<compile_context>
chip_gen: v7x
topology: tpu7x:2x2x1
jax: 0.10.0
libtpu: 0.0.40
codegen_flags: <defaults>
</compile_context>

<pallas_src>
import jax
import jax.numpy as jnp
from jax.experimental import pallas as pl
from jax.experimental.pallas import tpu as pltpu


def _round_up(x, m):
    return ((x + m - 1) // m) * m


def _make_attention_kernel(t_valid, t_pad, precision):
    """Kernel closed over static sequence lengths / matmul precision.

    Per-grid-step refs:
      enc_ref: (BB, T_pad, H_pad)   dec_ref: (BB, H_pad)
      w1_ref:  (H_pad, U)           w2_ref:  (H_pad, U)     v_ref: (1, U)
      di_ref:  (BB, H_pad) f32      uj_ref:  (BB, T_pad) f32
    """

    def kernel(enc_ref, dec_ref, w1_ref, w2_ref, v_ref, di_ref, uj_ref):
        bb, T, H = enc_ref.shape
        U = w1_ref.shape[1]

        e = enc_ref[...]                                   # (BB, T, H)
        # T_pad % 8 == 0 and H_pad % 128 == 0 (wrapper-guaranteed), so this
        # reshape is a layout view, not a VMEM repack.
        e_flat = e.reshape(bb * T, H)

        # Encoder projection: one big MXU matmul, M = BB * T_pad.
        u_enc = jnp.dot(e_flat, w1_ref[...],
                        preferred_element_type=jnp.float32, precision=precision)
        # Decoder projection batched over the whole block: M = BB.
        u_dec = jnp.dot(dec_ref[...], w2_ref[...],
                        preferred_element_type=jnp.float32, precision=precision)

        # tanh / softmax / weighted-sum in f32 (v5e VPU/EUP have no bf16).
        u = jnp.tanh(u_enc.reshape(bb, T, U) + u_dec[:, None, :])   # (BB, T, U)

        # V projection (N=1 matmul is the worst MXU shape) -> VPU mul + reduce.
        v_row = v_ref[...].astype(jnp.float32)                      # (1, U)
        scores = jnp.sum(u * v_row, axis=-1)                        # (BB, T)

        # Mask padded sequence positions so they get zero softmax weight.
        if t_pad != t_valid:
            col = jax.lax.broadcasted_iota(jnp.int32, (bb, T), 1)
            masked = jnp.where(col < t_valid, scores, jnp.float32(-1e30))
        else:
            masked = scores

        m = jnp.max(masked, axis=-1, keepdims=True)                 # (BB, 1)
        p = jnp.exp(masked - m)                                     # (BB, T)
        # Exact division: approx reciprocal perturbed di_prime beyond 1e-5.
        aj = p / jnp.sum(p, axis=-1, keepdims=True)                 # (BB, T)

        # Attention-weighted sum of encoder states, accumulated in f32.
        di = jnp.sum(aj[..., None] * e.astype(jnp.float32), axis=1)  # (BB, H)

        di_ref[...] = di
        uj_ref[...] = scores

    return kernel


def _vmem_budget_bytes():
    """Generation-aware VMEM budget (v7x: 64 MiB physical; v5e/v6e: 128 MiB)."""
    phys = 64 << 20                 # conservative fallback = v7x per-core VMEM
    try:
        phys = int(pltpu.get_tpu_info().vmem_capacity_bytes)
    except Exception:
        pass
    return int(phys * 0.75)         # headroom for compiler scratch


def _choose_block_b(B_pad, T_pad, H_pad, U, in_bytes, tile_budget_bytes):
    """Largest batch tile (multiple of 8) whose working set fits the budget."""

    def working_set(bb):
        enc = 2 * bb * T_pad * H_pad * in_bytes           # double-buffered enc input
        dec = 2 * bb * H_pad * in_bytes                   # double-buffered dec input
        wts = 2 * (2 * H_pad * U + U) * in_bytes          # w1, w2, v (default 2 buffers)
        outs = 2 * bb * (H_pad + T_pad) * 4               # di + uj output blocks
        inter = bb * T_pad * (2 * U + 4) * 4              # u_enc, u, scores/aj temps
        wsum = bb * T_pad * H_pad * 4                     # f32 aj*enc product temp
        return enc + dec + wts + outs + inter + wsum

    bb = 8
    while bb + 8 <= B_pad and working_set(bb + 8) <= tile_budget_bytes:
        bb += 8
    # Keep at least two grid steps when the batch allows it so the "parallel"
    # batch axis can be sharded across both v7x TensorCores.
    if B_pad >= 16:
        bb = min(bb, max(8, (B_pad // 2) // 8 * 8))
    return bb


def attention_forward(encoder_out, decoder_hidden, w1, w2, v,
                      block_b=None, matmul_dtype=jnp.float32):
    """encoder_out: (B, T, H); decoder_hidden: (B, H);
       w1, w2: (H, U) (= PyTorch W?.weight.T); v: (U, 1) (= V.weight.T).
       Returns (di_prime (B, H) f32, uj (B, T) f32)."""
    B, T, H = encoder_out.shape
    U = w1.shape[1]

    # Lane-dense padding: last dims of both outputs (H for di, T for uj) padded
    # to multiples of 128 so stores lower to unmasked `vst`, and T_pad % 8 == 0
    # keeps the in-kernel reshapes as views.
    T_pad = _round_up(T, 128)
    H_pad = _round_up(H, 128)

    in_dtype = jax.dtypes.canonicalize_dtype(matmul_dtype)
    in_bytes = in_dtype.itemsize
    # Full-f32 matmul accuracy when inputs are f32 (matches PyTorch semantics);
    # bf16 inputs already run at the MXU's native rate.
    precision = (jax.lax.Precision.HIGHEST if in_dtype == jnp.float32
                 else jax.lax.Precision.DEFAULT)

    vmem_budget = _vmem_budget_bytes()
    if block_b is None:
        block_b = _choose_block_b(_round_up(B, 8), T_pad, H_pad, U, in_bytes,
                                  int(vmem_budget * 0.85))
    bb = int(block_b)
    B_pad = _round_up(B, bb)

    enc = jnp.pad(encoder_out, ((0, B_pad - B), (0, T_pad - T), (0, H_pad - H)))
    dec = jnp.pad(decoder_hidden, ((0, B_pad - B), (0, H_pad - H)))
    w1p = jnp.pad(w1, ((0, H_pad - H), (0, 0)))
    w2p = jnp.pad(w2, ((0, H_pad - H), (0, 0)))
    v_row = v.reshape(1, U)

    # bf16 inputs halve HBM bytes of the (memory-bound) encoder stream; the
    # accumulation stays f32 via preferred_element_type.
    enc = enc.astype(in_dtype)
    dec = dec.astype(in_dtype)
    w1p = w1p.astype(in_dtype)
    w2p = w2p.astype(in_dtype)
    v_row = v_row.astype(in_dtype)

    kernel = _make_attention_kernel(T, T_pad, precision)
    grid = (B_pad // bb,)

    # NOTE: w1/w2/v have constant index_maps so they are fetched once; on jax
    # versions supporting BlockSpec(..., pipeline_mode=pl.Buffered(1)) they can
    # also be single-buffered to free 2*(H_pad*U*itemsize) bytes of VMEM.
    di, uj = pl.pallas_call(
        kernel,
        out_shape=(
            jax.ShapeDtypeStruct((B_pad, H_pad), jnp.float32),
            jax.ShapeDtypeStruct((B_pad, T_pad), jnp.float32),
        ),
        grid=grid,
        in_specs=[
            pl.BlockSpec((bb, T_pad, H_pad), lambda i: (i, 0, 0)),  # encoder block
            pl.BlockSpec((bb, H_pad), lambda i: (i, 0)),            # decoder block
            pl.BlockSpec((H_pad, U), lambda i: (0, 0)),             # W1^T (resident)
            pl.BlockSpec((H_pad, U), lambda i: (0, 0)),             # W2^T (resident)
            pl.BlockSpec((1, U), lambda i: (0, 0)),                 # V^T as a row
        ],
        out_specs=(
            pl.BlockSpec((bb, H_pad), lambda i: (i, 0)),
            pl.BlockSpec((bb, T_pad), lambda i: (i, 0)),
        ),
        compiler_params=pltpu.CompilerParams(
            dimension_semantics=("parallel",),
            vmem_limit_bytes=vmem_budget,
        ),
    )(enc, dec, w1p, w2p, v_row)

    return di[:B, :H], uj[:B, :T]


def _reference(encoder_out, decoder_hidden, w1, w2, v):
    hp = jax.lax.Precision.HIGHEST
    uj = jnp.tanh(jnp.matmul(encoder_out, w1, precision=hp)
                  + jnp.matmul(decoder_hidden, w2, precision=hp)[:, None, :])
    uj = jnp.matmul(uj, v, precision=hp)          # (B, T, 1)
    aj = jax.nn.softmax(uj, axis=1)
    di = jnp.sum(aj * encoder_out, axis=1)
    return di, uj[..., 0]


if __name__ == "__main__":
    B, T, H, U = 2, 8, 32, 16   # batch, seq, hidden_size, units

    key = jax.random.PRNGKey(0)
    k_enc, k_dec, k_w1, k_w2, k_v = jax.random.split(key, 5)

    encoder_out = jax.random.normal(k_enc, (B, T, H), dtype=jnp.float32)
    decoder_hidden = jax.random.normal(k_dec, (B, H), dtype=jnp.float32)

    # Deterministic nn.Linear(..., bias=False) weights, stored transposed.
    bound1 = 1.0 / jnp.sqrt(H)
    bound2 = 1.0 / jnp.sqrt(U)
    w1 = jax.random.uniform(k_w1, (H, U), jnp.float32, -bound1, bound1)  # W1.weight.T
    w2 = jax.random.uniform(k_w2, (H, U), jnp.float32, -bound1, bound1)  # W2.weight.T
    v = jax.random.uniform(k_v, (U, 1), jnp.float32, -bound2, bound2)    # V.weight.T

    di_ref, uj_ref = _reference(encoder_out, decoder_hidden, w1, w2, v)

    # Exact (f32) path.
    di_prime, uj = attention_forward(encoder_out, decoder_hidden, w1, w2, v)
    jax.block_until_ready((di_prime, uj))
    assert di_prime.shape == (B, H) and uj.shape == (B, T)
    assert jnp.allclose(di_prime, di_ref, atol=1e-5, rtol=1e-5)
    assert jnp.allclose(uj, uj_ref, atol=1e-5, rtol=1e-5)

    # bf16-matmul path (halves encoder HBM bytes on v5e/v6e); looser tolerance
    # because the inputs are quantized to bfloat16.
    di_bf16, uj_bf16 = attention_forward(encoder_out, decoder_hidden, w1, w2, v,
                                         matmul_dtype=jnp.bfloat16)
    jax.block_until_ready((di_bf16, uj_bf16))
    assert jnp.allclose(di_bf16, di_ref, atol=5e-2, rtol=5e-2)
    assert jnp.allclose(uj_bf16, uj_ref, atol=5e-2, rtol=5e-2)

    print("KERNEL_OK")
</pallas_src>

<mosaic_0001>
module attributes {stable_mosaic.version = 11 : i64} {
  func.func @kernel(%arg0: i32, %arg1: memref<8x128x128xf32, #tpu.memory_space<vmem>>, %arg2: memref<8x128xf32, #tpu.memory_space<vmem>>, %arg3: memref<128x16xf32, #tpu.memory_space<vmem>>, %arg4: memref<128x16xf32, #tpu.memory_space<vmem>>, %arg5: memref<1x16xf32, #tpu.memory_space<vmem>>, %arg6: memref<8x128xf32, #tpu.memory_space<vmem>>, %arg7: memref<8x128xf32, #tpu.memory_space<vmem>>) attributes {dimension_semantics = [#tpu.dimension_semantics<parallel>], iteration_bounds = array<i64: 1>, scalar_prefetch = 0 : i64, scratch_operands = 0 : i64, tpu.core_type = #tpu.core_type<tc>, window_params = [{transform_indices = @transform_0, window_bounds = array<i64: 8, 128, 128>}, {transform_indices = @transform_1, window_bounds = array<i64: 8, 128>}, {pipeline_mode = #tpu.pipeline_mode<synchronous>, transform_indices = @transform_2, window_bounds = array<i64: 128, 16>}, {pipeline_mode = #tpu.pipeline_mode<synchronous>, transform_indices = @transform_3, window_bounds = array<i64: 128, 16>}, {pipeline_mode = #tpu.pipeline_mode<synchronous>, transform_indices = @transform_4, window_bounds = array<i64: 1, 16>}, {transform_indices = @transform_5, window_bounds = array<i64: 8, 128>}, {transform_indices = @transform_6, window_bounds = array<i64: 8, 128>}]} {
    %c0 = arith.constant 0 : index
    %c0_0 = arith.constant 0 : index
    %c0_1 = arith.constant 0 : index
    %0 = vector.load %arg1[%c0, %c0_0, %c0_1] : memref<8x128x128xf32, #tpu.memory_space<vmem>>, vector<8x128x128xf32>
    %1 = vector.shape_cast %0 : vector<8x128x128xf32> to vector<1024x128xf32>
    %c0_2 = arith.constant 0 : index
    %c0_3 = arith.constant 0 : index
    %2 = vector.load %arg3[%c0_2, %c0_3] : memref<128x16xf32, #tpu.memory_space<vmem>>, vector<128x16xf32>
    %cst = arith.constant dense<0.000000e+00> : vector<1024x16xf32>
    %3 = tpu.matmul %1, %2, %cst {dimension_numbers = #tpu.dot_dimension_numbers<[1], [0], [0], [1], [0, 0, 1, 1], [], []>, precision = #tpu.contract_precision<fp32>} : vector<1024x128xf32>, vector<128x16xf32>, vector<1024x16xf32> -> vector<1024x16xf32>
    %c0_4 = arith.constant 0 : index
    %c0_5 = arith.constant 0 : index
    %4 = vector.load %arg2[%c0_4, %c0_5] : memref<8x128xf32, #tpu.memory_space<vmem>>, vector<8x128xf32>
    %c0_6 = arith.constant 0 : index
    %c0_7 = arith.constant 0 : index
    %5 = vector.load %arg4[%c0_6, %c0_7] : memref<128x16xf32, #tpu.memory_space<vmem>>, vector<128x16xf32>
    %cst_8 = arith.constant dense<0.000000e+00> : vector<8x16xf32>
    %6 = tpu.matmul %4, %5, %cst_8 {dimension_numbers = #tpu.dot_dimension_numbers<[1], [0], [0], [1], [0, 0, 1, 1], [], []>, precision = #tpu.contract_precision<fp32>} : vector<8x128xf32>, vector<128x16xf32>, vector<8x16xf32> -> vector<8x16xf32>
    %7 = vector.shape_cast %3 : vector<1024x16xf32> to vector<8x128x16xf32>
    %8 = vector.shape_cast %6 : vector<8x16xf32> to vector<8x1x16xf32>
    %9 = vector.broadcast %8 : vector<8x1x16xf32> to vector<8x128x16xf32>
    %10 = arith.addf %7, %9 : vector<8x128x16xf32>
    %11 = math.tanh %10 : vector<8x128x16xf32>
    %c0_9 = arith.constant 0 : index
    %c0_10 = arith.constant 0 : index
    %12 = vector.load %arg5[%c0_9, %c0_10] : memref<1x16xf32, #tpu.memory_space<vmem>>, vector<1x16xf32>
    %13 = vector.shape_cast %12 : vector<1x16xf32> to vector<1x1x16xf32>
    %14 = vector.broadcast %13 : vector<1x1x16xf32> to vector<8x128x16xf32>
    %15 = arith.mulf %11, %14 : vector<8x128x16xf32>
    %cst_11 = arith.constant dense<0.000000e+00> : vector<8x128xf32>
    %16 = vector.multi_reduction <add>, %15, %cst_11 [2] : vector<8x128x16xf32> to vector<8x128xf32>
    %17 = tpu.iota {dimensions = array<i32: 1>} : vector<8x128xi32>
    %c8_i32 = arith.constant 8 : i32
    %18 = vector.broadcast %c8_i32 : i32 to vector<8x128xi32>
    %19 = arith.cmpi slt, %17, %18 : vector<8x128xi32>
    %cst_12 = arith.constant -1.000000e+30 : f32
    %20 = vector.broadcast %cst_12 : f32 to vector<8x128xf32>
    %21 = arith.select %19, %16, %20 : vector<8x128xi1>, vector<8x128xf32>
    %cst_13 = arith.constant dense<0xFF800000> : vector<8xf32>
    %22 = vector.multi_reduction <maximumf>, %21, %cst_13 [1] : vector<8x128xf32> to vector<8xf32>
    %23 = vector.shape_cast %22 : vector<8xf32> to vector<8x1xf32>
    %24 = vector.broadcast %23 : vector<8x1xf32> to vector<8x128xf32>
    %25 = arith.subf %21, %24 : vector<8x128xf32>
    %26 = math.exp %25 : vector<8x128xf32>
    %cst_14 = arith.constant dense<0.000000e+00> : vector<8xf32>
    %27 = vector.multi_reduction <add>, %26, %cst_14 [1] : vector<8x128xf32> to vector<8xf32>
    %28 = vector.shape_cast %27 : vector<8xf32> to vector<8x1xf32>
    %29 = vector.broadcast %28 : vector<8x1xf32> to vector<8x128xf32>
    %30 = arith.divf %26, %29 : vector<8x128xf32>
    %31 = vector.shape_cast %30 : vector<8x128xf32> to vector<8x128x1xf32>
    %32 = vector.broadcast %31 : vector<8x128x1xf32> to vector<8x128x128xf32>
    %33 = arith.mulf %32, %0 : vector<8x128x128xf32>
    %cst_15 = arith.constant dense<0.000000e+00> : vector<8x128xf32>
    %34 = vector.multi_reduction <add>, %33, %cst_15 [1] : vector<8x128x128xf32> to vector<8x128xf32>
    %c0_16 = arith.constant 0 : index
    %c0_17 = arith.constant 0 : index
    %35 = vector.load %arg6[%c0_16, %c0_17] : memref<8x128xf32, #tpu.memory_space<vmem>>, vector<8x128xf32>
    tpu.vector_store %arg6[%c0_16, %c0_17], %34 {strides = array<i32>} : memref<8x128xf32, #tpu.memory_space<vmem>>, vector<8x128xf32>,
    %c0_18 = arith.constant 0 : index
    %c0_19 = arith.constant 0 : index
    %36 = vector.load %arg7[%c0_18, %c0_19] : memref<8x128xf32, #tpu.memory_space<vmem>>, vector<8x128xf32>
    tpu.vector_store %arg7[%c0_18, %c0_19], %16 {strides = array<i32>} : memref<8x128xf32, #tpu.memory_space<vmem>>, vector<8x128xf32>,
    return
  }
  func.func @transform_0(%arg0: i32) -> (i32, i32, i32) {
    %c0_i32 = arith.constant 0 : i32
    %c0_i32_0 = arith.constant 0 : i32
    %c0_i32_1 = arith.constant 0 : i32
    return %arg0, %c0_i32, %c0_i32_0 : i32, i32, i32
  }
  func.func @transform_1(%arg0: i32) -> (i32, i32) {
    %c0_i32 = arith.constant 0 : i32
    %c0_i32_0 = arith.constant 0 : i32
    return %arg0, %c0_i32 : i32, i32
  }
  func.func @transform_2(%arg0: i32) -> (i32, i32) {
    %c0_i32 = arith.constant 0 : i32
    %c0_i32_0 = arith.constant 0 : i32
    %c0_i32_1 = arith.constant 0 : i32
    return %c0_i32, %c0_i32_0 : i32, i32
  }
  func.func @transform_3(%arg0: i32) -> (i32, i32) {
    %c0_i32 = arith.constant 0 : i32
    %c0_i32_0 = arith.constant 0 : i32
    %c0_i32_1 = arith.constant 0 : i32
    return %c0_i32, %c0_i32_0 : i32, i32
  }
  func.func @transform_4(%arg0: i32) -> (i32, i32) {
    %c0_i32 = arith.constant 0 : i32
    %c0_i32_0 = arith.constant 0 : i32
    %c0_i32_1 = arith.constant 0 : i32
    return %c0_i32, %c0_i32_0 : i32, i32
  }
  func.func @transform_5(%arg0: i32) -> (i32, i32) {
    %c0_i32 = arith.constant 0 : i32
    %c0_i32_0 = arith.constant 0 : i32
    return %arg0, %c0_i32 : i32, i32
  }
  func.func @transform_6(%arg0: i32) -> (i32, i32) {
    %c0_i32 = arith.constant 0 : i32
    %c0_i32_0 = arith.constant 0 : i32
    return %arg0, %c0_i32 : i32, i32
  }
}

</mosaic_0001>

<llo_original>
// kernel: tpu_custom_call.1
$region0: #{tpu_custom_call.1}
  #allocation0 [shape = 'u32[]', space=smem, size = 0x4, offset = 0x4, fixed_abs, tag = 'smem constant byte address 0x4 - core index']
  #allocation1 [shape = 'u32[144,128]{1,0:T(1,128)}', space=vmem, size = 0x12000, scoped, tag = 'internal scratch']
  %s0 = inlined_call_operand.hbm [shape: f32[8,128,128], index: 0, kind: input, shape index: {}]
  %s1 = inlined_call_operand.vmem [shape: f32[8,128], index: 1, kind: input, shape index: {}]
  %s2 = inlined_call_operand.vmem [shape: f32[128,16], index: 2, kind: input, shape index: {}]
  %s3 = inlined_call_operand.vmem [shape: f32[128,16], index: 3, kind: input, shape index: {}]
  %s4 = inlined_call_operand.vmem [shape: f32[1,16], index: 4, kind: input, shape index: {}]
  %s5 = inlined_call_operand.hbm [shape: f32[8,128], index: 5, kind: output, shape index: {0}]
  %s6 = inlined_call_operand.hbm [shape: f32[8,128], index: 6, kind: output, shape index: {1}]
  %7 = xla_tuple %s5, %s6
  %s8 = sld [smem:[#allocation0]]
  $region42: #{tpu_custom_call.1} parent=0
    _
  %s10 = ssub.s32 1, %s8
  %s11 = scalar_select 0, %s10, %s8
  $region1: #{tpu_custom_call.1} parent=0
    #allocation2 [shape = 'u8[524288]{0}', space=vmem, size = 0x80000, scoped, tag = 'input window, operand 0, single buffered']
    #allocation3 [shape = 's32[1]{0}', space=sflag, size = 0x4, scoped, tag = 'scoped memory for tpu_custom_call.1']
    #allocation4 [shape = 's32[1]{0}', space=sflag, size = 0x4, scoped, tag = 'scoped memory for tpu_custom_call.1']
    #allocation5 [shape = 'u8[4096]{0}', space=vmem, size = 0x1000, scoped, tag = 'output window, operand 0, single buffered']
    #allocation6 [shape = 'u8[4096]{0}', space=vmem, size = 0x1000, scoped, tag = 'output window, operand 1, single buffered']
    #allocation7 [shape = 's32[1]{0}', space=sflag, size = 0x4, scoped, tag = 'scoped memory for tpu_custom_call.1']
    %12 = vsyncpa [#allocation3], 0
    %13 = vsyncpa [#allocation4], 0
    %14 = vsyncpa [#allocation7], 0
    // Predicated region
    $region2: #{tpu_custom_call.1} parent=1 // pred_check
      _
    $region3: #{tpu_custom_call.1} parent=1 // pred_check_branch
      %16 = sbr.rel (0) target = $region5
    $region4: #{tpu_custom_call.1} parent=1 // pred_region
      %s18 = ssub.s32 16384, 16384
      %19 = vsyncadd [#allocation3], %s18
      %s20 = sshll.u32 [#allocation2], 4
      %s21 = int_to_ptr.vmem [resolvable:$true] %s20
      %26 = dma.hbm_to_vmem [thread:$0]  %s0, 16384, %s21, [#allocation3], 128, 128, 8
    $region5: #{tpu_custom_call.1} parent=1 // pred_fallthru
      _
    // Predicated region
    $region6: #{tpu_custom_call.1} parent=1 // pred_check
      _
    $region7: #{tpu_custom_call.1} parent=1 // pred_check_branch
      %28 = sbr.rel (0) target = $region9
    $region8: #{tpu_custom_call.1} parent=1 // pred_region
      _
    $region9: #{tpu_custom_call.1} parent=1 // pred_fallthru
      _
    // Predicated region
    $region10: #{tpu_custom_call.1} parent=1 // pred_check
      _
    $region11: #{tpu_custom_call.1} parent=1 // pred_check_branch
      %30 = sbr.rel (0) target = $region13
    $region12: #{tpu_custom_call.1} parent=1 // pred_region
      _
    $region13: #{tpu_custom_call.1} parent=1 // pred_fallthru
      _
    // Predicated region
    $region14: #{tpu_custom_call.1} parent=1 // pred_check
      _
    $region15: #{tpu_custom_call.1} parent=1 // pred_check_branch
      %32 = sbr.rel (0) target = $region17
    $region16: #{tpu_custom_call.1} parent=1 // pred_region
      _
    $region17: #{tpu_custom_call.1} parent=1 // pred_fallthru
      _
    // Predicated region
    $region18: #{tpu_custom_call.1} parent=1 // pred_check
      _
    $region19: #{tpu_custom_call.1} parent=1 // pred_check_branch
      %34 = sbr.rel (0) target = $region21
    $region20: #{tpu_custom_call.1} parent=1 // pred_region
      _
    $region21: #{tpu_custom_call.1} parent=1 // pred_fallthru
      _
    // Predicated region
    $region22: #{tpu_custom_call.1} parent=1 // pred_check
      _
    $region23: #{tpu_custom_call.1} parent=1 // pred_check_branch
      %36 = sbr.rel (0) target = $region25
    $region24: #{tpu_custom_call.1} parent=1 // pred_region
      %37 = dma.done [#allocation3], 16384
    $region25: #{tpu_custom_call.1} parent=1 // pred_fallthru
      _
    %v38 = vld [vmem:[#allocation2] sm:$0xff]
    %v39 = vld [vmem:[#allocation2 + $0x8] sm:$0xff]
    %v40 = vld [vmem:[#allocation2 + $0x10] sm:$0xff]
    %v41 = vld [vmem:[#allocation2 + $0x18] sm:$0xff]
    %v42 = vld [vmem:[#allocation2 + $0x20] sm:$0xff]
    %v43 = vld [vmem:[#allocation2 + $0x28] sm:$0xff]
    %v44 = vld [vmem:[#allocation2 + $0x30] sm:$0xff]
    %v45 = vld [vmem:[#allocation2 + $0x38] sm:$0xff]
    %v46 = vld [vmem:[#allocation2 + $0x40] sm:$0xff]
    %v47 = vld [vmem:[#allocation2 + $0x48] sm:$0xff]
    %v48 = vld [vmem:[#allocation2 + $0x50] sm:$0xff]
    %v49 = vld [vmem:[#allocation2 + $0x58] sm:$0xff]
    %v50 = vld [vmem:[#allocation2 + $0x60] sm:$0xff]
    %v51 = vld [vmem:[#allocation2 + $0x68] sm:$0xff]
    %v52 = vld [vmem:[#allocation2 + $0x70] sm:$0xff]
    %v53 = vld [vmem:[#allocation2 + $0x78] sm:$0xff]
    %v54 = vld [vmem:[#allocation2 + $0x80] sm:$0xff]
    %v55 = vld [vmem:[#allocation2 + $0x88] sm:$0xff]
    %v56 = vld [vmem:[#allocation2 + $0x90] sm:$0xff]
    %v57 = vld [vmem:[#allocation2 + $0x98] sm:$0xff]
    %v58 = vld [vmem:[#allocation2 + $0xa0] sm:$0xff]
    %v59 = vld [vmem:[#allocation2 + $0xa8] sm:$0xff]
    %v60 = vld [vmem:[#allocation2 + $0xb0] sm:$0xff]
    %v61 = vld [vmem:[#allocation2 + $0xb8] sm:$0xff]
    %v62 = vld [vmem:[#allocation2 + $0xc0] sm:$0xff]
    %v63 = vld [vmem:[#allocation2 + $0xc8] sm:$0xff]
    %v64 = vld [vmem:[#allocation2 + $0xd0] sm:$0xff]
    %v65 = vld [vmem:[#allocation2 + $0xd8] sm:$0xff]
    %v66 = vld [vmem:[#allocation2 + $0xe0] sm:$0xff]
    %v67 = vld [vmem:[#allocation2 + $0xe8] sm:$0xff]
    %v68 = vld [vmem:[#allocation2 + $0xf0] sm:$0xff]
    %v69 = vld [vmem:[#allocation2 + $0xf8] sm:$0xff]
    %v70 = vld [vmem:[#allocation2 + $0x100] sm:$0xff]
    %v71 = vld [vmem:[#allocation2 + $0x108] sm:$0xff]
    %v72 = vld [vmem:[#allocation2 + $0x110] sm:$0xff]
    %v73 = vld [vmem:[#allocation2 + $0x118] sm:$0xff]
    %v74 = vld [vmem:[#allocation2 + $0x120] sm:$0xff]
    %v75 = vld [vmem:[#allocation2 + $0x128] sm:$0xff]
    %v76 = vld [vmem:[#allocation2 + $0x130] sm:$0xff]
    %v77 = vld [vmem:[#allocation2 + $0x138] sm:$0xff]
    %v78 = vld [vmem:[#allocation2 + $0x140] sm:$0xff]
    %v79 = vld [vmem:[#allocation2 + $0x148] sm:$0xff]
    %v80 = vld [vmem:[#allocation2 + $0x150] sm:$0xff]
    %v81 = vld [vmem:[#allocation2 + $0x158] sm:$0xff]
    %v82 = vld [vmem:[#allocation2 + $0x160] sm:$0xff]
    %v83 = vld [vmem:[#allocation2 + $0x168] sm:$0xff]
    %v84 = vld [vmem:[#allocation2 + $0x170] sm:$0xff]
    %v85 = vld [vmem:[#allocation2 + $0x178] sm:$0xff]
    %v86 = vld [vmem:[#allocation2 + $0x180] sm:$0xff]
    %v87 = vld [vmem:[#allocation2 + $0x188] sm:$0xff]
    %v88 = vld [vmem:[#allocation2 + $0x190] sm:$0xff]
    %v89 = vld [vmem:[#allocation2 + $0x198] sm:$0xff]
    %v90 = vld [vmem:[#allocation2 + $0x1a0] sm:$0xff]
    %v91 = vld [vmem:[#allocation2 + $0x1a8] sm:$0xff]
    %v92 = vld [vmem:[#allocation2 + $0x1b0] sm:$0xff]
    %v93 = vld [vmem:[#allocation2 + $0x1b8] sm:$0xff]
    %v94 = vld [vmem:[#allocation2 + $0x1c0] sm:$0xff]
    %v95 = vld [vmem:[#allocation2 + $0x1c8] sm:$0xff]
    %v96 = vld [vmem:[#allocation2 + $0x1d0] sm:$0xff]
    %v97 = vld [vmem:[#allocation2 + $0x1d8] sm:$0xff]
    %v98 = vld [vmem:[#allocation2 + $0x1e0] sm:$0xff]
    %v99 = vld [vmem:[#allocation2 + $0x1e8] sm:$0xff]
    %v100 = vld [vmem:[#allocation2 + $0x1f0] sm:$0xff]
    %v101 = vld [vmem:[#allocation2 + $0x1f8] sm:$0xff]
    %v102 = vld [vmem:[#allocation2 + $0x200] sm:$0xff]
    %v103 = vld [vmem:[#allocation2 + $0x208] sm:$0xff]
    %v104 = vld [vmem:[#allocation2 + $0x210] sm:$0xff]
    %v105 = vld [vmem:[#allocation2 + $0x218] sm:$0xff]
    %v106 = vld [vmem:[#allocation2 + $0x220] sm:$0xff]
    %v107 = vld [vmem:[#allocation2 + $0x228] sm:$0xff]
    %v108 = vld [vmem:[#allocation2 + $0x230] sm:$0xff]
    %v109 = vld [vmem:[#allocation2 + $0x238] sm:$0xff]
    %v110 = vld [vmem:[#allocation2 + $0x240] sm:$0xff]
    %v111 = vld [vmem:[#allocation2 + $0x248] sm:$0xff]
    %v112 = vld [vmem:[#allocation2 + $0x250] sm:$0xff]
    %v113 = vld [vmem:[#allocation2 + $0x258] sm:$0xff]
    %v114 = vld [vmem:[#allocation2 + $0x260] sm:$0xff]
    %v115 = vld [vmem:[#allocation2 + $0x268] sm:$0xff]
    %v116 = vld [vmem:[#allocation2 + $0x270] sm:$0xff]
    %v117 = vld [vmem:[#allocation2 + $0x278] sm:$0xff]
    %v118 = vld [vmem:[#allocation2 + $0x280] sm:$0xff]
    %v119 = vld [vmem:[#allocation2 + $0x288] sm:$0xff]
    %v120 = vld [vmem:[#allocation2 + $0x290] sm:$0xff]
    %v121 = vld [vmem:[#allocation2 + $0x298] sm:$0xff]
    %v122 = vld [vmem:[#allocation2 + $0x2a0] sm:$0xff]
    %v123 = vld [vmem:[#allocation2 + $0x2a8] sm:$0xff]
    %v124 = vld [vmem:[#allocation2 + $0x2b0] sm:$0xff]
    %v125 = vld [vmem:[#allocation2 + $0x2b8] sm:$0xff]
    %v126 = vld [vmem:[#allocation2 + $0x2c0] sm:$0xff]
    %v127 = vld [vmem:[#allocation2 + $0x2c8] sm:$0xff]
    %v128 = vld [vmem:[#allocation2 + $0x2d0] sm:$0xff]
    %v129 = vld [vmem:[#allocation2 + $0x2d8] sm:$0xff]
    %v130 = vld [vmem:[#allocation2 + $0x2e0] sm:$0xff]
    %v131 = vld [vmem:[#allocation2 + $0x2e8] sm:$0xff]
    %v132 = vld [vmem:[#allocation2 + $0x2f0] sm:$0xff]
    %v133 = vld [vmem:[#allocation2 + $0x2f8] sm:$0xff]
    %v134 = vld [vmem:[#allocation2 + $0x300] sm:$0xff]
    %v135 = vld [vmem:[#allocation2 + $0x308] sm:$0xff]
    %v136 = vld [vmem:[#allocation2 + $0x310] sm:$0xff]
    %v137 = vld [vmem:[#allocation2 + $0x318] sm:$0xff]
    %v138 = vld [vmem:[#allocation2 + $0x320] sm:$0xff]
    %v139 = vld [vmem:[#allocation2 + $0x328] sm:$0xff]
    %v140 = vld [vmem:[#allocation2 + $0x330] sm:$0xff]
    %v141 = vld [vmem:[#allocation2 + $0x338] sm:$0xff]
    %v142 = vld [vmem:[#allocation2 + $0x340] sm:$0xff]
    %v143 = vld [vmem:[#allocation2 + $0x348] sm:$0xff]
    %v144 = vld [vmem:[#allocation2 + $0x350] sm:$0xff]
    %v145 = vld [vmem:[#allocation2 + $0x358] sm:$0xff]
    %v146 = vld [vmem:[#allocation2 + $0x360] sm:$0xff]
    %v147 = vld [vmem:[#allocation2 + $0x368] sm:$0xff]
    %v148 = vld [vmem:[#allocation2 + $0x370] sm:$0xff]
    %v149 = vld [vmem:[#allocation2 + $0x378] sm:$0xff]
    %v150 = vld [vmem:[#allocation2 + $0x380] sm:$0xff]
    %v151 = vld [vmem:[#allocation2 + $0x388] sm:$0xff]
    %v152 = vld [vmem:[#allocation2 + $0x390] sm:$0xff]
    %v153 = vld [vmem:[#allocation2 + $0x398] sm:$0xff]
    %v154 = vld [vmem:[#allocation2 + $0x3a0] sm:$0xff]
    %v155 = vld [vmem:[#allocation2 + $0x3a8] sm:$0xff]
    %v156 = vld [vmem:[#allocation2 + $0x3b0] sm:$0xff]
    %v157 = vld [vmem:[#allocation2 + $0x3b8] sm:$0xff]
    %v158 = vld [vmem:[#allocation2 + $0x3c0] sm:$0xff]
    %v159 = vld [vmem:[#allocation2 + $0x3c8] sm:$0xff]
    %v160 = vld [vmem:[#allocation2 + $0x3d0] sm:$0xff]
    %v161 = vld [vmem:[#allocation2 + $0x3d8] sm:$0xff]
    %v162 = vld [vmem:[#allocation2 + $0x3e0] sm:$0xff]
    %v163 = vld [vmem:[#allocation2 + $0x3e8] sm:$0xff]
    %v164 = vld [vmem:[#allocation2 + $0x3f0] sm:$0xff]
    %v165 = vld [vmem:[#allocation2 + $0x3f8] sm:$0xff]
    %v166 = vld [vmem:[%s2] sm:$0xff]
    %v167 = vld [vmem:[%s2 + $0x8] sm:$0xff]
    %v168 = vld [vmem:[%s2 + $0x10] sm:$0xff]
    %v169 = vld [vmem:[%s2 + $0x18] sm:$0xff]
    %v170 = vld [vmem:[%s2 + $0x20] sm:$0xff]
    %v171 = vld [vmem:[%s2 + $0x28] sm:$0xff]
    %v172 = vld [vmem:[%s2 + $0x30] sm:$0xff]
    %v173 = vld [vmem:[%s2 + $0x38] sm:$0xff]
    %v174 = vld [vmem:[%s2 + $0x40] sm:$0xff]
    %v175 = vld [vmem:[%s2 + $0x48] sm:$0xff]
    %v176 = vld [vmem:[%s2 + $0x50] sm:$0xff]
    %v177 = vld [vmem:[%s2 + $0x58] sm:$0xff]
    %v178 = vld [vmem:[%s2 + $0x60] sm:$0xff]
    %v179 = vld [vmem:[%s2 + $0x68] sm:$0xff]
    %v180 = vld [vmem:[%s2 + $0x70] sm:$0xff]
    %v181 = vld [vmem:[%s2 + $0x78] sm:$0xff]
    %182 = vmatprep.subr.mxu0 0.0
    %v183 = vand.u32 %v166, 4294901760
    %184 = vmatpush1.msra.mxu0 %v183
    %185 = vmatprep.subr.mxu0 0.0
    %v186 = vand.u32 %v167, 4294901760
    %187 = vmatpush1.msra.mxu0 %v186
    %188 = vmatprep.subr.mxu0 0.0
    %v189 = vand.u32 %v168, 4294901760
    %190 = vmatpush1.msra.mxu0 %v189
    %191 = vmatprep.subr.mxu0 0.0
    %v192 = vand.u32 %v169, 4294901760
    %193 = vmatpush1.msra.mxu0 %v192
    %194 = vmatprep.subr.mxu0 0.0
    %v195 = vand.u32 %v170, 4294901760
    %196 = vmatpush1.msra.mxu0 %v195
    %197 = vmatprep.subr.mxu0 0.0
    %v198 = vand.u32 %v171, 4294901760
    %199 = vmatpush1.msra.mxu0 %v198
    %200 = vmatprep.subr.mxu0 0.0
    %v201 = vand.u32 %v172, 4294901760
    %202 = vmatpush1.msra.mxu0 %v201
    %203 = vmatprep.subr.mxu0 0.0
    %v204 = vand.u32 %v173, 4294901760
    %205 = vmatpush1.msra.mxu0 %v204
    %206 = vmatprep.subr.mxu0 0.0
    %v207 = vand.u32 %v174, 4294901760
    %208 = vmatpush1.msra.mxu0 %v207
    %209 = vmatprep.subr.mxu0 0.0
    %v210 = vand.u32 %v175, 4294901760
    %211 = vmatpush1.msra.mxu0 %v210
    %212 = vmatprep.subr.mxu0 0.0
    %v213 = vand.u32 %v176, 4294901760
    %214 = vmatpush1.msra.mxu0 %v213
    %215 = vmatprep.subr.mxu0 0.0
    %v216 = vand.u32 %v177, 4294901760
    %217 = vmatpush1.msra.mxu0 %v216
    %218 = vmatprep.subr.mxu0 0.0
    %v219 = vand.u32 %v178, 4294901760
    %220 = vmatpush1.msra.mxu0 %v219
    %221 = vmatprep.subr.mxu0 0.0
    %v222 = vand.u32 %v179, 4294901760
    %223 = vmatpush1.msra.mxu0 %v222
    %224 = vmatprep.subr.mxu0 0.0
    %v225 = vand.u32 %v180, 4294901760
    %226 = vmatpush1.msra.mxu0 %v225
    %227 = vmatprep.subr.mxu0 0.0
    %v228 = vand.u32 %v181, 4294901760
    %229 = vmatpush1.msra.mxu0 %v228
    %230 = vmatprep.subr.mxu0 0.0
    %231 = vmatpush1.msra.mxu0 0.0
    %232 = vmatprep.subr.mxu0 0.0
    %233 = vmatpush1.msra.mxu0 0.0
    %234 = vmatprep.subr.mxu0 0.0
    %235 = vmatpush1.msra.mxu0 0.0
    %236 = vmatprep.subr.mxu0 0.0
    %237 = vmatpush1.msra.mxu0 0.0
    %238 = vmatprep.subr.mxu0 0.0
    %239 = vmatpush1.msra.mxu0 0.0
    %240 = vmatprep.subr.mxu0 0.0
    %241 = vmatpush1.msra.mxu0 0.0
    %242 = vmatprep.subr.mxu0 0.0
    %243 = vmatpush1.msra.mxu0 0.0
    %244 = vmatprep.subr.mxu0 0.0
    %245 = vmatpush1.msra.mxu0 0.0
    %246 = vmatprep.subr.mxu0 0.0
    %247 = vmatpush1.msra.mxu0 0.0
    %248 = vmatprep.subr.mxu0 0.0
    %249 = vmatpush1.msra.mxu0 0.0
    %250 = vmatprep.subr.mxu0 0.0
    %251 = vmatpush1.msra.mxu0 0.0
    %252 = vmatprep.subr.mxu0 0.0
    %253 = vmatpush1.msra.mxu0 0.0
    %254 = vmatprep.subr.mxu0 0.0
    %255 = vmatpush1.msra.mxu0 0.0
    %256 = vmatprep.subr.mxu0 0.0
    %257 = vmatpush1.msra.mxu0 0.0
    %258 = vmatprep.subr.mxu0 0.0
    %259 = vmatpush1.msra.mxu0 0.0
    %260 = vmatprep.subr.mxu0 0.0
    %261 = vmatpush1.msra.mxu0 0.0
    %262 = vmatprep.mubr.f32.mxu0 0.0
    %v263 = vand.u32 %v38, 4294901760
    %v264 = vsub.f32 %v38, %v263
    %v265 = vand.u32 %v264, 4294901760
    %v266 = vsub.f32 %v264, %v265
    %v267 = vand.u32 %v266, 4294901760
    %268 = vmatmul.mubr.f32.gmra.mrb[0].mxu0 %v267
    %v269 = vpop.f32.mrb[0].mxu0
    %v270 = vadd.f32 0.0, %v269
    %v271 = vpop.f32.mrb[0].mxu0
    %272 = vmatprep.mubr.f32.mxu0 0.0
    %v273 = vand.u32 %v39, 4294901760
    %v274 = vsub.f32 %v39, %v273
    %v275 = vand.u32 %v274, 4294901760
    %v276 = vsub.f32 %v274, %v275
    %v277 = vand.u32 %v276, 4294901760
    %278 = vmatmul.mubr.f32.gmra.mrb[0].mxu0 %v277
    %v279 = vpop.f32.mrb[0].mxu0
    %v280 = vadd.f32 0.0, %v279
    %v281 = vpop.f32.mrb[0].mxu0
    %282 = vmatprep.mubr.f32.mxu0 0.0
    %v283 = vand.u32 %v40, 4294901760
    %v284 = vsub.f32 %v40, %v283
    %v285 = vand.u32 %v284, 4294901760
    %v286 = vsub.f32 %v284, %v285
    %v287 = vand.u32 %v286, 4294901760
    %288 = vmatmul.mubr.f32.gmra.mrb[0].mxu0 %v287
    %v289 = vpop.f32.mrb[0].mxu0
    %v290 = vadd.f32 0.0, %v289
    %v291 = vpop.f32.mrb[0].mxu0
    %292 = vmatprep.mubr.f32.mxu0 0.0
    %v293 = vand.u32 %v41, 4294901760
    %v294 = vsub.f32 %v41, %v293
    %v295 = vand.u32 %v294, 4294901760
    %v296 = vsub.f32 %v294, %v295
    %v297 = vand.u32 %v296, 4294901760
    %298 = vmatmul.mubr.f32.gmra.mrb[0].mxu0 %v297
    %v299 = vpop.f32.mrb[0].mxu0
    %v300 = vadd.f32 0.0, %v299
    %v301 = vpop.f32.mrb[0].mxu0
    %302 = vmatprep.mubr.f32.mxu0 0.0
    %v303 = vand.u32 %v42, 4294901760
    %v304 = vsub.f32 %v42, %v303
    %v305 = vand.u32 %v304, 4294901760
    %v306 = vsub.f32 %v304, %v305
    %v307 = vand.u32 %v306, 4294901760
    %308 = vmatmul.mubr.f32.gmra.mrb[0].mxu0 %v307
    %v309 = vpop.f32.mrb[0].mxu0
    %v310 = vadd.f32 0.0, %v309
    %v311 = vpop.f32.mrb[0].mxu0
    %312 = vmatprep.mubr.f32.mxu0 0.0
    %v313 = vand.u32 %v43, 4294901760
    %v314 = vsub.f32 %v43, %v313
    %v315 = vand.u32 %v314, 4294901760
    %v316 = vsub.f32 %v314, %v315
    %v317 = vand.u32 %v316, 4294901760
    %318 = vmatmul.mubr.f32.gmra.mrb[0].mxu0 %v317
    %v319 = vpop.f32.mrb[0].mxu0
    %v320 = vadd.f32 0.0, %v319
    %v321 = vpop.f32.mrb[0].mxu0
    %322 = vmatprep.mubr.f32.mxu0 0.0
    %v323 = vand.u32 %v44, 4294901760
    %v324 = vsub.f32 %v44, %v323
    %v325 = vand.u32 %v324, 4294901760
    %v326 = vsub.f32 %v324, %v325
    %v327 = vand.u32 %v326, 4294901760
    %328 = vmatmul.mubr.f32.gmra.mrb[0].mxu0 %v327
    %v329 = vpop.f32.mrb[0].mxu0
    %v330 = vadd.f32 0.0, %v329
    %v331 = vpop.f32.mrb[0].mxu0
    %332 = vmatprep.mubr.f32.mxu0 0.0
    %v333 = vand.u32 %v45, 4294901760
    %v334 = vsub.f32 %v45, %v333
    %v335 = vand.u32 %v334, 4294901760
    %v336 = vsub.f32 %v334, %v335
    %v337 = vand.u32 %v336, 4294901760
    %338 = vmatmul.mubr.f32.gmra.mrb[0].mxu0 %v337
    %v339 = vpop.f32.mrb[0].mxu0
    %v340 = vadd.f32 0.0, %v339
    %v341 = vpop.f32.mrb[0].mxu0
    %342 = vmatprep.mubr.f32.mxu0 0.0
    %v343 = vand.u32 %v46, 4294901760
    %v344 = vsub.f32 %v46, %v343
    %v345 = vand.u32 %v344, 4294901760
    %v346 = vsub.f32 %v344, %v345
    %v347 = vand.u32 %v346, 4294901760
    %348 = vmatmul.mubr.f32.gmra.mrb[0].mxu0 %v347
    %v349 = vpop.f32.mrb[0].mxu0
    %v350 = vadd.f32 0.0, %v349
    %v351 = vpop.f32.mrb[0].mxu0
    %352 = vmatprep.mubr.f32.mxu0 0.0
    %v353 = vand.u32 %v47, 4294901760
    %v354 = vsub.f32 %v47, %v353
    %v355 = vand.u32 %v354, 4294901760
    %v356 = vsub.f32 %v354, %v355
    %v357 = vand.u32 %v356, 4294901760
    %358 = vmatmul.mubr.f32.gmra.mrb[0].mxu0 %v357
    %v359 = vpop.f32.mrb[0].mxu0
    %v360 = vadd.f32 0.0, %v359
    %v361 = vpop.f32.mrb[0].mxu0
    %362 = vmatprep.mubr.f32.mxu0 0.0
    %v363 = vand.u32 %v48, 4294901760
    %v364 = vsub.f32 %v48, %v363
    %v365 = vand.u32 %v364, 4294901760
    %v366 = vsub.f32 %v364, %v365
    %v367 = vand.u32 %v366, 4294901760
    %368 = vmatmul.mubr.f32.gmra.mrb[0].mxu0 %v367
    %v369 = vpop.f32.mrb[0].mxu0
    %v370 = vadd.f32 0.0, %v369
    %v371 = vpop.f32.mrb[0].mxu0
    %372 = vmatprep.mubr.f32.mxu0 0.0
    %v373 = vand.u32 %v49, 4294901760
    %v374 = vsub.f32 %v49, %v373
    %v375 = vand.u32 %v374, 4294901760
    %v376 = vsub.f32 %v374, %v375
    %v377 = vand.u32 %v376, 4294901760
    %378 = vmatmul.mubr.f32.gmra.mrb[0].mxu0 %v377
    %v379 = vpop.f32.mrb[0].mxu0
    %v380 = vadd.f32 0.0, %v379
    %v381 = vpop.f32.mrb[0].mxu0
    %382 = vmatprep.mubr.f32.mxu0 0.0
    %v383 = vand.u32 %v50, 4294901760
    %v384 = vsub.f32 %v50, %v383
    %v385 = vand.u32 %v384, 4294901760
    %v386 = vsub.f32 %v384, %v385
    %v387 = vand.u32 %v386, 4294901760
    %388 = vmatmul.mubr.f32.gmra.mrb[0].mxu0 %v387
    %v389 = vpop.f32.mrb[0].mxu0
    %v390 = vadd.f32 0.0, %v389
    %v391 = vpop.f32.mrb[0].mxu0
    %392 = vmatprep.mubr.f32.mxu0 0.0
    %v393 = vand.u32 %v51, 4294901760
    %v394 = vsub.f32 %v51, %v393
    %v395 = vand.u32 %v394, 4294901760
    %v396 = vsub.f32 %v394, %v395
    %v397 = vand.u32 %v396, 4294901760
    %398 = vmatmul.mubr.f32.gmra.mrb[0].mxu0 %v397
    %v399 = vpop.f32.mrb[0].mxu0
    %v400 = vadd.f32 0.0, %v399
    %v401 = vpop.f32.mrb[0].mxu0
    %402 = vmatprep.mubr.f32.mxu0 0.0
    %v403 = vand.u32 %v52, 4294901760
    %v404 = vsub.f32 %v52, %v403
    %v405 = vand.u32 %v404, 4294901760
    %v406 = vsub.f32 %v404, %v405
    %v407 = vand.u32 %v406, 4294901760
    %408 = vmatmul.mubr.f32.gmra.mrb[0].mxu0 %v407
    %v409 = vpop.f32.mrb[0].mxu0
    %v410 = vadd.f32 0.0, %v409
    %v411 = vpop.f32.mrb[0].mxu0
    %412 = vmatprep.mubr.f32.mxu0 0.0
    %v413 = vand.u32 %v53, 4294901760
    %v414 = vsub.f32 %v53, %v413
    %v415 = vand.u32 %v414, 4294901760
    %v416 = vsub.f32 %v414, %v415
    %v417 = vand.u32 %v416, 4294901760
    %418 = vmatmul.mubr.f32.gmra.mrb[0].mxu0 %v417
    %v419 = vpop.f32.mrb[0].mxu0
    %v420 = vadd.f32 0.0, %v419
    %v421 = vpop.f32.mrb[0].mxu0
    %422 = vmatprep.mubr.f32.mxu0 0.0
    %v423 = vand.u32 %v54, 4294901760
    %v424 = vsub.f32 %v54, %v423
    %v425 = vand.u32 %v424, 4294901760
    %v426 = vsub.f32 %v424, %v425
    %v427 = vand.u32 %v426, 4294901760
    %428 = vmatmul.mubr.f32.gmra.mrb[0].mxu0 %v427
    %v429 = vpop.f32.mrb[0].mxu0
    %v430 = vadd.f32 0.0, %v429
    %v431 = vpop.f32.mrb[0].mxu0
    %432 = vmatprep.mubr.f32.mxu0 0.0
    %v433 = vand.u32 %v55, 4294901760
    %v434 = vsub.f32 %v55, %v433
    %v435 = vand.u32 %v434, 4294901760
    %v436 = vsub.f32 %v434, %v435
    %v437 = vand.u32 %v436, 4294901760
    %438 = vmatmul.mubr.f32.gmra.mrb[0].mxu0 %v437
    %v439 = vpop.f32.mrb[0].mxu0
    %v440 = vadd.f32 0.0, %v439
    %v441 = vpop.f32.mrb[0].mxu0
    %442 = vmatprep.mubr.f32.mxu0 0.0
    %v443 = vand.u32 %v56, 4294901760
    %v444 = vsub.f32 %v56, %v443
    %v445 = vand.u32 %v444, 4294901760
    %v446 = vsub.f32 %v444, %v445
    %v447 = vand.u32 %v446, 4294901760
    %448 = vmatmul.mubr.f32.gmra.mrb[0].mxu0 %v447
    %v449 = vpop.f32.mrb[0].mxu0
    %v450 = vadd.f32 0.0, %v449
    %v451 = vpop.f32.mrb[0].mxu0
    %452 = vmatprep.mubr.f32.mxu0 0.0
    %v453 = vand.u32 %v57, 4294901760
    %v454 = vsub.f32 %v57, %v453
    %v455 = vand.u32 %v454, 4294901760
    %v456 = vsub.f32 %v454, %v455
    %v457 = vand.u32 %v456, 4294901760
    %458 = vmatmul.mubr.f32.gmra.mrb[0].mxu0 %v457
    %v459 = vpop.f32.mrb[0].mxu0
    %v460 = vadd.f32 0.0, %v459
    %v461 = vpop.f32.mrb[0].mxu0
    %462 = vmatprep.mubr.f32.mxu0 0.0
    %v463 = vand.u32 %v58, 4294901760
    %v464 = vsub.f32 %v58, %v463
    %v465 = vand.u32 %v464, 4294901760
    %v466 = vsub.f32 %v464, %v465
    %v467 = vand.u32 %v466, 4294901760
    %468 = vmatmul.mubr.f32.gmra.mrb[0].mxu0 %v467
    %v469 = vpop.f32.mrb[0].mxu0
    %v470 = vadd.f32 0.0, %v469
    %v471 = vpop.f32.mrb[0].mxu0
    %472 = vmatprep.mubr.f32.mxu0 0.0
    %v473 = vand.u32 %v59, 4294901760
    %v474 = vsub.f32 %v59, %v473
    %v475 = vand.u32 %v474, 4294901760
    %v476 = vsub.f32 %v474, %v475
    %v477 = vand.u32 %v476, 4294901760
    %478 = vmatmul.mubr.f32.gmra.mrb[0].mxu0 %v477
    %v479 = vpop.f32.mrb[0].mxu0
    %v480 = vadd.f32 0.0, %v479
    %v481 = vpop.f32.mrb[0].mxu0
    %482 = vmatprep.mubr.f32.mxu0 0.0
    %v483 = vand.u32 %v60, 4294901760
    %v484 = vsub.f32 %v60, %v483
    %v485 = vand.u32 %v484, 4294901760
    %v486 = vsub.f32 %v484, %v485
    %v487 = vand.u32 %v486, 4294901760
    %488 = vmatmul.mubr.f32.gmra.mrb[0].mxu0 %v487
    %v489 = vpop.f32.mrb[0].mxu0
    %v490 = vadd.f32 0.0, %v489
    %v491 = vpop.f32.mrb[0].mxu0
    %492 = vmatprep.mubr.f32.mxu0 0.0
    %v493 = vand.u32 %v61, 4294901760
    %v494 = vsub.f32 %v61, %v493
    %v495 = vand.u32 %v494, 4294901760
    %v496 = vsub.f32 %v494, %v495
    %v497 = vand.u32 %v496, 4294901760
    %498 = vmatmul.mubr.f32.gmra.mrb[0].mxu0 %v497
    %v499 = vpop.f32.mrb[0].mxu0
    %v500 = vadd.f32 0.0, %v499
    %v501 = vpop.f32.mrb[0].mxu0
    %502 = vmatprep.mubr.f32.mxu0 0.0
    %v503 = vand.u32 %v62, 4294901760
    %v504 = vsub.f32 %v62, %v503
    %v505 = vand.u32 %v504, 4294901760
    %v506 = vsub.f32 %v504, %v505
    %v507 = vand.u32 %v506, 4294901760
    %508 = vmatmul.mubr.f32.gmra.mrb[0].mxu0 %v507
    %v509 = vpop.f32.mrb[0].mxu0
    %v510 = vadd.f32 0.0, %v509
    %v511 = vpop.f32.mrb[0].mxu0
    %512 = vmatprep.mubr.f32.mxu0 0.0
    %v513 = vand.u32 %v63, 4294901760
    %v514 = vsub.f32 %v63, %v513
    %v515 = vand.u32 %v514, 4294901760
    %v516 = vsub.f32 %v514, %v515
    %v517 = vand.u32 %v516, 4294901760
    %518 = vmatmul.mubr.f32.gmra.mrb[0].mxu0 %v517
    %v519 = vpop.f32.mrb[0].mxu0
    %v520 = vadd.f32 0.0, %v519
    %v521 = vpop.f32.mrb[0].mxu0
    %522 = vmatprep.mubr.f32.mxu0 0.0
    %v523 = vand.u32 %v64, 4294901760
    %v524 = vsub.f32 %v64, %v523
    %v525 = vand.u32 %v524, 4294901760
    %v526 = vsub.f32 %v524, %v525
    %v527 = vand.u32 %v526, 4294901760
    %528 = vmatmul.mubr.f32.gmra.mrb[0].mxu0 %v527
    %v529 = vpop.f32.mrb[0].mxu0
    %v530 = vadd.f32 0.0, %v529
    %v531 = vpop.f32.mrb[0].mxu0
    %532 = vmatprep.mubr.f32.mxu0 0.0
    %v533 = vand.u32 %v65, 4294901760
    %v534 = vsub.f32 %v65, %v533
    %v535 = vand.u32 %v534, 4294901760
    %v536 = vsub.f32 %v534, %v535
    %v537 = vand.u32 %v536, 4294901760
    %538 = vmatmul.mubr.f32.gmra.mrb[0].mxu0 %v537
    %v539 = vpop.f32.mrb[0].mxu0
    %v540 = vadd.f32 0.0, %v539
    %v541 = vpop.f32.mrb[0].mxu0
    %542 = vmatprep.mubr.f32.mxu0 0.0
    %v543 = vand.u32 %v66, 4294901760
    %v544 = vsub.f32 %v66, %v543
    %v545 = vand.u32 %v544, 4294901760
    %v546 = vsub.f32 %v544, %v545
    %v547 = vand.u32 %v546, 4294901760
    %548 = vmatmul.mubr.f32.gmra.mrb[0].mxu0 %v547
    %v549 = vpop.f32.mrb[0].mxu0
    %v550 = vadd.f32 0.0, %v549
    %v551 = vpop.f32.mrb[0].mxu0
    %552 = vmatprep.mubr.f32.mxu0 0.0
    %v553 = vand.u32 %v67, 4294901760
    %v554 = vsub.f32 %v67, %v553
    %v555 = vand.u32 %v554, 4294901760
    %v556 = vsub.f32 %v554, %v555
    %v557 = vand.u32 %v556, 4294901760
    %558 = vmatmul.mubr.f32.gmra.mrb[0].mxu0 %v557
    %v559 = vpop.f32.mrb[0].mxu0
    %v560 = vadd.f32 0.0, %v559
    %v561 = vpop.f32.mrb[0].mxu0
    %562 = vmatprep.mubr.f32.mxu0 0.0
    %v563 = vand.u32 %v68, 4294901760
    %v564 = vsub.f32 %v68, %v563
    %v565 = vand.u32 %v564, 4294901760
    %v566 = vsub.f32 %v564, %v565
    %v567 = vand.u32 %v566, 4294901760
    %568 = vmatmul.mubr.f32.gmra.mrb[0].mxu0 %v567
    %v569 = vpop.f32.mrb[0].mxu0
    %v570 = vadd.f32 0.0, %v569
    %v571 = vpop.f32.mrb[0].mxu0
    %572 = vmatprep.mubr.f32.mxu0 0.0
    %v573 = vand.u32 %v69, 4294901760
    %v574 = vsub.f32 %v69, %v573
    %v575 = vand.u32 %v574, 4294901760
    %v576 = vsub.f32 %v574, %v575
    %v577 = vand.u32 %v576, 4294901760
    %578 = vmatmul.mubr.f32.gmra.mrb[0].mxu0 %v577
    %v579 = vpop.f32.mrb[0].mxu0
    %v580 = vadd.f32 0.0, %v579
    %v581 = vpop.f32.mrb[0].mxu0
    %582 = vmatprep.mubr.f32.mxu0 0.0
    %v583 = vand.u32 %v70, 4294901760
    %v584 = vsub.f32 %v70, %v583
    %v585 = vand.u32 %v584, 4294901760
    %v586 = vsub.f32 %v584, %v585
    %v587 = vand.u32 %v586, 4294901760
    %588 = vmatmul.mubr.f32.gmra.mrb[0].mxu0 %v587
    %v589 = vpop.f32.mrb[0].mxu0
    %v590 = vadd.f32 0.0, %v589
    %v591 = vpop.f32.mrb[0].mxu0
    %592 = vmatprep.mubr.f32.mxu0 0.0
    %v593 = vand.u32 %v71, 4294901760
    %v594 = vsub.f32 %v71, %v593
    %v595 = vand.u32 %v594, 4294901760
    %v596 = vsub.f32 %v594, %v595
    %v597 = vand.u32 %v596, 4294901760
    %598 = vmatmul.mubr.f32.gmra.mrb[0].mxu0 %v597
    %v599 = vpop.f32.mrb[0].mxu0
    %v600 = vadd.f32 0.0, %v599
    %v601 = vpop.f32.mrb[0].mxu0
    %602 = vmatprep.mubr.f32.mxu0 0.0
    %v603 = vand.u32 %v72, 4294901760
    %v604 = vsub.f32 %v72, %v603
    %v605 = vand.u32 %v604, 4294901760
    %v606 = vsub.f32 %v604, %v605
    %v607 = vand.u32 %v606, 4294901760
    %608 = vmatmul.mubr.f32.gmra.mrb[0].mxu0 %v607
    %v609 = vpop.f32.mrb[0].mxu0
    %v610 = vadd.f32 0.0, %v609
    %v611 = vpop.f32.mrb[0].mxu0
    %612 = vmatprep.mubr.f32.mxu0 0.0
    %v613 = vand.u32 %v73, 4294901760
    %v614 = vsub.f32 %v73, %v613
    %v615 = vand.u32 %v614, 4294901760
    %v616 = vsub.f32 %v614, %v615
    %v617 = vand.u32 %v616, 4294901760
    %618 = vmatmul.mubr.f32.gmra.mrb[0].mxu0 %v617
    %v619 = vpop.f32.mrb[0].mxu0
    %v620 = vadd.f32 0.0, %v619
    %v621 = vpop.f32.mrb[0].mxu0
    %622 = vmatprep.mubr.f32.mxu0 0.0
    %v623 = vand.u32 %v74, 4294901760
    %v624 = vsub.f32 %v74, %v623
    %v625 = vand.u32 %v624, 4294901760
    %v626 = vsub.f32 %v624, %v625
    %v627 = vand.u32 %v626, 4294901760
    %628 = vmatmul.mubr.f32.gmra.mrb[0].mxu0 %v627
    %v629 = vpop.f32.mrb[0].mxu0
    %v630 = vadd.f32 0.0, %v629
    %v631 = vpop.f32.mrb[0].mxu0
    %632 = vmatprep.mubr.f32.mxu0 0.0
    %v633 = vand.u32 %v75, 4294901760
    %v634 = vsub.f32 %v75, %v633
    %v635 = vand.u32 %v634, 4294901760
    %v636 = vsub.f32 %v634, %v635
    %v637 = vand.u32 %v636, 4294901760
    %638 = vmatmul.mubr.f32.gmra.mrb[0].mxu0 %v637
    %v639 = vpop.f32.mrb[0].mxu0
    %v640 = vadd.f32 0.0, %v639
    %v641 = vpop.f32.mrb[0].mxu0
    %642 = vmatprep.mubr.f32.mxu0 0.0
    %v643 = vand.u32 %v76, 4294901760
    %v644 = vsub.f32 %v76, %v643
    %v645 = vand.u32 %v644, 4294901760
    %v646 = vsub.f32 %v644, %v645
    %v647 = vand.u32 %v646, 4294901760
    %648 = vmatmul.mubr.f32.gmra.mrb[0].mxu0 %v647
    %v649 = vpop.f32.mrb[0].mxu0
    %v650 = vadd.f32 0.0, %v649
    %v651 = vpop.f32.mrb[0].mxu0
    %652 = vmatprep.mubr.f32.mxu0 0.0
    %v653 = vand.u32 %v77, 4294901760
    %v654 = vsub.f32 %v77, %v653
    %v655 = vand.u32 %v654, 4294901760
    %v656 = vsub.f32 %v654, %v655
    %v657 = vand.u32 %v656, 4294901760
    %658 = vmatmul.mubr.f32.gmra.mrb[0].mxu0 %v657
    %v659 = vpop.f32.mrb[0].mxu0
    %v660 = vadd.f32 0.0, %v659
    %v661 = vpop.f32.mrb[0].mxu0
    %662 = vmatprep.mubr.f32.mxu0 0.0
    %v663 = vand.u32 %v78, 4294901760
    %v664 = vsub.f32 %v78, %v663
    %v665 = vand.u32 %v664, 4294901760
    %v666 = vsub.f32 %v664, %v665
    %v667 = vand.u32 %v666, 4294901760
    %668 = vmatmul.mubr.f32.gmra.mrb[0].mxu0 %v667
    %v669 = vpop.f32.mrb[0].mxu0
    %v670 = vadd.f32 0.0, %v669
    %v671 = vpop.f32.mrb[0].mxu0
    %672 = vmatprep.mubr.f32.mxu0 0.0
    %v673 = vand.u32 %v79, 4294901760
    %v674 = vsub.f32 %v79, %v673
    %v675 = vand.u32 %v674, 4294901760
    %v676 = vsub.f32 %v674, %v675
    %v677 = vand.u32 %v676, 4294901760
    %678 = vmatmul.mubr.f32.gmra.mrb[0].mxu0 %v677
    %v679 = vpop.f32.mrb[0].mxu0
    %v680 = vadd.f32 0.0, %v679
    %v681 = vpop.f32.mrb[0].mxu0
    %682 = vmatprep.mubr.f32.mxu0 0.0
    %v683 = vand.u32 %v80, 4294901760
    %v684 = vsub.f32 %v80, %v683
    %v685 = vand.u32 %v684, 4294901760
    %v686 = vsub.f32 %v684, %v685
    %v687 = vand.u32 %v686, 4294901760
    %688 = vmatmul.mubr.f32.gmra.mrb[0].mxu0 %v687
    %v689 = vpop.f32.mrb[0].mxu0
    %v690 = vadd.f32 0.0, %v689
    %v691 = vpop.f32.mrb[0].mxu0
    %692 = vmatprep.mubr.f32.mxu0 0.0
    %v693 = vand.u32 %v81, 4294901760
    %v694 = vsub.f32 %v81, %v693
    %v695 = vand.u32 %v694, 4294901760
    %v696 = vsub.f32 %v694, %v695
    %v697 = vand.u32 %v696, 4294901760
    %698 = vmatmul.mubr.f32.gmra.mrb[0].mxu0 %v697
    %v699 = vpop.f32.mrb[0].mxu0
    %v700 = vadd.f32 0.0, %v699
    %v701 = vpop.f32.mrb[0].mxu0
    %702 = vmatprep.mubr.f32.mxu0 0.0
    %v703 = vand.u32 %v82, 4294901760
    %v704 = vsub.f32 %v82, %v703
    %v705 = vand.u32 %v704, 4294901760
    %v706 = vsub.f32 %v704, %v705
    %v707 = vand.u32 %v706, 4294901760
    %708 = vmatmul.mubr.f32.gmra.mrb[0].mxu0 %v707
    %v709 = vpop.f32.mrb[0].mxu0
    %v710 = vadd.f32 0.0, %v709
    %v711 = vpop.f32.mrb[0].mxu0
    %712 = vmatprep.mubr.f32.mxu0 0.0
    %v713 = vand.u32 %v83, 4294901760
    %v714 = vsub.f32 %v83, %v713
    %v715 = vand.u32 %v714, 4294901760
    %v716 = vsub.f32 %v714, %v715
    %v717 = vand.u32 %v716, 4294901760
    %718 = vmatmul.mubr.f32.gmra.mrb[0].mxu0 %v717
    %v719 = vpop.f32.mrb[0].mxu0
    %v720 = vadd.f32 0.0, %v719
    %v721 = vpop.f32.mrb[0].mxu0
    %722 = vmatprep.mubr.f32.mxu0 0.0
    %v723 = vand.u32 %v84, 4294901760
    %v724 = vsub.f32 %v84, %v723
    %v725 = vand.u32 %v724, 4294901760
    %v726 = vsub.f32 %v724, %v725
    %v727 = vand.u32 %v726, 4294901760
    %728 = vmatmul.mubr.f32.gmra.mrb[0].mxu0 %v727
    %v729 = vpop.f32.mrb[0].mxu0
    %v730 = vadd.f32 0.0, %v729
    %v731 = vpop.f32.mrb[0].mxu0
    %732 = vmatprep.mubr.f32.mxu0 0.0
    %v733 = vand.u32 %v85, 4294901760
    %v734 = vsub.f32 %v85, %v733
    %v735 = vand.u32 %v734, 4294901760
    %v736 = vsub.f32 %v734, %v735
    %v737 = vand.u32 %v736, 4294901760
    %738 = vmatmul.mubr.f32.gmra.mrb[0].mxu0 %v737
    %v739 = vpop.f32.mrb[0].mxu0
    %v740 = vadd.f32 0.0, %v739
    %v741 = vpop.f32.mrb[0].mxu0
    %742 = vmatprep.mubr.f32.mxu0 0.0
    %v743 = vand.u32 %v86, 4294901760
    %v744 = vsub.f32 %v86, %v743
    %v745 = vand.u32 %v744, 4294901760
    %v746 = vsub.f32 %v744, %v745
    %v747 = vand.u32 %v746, 4294901760
    %748 = vmatmul.mubr.f32.gmra.mrb[0].mxu0 %v747
    %v749 = vpop.f32.mrb[0].mxu0
    %v750 = vadd.f32 0.0, %v749
    %v751 = vpop.f32.mrb[0].mxu0
    %752 = vmatprep.mubr.f32.mxu0 0.0
    %v753 = vand.u32 %v87, 4294901760
    %v754 = vsub.f32 %v87, %v753
    %v755 = vand.u32 %v754, 4294901760
    %v756 = vsub.f32 %v754, %v755
    %v757 = vand.u32 %v756, 4294901760
    %758 = vmatmul.mubr.f32.gmra.mrb[0].mxu0 %v757
    %v759 = vpop.f32.mrb[0].mxu0
    %v760 = vadd.f32 0.0, %v759
    %v761 = vpop.f32.mrb[0].mxu0
    %762 = vmatprep.mubr.f32.mxu0 0.0
    %v763 = vand.u32 %v88, 4294901760
    %v764 = vsub.f32 %v88, %v763
    %v765 = vand.u32 %v764, 4294901760
    %v766 = vsub.f32 %v764, %v765
    %v767 = vand.u32 %v766, 4294901760
    %768 = vmatmul.mubr.f32.gmra.mrb[0].mxu0 %v767
    %v769 = vpop.f32.mrb[0].mxu0
    %v770 = vadd.f32 0.0, %v769
    %v771 = vpop.f32.mrb[0].mxu0
    %772 = vmatprep.mubr.f32.mxu0 0.0
    %v773 = vand.u32 %v89, 4294901760
    %v774 = vsub.f32 %v89, %v773
    %v775 = vand.u32 %v774, 4294901760
    %v776 = vsub.f32 %v774, %v775
    %v777 = vand.u32 %v776, 4294901760
    %778 = vmatmul.mubr.f32.gmra.mrb[0].mxu0 %v777
    %v779 = vpop.f32.mrb[0].mxu0
    %v780 = vadd.f32 0.0, %v779
    %v781 = vpop.f32.mrb[0].mxu0
    %782 = vmatprep.mubr.f32.mxu0 0.0
    %v783 = vand.u32 %v90, 4294901760
    %v784 = vsub.f32 %v90, %v783
    %v785 = vand.u32 %v784, 4294901760
    %v786 = vsub.f32 %v784, %v785
    %v787 = vand.u32 %v786, 4294901760
    %788 = vmatmul.mubr.f32.gmra.mrb[0].mxu0 %v787
    %v789 = vpop.f32.mrb[0].mxu0
    %v790 = vadd.f32 0.0, %v789
    %v791 = vpop.f32.mrb[0].mxu0
    %792 = vmatprep.mubr.f32.mxu0 0.0
    %v793 = vand.u32 %v91, 4294901760
    %v794 = vsub.f32 %v91, %v793
    %v795 = vand.u32 %v794, 4294901760
    %v796 = vsub.f32 %v794, %v795
    %v797 = vand.u32 %v796, 4294901760
    %798 = vmatmul.mubr.f32.gmra.mrb[0].mxu0 %v797
    %v799 = vpop.f32.mrb[0].mxu0
    %v800 = vadd.f32 0.0, %v799
    %v801 = vpop.f32.mrb[0].mxu0
    %802 = vmatprep.mubr.f32.mxu0 0.0
    %v803 = vand.u32 %v92, 4294901760
    %v804 = vsub.f32 %v92, %v803
    %v805 = vand.u32 %v804, 4294901760
    %v806 = vsub.f32 %v804, %v805
    %v807 = vand.u32 %v806, 4294901760
    %808 = vmatmul.mubr.f32.gmra.mrb[0].mxu0 %v807
    %v809 = vpop.f32.mrb[0].mxu0
    %v810 = vadd.f32 0.0, %v809
    %v811 = vpop.f32.mrb[0].mxu0
    %812 = vmatprep.mubr.f32.mxu0 0.0
    %v813 = vand.u32 %v93, 4294901760
    %v814 = vsub.f32 %v93, %v813
    %v815 = vand.u32 %v814, 4294901760
    %v816 = vsub.f32 %v814, %v815
    %v817 = vand.u32 %v816, 4294901760
    %818 = vmatmul.mubr.f32.gmra.mrb[0].mxu0 %v817
    %v819 = vpop.f32.mrb[0].mxu0
    %v820 = vadd.f32 0.0, %v819
    %v821 = vpop.f32.mrb[0].mxu0
    %822 = vmatprep.mubr.f32.mxu0 0.0
    %v823 = vand.u32 %v94, 4294901760
    %v824 = vsub.f32 %v94, %v823
    %v825 = vand.u32 %v824, 4294901760
    %v826 = vsub.f32 %v824, %v825
    %v827 = vand.u32 %v826, 4294901760
    %828 = vmatmul.mubr.f32.gmra.mrb[0].mxu0 %v827
    %v829 = vpop.f32.mrb[0].mxu0
    %v830 = vadd.f32 0.0, %v829
    %v831 = vpop.f32.mrb[0].mxu0
    %832 = vmatprep.mubr.f32.mxu0 0.0
    %v833 = vand.u32 %v95, 4294901760
    %v834 = vsub.f32 %v95, %v833
    %v835 = vand.u32 %v834, 4294901760
    %v836 = vsub.f32 %v834, %v835
    %v837 = vand.u32 %v836, 4294901760
    %838 = vmatmul.mubr.f32.gmra.mrb[0].mxu0 %v837
    %v839 = vpop.f32.mrb[0].mxu0
    %v840 = vadd.f32 0.0, %v839
    %v841 = vpop.f32.mrb[0].mxu0
    %842 = vmatprep.mubr.f32.mxu0 0.0
    %v843 = vand.u32 %v96, 4294901760
    %v844 = vsub.f32 %v96, %v843
    %v845 = vand.u32 %v844, 4294901760
    %v846 = vsub.f32 %v844, %v845
    %v847 = vand.u32 %v846, 4294901760
    %848 = vmatmul.mubr.f32.gmra.mrb[0].mxu0 %v847
    %v849 = vpop.f32.mrb[0].mxu0
    %v850 = vadd.f32 0.0, %v849
    %v851 = vpop.f32.mrb[0].mxu0
    %852 = vmatprep.mubr.f32.mxu0 0.0
    %v853 = vand.u32 %v97, 4294901760
    %v854 = vsub.f32 %v97, %v853
    %v855 = vand.u32 %v854, 4294901760
    %v856 = vsub.f32 %v854, %v855
    %v857 = vand.u32 %v856, 4294901760
    %858 = vmatmul.mubr.f32.gmra.mrb[0].mxu0 %v857
    %v859 = vpop.f32.mrb[0].mxu0
    %v860 = vadd.f32 0.0, %v859
    %v861 = vpop.f32.mrb[0].mxu0
    %862 = vmatprep.mubr.f32.mxu0 0.0
    %v863 = vand.u32 %v98, 4294901760
    %v864 = vsub.f32 %v98, %v863
    %v865 = vand.u32 %v864, 4294901760
    %v866 = vsub.f32 %v864, %v865
    %v867 = vand.u32 %v866, 4294901760
    %868 = vmatmul.mubr.f32.gmra.mrb[0].mxu0 %v867
    %v869 = vpop.f32.mrb[0].mxu0
    %v870 = vadd.f32 0.0, %v869
    %v871 = vpop.f32.mrb[0].mxu0
    %872 = vmatprep.mubr.f32.mxu0 0.0
    %v873 = vand.u32 %v99, 4294901760
    %v874 = vsub.f32 %v99, %v873
    %v875 = vand.u32 %v874, 4294901760
    %v876 = vsub.f32 %v874, %v875
    %v877 = vand.u32 %v876, 4294901760
    %878 = vmatmul.mubr.f32.gmra.mrb[0].mxu0 %v877
    %v879 = vpop.f32.mrb[0].mxu0
    %v880 = vadd.f32 0.0, %v879
    %v881 = vpop.f32.mrb[0].mxu0
    %882 = vmatprep.mubr.f32.mxu0 0.0
    %v883 = vand.u32 %v100, 4294901760
    %v884 = vsub.f32 %v100, %v883
    %v885 = vand.u32 %v884, 4294901760
    %v886 = vsub.f32 %v884, %v885
    %v887 = vand.u32 %v886, 4294901760
    %888 = vmatmul.mubr.f32.gmra.mrb[0].mxu0 %v887
    %v889 = vpop.f32.mrb[0].mxu0
    %v890 = vadd.f32 0.0, %v889
    %v891 = vpop.f32.mrb[0].mxu0
    %892 = vmatprep.mubr.f32.mxu0 0.0
    %v893 = vand.u32 %v101, 4294901760
    %v894 = vsub.f32 %v101, %v893
    %v895 = vand.u32 %v894, 4294901760
    %v896 = vsub.f32 %v894, %v895
    %v897 = vand.u32 %v896, 4294901760
    %898 = vmatmul.mubr.f32.gmra.mrb[0].mxu0 %v897
    %v899 = vpop.f32.mrb[0].mxu0
    %v900 = vadd.f32 0.0, %v899
    %v901 = vpop.f32.mrb[0].mxu0
    %902 = vmatprep.mubr.f32.mxu0 0.0
    %v903 = vand.u32 %v102, 4294901760
    %v904 = vsub.f32 %v102, %v903
    %v905 = vand.u32 %v904, 4294901760
    %v906 = vsub.f32 %v904, %v905
    %v907 = vand.u32 %v906, 4294901760
    %908 = vmatmul.mubr.f32.gmra.mrb[0].mxu0 %v907
    %v909 = vpop.f32.mrb[0].mxu0
    %v910 = vadd.f32 0.0, %v909
    %v911 = vpop.f32.mrb[0].mxu0
    %912 = vmatprep.mubr.f32.mxu0 0.0
    %v913 = vand.u32 %v103, 4294901760
    %v914 = vsub.f32 %v103, %v913
    %v915 = vand.u32 %v914, 4294901760
    %v916 = vsub.f32 %v914, %v915
    %v917 = vand.u32 %v916, 4294901760
    %918 = vmatmul.mubr.f32.gmra.mrb[0].mxu0 %v917
    %v919 = vpop.f32.mrb[0].mxu0
    %v920 = vadd.f32 0.0, %v919
    %v921 = vpop.f32.mrb[0].mxu0
    %922 = vmatprep.mubr.f32.mxu0 0.0
    %v923 = vand.u32 %v104, 4294901760
    %v924 = vsub.f32 %v104, %v923
    %v925 = vand.u32 %v924, 4294901760
    %v926 = vsub.f32 %v924, %v925
    %v927 = vand.u32 %v926, 4294901760
    %928 = vmatmul.mubr.f32.gmra.mrb[0].mxu0 %v927
    %v929 = vpop.f32.mrb[0].mxu0
    %v930 = vadd.f32 0.0, %v929
    %v931 = vpop.f32.mrb[0].mxu0
    %932 = vmatprep.mubr.f32.mxu0 0.0
    %v933 = vand.u32 %v105, 4294901760
    %v934 = vsub.f32 %v105, %v933
    %v935 = vand.u32 %v934, 4294901760
    %v936 = vsub.f32 %v934, %v935
    %v937 = vand.u32 %v936, 4294901760
    %938 = vmatmul.mubr.f32.gmra.mrb[0].mxu0 %v937
    %v939 = vpop.f32.mrb[0].mxu0
    %v940 = vadd.f32 0.0, %v939
    %v941 = vpop.f32.mrb[0].mxu0
    %942 = vmatprep.mubr.f32.mxu0 0.0
    %v943 = vand.u32 %v106, 4294901760
    %v944 = vsub.f32 %v106, %v943
    %v945 = vand.u32 %v944, 4294901760
    %v946 = vsub.f32 %v944, %v945
    %v947 = vand.u32 %v946, 4294901760
    %948 = vmatmul.mubr.f32.gmra.mrb[0].mxu0 %v947
    %v949 = vpop.f32.mrb[0].mxu0
    %v950 = vadd.f32 0.0, %v949
    %v951 = vpop.f32.mrb[0].mxu0
    %952 = vmatprep.mubr.f32.mxu0 0.0
    %v953 = vand.u32 %v107, 4294901760
    %v954 = vsub.f32 %v107, %v953
    %v955 = vand.u32 %v954, 4294901760
    %v956 = vsub.f32 %v954, %v955
    %v957 = vand.u32 %v956, 4294901760
    %958 = vmatmul.mubr.f32.gmra.mrb[0].mxu0 %v957
    %v959 = vpop.f32.mrb[0].mxu0
    %v960 = vadd.f32 0.0, %v959
    %v961 = vpop.f32.mrb[0].mxu0
    %962 = vmatprep.mubr.f32.mxu0 0.0
    %v963 = vand.u32 %v108, 4294901760
    %v964 = vsub.f32 %v108, %v963
    %v965 = vand.u32 %v964, 4294901760
    %v966 = vsub.f32 %v964, %v965
    %v967 = vand.u32 %v966, 4294901760
    %968 = vmatmul.mubr.f32.gmra.mrb[0].mxu0 %v967
    %v969 = vpop.f32.mrb[0].mxu0
    %v970 = vadd.f32 0.0, %v969
    %v971 = vpop.f32.mrb[0].mxu0
    %972 = vmatprep.mubr.f32.mxu0 0.0
    %v973 = vand.u32 %v109, 4294901760
    %v974 = vsub.f32 %v109, %v973
    %v975 = vand.u32 %v974, 4294901760
    %v976 = vsub.f32 %v974, %v975
    %v977 = vand.u32 %v976, 4294901760
    %978 = vmatmul.mubr.f32.gmra.mrb[0].mxu0 %v977
    %v979 = vpop.f32.mrb[0].mxu0
    %v980 = vadd.f32 0.0, %v979
    %v981 = vpop.f32.mrb[0].mxu0
    %982 = vmatprep.mubr.f32.mxu0 0.0
    %v983 = vand.u32 %v110, 4294901760
    %v984 = vsub.f32 %v110, %v983
    %v985 = vand.u32 %v984, 4294901760
    %v986 = vsub.f32 %v984, %v985
    %v987 = vand.u32 %v986, 4294901760
    %988 = vmatmul.mubr.f32.gmra.mrb[0].mxu0 %v987
    %v989 = vpop.f32.mrb[0].mxu0
    %v990 = vadd.f32 0.0, %v989
    %v991 = vpop.f32.mrb[0].mxu0
    %992 = vmatprep.mubr.f32.mxu0 0.0
    %v993 = vand.u32 %v111, 4294901760
    %v994 = vsub.f32 %v111, %v993
    %v995 = vand.u32 %v994, 4294901760
    %v996 = vsub.f32 %v994, %v995
    %v997 = vand.u32 %v996, 4294901760
    %998 = vmatmul.mubr.f32.gmra.mrb[0].mxu0 %v997
    %v999 = vpop.f32.mrb[0].mxu0
    %v1000 = vadd.f32 0.0, %v999
    %v1001 = vpop.f32.mrb[0].mxu0
    %1002 = vmatprep.mubr.f32.mxu0 0.0
    %v1003 = vand.u32 %v112, 4294901760
    %v1004 = vsub.f32 %v112, %v1003
    %v1005 = vand.u32 %v1004, 4294901760
    %v1006 = vsub.f32 %v1004, %v1005
    %v1007 = vand.u32 %v1006, 4294901760
    %1008 = vmatmul.mubr.f32.gmra.mrb[0].mxu0 %v1007
    %v1009 = vpop.f32.mrb[0].mxu0
    %v1010 = vadd.f32 0.0, %v1009
    %v1011 = vpop.f32.mrb[0].mxu0
    %1012 = vmatprep.mubr.f32.mxu0 0.0
    %v1013 = vand.u32 %v113, 4294901760
    %v1014 = vsub.f32 %v113, %v1013
    %v1015 = vand.u32 %v1014, 4294901760
    %v1016 = vsub.f32 %v1014, %v1015
    %v1017 = vand.u32 %v1016, 4294901760
    %1018 = vmatmul.mubr.f32.gmra.mrb[0].mxu0 %v1017
    %v1019 = vpop.f32.mrb[0].mxu0
    %v1020 = vadd.f32 0.0, %v1019
    %v1021 = vpop.f32.mrb[0].mxu0
    %1022 = vmatprep.mubr.f32.mxu0 0.0
    %v1023 = vand.u32 %v114, 4294901760
    %v1024 = vsub.f32 %v114, %v1023
    %v1025 = vand.u32 %v1024, 4294901760
    %v1026 = vsub.f32 %v1024, %v1025
    %v1027 = vand.u32 %v1026, 4294901760
    %1028 = vmatmul.mubr.f32.gmra.mrb[0].mxu0 %v1027
    %v1029 = vpop.f32.mrb[0].mxu0
    %v1030 = vadd.f32 0.0, %v1029
    %v1031 = vpop.f32.mrb[0].mxu0
    %1032 = vmatprep.mubr.f32.mxu0 0.0
    %v1033 = vand.u32 %v115, 4294901760
    %v1034 = vsub.f32 %v115, %v1033
    %v1035 = vand.u32 %v1034, 4294901760
    %v1036 = vsub.f32 %v1034, %v1035
    %v1037 = vand.u32 %v1036, 4294901760
    %1038 = vmatmul.mubr.f32.gmra.mrb[0].mxu0 %v1037
    %v1039 = vpop.f32.mrb[0].mxu0
    %v1040 = vadd.f32 0.0, %v1039
    %v1041 = vpop.f32.mrb[0].mxu0
    %1042 = vmatprep.mubr.f32.mxu0 0.0
    %v1043 = vand.u32 %v116, 4294901760
    %v1044 = vsub.f32 %v116, %v1043
    %v1045 = vand.u32 %v1044, 4294901760
    %v1046 = vsub.f32 %v1044, %v1045
    %v1047 = vand.u32 %v1046, 4294901760
    %1048 = vmatmul.mubr.f32.gmra.mrb[0].mxu0 %v1047
    %v1049 = vpop.f32.mrb[0].mxu0
    %v1050 = vadd.f32 0.0, %v1049
    %v1051 = vpop.f32.mrb[0].mxu0
    %1052 = vmatprep.mubr.f32.mxu0 0.0
    %v1053 = vand.u32 %v117, 4294901760
    %v1054 = vsub.f32 %v117, %v1053
    %v1055 = vand.u32 %v1054, 4294901760
    %v1056 = vsub.f32 %v1054, %v1055
    %v1057 = vand.u32 %v1056, 4294901760
    %1058 = vmatmul.mubr.f32.gmra.mrb[0].mxu0 %v1057
    %v1059 = vpop.f32.mrb[0].mxu0
    %v1060 = vadd.f32 0.0, %v1059
    %v1061 = vpop.f32.mrb[0].mxu0
    %1062 = vmatprep.mubr.f32.mxu0 0.0
    %v1063 = vand.u32 %v118, 4294901760
    %v1064 = vsub.f32 %v118, %v1063
    %v1065 = vand.u32 %v1064, 4294901760
    %v1066 = vsub.f32 %v1064, %v1065
    %v1067 = vand.u32 %v1066, 4294901760
    %1068 = vmatmul.mubr.f32.gmra.mrb[0].mxu0 %v1067
    %v1069 = vpop.f32.mrb[0].mxu0
    %v1070 = vadd.f32 0.0, %v1069
    %v1071 = vpop.f32.mrb[0].mxu0
    %1072 = vmatprep.mubr.f32.mxu0 0.0
    %v1073 = vand.u32 %v119, 4294901760
    %v1074 = vsub.f32 %v119, %v1073
    %v1075 = vand.u32 %v1074, 4294901760
    %v1076 = vsub.f32 %v1074, %v1075
    %v1077 = vand.u32 %v1076, 4294901760
    %1078 = vmatmul.mubr.f32.gmra.mrb[0].mxu0 %v1077
    %v1079 = vpop.f32.mrb[0].mxu0
    %v1080 = vadd.f32 0.0, %v1079
    %v1081 = vpop.f32.mrb[0].mxu0
    %1082 = vmatprep.mubr.f32.mxu0 0.0
    %v1083 = vand.u32 %v120, 4294901760
    %v1084 = vsub.f32 %v120, %v1083
    %v1085 = vand.u32 %v1084, 4294901760
    %v1086 = vsub.f32 %v1084, %v1085
    %v1087 = vand.u32 %v1086, 4294901760
    %1088 = vmatmul.mubr.f32.gmra.mrb[0].mxu0 %v1087
    %v1089 = vpop.f32.mrb[0].mxu0
    %v1090 = vadd.f32 0.0, %v1089
    %v1091 = vpop.f32.mrb[0].mxu0
    %1092 = vmatprep.mubr.f32.mxu0 0.0
    %v1093 = vand.u32 %v121, 4294901760
    %v1094 = vsub.f32 %v121, %v1093
    %v1095 = vand.u32 %v1094, 4294901760
    %v1096 = vsub.f32 %v1094, %v1095
    %v1097 = vand.u32 %v1096, 4294901760
    %1098 = vmatmul.mubr.f32.gmra.mrb[0].mxu0 %v1097
    %v1099 = vpop.f32.mrb[0].mxu0
    %v1100 = vadd.f32 0.0, %v1099
    %v1101 = vpop.f32.mrb[0].mxu0
    %1102 = vmatprep.mubr.f32.mxu0 0.0
    %v1103 = vand.u32 %v122, 4294901760
    %v1104 = vsub.f32 %v122, %v1103
    %v1105 = vand.u32 %v1104, 4294901760
    %v1106 = vsub.f32 %v1104, %v1105
    %v1107 = vand.u32 %v1106, 4294901760
    %1108 = vmatmul.mubr.f32.gmra.mrb[0].mxu0 %v1107
    %v1109 = vpop.f32.mrb[0].mxu0
    %v1110 = vadd.f32 0.0, %v1109
    %v1111 = vpop.f32.mrb[0].mxu0
    %1112 = vmatprep.mubr.f32.mxu0 0.0
    %v1113 = vand.u32 %v123, 4294901760
    %v1114 = vsub.f32 %v123, %v1113
    %v1115 = vand.u32 %v1114, 4294901760
    %v1116 = vsub.f32 %v1114, %v1115
    %v1117 = vand.u32 %v1116, 4294901760
    %1118 = vmatmul.mubr.f32.gmra.mrb[0].mxu0 %v1117
    %v1119 = vpop.f32.mrb[0].mxu0
    %v1120 = vadd.f32 0.0, %v1119
    %v1121 = vpop.f32.mrb[0].mxu0
    %1122 = vmatprep.mubr.f32.mxu0 0.0
    %v1123 = vand.u32 %v124, 4294901760
    %v1124 = vsub.f32 %v124, %v1123
    %v1125 = vand.u32 %v1124, 4294901760
    %v1126 = vsub.f32 %v1124, %v1125
    %v1127 = vand.u32 %v1126, 4294901760
    %1128 = vmatmul.mubr.f32.gmra.mrb[0].mxu0 %v1127
    %v1129 = vpop.f32.mrb[0].mxu0
    %v1130 = vadd.f32 0.0, %v1129
    %v1131 = vpop.f32.mrb[0].mxu0
    %1132 = vmatprep.mubr.f32.mxu0 0.0
    %v1133 = vand.u32 %v125, 4294901760
    %v1134 = vsub.f32 %v125, %v1133
    %v1135 = vand.u32 %v1134, 4294901760
    %v1136 = vsub.f32 %v1134, %v1135
    %v1137 = vand.u32 %v1136, 4294901760
    %1138 = vmatmul.mubr.f32.gmra.mrb[0].mxu0 %v1137
    %v1139 = vpop.f32.mrb[0].mxu0
    %v1140 = vadd.f32 0.0, %v1139
    %v1141 = vpop.f32.mrb[0].mxu0
    %1142 = vmatprep.mubr.f32.mxu0 0.0
    %v1143 = vand.u32 %v126, 4294901760
    %v1144 = vsub.f32 %v126, %v1143
    %v1145 = vand.u32 %v1144, 4294901760
    %v1146 = vsub.f32 %v1144, %v1145
    %v1147 = vand.u32 %v1146, 4294901760
    %1148 = vmatmul.mubr.f32.gmra.mrb[0].mxu0 %v1147
    %v1149 = vpop.f32.mrb[0].mxu0
    %v1150 = vadd.f32 0.0, %v1149
    %v1151 = vpop.f32.mrb[0].mxu0
    %1152 = vmatprep.mubr.f32.mxu0 0.0
    %v1153 = vand.u32 %v127, 4294901760
    %v1154 = vsub.f32 %v127, %v1153
    %v1155 = vand.u32 %v1154, 4294901760
    %v1156 = vsub.f32 %v1154, %v1155
    %v1157 = vand.u32 %v1156, 4294901760
    %1158 = vmatmul.mubr.f32.gmra.mrb[0].mxu0 %v1157
    %v1159 = vpop.f32.mrb[0].mxu0
    %v1160 = vadd.f32 0.0, %v1159
    %v1161 = vpop.f32.mrb[0].mxu0
    %1162 = vmatprep.mubr.f32.mxu0 0.0
    %v1163 = vand.u32 %v128, 4294901760
    %v1164 = vsub.f32 %v128, %v1163
    %v1165 = vand.u32 %v1164, 4294901760
    %v1166 = vsub.f32 %v1164, %v1165
    %v1167 = vand.u32 %v1166, 4294901760
    %1168 = vmatmul.mubr.f32.gmra.mrb[0].mxu0 %v1167
    %v1169 = vpop.f32.mrb[0].mxu0
    %v1170 = vadd.f32 0.0, %v1169
    %v1171 = vpop.f32.mrb[0].mxu0
    %1172 = vmatprep.mubr.f32.mxu0 0.0
    %v1173 = vand.u32 %v129, 4294901760
    %v1174 = vsub.f32 %v129, %v1173
    %v1175 = vand.u32 %v1174, 4294901760
    %v1176 = vsub.f32 %v1174, %v1175
    %v1177 = vand.u32 %v1176, 4294901760
    %1178 = vmatmul.mubr.f32.gmra.mrb[0].mxu0 %v1177
    %v1179 = vpop.f32.mrb[0].mxu0
    %v1180 = vadd.f32 0.0, %v1179
    %v1181 = vpop.f32.mrb[0].mxu0
    %1182 = vmatprep.mubr.f32.mxu0 0.0
    %v1183 = vand.u32 %v130, 4294901760
    %v1184 = vsub.f32 %v130, %v1183
    %v1185 = vand.u32 %v1184, 4294901760
    %v1186 = vsub.f32 %v1184, %v1185
    %v1187 = vand.u32 %v1186, 4294901760
    %1188 = vmatmul.mubr.f32.gmra.mrb[0].mxu0 %v1187
    %v1189 = vpop.f32.mrb[0].mxu0
    %v1190 = vadd.f32 0.0, %v1189
    %v1191 = vpop.f32.mrb[0].mxu0
    %1192 = vmatprep.mubr.f32.mxu0 0.0
    %v1193 = vand.u32 %v131, 4294901760
    %v1194 = vsub.f32 %v131, %v1193
    %v1195 = vand.u32 %v1194, 4294901760
    %v1196 = vsub.f32 %v1194, %v1195
    %v1197 = vand.u32 %v1196, 4294901760
    %1198 = vmatmul.mubr.f32.gmra.mrb[0].mxu0 %v1197
    %v1199 = vpop.f32.mrb[0].mxu0
    %v1200 = vadd.f32 0.0, %v1199
    %v1201 = vpop.f32.mrb[0].mxu0
    %1202 = vmatprep.mubr.f32.mxu0 0.0
    %v1203 = vand.u32 %v132, 4294901760
    %v1204 = vsub.f32 %v132, %v1203
    %v1205 = vand.u32 %v1204, 4294901760
    %v1206 = vsub.f32 %v1204, %v1205
    %v1207 = vand.u32 %v1206, 4294901760
    %1208 = vmatmul.mubr.f32.gmra.mrb[0].mxu0 %v1207
    %v1209 = vpop.f32.mrb[0].mxu0
    %v1210 = vadd.f32 0.0, %v1209
    %v1211 = vpop.f32.mrb[0].mxu0
    %1212 = vmatprep.mubr.f32.mxu0 0.0
    %v1213 = vand.u32 %v133, 4294901760
    %v1214 = vsub.f32 %v133, %v1213
    %v1215 = vand.u32 %v1214, 4294901760
    %v1216 = vsub.f32 %v1214, %v1215
    %v1217 = vand.u32 %v1216, 4294901760
    %1218 = vmatmul.mubr.f32.gmra.mrb[0].mxu0 %v1217
    %v1219 = vpop.f32.mrb[0].mxu0
    %v1220 = vadd.f32 0.0, %v1219
    %v1221 = vpop.f32.mrb[0].mxu0
    %1222 = vmatprep.mubr.f32.mxu0 0.0
    %v1223 = vand.u32 %v134, 4294901760
    %v1224 = vsub.f32 %v134, %v1223
    %v1225 = vand.u32 %v1224, 4294901760
    %v1226 = vsub.f32 %v1224, %v1225
    %v1227 = vand.u32 %v1226, 4294901760
    %1228 = vmatmul.mubr.f32.gmra.mrb[0].mxu0 %v1227
    %v1229 = vpop.f32.mrb[0].mxu0
    %v1230 = vadd.f32 0.0, %v1229
    %v1231 = vpop.f32.mrb[0].mxu0
    %1232 = vmatprep.mubr.f32.mxu0 0.0
    %v1233 = vand.u32 %v135, 4294901760
    %v1234 = vsub.f32 %v135, %v1233
    %v1235 = vand.u32 %v1234, 4294901760
    %v1236 = vsub.f32 %v1234, %v1235
    %v1237 = vand.u32 %v1236, 4294901760
    %1238 = vmatmul.mubr.f32.gmra.mrb[0].mxu0 %v1237
    %v1239 = vpop.f32.mrb[0].mxu0
    %v1240 = vadd.f32 0.0, %v1239
    %v1241 = vpop.f32.mrb[0].mxu0
    %1242 = vmatprep.mubr.f32.mxu0 0.0
    %v1243 = vand.u32 %v136, 4294901760
    %v1244 = vsub.f32 %v136, %v1243
    %v1245 = vand.u32 %v1244, 4294901760
    %v1246 = vsub.f32 %v1244, %v1245
    %v1247 = vand.u32 %v1246, 4294901760
    %1248 = vmatmul.mubr.f32.gmra.mrb[0].mxu0 %v1247
    %v1249 = vpop.f32.mrb[0].mxu0
    %v1250 = vadd.f32 0.0, %v1249
    %v1251 = vpop.f32.mrb[0].mxu0
    %1252 = vmatprep.mubr.f32.mxu0 0.0
    %v1253 = vand.u32 %v137, 4294901760
    %v1254 = vsub.f32 %v137, %v1253
    %v1255 = vand.u32 %v1254, 4294901760
    %v1256 = vsub.f32 %v1254, %v1255
    %v1257 = vand.u32 %v1256, 4294901760
    %1258 = vmatmul.mubr.f32.gmra.mrb[0].mxu0 %v1257
    %v1259 = vpop.f32.mrb[0].mxu0
    %v1260 = vadd.f32 0.0, %v1259
    %v1261 = vpop.f32.mrb[0].mxu0
    %1262 = vmatprep.mubr.f32.mxu0 0.0
    %v1263 = vand.u32 %v138, 4294901760
    %v1264 = vsub.f32 %v138, %v1263
    %v1265 = vand.u32 %v1264, 4294901760
    %v1266 = vsub.f32 %v1264, %v1265
    %v1267 = vand.u32 %v1266, 4294901760
    %1268 = vmatmul.mubr.f32.gmra.mrb[0].mxu0 %v1267
    %v1269 = vpop.f32.mrb[0].mxu0
    %v1270 = vadd.f32 0.0, %v1269
    %v1271 = vpop.f32.mrb[0].mxu0
    %1272 = vmatprep.mubr.f32.mxu0 0.0
    %v1273 = vand.u32 %v139, 4294901760
    %v1274 = vsub.f32 %v139, %v1273
    %v1275 = vand.u32 %v1274, 4294901760
    %v1276 = vsub.f32 %v1274, %v1275
    %v1277 = vand.u32 %v1276, 4294901760
    %1278 = vmatmul.mubr.f32.gmra.mrb[0].mxu0 %v1277
    %v1279 = vpop.f32.mrb[0].mxu0
    %v1280 = vadd.f32 0.0, %v1279
    %v1281 = vpop.f32.mrb[0].mxu0
    %1282 = vmatprep.mubr.f32.mxu0 0.0
    %v1283 = vand.u32 %v140, 4294901760
    %v1284 = vsub.f32 %v140, %v1283
    %v1285 = vand.u32 %v1284, 4294901760
    %v1286 = vsub.f32 %v1284, %v1285
    %v1287 = vand.u32 %v1286, 4294901760
    %1288 = vmatmul.mubr.f32.gmra.mrb[0].mxu0 %v1287
    %v1289 = vpop.f32.mrb[0].mxu0
    %v1290 = vadd.f32 0.0, %v1289
    %v1291 = vpop.f32.mrb[0].mxu0
    %1292 = vmatprep.mubr.f32.mxu0 0.0
    %v1293 = vand.u32 %v141, 4294901760
    %v1294 = vsub.f32 %v141, %v1293
    %v1295 = vand.u32 %v1294, 4294901760
    %v1296 = vsub.f32 %v1294, %v1295
    %v1297 = vand.u32 %v1296, 4294901760
    %1298 = vmatmul.mubr.f32.gmra.mrb[0].mxu0 %v1297
    %v1299 = vpop.f32.mrb[0].mxu0
    %v1300 = vadd.f32 0.0, %v1299
    %v1301 = vpop.f32.mrb[0].mxu0
    %1302 = vmatprep.mubr.f32.mxu0 0.0
    %v1303 = vand.u32 %v142, 4294901760
    %v1304 = vsub.f32 %v142, %v1303
    %v1305 = vand.u32 %v1304, 4294901760
    %v1306 = vsub.f32 %v1304, %v1305
    %v1307 = vand.u32 %v1306, 4294901760
    %1308 = vmatmul.mubr.f32.gmra.mrb[0].mxu0 %v1307
    %v1309 = vpop.f32.mrb[0].mxu0
    %v1310 = vadd.f32 0.0, %v1309
    %v1311 = vpop.f32.mrb[0].mxu0
    %1312 = vmatprep.mubr.f32.mxu0 0.0
    %v1313 = vand.u32 %v143, 4294901760
    %v1314 = vsub.f32 %v143, %v1313
    %v1315 = vand.u32 %v1314, 4294901760
    %v1316 = vsub.f32 %v1314, %v1315
    %v1317 = vand.u32 %v1316, 4294901760
    %1318 = vmatmul.mubr.f32.gmra.mrb[0].mxu0 %v1317
    %v1319 = vpop.f32.mrb[0].mxu0
    %v1320 = vadd.f32 0.0, %v1319
    %v1321 = vpop.f32.mrb[0].mxu0
    %1322 = vmatprep.mubr.f32.mxu0 0.0
    %v1323 = vand.u32 %v144, 4294901760
    %v1324 = vsub.f32 %v144, %v1323
    %v1325 = vand.u32 %v1324, 4294901760
    %v1326 = vsub.f32 %v1324, %v1325
    %v1327 = vand.u32 %v1326, 4294901760
    %1328 = vmatmul.mubr.f32.gmra.mrb[0].mxu0 %v1327
    %v1329 = vpop.f32.mrb[0].mxu0
    %v1330 = vadd.f32 0.0, %v1329
    %v1331 = vpop.f32.mrb[0].mxu0
    %1332 = vmatprep.mubr.f32.mxu0 0.0
    %v1333 = vand.u32 %v145, 4294901760
    %v1334 = vsub.f32 %v145, %v1333
    %v1335 = vand.u32 %v1334, 4294901760
    %v1336 = vsub.f32 %v1334, %v1335
    %v1337 = vand.u32 %v1336, 4294901760
    %1338 = vmatmul.mubr.f32.gmra.mrb[0].mxu0 %v1337
    %v1339 = vpop.f32.mrb[0].mxu0
    %v1340 = vadd.f32 0.0, %v1339
    %v1341 = vpop.f32.mrb[0].mxu0
    %1342 = vmatprep.mubr.f32.mxu0 0.0
    %v1343 = vand.u32 %v146, 4294901760
    %v1344 = vsub.f32 %v146, %v1343
    %v1345 = vand.u32 %v1344, 4294901760
    %v1346 = vsub.f32 %v1344, %v1345
    %v1347 = vand.u32 %v1346, 4294901760
    %1348 = vmatmul.mubr.f32.gmra.mrb[0].mxu0 %v1347
    %v1349 = vpop.f32.mrb[0].mxu0
    %v1350 = vadd.f32 0.0, %v1349
    %v1351 = vpop.f32.mrb[0].mxu0
    %1352 = vmatprep.mubr.f32.mxu0 0.0
    %v1353 = vand.u32 %v147, 4294901760
    %v1354 = vsub.f32 %v147, %v1353
    %v1355 = vand.u32 %v1354, 4294901760
    %v1356 = vsub.f32 %v1354, %v1355
    %v1357 = vand.u32 %v1356, 4294901760
    %1358 = vmatmul.mubr.f32.gmra.mrb[0].mxu0 %v1357
    %v1359 = vpop.f32.mrb[0].mxu0
    %v1360 = vadd.f32 0.0, %v1359
    %v1361 = vpop.f32.mrb[0].mxu0
    %1362 = vmatprep.mubr.f32.mxu0 0.0
    %v1363 = vand.u32 %v148, 4294901760
    %v1364 = vsub.f32 %v148, %v1363
    %v1365 = vand.u32 %v1364, 4294901760
    %v1366 = vsub.f32 %v1364, %v1365
    %v1367 = vand.u32 %v1366, 4294901760
    %1368 = vmatmul.mubr.f32.gmra.mrb[0].mxu0 %v1367
    %v1369 = vpop.f32.mrb[0].mxu0
    %v1370 = vadd.f32 0.0, %v1369
    %v1371 = vpop.f32.mrb[0].mxu0
    %1372 = vmatprep.mubr.f32.mxu0 0.0
    %v1373 = vand.u32 %v149, 4294901760
    %v1374 = vsub.f32 %v149, %v1373
    %v1375 = vand.u32 %v1374, 4294901760
    %v1376 = vsub.f32 %v1374, %v1375
    %v1377 = vand.u32 %v1376, 4294901760
    %1378 = vmatmul.mubr.f32.gmra.mrb[0].mxu0 %v1377
    %v1379 = vpop.f32.mrb[0].mxu0
    %v1380 = vadd.f32 0.0, %v1379
    %v1381 = vpop.f32.mrb[0].mxu0
    %1382 = vmatprep.mubr.f32.mxu0 0.0
    %v1383 = vand.u32 %v150, 4294901760
    %v1384 = vsub.f32 %v150, %v1383
    %v1385 = vand.u32 %v1384, 4294901760
    %v1386 = vsub.f32 %v1384, %v1385
    %v1387 = vand.u32 %v1386, 4294901760
    %1388 = vmatmul.mubr.f32.gmra.mrb[0].mxu0 %v1387
    %v1389 = vpop.f32.mrb[0].mxu0
    %v1390 = vadd.f32 0.0, %v1389
    %v1391 = vpop.f32.mrb[0].mxu0
    %1392 = vmatprep.mubr.f32.mxu0 0.0
    %v1393 = vand.u32 %v151, 4294901760
    %v1394 = vsub.f32 %v151, %v1393
    %v1395 = vand.u32 %v1394, 4294901760
    %v1396 = vsub.f32 %v1394, %v1395
    %v1397 = vand.u32 %v1396, 4294901760
    %1398 = vmatmul.mubr.f32.gmra.mrb[0].mxu0 %v1397
    %v1399 = vpop.f32.mrb[0].mxu0
    %v1400 = vadd.f32 0.0, %v1399
    %v1401 = vpop.f32.mrb[0].mxu0
    %1402 = vmatprep.mubr.f32.mxu0 0.0
    %v1403 = vand.u32 %v152, 4294901760
    %v1404 = vsub.f32 %v152, %v1403
    %v1405 = vand.u32 %v1404, 4294901760
    %v1406 = vsub.f32 %v1404, %v1405
    %v1407 = vand.u32 %v1406, 4294901760
    %1408 = vmatmul.mubr.f32.gmra.mrb[0].mxu0 %v1407
    %v1409 = vpop.f32.mrb[0].mxu0
    %v1410 = vadd.f32 0.0, %v1409
    %v1411 = vpop.f32.mrb[0].mxu0
    %1412 = vmatprep.mubr.f32.mxu0 0.0
    %v1413 = vand.u32 %v153, 4294901760
    %v1414 = vsub.f32 %v153, %v1413
    %v1415 = vand.u32 %v1414, 4294901760
    %v1416 = vsub.f32 %v1414, %v1415
    %v1417 = vand.u32 %v1416, 4294901760
    %1418 = vmatmul.mubr.f32.gmra.mrb[0].mxu0 %v1417
    %v1419 = vpop.f32.mrb[0].mxu0
    %v1420 = vadd.f32 0.0, %v1419
    %v1421 = vpop.f32.mrb[0].mxu0
    %1422 = vmatprep.mubr.f32.mxu0 0.0
    %v1423 = vand.u32 %v154, 4294901760
    %v1424 = vsub.f32 %v154, %v1423
    %v1425 = vand.u32 %v1424, 4294901760
    %v1426 = vsub.f32 %v1424, %v1425
    %v1427 = vand.u32 %v1426, 4294901760
    %1428 = vmatmul.mubr.f32.gmra.mrb[0].mxu0 %v1427
    %v1429 = vpop.f32.mrb[0].mxu0
    %v1430 = vadd.f32 0.0, %v1429
    %v1431 = vpop.f32.mrb[0].mxu0
    %1432 = vmatprep.mubr.f32.mxu0 0.0
    %v1433 = vand.u32 %v155, 4294901760
    %v1434 = vsub.f32 %v155, %v1433
    %v1435 = vand.u32 %v1434, 4294901760
    %v1436 = vsub.f32 %v1434, %v1435
    %v1437 = vand.u32 %v1436, 4294901760
    %1438 = vmatmul.mubr.f32.gmra.mrb[0].mxu0 %v1437
    %v1439 = vpop.f32.mrb[0].mxu0
    %v1440 = vadd.f32 0.0, %v1439
    %v1441 = vpop.f32.mrb[0].mxu0
    %1442 = vmatprep.mubr.f32.mxu0 0.0
    %v1443 = vand.u32 %v156, 4294901760
    %v1444 = vsub.f32 %v156, %v1443
    %v1445 = vand.u32 %v1444, 4294901760
    %v1446 = vsub.f32 %v1444, %v1445
    %v1447 = vand.u32 %v1446, 4294901760
    %1448 = vmatmul.mubr.f32.gmra.mrb[0].mxu0 %v1447
    %v1449 = vpop.f32.mrb[0].mxu0
    %v1450 = vadd.f32 0.0, %v1449
    %v1451 = vpop.f32.mrb[0].mxu0
    %1452 = vmatprep.mubr.f32.mxu0 0.0
    %v1453 = vand.u32 %v157, 4294901760
    %v1454 = vsub.f32 %v157, %v1453
    %v1455 = vand.u32 %v1454, 4294901760
    %v1456 = vsub.f32 %v1454, %v1455
    %v1457 = vand.u32 %v1456, 4294901760
    %1458 = vmatmul.mubr.f32.gmra.mrb[0].mxu0 %v1457
    %v1459 = vpop.f32.mrb[0].mxu0
    %v1460 = vadd.f32 0.0, %v1459
    %v1461 = vpop.f32.mrb[0].mxu0
    %1462 = vmatprep.mubr.f32.mxu0 0.0
    %v1463 = vand.u32 %v158, 4294901760
    %v1464 = vsub.f32 %v158, %v1463
    %v1465 = vand.u32 %v1464, 4294901760
    %v1466 = vsub.f32 %v1464, %v1465
    %v1467 = vand.u32 %v1466, 4294901760
    %1468 = vmatmul.mubr.f32.gmra.mrb[0].mxu0 %v1467
    %v1469 = vpop.f32.mrb[0].mxu0
    %v1470 = vadd.f32 0.0, %v1469
    %v1471 = vpop.f32.mrb[0].mxu0
    %1472 = vmatprep.mubr.f32.mxu0 0.0
    %v1473 = vand.u32 %v159, 4294901760
    %v1474 = vsub.f32 %v159, %v1473
    %v1475 = vand.u32 %v1474, 4294901760
    %v1476 = vsub.f32 %v1474, %v1475
    %v1477 = vand.u32 %v1476, 4294901760
    %1478 = vmatmul.mubr.f32.gmra.mrb[0].mxu0 %v1477
    %v1479 = vpop.f32.mrb[0].mxu0
    %v1480 = vadd.f32 0.0, %v1479
    %v1481 = vpop.f32.mrb[0].mxu0
    %1482 = vmatprep.mubr.f32.mxu0 0.0
    %v1483 = vand.u32 %v160, 4294901760
    %v1484 = vsub.f32 %v160, %v1483
    %v1485 = vand.u32 %v1484, 4294901760
    %v1486 = vsub.f32 %v1484, %v1485
    %v1487 = vand.u32 %v1486, 4294901760
    %1488 = vmatmul.mubr.f32.gmra.mrb[0].mxu0 %v1487
    %v1489 = vpop.f32.mrb[0].mxu0
    %v1490 = vadd.f32 0.0, %v1489
    %v1491 = vpop.f32.mrb[0].mxu0
    %1492 = vmatprep.mubr.f32.mxu0 0.0
    %v1493 = vand.u32 %v161, 4294901760
    %v1494 = vsub.f32 %v161, %v1493
    %v1495 = vand.u32 %v1494, 4294901760
    %v1496 = vsub.f32 %v1494, %v1495
    %v1497 = vand.u32 %v1496, 4294901760
    %1498 = vmatmul.mubr.f32.gmra.mrb[0].mxu0 %v1497
    %v1499 = vpop.f32.mrb[0].mxu0
    %v1500 = vadd.f32 0.0, %v1499
    %v1501 = vpop.f32.mrb[0].mxu0
    %1502 = vmatprep.mubr.f32.mxu0 0.0
    %v1503 = vand.u32 %v162, 4294901760
    %v1504 = vsub.f32 %v162, %v1503
    %v1505 = vand.u32 %v1504, 4294901760
    %v1506 = vsub.f32 %v1504, %v1505
    %v1507 = vand.u32 %v1506, 4294901760
    %1508 = vmatmul.mubr.f32.gmra.mrb[0].mxu0 %v1507
    %v1509 = vpop.f32.mrb[0].mxu0
    %v1510 = vadd.f32 0.0, %v1509
    %v1511 = vpop.f32.mrb[0].mxu0
    %1512 = vmatprep.mubr.f32.mxu0 0.0
    %v1513 = vand.u32 %v163, 4294901760
    %v1514 = vsub.f32 %v163, %v1513
    %v1515 = vand.u32 %v1514, 4294901760
    %v1516 = vsub.f32 %v1514, %v1515
    %v1517 = vand.u32 %v1516, 4294901760
    %1518 = vmatmul.mubr.f32.gmra.mrb[0].mxu0 %v1517
    %v1519 = vpop.f32.mrb[0].mxu0
    %v1520 = vadd.f32 0.0, %v1519
    %v1521 = vpop.f32.mrb[0].mxu0
    %1522 = vmatprep.mubr.f32.mxu0 0.0
    %v1523 = vand.u32 %v164, 4294901760
    %v1524 = vsub.f32 %v164, %v1523
    %v1525 = vand.u32 %v1524, 4294901760
    %v1526 = vsub.f32 %v1524, %v1525
    %v1527 = vand.u32 %v1526, 4294901760
    %1528 = vmatmul.mubr.f32.gmra.mrb[0].mxu0 %v1527
    %v1529 = vpop.f32.mrb[0].mxu0
    %v1530 = vadd.f32 0.0, %v1529
    %v1531 = vpop.f32.mrb[0].mxu0
    %1532 = vmatprep.mubr.f32.mxu0 0.0
    %v1533 = vand.u32 %v165, 4294901760
    %v1534 = vsub.f32 %v165, %v1533
    %v1535 = vand.u32 %v1534, 4294901760
    %v1536 = vsub.f32 %v1534, %v1535
    %v1537 = vand.u32 %v1536, 4294901760
    %1538 = vmatmul.mubr.f32.gmra.mrb[0].mxu0 %v1537
    %v1539 = vpop.f32.mrb[0].mxu0
    %v1540 = vadd.f32 0.0, %v1539
    %v1541 = vpop.f32.mrb[0].mxu0
    %1542 = vdwg.mxu0
    %1543 = vmatprep.subr.mxu0 0.0
    %v1544 = vand.u32 %v166, 4294901760
    %v1545 = vsub.f32 %v166, %v1544
    %v1546 = vand.u32 %v1545, 4294901760
    %v1547 = vsub.f32 %v1545, %v1546
    %v1548 = vand.u32 %v1547, 4294901760
    %1549 = vmatpush1.msra.mxu0 %v1548
    %1550 = vmatprep.subr.mxu0 0.0
    %v1551 = vand.u32 %v167, 4294901760
    %v1552 = vsub.f32 %v167, %v1551
    %v1553 = vand.u32 %v1552, 4294901760
    %v1554 = vsub.f32 %v1552, %v1553
    %v1555 = vand.u32 %v1554, 4294901760
    %1556 = vmatpush1.msra.mxu0 %v1555
    %1557 = vmatprep.subr.mxu0 0.0
    %v1558 = vand.u32 %v168, 4294901760
    %v1559 = vsub.f32 %v168, %v1558
    %v1560 = vand.u32 %v1559, 4294901760
    %v1561 = vsub.f32 %v1559, %v1560
    %v1562 = vand.u32 %v1561, 4294901760
    %1563 = vmatpush1.msra.mxu0 %v1562
    %1564 = vmatprep.subr.mxu0 0.0
    %v1565 = vand.u32 %v169, 4294901760
    %v1566 = vsub.f32 %v169, %v1565
    %v1567 = vand.u32 %v1566, 4294901760
    %v1568 = vsub.f32 %v1566, %v1567
    %v1569 = vand.u32 %v1568, 4294901760
    %1570 = vmatpush1.msra.mxu0 %v1569
    %1571 = vmatprep.subr.mxu0 0.0
    %v1572 = vand.u32 %v170, 4294901760
    %v1573 = vsub.f32 %v170, %v1572
    %v1574 = vand.u32 %v1573, 4294901760
    %v1575 = vsub.f32 %v1573, %v1574
    %v1576 = vand.u32 %v1575, 4294901760
    %1577 = vmatpush1.msra.mxu0 %v1576
    %1578 = vmatprep.subr.mxu0 0.0
    %v1579 = vand.u32 %v171, 4294901760
    %v1580 = vsub.f32 %v171, %v1579
    %v1581 = vand.u32 %v1580, 4294901760
    %v1582 = vsub.f32 %v1580, %v1581
    %v1583 = vand.u32 %v1582, 4294901760
    %1584 = vmatpush1.msra.mxu0 %v1583
    %1585 = vmatprep.subr.mxu0 0.0
    %v1586 = vand.u32 %v172, 4294901760
    %v1587 = vsub.f32 %v172, %v1586
    %v1588 = vand.u32 %v1587, 4294901760
    %v1589 = vsub.f32 %v1587, %v1588
    %v1590 = vand.u32 %v1589, 4294901760
    %1591 = vmatpush1.msra.mxu0 %v1590
    %1592 = vmatprep.subr.mxu0 0.0
    %v1593 = vand.u32 %v173, 4294901760
    %v1594 = vsub.f32 %v173, %v1593
    %v1595 = vand.u32 %v1594, 4294901760
    %v1596 = vsub.f32 %v1594, %v1595
    %v1597 = vand.u32 %v1596, 4294901760
    %1598 = vmatpush1.msra.mxu0 %v1597
    %1599 = vmatprep.subr.mxu0 0.0
    %v1600 = vand.u32 %v174, 4294901760
    %v1601 = vsub.f32 %v174, %v1600
    %v1602 = vand.u32 %v1601, 4294901760
    %v1603 = vsub.f32 %v1601, %v1602
    %v1604 = vand.u32 %v1603, 4294901760
    %1605 = vmatpush1.msra.mxu0 %v1604
    %1606 = vmatprep.subr.mxu0 0.0
    %v1607 = vand.u32 %v175, 4294901760
    %v1608 = vsub.f32 %v175, %v1607
    %v1609 = vand.u32 %v1608, 4294901760
    %v1610 = vsub.f32 %v1608, %v1609
    %v1611 = vand.u32 %v1610, 4294901760
    %1612 = vmatpush1.msra.mxu0 %v1611
    %1613 = vmatprep.subr.mxu0 0.0
    %v1614 = vand.u32 %v176, 4294901760
    %v1615 = vsub.f32 %v176, %v1614
    %v1616 = vand.u32 %v1615, 4294901760
    %v1617 = vsub.f32 %v1615, %v1616
    %v1618 = vand.u32 %v1617, 4294901760
    %1619 = vmatpush1.msra.mxu0 %v1618
    %1620 = vmatprep.subr.mxu0 0.0
    %v1621 = vand.u32 %v177, 4294901760
    %v1622 = vsub.f32 %v177, %v1621
    %v1623 = vand.u32 %v1622, 4294901760
    %v1624 = vsub.f32 %v1622, %v1623
    %v1625 = vand.u32 %v1624, 4294901760
    %1626 = vmatpush1.msra.mxu0 %v1625
    %1627 = vmatprep.subr.mxu0 0.0
    %v1628 = vand.u32 %v178, 4294901760
    %v1629 = vsub.f32 %v178, %v1628
    %v1630 = vand.u32 %v1629, 4294901760
    %v1631 = vsub.f32 %v1629, %v1630
    %v1632 = vand.u32 %v1631, 4294901760
    %1633 = vmatpush1.msra.mxu0 %v1632
    %1634 = vmatprep.subr.mxu0 0.0
    %v1635 = vand.u32 %v179, 4294901760
    %v1636 = vsub.f32 %v179, %v1635
    %v1637 = vand.u32 %v1636, 4294901760
    %v1638 = vsub.f32 %v1636, %v1637
    %v1639 = vand.u32 %v1638, 4294901760
    %1640 = vmatpush1.msra.mxu0 %v1639
    %1641 = vmatprep.subr.mxu0 0.0
    %v1642 = vand.u32 %v180, 4294901760
    %v1643 = vsub.f32 %v180, %v1642
    %v1644 = vand.u32 %v1643, 4294901760
    %v1645 = vsub.f32 %v1643, %v1644
    %v1646 = vand.u32 %v1645, 4294901760
    %1647 = vmatpush1.msra.mxu0 %v1646
    %1648 = vmatprep.subr.mxu0 0.0
    %v1649 = vand.u32 %v181, 4294901760
    %v1650 = vsub.f32 %v181, %v1649
    %v1651 = vand.u32 %v1650, 4294901760
    %v1652 = vsub.f32 %v1650, %v1651
    %v1653 = vand.u32 %v1652, 4294901760
    %1654 = vmatpush1.msra.mxu0 %v1653
    %1655 = vmatprep.subr.mxu0 0.0
    %1656 = vmatpush1.msra.mxu0 0.0
    %1657 = vmatprep.subr.mxu0 0.0
    %1658 = vmatpush1.msra.mxu0 0.0
    %1659 = vmatprep.subr.mxu0 0.0
    %1660 = vmatpush1.msra.mxu0 0.0
    %1661 = vmatprep.subr.mxu0 0.0
    %1662 = vmatpush1.msra.mxu0 0.0
    %1663 = vmatprep.subr.mxu0 0.0
    %1664 = vmatpush1.msra.mxu0 0.0
    %1665 = vmatprep.subr.mxu0 0.0
    %1666 = vmatpush1.msra.mxu0 0.0
    %1667 = vmatprep.subr.mxu0 0.0
    %1668 = vmatpush1.msra.mxu0 0.0
    %1669 = vmatprep.subr.mxu0 0.0
    %1670 = vmatpush1.msra.mxu0 0.0
    %1671 = vmatprep.subr.mxu0 0.0
    %1672 = vmatpush1.msra.mxu0 0.0
    %1673 = vmatprep.subr.mxu0 0.0
    %1674 = vmatpush1.msra.mxu0 0.0
    %1675 = vmatprep.subr.mxu0 0.0
    %1676 = vmatpush1.msra.mxu0 0.0
    %1677 = vmatprep.subr.mxu0 0.0
    %1678 = vmatpush1.msra.mxu0 0.0
    %1679 = vmatprep.subr.mxu0 0.0
    %1680 = vmatpush1.msra.mxu0 0.0
    %1681 = vmatprep.subr.mxu0 0.0
    %1682 = vmatpush1.msra.mxu0 0.0
    %1683 = vmatprep.subr.mxu0 0.0
    %1684 = vmatpush1.msra.mxu0 0.0
    %1685 = vmatprep.subr.mxu0 0.0
    %1686 = vmatpush1.msra.mxu0 0.0
    %1687 = vmatprep.mubr.f32.mxu0 0.0
    %v1688 = vand.u32 %v38, 4294901760
    %1689 = vmatmul.mubr.f32.gmra.mrb[0].mxu0 %v1688
    %v1690 = vpop.f32.mrb[0].mxu0
    %v1691 = vadd.f32 %v270, %v1690
    %v1692 = vpop.f32.mrb[0].mxu0
    %1693 = vmatprep.mubr.f32.mxu0 0.0
    %v1694 = vand.u32 %v39, 4294901760
    %1695 = vmatmul.mubr.f32.gmra.mrb[0].mxu0 %v1694
    %v1696 = vpop.f32.mrb[0].mxu0
    %v1697 = vadd.f32 %v280, %v1696
    %v1698 = vpop.f32.mrb[0].mxu0
    %1699 = vmatprep.mubr.f32.mxu0 0.0
    %v1700 = vand.u32 %v40, 4294901760
    %1701 = vmatmul.mubr.f32.gmra.mrb[0].mxu0 %v1700
    %v1702 = vpop.f32.mrb[0].mxu0
    %v1703 = vadd.f32 %v290, %v1702
    %v1704 = vpop.f32.mrb[0].mxu0
    %1705 = vmatprep.mubr.f32.mxu0 0.0
    %v1706 = vand.u32 %v41, 4294901760
    %1707 = vmatmul.mubr.f32.gmra.mrb[0].mxu0 %v1706
    %v1708 = vpop.f32.mrb[0].mxu0
    %v1709 = vadd.f32 %v300, %v1708
    %v1710 = vpop.f32.mrb[0].mxu0
    %1711 = vmatprep.mubr.f32.mxu0 0.0
    %v1712 = vand.u32 %v42, 4294901760
    %1713 = vmatmul.mubr.f32.gmra.mrb[0].mxu0 %v1712
    %v1714 = vpop.f32.mrb[0].mxu0
    %v1715 = vadd.f32 %v310, %v1714
    %v1716 = vpop.f32.mrb[0].mxu0
    %1717 = vmatprep.mubr.f32.mxu0 0.0
    %v1718 = vand.u32 %v43, 4294901760
    %1719 = vmatmul.mubr.f32.gmra.mrb[0].mxu0 %v1718
    %v1720 = vpop.f32.mrb[0].mxu0
    %v1721 = vadd.f32 %v320, %v1720
    %v1722 = vpop.f32.mrb[0].mxu0
    %1723 = vmatprep.mubr.f32.mxu0 0.0
    %v1724 = vand.u32 %v44, 4294901760
    %1725 = vmatmul.mubr.f32.gmra.mrb[0].mxu0 %v1724
    %v1726 = vpop.f32.mrb[0].mxu0
    %v1727 = vadd.f32 %v330, %v1726
    %v1728 = vpop.f32.mrb[0].mxu0
    %1729 = vmatprep.mubr.f32.mxu0 0.0
    %v1730 = vand.u32 %v45, 4294901760
    %1731 = vmatmul.mubr.f32.gmra.mrb[0].mxu0 %v1730
    %v1732 = vpop.f32.mrb[0].mxu0
    %v1733 = vadd.f32 %v340, %v1732
    %v1734 = vpop.f32.mrb[0].mxu0
    %1735 = vmatprep.mubr.f32.mxu0 0.0
    %v1736 = vand.u32 %v46, 4294901760
    %1737 = vmatmul.mubr.f32.gmra.mrb[0].mxu0 %v1736
    %v1738 = vpop.f32.mrb[0].mxu0
    %v1739 = vadd.f32 %v350, %v1738
    %v1740 = vpop.f32.mrb[0].mxu0
    %1741 = vmatprep.mubr.f32.mxu0 0.0
    %v1742 = vand.u32 %v47, 4294901760
    %1743 = vmatmul.mubr.f32.gmra.mrb[0].mxu0 %v1742
    %v1744 = vpop.f32.mrb[0].mxu0
    %v1745 = vadd.f32 %v360, %v1744
    %v1746 = vpop.f32.mrb[0].mxu0
    %1747 = vmatprep.mubr.f32.mxu0 0.0
    %v1748 = vand.u32 %v48, 4294901760
    %1749 = vmatmul.mubr.f32.gmra.mrb[0].mxu0 %v1748
    %v1750 = vpop.f32.mrb[0].mxu0
    %v1751 = vadd.f32 %v370, %v1750
    %v1752 = vpop.f32.mrb[0].mxu0
    %1753 = vmatprep.mubr.f32.mxu0 0.0
    %v1754 = vand.u32 %v49, 4294901760
    %1755 = vmatmul.mubr.f32.gmra.mrb[0].mxu0 %v1754
    %v1756 = vpop.f32.mrb[0].mxu0
    %v1757 = vadd.f32 %v380, %v1756
    %v1758 = vpop.f32.mrb[0].mxu0
    %1759 = vmatprep.mubr.f32.mxu0 0.0
    %v1760 = vand.u32 %v50, 4294901760
    %1761 = vmatmul.mubr.f32.gmra.mrb[0].mxu0 %v1760
    %v1762 = vpop.f32.mrb[0].mxu0
    %v1763 = vadd.f32 %v390, %v1762
    %v1764 = vpop.f32.mrb[0].mxu0
    %1765 = vmatprep.mubr.f32.mxu0 0.0
    %v1766 = vand.u32 %v51, 4294901760
    %1767 = vmatmul.mubr.f32.gmra.mrb[0].mxu0 %v1766
    %v1768 = vpop.f32.mrb[0].mxu0
    %v1769 = vadd.f32 %v400, %v1768
    %v1770 = vpop.f32.mrb[0].mxu0
    %1771 = vmatprep.mubr.f32.mxu0 0.0
    %v1772 = vand.u32 %v52, 4294901760
    %1773 = vmatmul.mubr.f32.gmra.mrb[0].mxu0 %v1772
    %v1774 = vpop.f32.mrb[0].mxu0
    %v1775 = vadd.f32 %v410, %v1774
    %v1776 = vpop.f32.mrb[0].mxu0
    %1777 = vmatprep.mubr.f32.mxu0 0.0
    %v1778 = vand.u32 %v53, 4294901760
    %1779 = vmatmul.mubr.f32.gmra.mrb[0].mxu0 %v1778
    %v1780 = vpop.f32.mrb[0].mxu0
    %v1781 = vadd.f32 %v420, %v1780
    %v1782 = vpop.f32.mrb[0].mxu0
    %1783 = vmatprep.mubr.f32.mxu0 0.0
    %v1784 = vand.u32 %v54, 4294901760
    %1785 = vmatmul.mubr.f32.gmra.mrb[0].mxu0 %v1784
    %v1786 = vpop.f32.mrb[0].mxu0
    %v1787 = vadd.f32 %v430, %v1786
    %v1788 = vpop.f32.mrb[0].mxu0
    %1789 = vmatprep.mubr.f32.mxu0 0.0
    %v1790 = vand.u32 %v55, 4294901760
    %1791 = vmatmul.mubr.f32.gmra.mrb[0].mxu0 %v1790
    %v1792 = vpop.f32.mrb[0].mxu0
    %v1793 = vadd.f32 %v440, %v1792
    %v1794 = vpop.f32.mrb[0].mxu0
    %1795 = vmatprep.mubr.f32.mxu0 0.0
    %v1796 = vand.u32 %v56, 4294901760
    %1797 = vmatmul.mubr.f32.gmra.mrb[0].mxu0 %v1796
    %v1798 = vpop.f32.mrb[0].mxu0
    %v1799 = vadd.f32 %v450, %v1798
    %v1800 = vpop.f32.mrb[0].mxu0
    %1801 = vmatprep.mubr.f32.mxu0 0.0
    %v1802 = vand.u32 %v57, 4294901760
    %1803 = vmatmul.mubr.f32.gmra.mrb[0].mxu0 %v1802
    %v1804 = vpop.f32.mrb[0].mxu0
    %v1805 = vadd.f32 %v460, %v1804
    %v1806 = vpop.f32.mrb[0].mxu0
    %1807 = vmatprep.mubr.f32.mxu0 0.0
    %v1808 = vand.u32 %v58, 4294901760
    %1809 = vmatmul.mubr.f32.gmra.mrb[0].mxu0 %v1808
    %v1810 = vpop.f32.mrb[0].mxu0
    %v1811 = vadd.f32 %v470, %v1810
    %v1812 = vpop.f32.mrb[0].mxu0
    %1813 = vmatprep.mubr.f32.mxu0 0.0
    %v1814 = vand.u32 %v59, 4294901760
    %1815 = vmatmul.mubr.f32.gmra.mrb[0].mxu0 %v1814
    %v1816 = vpop.f32.mrb[0].mxu0
    %v1817 = vadd.f32 %v480, %v1816
    %v1818 = vpop.f32.mrb[0].mxu0
    %1819 = vmatprep.mubr.f32.mxu0 0.0
    %v1820 = vand.u32 %v60, 4294901760
    %1821 = vmatmul.mubr.f32.gmra.mrb[0].mxu0 %v1820
    %v1822 = vpop.f32.mrb[0].mxu0
    %v1823 = vadd.f32 %v490, %v1822
    %v1824 = vpop.f32.mrb[0].mxu0
    %1825 = vmatprep.mubr.f32.mxu0 0.0
    %v1826 = vand.u32 %v61, 4294901760
    %1827 = vmatmul.mubr.f32.gmra.mrb[0].mxu0 %v1826
    %v1828 = vpop.f32.mrb[0].mxu0
    %v1829 = vadd.f32 %v500, %v1828
    %v1830 = vpop.f32.mrb[0].mxu0
    %1831 = vmatprep.mubr.f32.mxu0 0.0
    %v1832 = vand.u32 %v62, 4294901760
    %1833 = vmatmul.mubr.f32.gmra.mrb[0].mxu0 %v1832
    %v1834 = vpop.f32.mrb[0].mxu0
    %v1835 = vadd.f32 %v510, %v1834
    %v1836 = vpop.f32.mrb[0].mxu0
    %1837 = vmatprep.mubr.f32.mxu0 0.0
    %v1838 = vand.u32 %v63, 4294901760
    %1839 = vmatmul.mubr.f32.gmra.mrb[0].mxu0 %v1838
    %v1840 = vpop.f32.mrb[0].mxu0
    %v1841 = vadd.f32 %v520, %v1840
    %v1842 = vpop.f32.mrb[0].mxu0
    %1843 = vmatprep.mubr.f32.mxu0 0.0
    %v1844 = vand.u32 %v64, 4294901760
    %1845 = vmatmul.mubr.f32.gmra.mrb[0].mxu0 %v1844
    %v1846 = vpop.f32.mrb[0].mxu0
    %v1847 = vadd.f32 %v530, %v1846
    %v1848 = vpop.f32.mrb[0].mxu0
    %1849 = vmatprep.mubr.f32.mxu0 0.0
    %v1850 = vand.u32 %v65, 4294901760
    %1851 = vmatmul.mubr.f32.gmra.mrb[0].mxu0 %v1850
    %v1852 = vpop.f32.mrb[0].mxu0
    %v1853 = vadd.f32 %v540, %v1852
    %v1854 = vpop.f32.mrb[0].mxu0
    %1855 = vmatprep.mubr.f32.mxu0 0.0
    %v1856 = vand.u32 %v66, 4294901760
    %1857 = vmatmul.mubr.f32.gmra.mrb[0].mxu0 %v1856
    %v1858 = vpop.f32.mrb[0].mxu0
    %v1859 = vadd.f32 %v550, %v1858
    %v1860 = vpop.f32.mrb[0].mxu0
    %1861 = vmatprep.mubr.f32.mxu0 0.0
    %v1862 = vand.u32 %v67, 4294901760
    %1863 = vmatmul.mubr.f32.gmra.mrb[0].mxu0 %v1862
    %v1864 = vpop.f32.mrb[0].mxu0
    %v1865 = vadd.f32 %v560, %v1864
    %v1866 = vpop.f32.mrb[0].mxu0
    %1867 = vmatprep.mubr.f32.mxu0 0.0
    %v1868 = vand.u32 %v68, 4294901760
    %1869 = vmatmul.mubr.f32.gmra.mrb[0].mxu0 %v1868
    %v1870 = vpop.f32.mrb[0].mxu0
    %v1871 = vadd.f32 %v570, %v1870
    %v1872 = vpop.f32.mrb[0].mxu0
    %1873 = vmatprep.mubr.f32.mxu0 0.0
    %v1874 = vand.u32 %v69, 4294901760
    %1875 = vmatmul.mubr.f32.gmra.mrb[0].mxu0 %v1874
    %v1876 = vpop.f32.mrb[0].mxu0
    %v1877 = vadd.f32 %v580, %v1876
    %v1878 = vpop.f32.mrb[0].mxu0
    %1879 = vmatprep.mubr.f32.mxu0 0.0
    %v1880 = vand.u32 %v70, 4294901760
    %1881 = vmatmul.mubr.f32.gmra.mrb[0].mxu0 %v1880
    %v1882 = vpop.f32.mrb[0].mxu0
    %v1883 = vadd.f32 %v590, %v1882
    %v1884 = vpop.f32.mrb[0].mxu0
    %1885 = vmatprep.mubr.f32.mxu0 0.0
    %v1886 = vand.u32 %v71, 4294901760
    %1887 = vmatmul.mubr.f32.gmra.mrb[0].mxu0 %v1886
    %v1888 = vpop.f32.mrb[0].mxu0
    %v1889 = vadd.f32 %v600, %v1888
    %v1890 = vpop.f32.mrb[0].mxu0
    %1891 = vmatprep.mubr.f32.mxu0 0.0
    %v1892 = vand.u32 %v72, 4294901760
    %1893 = vmatmul.mubr.f32.gmra.mrb[0].mxu0 %v1892
    %v1894 = vpop.f32.mrb[0].mxu0
    %v1895 = vadd.f32 %v610, %v1894
    %v1896 = vpop.f32.mrb[0].mxu0
    %1897 = vmatprep.mubr.f32.mxu0 0.0
    %v1898 = vand.u32 %v73, 4294901760
    %1899 = vmatmul.mubr.f32.gmra.mrb[0].mxu0 %v1898
    %v1900 = vpop.f32.mrb[0].mxu0
    %v1901 = vadd.f32 %v620, %v1900
    %v1902 = vpop.f32.mrb[0].mxu0
    %1903 = vmatprep.mubr.f32.mxu0 0.0
    %v1904 = vand.u32 %v74, 4294901760
    %1905 = vmatmul.mubr.f32.gmra.mrb[0].mxu0 %v1904
    %v1906 = vpop.f32.mrb[0].mxu0
    %v1907 = vadd.f32 %v630, %v1906
    %v1908 = vpop.f32.mrb[0].mxu0
    %1909 = vmatprep.mubr.f32.mxu0 0.0
    %v1910 = vand.u32 %v75, 4294901760
    %1911 = vmatmul.mubr.f32.gmra.mrb[0].mxu0 %v1910
    %v1912 = vpop.f32.mrb[0].mxu0
    %v1913 = vadd.f32 %v640, %v1912
    %v1914 = vpop.f32.mrb[0].mxu0
    %1915 = vmatprep.mubr.f32.mxu0 0.0
    %v1916 = vand.u32 %v76, 4294901760
    %1917 = vmatmul.mubr.f32.gmra.mrb[0].mxu0 %v1916
    %v1918 = vpop.f32.mrb[0].mxu0
    %v1919 = vadd.f32 %v650, %v1918
    %v1920 = vpop.f32.mrb[0].mxu0
    %1921 = vmatprep.mubr.f32.mxu0 0.0
    %v1922 = vand.u32 %v77, 4294901760
    %1923 = vmatmul.mubr.f32.gmra.mrb[0].mxu0 %v1922
    %v1924 = vpop.f32.mrb[0].mxu0
    %v1925 = vadd.f32 %v660, %v1924
    %v1926 = vpop.f32.mrb[0].mxu0
    %1927 = vmatprep.mubr.f32.mxu0 0.0
    %v1928 = vand.u32 %v78, 4294901760
    %1929 = vmatmul.mubr.f32.gmra.mrb[0].mxu0 %v1928
    %v1930 = vpop.f32.mrb[0].mxu0
    %v1931 = vadd.f32 %v670, %v1930
    %v1932 = vpop.f32.mrb[0].mxu0
    %1933 = vmatprep.mubr.f32.mxu0 0.0
    %v1934 = vand.u32 %v79, 4294901760
    %1935 = vmatmul.mubr.f32.gmra.mrb[0].mxu0 %v1934
    %v1936 = vpop.f32.mrb[0].mxu0
    %v1937 = vadd.f32 %v680, %v1936
    %v1938 = vpop.f32.mrb[0].mxu0
    %1939 = vmatprep.mubr.f32.mxu0 0.0
    %v1940 = vand.u32 %v80, 4294901760
    %1941 = vmatmul.mubr.f32.gmra.mrb[0].mxu0 %v1940
    %v1942 = vpop.f32.mrb[0].mxu0
    %v1943 = vadd.f32 %v690, %v1942
    %v1944 = vpop.f32.mrb[0].mxu0
    %1945 = vmatprep.mubr.f32.mxu0 0.0
    %v1946 = vand.u32 %v81, 4294901760
    %1947 = vmatmul.mubr.f32.gmra.mrb[0].mxu0 %v1946
    %v1948 = vpop.f32.mrb[0].mxu0
    %v1949 = vadd.f32 %v700, %v1948
    %v1950 = vpop.f32.mrb[0].mxu0
    %1951 = vmatprep.mubr.f32.mxu0 0.0
    %v1952 = vand.u32 %v82, 4294901760
    %1953 = vmatmul.mubr.f32.gmra.mrb[0].mxu0 %v1952
    %v1954 = vpop.f32.mrb[0].mxu0
    %v1955 = vadd.f32 %v710, %v1954
    %v1956 = vpop.f32.mrb[0].mxu0
    %1957 = vmatprep.mubr.f32.mxu0 0.0
    %v1958 = vand.u32 %v83, 4294901760
    %1959 = vmatmul.mubr.f32.gmra.mrb[0].mxu0 %v1958
    %v1960 = vpop.f32.mrb[0].mxu0
    %v1961 = vadd.f32 %v720, %v1960
    %v1962 = vpop.f32.mrb[0].mxu0
    %1963 = vmatprep.mubr.f32.mxu0 0.0
    %v1964 = vand.u32 %v84, 4294901760
    %1965 = vmatmul.mubr.f32.gmra.mrb[0].mxu0 %v1964
    %v1966 = vpop.f32.mrb[0].mxu0
    %v1967 = vadd.f32 %v730, %v1966
    %v1968 = vpop.f32.mrb[0].mxu0
    %1969 = vmatprep.mubr.f32.mxu0 0.0
    %v1970 = vand.u32 %v85, 4294901760
    %1971 = vmatmul.mubr.f32.gmra.mrb[0].mxu0 %v1970
    %v1972 = vpop.f32.mrb[0].mxu0
    %v1973 = vadd.f32 %v740, %v1972
    %v1974 = vpop.f32.mrb[0].mxu0
    %1975 = vmatprep.mubr.f32.mxu0 0.0
    %v1976 = vand.u32 %v86, 4294901760
    %1977 = vmatmul.mubr.f32.gmra.mrb[0].mxu0 %v1976
    %v1978 = vpop.f32.mrb[0].mxu0
    %v1979 = vadd.f32 %v750, %v1978
    %v1980 = vpop.f32.mrb[0].mxu0
    %1981 = vmatprep.mubr.f32.mxu0 0.0
    %v1982 = vand.u32 %v87, 4294901760
    %1983 = vmatmul.mubr.f32.gmra.mrb[0].mxu0 %v1982
    %v1984 = vpop.f32.mrb[0].mxu0
    %v1985 = vadd.f32 %v760, %v1984
    %v1986 = vpop.f32.mrb[0].mxu0
    %1987 = vmatprep.mubr.f32.mxu0 0.0
    %v1988 = vand.u32 %v88, 4294901760
    %1989 = vmatmul.mubr.f32.gmra.mrb[0].mxu0 %v1988
    %v1990 = vpop.f32.mrb[0].mxu0
    %v1991 = vadd.f32 %v770, %v1990
    %v1992 = vpop.f32.mrb[0].mxu0
    %1993 = vmatprep.mubr.f32.mxu0 0.0
    %v1994 = vand.u32 %v89, 4294901760
    %1995 = vmatmul.mubr.f32.gmra.mrb[0].mxu0 %v1994
    %v1996 = vpop.f32.mrb[0].mxu0
    %v1997 = vadd.f32 %v780, %v1996
    %v1998 = vpop.f32.mrb[0].mxu0
    %1999 = vmatprep.mubr.f32.mxu0 0.0
    %v2000 = vand.u32 %v90, 4294901760
    %2001 = vmatmul.mubr.f32.gmra.mrb[0].mxu0 %v2000
    %v2002 = vpop.f32.mrb[0].mxu0
    %v2003 = vadd.f32 %v790, %v2002
    %v2004 = vpop.f32.mrb[0].mxu0
    %2005 = vmatprep.mubr.f32.mxu0 0.0
    %v2006 = vand.u32 %v91, 4294901760
    %2007 = vmatmul.mubr.f32.gmra.mrb[0].mxu0 %v2006
    %v2008 = vpop.f32.mrb[0].mxu0
    %v2009 = vadd.f32 %v800, %v2008
    %v2010 = vpop.f32.mrb[0].mxu0
    %2011 = vmatprep.mubr.f32.mxu0 0.0
    %v2012 = vand.u32 %v92, 4294901760
    %2013 = vmatmul.mubr.f32.gmra.mrb[0].mxu0 %v2012
    %v2014 = vpop.f32.mrb[0].mxu0
    %v2015 = vadd.f32 %v810, %v2014
    %v2016 = vpop.f32.mrb[0].mxu0
    %2017 = vmatprep.mubr.f32.mxu0 0.0
    %v2018 = vand.u32 %v93, 4294901760
    %2019 = vmatmul.mubr.f32.gmra.mrb[0].mxu0 %v2018
    %v2020 = vpop.f32.mrb[0].mxu0
    %v2021 = vadd.f32 %v820, %v2020
    %v2022 = vpop.f32.mrb[0].mxu0
    %2023 = vmatprep.mubr.f32.mxu0 0.0
    %v2024 = vand.u32 %v94, 4294901760
    %2025 = vmatmul.mubr.f32.gmra.mrb[0].mxu0 %v2024
    %v2026 = vpop.f32.mrb[0].mxu0
    %v2027 = vadd.f32 %v830, %v2026
    %v2028 = vpop.f32.mrb[0].mxu0
    %2029 = vmatprep.mubr.f32.mxu0 0.0
    %v2030 = vand.u32 %v95, 4294901760
    %2031 = vmatmul.mubr.f32.gmra.mrb[0].mxu0 %v2030
    %v2032 = vpop.f32.mrb[0].mxu0
    %v2033 = vadd.f32 %v840, %v2032
    %v2034 = vpop.f32.mrb[0].mxu0
    %2035 = vmatprep.mubr.f32.mxu0 0.0
    %v2036 = vand.u32 %v96, 4294901760
    %2037 = vmatmul.mubr.f32.gmra.mrb[0].mxu0 %v2036
    %v2038 = vpop.f32.mrb[0].mxu0
    %v2039 = vadd.f32 %v850, %v2038
    %v2040 = vpop.f32.mrb[0].mxu0
    %2041 = vmatprep.mubr.f32.mxu0 0.0
    %v2042 = vand.u32 %v97, 4294901760
    %2043 = vmatmul.mubr.f32.gmra.mrb[0].mxu0 %v2042
    %v2044 = vpop.f32.mrb[0].mxu0
    %v2045 = vadd.f32 %v860, %v2044
    %v2046 = vpop.f32.mrb[0].mxu0
    %2047 = vmatprep.mubr.f32.mxu0 0.0
    %v2048 = vand.u32 %v98, 4294901760
    %2049 = vmatmul.mubr.f32.gmra.mrb[0].mxu0 %v2048
    %v2050 = vpop.f32.mrb[0].mxu0
    %v2051 = vadd.f32 %v870, %v2050
    %v2052 = vpop.f32.mrb[0].mxu0
    %2053 = vmatprep.mubr.f32.mxu0 0.0
    %v2054 = vand.u32 %v99, 4294901760
    %2055 = vmatmul.mubr.f32.gmra.mrb[0].mxu0 %v2054
    %v2056 = vpop.f32.mrb[0].mxu0
    %v2057 = vadd.f32 %v880, %v2056
    %v2058 = vpop.f32.mrb[0].mxu0
    %2059 = vmatprep.mubr.f32.mxu0 0.0
    %v2060 = vand.u32 %v100, 4294901760
    %2061 = vmatmul.mubr.f32.gmra.mrb[0].mxu0 %v2060
    %v2062 = vpop.f32.mrb[0].mxu0
    %v2063 = vadd.f32 %v890, %v2062
    %v2064 = vpop.f32.mrb[0].mxu0
    %2065 = vmatprep.mubr.f32.mxu0 0.0
    %v2066 = vand.u32 %v101, 4294901760
    %2067 = vmatmul.mubr.f32.gmra.mrb[0].mxu0 %v2066
    %v2068 = vpop.f32.mrb[0].mxu0
    %v2069 = vadd.f32 %v900, %v2068
    %v2070 = vpop.f32.mrb[0].mxu0
    %2071 = vmatprep.mubr.f32.mxu0 0.0
    %v2072 = vand.u32 %v102, 4294901760
    %2073 = vmatmul.mubr.f32.gmra.mrb[0].mxu0 %v2072
    %v2074 = vpop.f32.mrb[0].mxu0
    %v2075 = vadd.f32 %v910, %v2074
    %v2076 = vpop.f32.mrb[0].mxu0
    %2077 = vmatprep.mubr.f32.mxu0 0.0
    %v2078 = vand.u32 %v103, 4294901760
    %2079 = vmatmul.mubr.f32.gmra.mrb[0].mxu0 %v2078
    %v2080 = vpop.f32.mrb[0].mxu0
    %v2081 = vadd.f32 %v920, %v2080
    %v2082 = vpop.f32.mrb[0].mxu0
    %2083 = vmatprep.mubr.f32.mxu0 0.0
    %v2084 = vand.u32 %v104, 4294901760
    %2085 = vmatmul.mubr.f32.gmra.mrb[0].mxu0 %v2084
    %v2086 = vpop.f32.mrb[0].mxu0
    %v2087 = vadd.f32 %v930, %v2086
    %v2088 = vpop.f32.mrb[0].mxu0
    %2089 = vmatprep.mubr.f32.mxu0 0.0
    %v2090 = vand.u32 %v105, 4294901760
    %2091 = vmatmul.mubr.f32.gmra.mrb[0].mxu0 %v2090
    %v2092 = vpop.f32.mrb[0].mxu0
    %v2093 = vadd.f32 %v940, %v2092
    %v2094 = vpop.f32.mrb[0].mxu0
    %2095 = vmatprep.mubr.f32.mxu0 0.0
    %v2096 = vand.u32 %v106, 4294901760
    %2097 = vmatmul.mubr.f32.gmra.mrb[0].mxu0 %v2096
    %v2098 = vpop.f32.mrb[0].mxu0
    %v2099 = vadd.f32 %v950, %v2098
    %v2100 = vpop.f32.mrb[0].mxu0
    %2101 = vmatprep.mubr.f32.mxu0 0.0
    %v2102 = vand.u32 %v107, 4294901760
    %2103 = vmatmul.mubr.f32.gmra.mrb[0].mxu0 %v2102
    %v2104 = vpop.f32.mrb[0].mxu0
    %v2105 = vadd.f32 %v960, %v2104
    %v2106 = vpop.f32.mrb[0].mxu0
    %2107 = vmatprep.mubr.f32.mxu0 0.0
    %v2108 = vand.u32 %v108, 4294901760
    %2109 = vmatmul.mubr.f32.gmra.mrb[0].mxu0 %v2108
    %v2110 = vpop.f32.mrb[0].mxu0
    %v2111 = vadd.f32 %v970, %v2110
    %v2112 = vpop.f32.mrb[0].mxu0
    %2113 = vmatprep.mubr.f32.mxu0 0.0
    %v2114 = vand.u32 %v109, 4294901760
    %2115 = vmatmul.mubr.f32.gmra.mrb[0].mxu0 %v2114
    %v2116 = vpop.f32.mrb[0].mxu0
    %v2117 = vadd.f32 %v980, %v2116
    %v2118 = vpop.f32.mrb[0].mxu0
    %2119 = vmatprep.mubr.f32.mxu0 0.0
    %v2120 = vand.u32 %v110, 4294901760
    %2121 = vmatmul.mubr.f32.gmra.mrb[0].mxu0 %v2120
    %v2122 = vpop.f32.mrb[0].mxu0
    %v2123 = vadd.f32 %v990, %v2122
    %v2124 = vpop.f32.mrb[0].mxu0
    %2125 = vmatprep.mubr.f32.mxu0 0.0
    %v2126 = vand.u32 %v111, 4294901760
    %2127 = vmatmul.mubr.f32.gmra.mrb[0].mxu0 %v2126
    %v2128 = vpop.f32.mrb[0].mxu0
    %v2129 = vadd.f32 %v1000, %v2128
    %v2130 = vpop.f32.mrb[0].mxu0
    %2131 = vmatprep.mubr.f32.mxu0 0.0
    %v2132 = vand.u32 %v112, 4294901760
    %2133 = vmatmul.mubr.f32.gmra.mrb[0].mxu0 %v2132
    %v2134 = vpop.f32.mrb[0].mxu0
    %v2135 = vadd.f32 %v1010, %v2134
    %v2136 = vpop.f32.mrb[0].mxu0
    %2137 = vmatprep.mubr.f32.mxu0 0.0
    %v2138 = vand.u32 %v113, 4294901760
    %2139 = vmatmul.mubr.f32.gmra.mrb[0].mxu0 %v2138
    %v2140 = vpop.f32.mrb[0].mxu0
    %v2141 = vadd.f32 %v1020, %v2140
    %v2142 = vpop.f32.mrb[0].mxu0
    %2143 = vmatprep.mubr.f32.mxu0 0.0
    %v2144 = vand.u32 %v114, 4294901760
    %2145 = vmatmul.mubr.f32.gmra.mrb[0].mxu0 %v2144
    %v2146 = vpop.f32.mrb[0].mxu0
    %v2147 = vadd.f32 %v1030, %v2146
    %v2148 = vpop.f32.mrb[0].mxu0
    %2149 = vmatprep.mubr.f32.mxu0 0.0
    %v2150 = vand.u32 %v115, 4294901760
    %2151 = vmatmul.mubr.f32.gmra.mrb[0].mxu0 %v2150
    %v2152 = vpop.f32.mrb[0].mxu0
    %v2153 = vadd.f32 %v1040, %v2152
    %v2154 = vpop.f32.mrb[0].mxu0
    %2155 = vmatprep.mubr.f32.mxu0 0.0
    %v2156 = vand.u32 %v116, 4294901760
    %2157 = vmatmul.mubr.f32.gmra.mrb[0].mxu0 %v2156
    %v2158 = vpop.f32.mrb[0].mxu0
    %v2159 = vadd.f32 %v1050, %v2158
    %v2160 = vpop.f32.mrb[0].mxu0
    %2161 = vmatprep.mubr.f32.mxu0 0.0
    %v2162 = vand.u32 %v117, 4294901760
    %2163 = vmatmul.mubr.f32.gmra.mrb[0].mxu0 %v2162
    %v2164 = vpop.f32.mrb[0].mxu0
    %v2165 = vadd.f32 %v1060, %v2164
    %v2166 = vpop.f32.mrb[0].mxu0
    %2167 = vmatprep.mubr.f32.mxu0 0.0
    %v2168 = vand.u32 %v118, 4294901760
    %2169 = vmatmul.mubr.f32.gmra.mrb[0].mxu0 %v2168
    %v2170 = vpop.f32.mrb[0].mxu0
    %v2171 = vadd.f32 %v1070, %v2170
    %v2172 = vpop.f32.mrb[0].mxu0
    %2173 = vmatprep.mubr.f32.mxu0 0.0
    %v2174 = vand.u32 %v119, 4294901760
    %2175 = vmatmul.mubr.f32.gmra.mrb[0].mxu0 %v2174
    %v2176 = vpop.f32.mrb[0].mxu0
    %v2177 = vadd.f32 %v1080, %v2176
    %v2178 = vpop.f32.mrb[0].mxu0
    %2179 = vmatprep.mubr.f32.mxu0 0.0
    %v2180 = vand.u32 %v120, 4294901760
    %2181 = vmatmul.mubr.f32.gmra.mrb[0].mxu0 %v2180
    %v2182 = vpop.f32.mrb[0].mxu0
    %v2183 = vadd.f32 %v1090, %v2182
    %v2184 = vpop.f32.mrb[0].mxu0
    %2185 = vmatprep.mubr.f32.mxu0 0.0
    %v2186 = vand.u32 %v121, 4294901760
    %2187 = vmatmul.mubr.f32.gmra.mrb[0].mxu0 %v2186
    %v2188 = vpop.f32.mrb[0].mxu0
    %v2189 = vadd.f32 %v1100, %v2188
    %v2190 = vpop.f32.mrb[0].mxu0
    %2191 = vmatprep.mubr.f32.mxu0 0.0
    %v2192 = vand.u32 %v122, 4294901760
    %2193 = vmatmul.mubr.f32.gmra.mrb[0].mxu0 %v2192
    %v2194 = vpop.f32.mrb[0].mxu0
    %v2195 = vadd.f32 %v1110, %v2194
    %v2196 = vpop.f32.mrb[0].mxu0
    %2197 = vmatprep.mubr.f32.mxu0 0.0
    %v2198 = vand.u32 %v123, 4294901760
    %2199 = vmatmul.mubr.f32.gmra.mrb[0].mxu0 %v2198
    %v2200 = vpop.f32.mrb[0].mxu0
    %v2201 = vadd.f32 %v1120, %v2200
    %v2202 = vpop.f32.mrb[0].mxu0
    %2203 = vmatprep.mubr.f32.mxu0 0.0
    %v2204 = vand.u32 %v124, 4294901760
    %2205 = vmatmul.mubr.f32.gmra.mrb[0].mxu0 %v2204
    %v2206 = vpop.f32.mrb[0].mxu0
    %v2207 = vadd.f32 %v1130, %v2206
    %v2208 = vpop.f32.mrb[0].mxu0
    %2209 = vmatprep.mubr.f32.mxu0 0.0
    %v2210 = vand.u32 %v125, 4294901760
    %2211 = vmatmul.mubr.f32.gmra.mrb[0].mxu0 %v2210
    %v2212 = vpop.f32.mrb[0].mxu0
    %v2213 = vadd.f32 %v1140, %v2212
    %v2214 = vpop.f32.mrb[0].mxu0
    %2215 = vmatprep.mubr.f32.mxu0 0.0
    %v2216 = vand.u32 %v126, 4294901760
    %2217 = vmatmul.mubr.f32.gmra.mrb[0].mxu0 %v2216
    %v2218 = vpop.f32.mrb[0].mxu0
    %v2219 = vadd.f32 %v1150, %v2218
    %v2220 = vpop.f32.mrb[0].mxu0
    %2221 = vmatprep.mubr.f32.mxu0 0.0
    %v2222 = vand.u32 %v127, 4294901760
    %2223 = vmatmul.mubr.f32.gmra.mrb[0].mxu0 %v2222
    %v2224 = vpop.f32.mrb[0].mxu0
    %v2225 = vadd.f32 %v1160, %v2224
    %v2226 = vpop.f32.mrb[0].mxu0
    %2227 = vmatprep.mubr.f32.mxu0 0.0
    %v2228 = vand.u32 %v128, 4294901760
    %2229 = vmatmul.mubr.f32.gmra.mrb[0].mxu0 %v2228
    %v2230 = vpop.f32.mrb[0].mxu0
    %v2231 = vadd.f32 %v1170, %v2230
    %v2232 = vpop.f32.mrb[0].mxu0
    %2233 = vmatprep.mubr.f32.mxu0 0.0
    %v2234 = vand.u32 %v129, 4294901760
    %2235 = vmatmul.mubr.f32.gmra.mrb[0].mxu0 %v2234
    %v2236 = vpop.f32.mrb[0].mxu0
    %v2237 = vadd.f32 %v1180, %v2236
    %v2238 = vpop.f32.mrb[0].mxu0
    %2239 = vmatprep.mubr.f32.mxu0 0.0
    %v2240 = vand.u32 %v130, 4294901760
    %2241 = vmatmul.mubr.f32.gmra.mrb[0].mxu0 %v2240
    %v2242 = vpop.f32.mrb[0].mxu0
    %v2243 = vadd.f32 %v1190, %v2242
    %v2244 = vpop.f32.mrb[0].mxu0
    %2245 = vmatprep.mubr.f32.mxu0 0.0
    %v2246 = vand.u32 %v131, 4294901760
    %2247 = vmatmul.mubr.f32.gmra.mrb[0].mxu0 %v2246
    %v2248 = vpop.f32.mrb[0].mxu0
    %v2249 = vadd.f32 %v1200, %v2248
    %v2250 = vpop.f32.mrb[0].mxu0
    %2251 = vmatprep.mubr.f32.mxu0 0.0
    %v2252 = vand.u32 %v132, 4294901760
    %2253 = vmatmul.mubr.f32.gmra.mrb[0].mxu0 %v2252
    %v2254 = vpop.f32.mrb[0].mxu0
    %v2255 = vadd.f32 %v1210, %v2254
    %v2256 = vpop.f32.mrb[0].mxu0
    %2257 = vmatprep.mubr.f32.mxu0 0.0
    %v2258 = vand.u32 %v133, 4294901760
    %2259 = vmatmul.mubr.f32.gmra.mrb[0].mxu0 %v2258
    %v2260 = vpop.f32.mrb[0].mxu0
    %v2261 = vadd.f32 %v1220, %v2260
    %v2262 = vpop.f32.mrb[0].mxu0
    %2263 = vmatprep.mubr.f32.mxu0 0.0
    %v2264 = vand.u32 %v134, 4294901760
    %2265 = vmatmul.mubr.f32.gmra.mrb[0].mxu0 %v2264
    %v2266 = vpop.f32.mrb[0].mxu0
    %v2267 = vadd.f32 %v1230, %v2266
    %v2268 = vpop.f32.mrb[0].mxu0
    %2269 = vmatprep.mubr.f32.mxu0 0.0
    %v2270 = vand.u32 %v135, 4294901760
    %2271 = vmatmul.mubr.f32.gmra.mrb[0].mxu0 %v2270
    %v2272 = vpop.f32.mrb[0].mxu0
    %v2273 = vadd.f32 %v1240, %v2272
    %v2274 = vpop.f32.mrb[0].mxu0
    %2275 = vmatprep.mubr.f32.mxu0 0.0
    %v2276 = vand.u32 %v136, 4294901760
    %2277 = vmatmul.mubr.f32.gmra.mrb[0].mxu0 %v2276
    %v2278 = vpop.f32.mrb[0].mxu0
    %v2279 = vadd.f32 %v1250, %v2278
    %v2280 = vpop.f32.mrb[0].mxu0
    %2281 = vmatprep.mubr.f32.mxu0 0.0
    %v2282 = vand.u32 %v137, 4294901760
    %2283 = vmatmul.mubr.f32.gmra.mrb[0].mxu0 %v2282
    %v2284 = vpop.f32.mrb[0].mxu0
    %v2285 = vadd.f32 %v1260, %v2284
    %v2286 = vpop.f32.mrb[0].mxu0
    %2287 = vmatprep.mubr.f32.mxu0 0.0
    %v2288 = vand.u32 %v138, 4294901760
    %2289 = vmatmul.mubr.f32.gmra.mrb[0].mxu0 %v2288
    %v2290 = vpop.f32.mrb[0].mxu0
    %v2291 = vadd.f32 %v1270, %v2290
    %v2292 = vpop.f32.mrb[0].mxu0
    %2293 = vmatprep.mubr.f32.mxu0 0.0
    %v2294 = vand.u32 %v139, 4294901760
    %2295 = vmatmul.mubr.f32.gmra.mrb[0].mxu0 %v2294
    %v2296 = vpop.f32.mrb[0].mxu0
    %v2297 = vadd.f32 %v1280, %v2296
    %v2298 = vpop.f32.mrb[0].mxu0
    %2299 = vmatprep.mubr.f32.mxu0 0.0
    %v2300 = vand.u32 %v140, 4294901760
    %2301 = vmatmul.mubr.f32.gmra.mrb[0].mxu0 %v2300
    %v2302 = vpop.f32.mrb[0].mxu0
    %v2303 = vadd.f32 %v1290, %v2302
    %v2304 = vpop.f32.mrb[0].mxu0
    %2305 = vmatprep.mubr.f32.mxu0 0.0
    %v2306 = vand.u32 %v141, 4294901760
    %2307 = vmatmul.mubr.f32.gmra.mrb[0].mxu0 %v2306
    %v2308 = vpop.f32.mrb[0].mxu0
    %v2309 = vadd.f32 %v1300, %v2308
    %v2310 = vpop.f32.mrb[0].mxu0
    %2311 = vmatprep.mubr.f32.mxu0 0.0
    %v2312 = vand.u32 %v142, 4294901760
    %2313 = vmatmul.mubr.f32.gmra.mrb[0].mxu0 %v2312
    %v2314 = vpop.f32.mrb[0].mxu0
    %v2315 = vadd.f32 %v1310, %v2314
    %v2316 = vpop.f32.mrb[0].mxu0
    %2317 = vmatprep.mubr.f32.mxu0 0.0
    %v2318 = vand.u32 %v143, 4294901760
    %2319 = vmatmul.mubr.f32.gmra.mrb[0].mxu0 %v2318
    %v2320 = vpop.f32.mrb[0].mxu0
    %v2321 = vadd.f32 %v1320, %v2320
    %v2322 = vpop.f32.mrb[0].mxu0
    %2323 = vmatprep.mubr.f32.mxu0 0.0
    %v2324 = vand.u32 %v144, 4294901760
    %2325 = vmatmul.mubr.f32.gmra.mrb[0].mxu0 %v2324
    %v2326 = vpop.f32.mrb[0].mxu0
    %v2327 = vadd.f32 %v1330, %v2326
    %v2328 = vpop.f32.mrb[0].mxu0
    %2329 = vmatprep.mubr.f32.mxu0 0.0
    %v2330 = vand.u32 %v145, 4294901760
    %2331 = vmatmul.mubr.f32.gmra.mrb[0].mxu0 %v2330
    %v2332 = vpop.f32.mrb[0].mxu0
    %v2333 = vadd.f32 %v1340, %v2332
    %v2334 = vpop.f32.mrb[0].mxu0
    %2335 = vmatprep.mubr.f32.mxu0 0.0
    %v2336 = vand.u32 %v146, 4294901760
    %2337 = vmatmul.mubr.f32.gmra.mrb[0].mxu0 %v2336
    %v2338 = vpop.f32.mrb[0].mxu0
    %v2339 = vadd.f32 %v1350, %v2338
    %v2340 = vpop.f32.mrb[0].mxu0
    %2341 = vmatprep.mubr.f32.mxu0 0.0
    %v2342 = vand.u32 %v147, 4294901760
    %2343 = vmatmul.mubr.f32.gmra.mrb[0].mxu0 %v2342
    %v2344 = vpop.f32.mrb[0].mxu0
    %v2345 = vadd.f32 %v1360, %v2344
    %v2346 = vpop.f32.mrb[0].mxu0
    %2347 = vmatprep.mubr.f32.mxu0 0.0
    %v2348 = vand.u32 %v148, 4294901760
    %2349 = vmatmul.mubr.f32.gmra.mrb[0].mxu0 %v2348
    %v2350 = vpop.f32.mrb[0].mxu0
    %v2351 = vadd.f32 %v1370, %v2350
    %v2352 = vpop.f32.mrb[0].mxu0
    %2353 = vmatprep.mubr.f32.mxu0 0.0
    %v2354 = vand.u32 %v149, 4294901760
    %2355 = vmatmul.mubr.f32.gmra.mrb[0].mxu0 %v2354
    %v2356 = vpop.f32.mrb[0].mxu0
    %v2357 = vadd.f32 %v1380, %v2356
    %v2358 = vpop.f32.mrb[0].mxu0
    %2359 = vmatprep.mubr.f32.mxu0 0.0
    %v2360 = vand.u32 %v150, 4294901760
    %2361 = vmatmul.mubr.f32.gmra.mrb[0].mxu0 %v2360
    %v2362 = vpop.f32.mrb[0].mxu0
    %v2363 = vadd.f32 %v1390, %v2362
    %v2364 = vpop.f32.mrb[0].mxu0
    %2365 = vmatprep.mubr.f32.mxu0 0.0
    %v2366 = vand.u32 %v151, 4294901760
    %2367 = vmatmul.mubr.f32.gmra.mrb[0].mxu0 %v2366
    %v2368 = vpop.f32.mrb[0].mxu0
    %v2369 = vadd.f32 %v1400, %v2368
    %v2370 = vpop.f32.mrb[0].mxu0
    %2371 = vmatprep.mubr.f32.mxu0 0.0
    %v2372 = vand.u32 %v152, 4294901760
    %2373 = vmatmul.mubr.f32.gmra.mrb[0].mxu0 %v2372
    %v2374 = vpop.f32.mrb[0].mxu0
    %v2375 = vadd.f32 %v1410, %v2374
    %v2376 = vpop.f32.mrb[0].mxu0
    %2377 = vmatprep.mubr.f32.mxu0 0.0
    %v2378 = vand.u32 %v153, 4294901760
    %2379 = vmatmul.mubr.f32.gmra.mrb[0].mxu0 %v2378
    %v2380 = vpop.f32.mrb[0].mxu0
    %v2381 = vadd.f32 %v1420, %v2380
    %v2382 = vpop.f32.mrb[0].mxu0
    %2383 = vmatprep.mubr.f32.mxu0 0.0
    %v2384 = vand.u32 %v154, 4294901760
    %2385 = vmatmul.mubr.f32.gmra.mrb[0].mxu0 %v2384
    %v2386 = vpop.f32.mrb[0].mxu0
    %v2387 = vadd.f32 %v1430, %v2386
    %v2388 = vpop.f32.mrb[0].mxu0
    %2389 = vmatprep.mubr.f32.mxu0 0.0
    %v2390 = vand.u32 %v155, 4294901760
    %2391 = vmatmul.mubr.f32.gmra.mrb[0].mxu0 %v2390
    %v2392 = vpop.f32.mrb[0].mxu0
    %v2393 = vadd.f32 %v1440, %v2392
    %v2394 = vpop.f32.mrb[0].mxu0
    %2395 = vmatprep.mubr.f32.mxu0 0.0
    %v2396 = vand.u32 %v156, 4294901760
    %2397 = vmatmul.mubr.f32.gmra.mrb[0].mxu0 %v2396
    %v2398 = vpop.f32.mrb[0].mxu0
    %v2399 = vadd.f32 %v1450, %v2398
    %v2400 = vpop.f32.mrb[0].mxu0
    %2401 = vmatprep.mubr.f32.mxu0 0.0
    %v2402 = vand.u32 %v157, 4294901760
    %2403 = vmatmul.mubr.f32.gmra.mrb[0].mxu0 %v2402
    %v2404 = vpop.f32.mrb[0].mxu0
    %v2405 = vadd.f32 %v1460, %v2404
    %v2406 = vpop.f32.mrb[0].mxu0
    %2407 = vmatprep.mubr.f32.mxu0 0.0
    %v2408 = vand.u32 %v158, 4294901760
    %2409 = vmatmul.mubr.f32.gmra.mrb[0].mxu0 %v2408
    %v2410 = vpop.f32.mrb[0].mxu0
    %v2411 = vadd.f32 %v1470, %v2410
    %v2412 = vpop.f32.mrb[0].mxu0
    %2413 = vmatprep.mubr.f32.mxu0 0.0
    %v2414 = vand.u32 %v159, 4294901760
    %2415 = vmatmul.mubr.f32.gmra.mrb[0].mxu0 %v2414
    %v2416 = vpop.f32.mrb[0].mxu0
    %v2417 = vadd.f32 %v1480, %v2416
    %v2418 = vpop.f32.mrb[0].mxu0
    %2419 = vmatprep.mubr.f32.mxu0 0.0
    %v2420 = vand.u32 %v160, 4294901760
    %2421 = vmatmul.mubr.f32.gmra.mrb[0].mxu0 %v2420
    %v2422 = vpop.f32.mrb[0].mxu0
    %v2423 = vadd.f32 %v1490, %v2422
    %v2424 = vpop.f32.mrb[0].mxu0
    %2425 = vmatprep.mubr.f32.mxu0 0.0
    %v2426 = vand.u32 %v161, 4294901760
    %2427 = vmatmul.mubr.f32.gmra.mrb[0].mxu0 %v2426
    %v2428 = vpop.f32.mrb[0].mxu0
    %v2429 = vadd.f32 %v1500, %v2428
    %v2430 = vpop.f32.mrb[0].mxu0
    %2431 = vmatprep.mubr.f32.mxu0 0.0
    %v2432 = vand.u32 %v162, 4294901760
    %2433 = vmatmul.mubr.f32.gmra.mrb[0].mxu0 %v2432
    %v2434 = vpop.f32.mrb[0].mxu0
    %v2435 = vadd.f32 %v1510, %v2434
    %v2436 = vpop.f32.mrb[0].mxu0
    %2437 = vmatprep.mubr.f32.mxu0 0.0
    %v2438 = vand.u32 %v163, 4294901760
    %2439 = vmatmul.mubr.f32.gmra.mrb[0].mxu0 %v2438
    %v2440 = vpop.f32.mrb[0].mxu0
    %v2441 = vadd.f32 %v1520, %v2440
    %v2442 = vpop.f32.mrb[0].mxu0
    %2443 = vmatprep.mubr.f32.mxu0 0.0
    %v2444 = vand.u32 %v164, 4294901760
    %2445 = vmatmul.mubr.f32.gmra.mrb[0].mxu0 %v2444
    %v2446 = vpop.f32.mrb[0].mxu0
    %v2447 = vadd.f32 %v1530, %v2446
    %v2448 = vpop.f32.mrb[0].mxu0
    %2449 = vmatprep.mubr.f32.mxu0 0.0
    %v2450 = vand.u32 %v165, 4294901760
    %2451 = vmatmul.mubr.f32.gmra.mrb[0].mxu0 %v2450
    %v2452 = vpop.f32.mrb[0].mxu0
    %v2453 = vadd.f32 %v1540, %v2452
    %v2454 = vpop.f32.mrb[0].mxu0
    %2455 = vdwg.mxu0
    %2456 = vmatprep.subr.mxu0 0.0
    %v2457 = vand.u32 %v166, 4294901760
    %v2458 = vsub.f32 %v166, %v2457
    %2459 = vmatpush1.msra.mxu0 %v2458
    %2460 = vmatprep.subr.mxu0 0.0
    %v2461 = vand.u32 %v167, 4294901760
    %v2462 = vsub.f32 %v167, %v2461
    %2463 = vmatpush1.msra.mxu0 %v2462
    %2464 = vmatprep.subr.mxu0 0.0
    %v2465 = vand.u32 %v168, 4294901760
    %v2466 = vsub.f32 %v168, %v2465
    %2467 = vmatpush1.msra.mxu0 %v2466
    %2468 = vmatprep.subr.mxu0 0.0
    %v2469 = vand.u32 %v169, 4294901760
    %v2470 = vsub.f32 %v169, %v2469
    %2471 = vmatpush1.msra.mxu0 %v2470
    %2472 = vmatprep.subr.mxu0 0.0
    %v2473 = vand.u32 %v170, 4294901760
    %v2474 = vsub.f32 %v170, %v2473
    %2475 = vmatpush1.msra.mxu0 %v2474
    %2476 = vmatprep.subr.mxu0 0.0
    %v2477 = vand.u32 %v171, 4294901760
    %v2478 = vsub.f32 %v171, %v2477
    %2479 = vmatpush1.msra.mxu0 %v2478
    %2480 = vmatprep.subr.mxu0 0.0
    %v2481 = vand.u32 %v172, 4294901760
    %v2482 = vsub.f32 %v172, %v2481
    %2483 = vmatpush1.msra.mxu0 %v2482
    %2484 = vmatprep.subr.mxu0 0.0
    %v2485 = vand.u32 %v173, 4294901760
    %v2486 = vsub.f32 %v173, %v2485
    %2487 = vmatpush1.msra.mxu0 %v2486
    %2488 = vmatprep.subr.mxu0 0.0
    %v2489 = vand.u32 %v174, 4294901760
    %v2490 = vsub.f32 %v174, %v2489
    %2491 = vmatpush1.msra.mxu0 %v2490
    %2492 = vmatprep.subr.mxu0 0.0
    %v2493 = vand.u32 %v175, 4294901760
    %v2494 = vsub.f32 %v175, %v2493
    %2495 = vmatpush1.msra.mxu0 %v2494
    %2496 = vmatprep.subr.mxu0 0.0
    %v2497 = vand.u32 %v176, 4294901760
    %v2498 = vsub.f32 %v176, %v2497
    %2499 = vmatpush1.msra.mxu0 %v2498
    %2500 = vmatprep.subr.mxu0 0.0
    %v2501 = vand.u32 %v177, 4294901760
    %v2502 = vsub.f32 %v177, %v2501
    %2503 = vmatpush1.msra.mxu0 %v2502
    %2504 = vmatprep.subr.mxu0 0.0
    %v2505 = vand.u32 %v178, 4294901760
    %v2506 = vsub.f32 %v178, %v2505
    %2507 = vmatpush1.msra.mxu0 %v2506
    %2508 = vmatprep.subr.mxu0 0.0
    %v2509 = vand.u32 %v179, 4294901760
    %v2510 = vsub.f32 %v179, %v2509
    %2511 = vmatpush1.msra.mxu0 %v2510
    %2512 = vmatprep.subr.mxu0 0.0
    %v2513 = vand.u32 %v180, 4294901760
    %v2514 = vsub.f32 %v180, %v2513
    %2515 = vmatpush1.msra.mxu0 %v2514
    %2516 = vmatprep.subr.mxu0 0.0
    %v2517 = vand.u32 %v181, 4294901760
    %v2518 = vsub.f32 %v181, %v2517
    %2519 = vmatpush1.msra.mxu0 %v2518
    %2520 = vmatprep.subr.mxu0 0.0
    %2521 = vmatpush1.msra.mxu0 0.0
    %2522 = vmatprep.subr.mxu0 0.0
    %2523 = vmatpush1.msra.mxu0 0.0
    %2524 = vmatprep.subr.mxu0 0.0
    %2525 = vmatpush1.msra.mxu0 0.0
    %2526 = vmatprep.subr.mxu0 0.0
    %2527 = vmatpush1.msra.mxu0 0.0
    %2528 = vmatprep.subr.mxu0 0.0
    %2529 = vmatpush1.msra.mxu0 0.0
    %2530 = vmatprep.subr.mxu0 0.0
    %2531 = vmatpush1.msra.mxu0 0.0
    %2532 = vmatprep.subr.mxu0 0.0
    %2533 = vmatpush1.msra.mxu0 0.0
    %2534 = vmatprep.subr.mxu0 0.0
    %2535 = vmatpush1.msra.mxu0 0.0
    %2536 = vmatprep.subr.mxu0 0.0
    %2537 = vmatpush1.msra.mxu0 0.0
    %2538 = vmatprep.subr.mxu0 0.0
    %2539 = vmatpush1.msra.mxu0 0.0
    %2540 = vmatprep.subr.mxu0 0.0
    %2541 = vmatpush1.msra.mxu0 0.0
    %2542 = vmatprep.subr.mxu0 0.0
    %2543 = vmatpush1.msra.mxu0 0.0
    %2544 = vmatprep.subr.mxu0 0.0
    %2545 = vmatpush1.msra.mxu0 0.0
    %2546 = vmatprep.subr.mxu0 0.0
    %2547 = vmatpush1.msra.mxu0 0.0
    %2548 = vmatprep.subr.mxu0 0.0
    %2549 = vmatpush1.msra.mxu0 0.0
    %2550 = vmatprep.subr.mxu0 0.0
    %2551 = vmatpush1.msra.mxu0 0.0
    %2552 = vmatprep.mubr.f32.mxu0 0.0
    %v2553 = vand.u32 %v38, 4294901760
    %v2554 = vsub.f32 %v38, %v2553
    %2555 = vmatmul.mubr.f32.gmra.mrb[0].mxu0 %v2554
    %v2556 = vpop.f32.mrb[0].mxu0
    %v2557 = vadd.f32 %v1691, %v2556
    %v2558 = vpop.f32.mrb[0].mxu0
    %2559 = vmatprep.mubr.f32.mxu0 0.0
    %v2560 = vand.u32 %v39, 4294901760
    %v2561 = vsub.f32 %v39, %v2560
    %2562 = vmatmul.mubr.f32.gmra.mrb[0].mxu0 %v2561
    %v2563 = vpop.f32.mrb[0].mxu0
    %v2564 = vadd.f32 %v1697, %v2563
    %v2565 = vpop.f32.mrb[0].mxu0
    %2566 = vmatprep.mubr.f32.mxu0 0.0
    %v2567 = vand.u32 %v40, 4294901760
    %v2568 = vsub.f32 %v40, %v2567
    %2569 = vmatmul.mubr.f32.gmra.mrb[0].mxu0 %v2568
    %v2570 = vpop.f32.mrb[0].mxu0
    %v2571 = vadd.f32 %v1703, %v2570
    %v2572 = vpop.f32.mrb[0].mxu0
    %2573 = vmatprep.mubr.f32.mxu0 0.0
    %v2574 = vand.u32 %v41, 4294901760
    %v2575 = vsub.f32 %v41, %v2574
    %2576 = vmatmul.mubr.f32.gmra.mrb[0].mxu0 %v2575
    %v2577 = vpop.f32.mrb[0].mxu0
    %v2578 = vadd.f32 %v1709, %v2577
    %v2579 = vpop.f32.mrb[0].mxu0
    %2580 = vmatprep.mubr.f32.mxu0 0.0
    %v2581 = vand.u32 %v42, 4294901760
    %v2582 = vsub.f32 %v42, %v2581
    %2583 = vmatmul.mubr.f32.gmra.mrb[0].mxu0 %v2582
    %v2584 = vpop.f32.mrb[0].mxu0
    %v2585 = vadd.f32 %v1715, %v2584
    %v2586 = vpop.f32.mrb[0].mxu0
    %2587 = vmatprep.mubr.f32.mxu0 0.0
    %v2588 = vand.u32 %v43, 4294901760
    %v2589 = vsub.f32 %v43, %v2588
    %2590 = vmatmul.mubr.f32.gmra.mrb[0].mxu0 %v2589
    %v2591 = vpop.f32.mrb[0].mxu0
    %v2592 = vadd.f32 %v1721, %v2591
    %v2593 = vpop.f32.mrb[0].mxu0
    %2594 = vmatprep.mubr.f32.mxu0 0.0
    %v2595 = vand.u32 %v44, 4294901760
    %v2596 = vsub.f32 %v44, %v2595
    %2597 = vmatmul.mubr.f32.gmra.mrb[0].mxu0 %v2596
    %v2598 = vpop.f32.mrb[0].mxu0
    %v2599 = vadd.f32 %v1727, %v2598
    %v2600 = vpop.f32.mrb[0].mxu0
    %2601 = vmatprep.mubr.f32.mxu0 0.0
    %v2602 = vand.u32 %v45, 4294901760
    %v2603 = vsub.f32 %v45, %v2602
    %2604 = vmatmul.mubr.f32.gmra.mrb[0].mxu0 %v2603
    %v2605 = vpop.f32.mrb[0].mxu0
    %v2606 = vadd.f32 %v1733, %v2605
    %v2607 = vpop.f32.mrb[0].mxu0
    %2608 = vmatprep.mubr.f32.mxu0 0.0
    %v2609 = vand.u32 %v46, 4294901760
    %v2610 = vsub.f32 %v46, %v2609
    %2611 = vmatmul.mubr.f32.gmra.mrb[0].mxu0 %v2610
    %v2612 = vpop.f32.mrb[0].mxu0
    %v2613 = vadd.f32 %v1739, %v2612
    %v2614 = vpop.f32.mrb[0].mxu0
    %2615 = vmatprep.mubr.f32.mxu0 0.0
    %v2616 = vand.u32 %v47, 4294901760
    %v2617 = vsub.f32 %v47, %v2616
    %2618 = vmatmul.mubr.f32.gmra.mrb[0].mxu0 %v2617
    %v2619 = vpop.f32.mrb[0].mxu0
    %v2620 = vadd.f32 %v1745, %v2619
    %v2621 = vpop.f32.mrb[0].mxu0
    %2622 = vmatprep.mubr.f32.mxu0 0.0
    %v2623 = vand.u32 %v48, 4294901760
    %v2624 = vsub.f32 %v48, %v2623
    %2625 = vmatmul.mubr.f32.gmra.mrb[0].mxu0 %v2624
    %v2626 = vpop.f32.mrb[0].mxu0
    %v2627 = vadd.f32 %v1751, %v2626
    %v2628 = vpop.f32.mrb[0].mxu0
    %2629 = vmatprep.mubr.f32.mxu0 0.0
    %v2630 = vand.u32 %v49, 4294901760
    %v2631 = vsub.f32 %v49, %v2630
    %2632 = vmatmul.mubr.f32.gmra.mrb[0].mxu0 %v2631
    %v2633 = vpop.f32.mrb[0].mxu0
    %v2634 = vadd.f32 %v1757, %v2633
    %v2635 = vpop.f32.mrb[0].mxu0
    %2636 = vmatprep.mubr.f32.mxu0 0.0
    %v2637 = vand.u32 %v50, 4294901760
    %v2638 = vsub.f32 %v50, %v2637
    %2639 = vmatmul.mubr.f32.gmra.mrb[0].mxu0 %v2638
    %v2640 = vpop.f32.mrb[0].mxu0
    %v2641 = vadd.f32 %v1763, %v2640
    %v2642 = vpop.f32.mrb[0].mxu0
    %2643 = vmatprep.mubr.f32.mxu0 0.0
    %v2644 = vand.u32 %v51, 4294901760
    %v2645 = vsub.f32 %v51, %v2644
    %2646 = vmatmul.mubr.f32.gmra.mrb[0].mxu0 %v2645
    %v2647 = vpop.f32.mrb[0].mxu0
    %v2648 = vadd.f32 %v1769, %v2647
    %v2649 = vpop.f32.mrb[0].mxu0
    %2650 = vmatprep.mubr.f32.mxu0 0.0
    %v2651 = vand.u32 %v52, 4294901760
    %v2652 = vsub.f32 %v52, %v2651
    %2653 = vmatmul.mubr.f32.gmra.mrb[0].mxu0 %v2652
    %v2654 = vpop.f32.mrb[0].mxu0
    %v2655 = vadd.f32 %v1775, %v2654
    %v2656 = vpop.f32.mrb[0].mxu0
    %2657 = vmatprep.mubr.f32.mxu0 0.0
    %v2658 = vand.u32 %v53, 4294901760
    %v2659 = vsub.f32 %v53, %v2658
    %2660 = vmatmul.mubr.f32.gmra.mrb[0].mxu0 %v2659
    %v2661 = vpop.f32.mrb[0].mxu0
    %v2662 = vadd.f32 %v1781, %v2661
    %v2663 = vpop.f32.mrb[0].mxu0
    %2664 = vmatprep.mubr.f32.mxu0 0.0
    %v2665 = vand.u32 %v54, 4294901760
    %v2666 = vsub.f32 %v54, %v2665
    %2667 = vmatmul.mubr.f32.gmra.mrb[0].mxu0 %v2666
    %v2668 = vpop.f32.mrb[0].mxu0
    %v2669 = vadd.f32 %v1787, %v2668
    %v2670 = vpop.f32.mrb[0].mxu0
    %2671 = vmatprep.mubr.f32.mxu0 0.0
    %v2672 = vand.u32 %v55, 4294901760
    %v2673 = vsub.f32 %v55, %v2672
    %2674 = vmatmul.mubr.f32.gmra.mrb[0].mxu0 %v2673
    %v2675 = vpop.f32.mrb[0].mxu0
    %v2676 = vadd.f32 %v1793, %v2675
    %v2677 = vpop.f32.mrb[0].mxu0
    %2678 = vmatprep.mubr.f32.mxu0 0.0
    %v2679 = vand.u32 %v56, 4294901760
    %v2680 = vsub.f32 %v56, %v2679
    %2681 = vmatmul.mubr.f32.gmra.mrb[0].mxu0 %v2680
    %v2682 = vpop.f32.mrb[0].mxu0
    %v2683 = vadd.f32 %v1799, %v2682
    %v2684 = vpop.f32.mrb[0].mxu0
    %2685 = vmatprep.mubr.f32.mxu0 0.0
    %v2686 = vand.u32 %v57, 4294901760
    %v2687 = vsub.f32 %v57, %v2686
    %2688 = vmatmul.mubr.f32.gmra.mrb[0].mxu0 %v2687
    %v2689 = vpop.f32.mrb[0].mxu0
    %v2690 = vadd.f32 %v1805, %v2689
    %v2691 = vpop.f32.mrb[0].mxu0
    %2692 = vmatprep.mubr.f32.mxu0 0.0
    %v2693 = vand.u32 %v58, 4294901760
    %v2694 = vsub.f32 %v58, %v2693
    %2695 = vmatmul.mubr.f32.gmra.mrb[0].mxu0 %v2694
    %v2696 = vpop.f32.mrb[0].mxu0
    %v2697 = vadd.f32 %v1811, %v2696
    %v2698 = vpop.f32.mrb[0].mxu0
    %2699 = vmatprep.mubr.f32.mxu0 0.0
    %v2700 = vand.u32 %v59, 4294901760
    %v2701 = vsub.f32 %v59, %v2700
    %2702 = vmatmul.mubr.f32.gmra.mrb[0].mxu0 %v2701
    %v2703 = vpop.f32.mrb[0].mxu0
    %v2704 = vadd.f32 %v1817, %v2703
    %v2705 = vpop.f32.mrb[0].mxu0
    %2706 = vmatprep.mubr.f32.mxu0 0.0
    %v2707 = vand.u32 %v60, 4294901760
    %v2708 = vsub.f32 %v60, %v2707
    %2709 = vmatmul.mubr.f32.gmra.mrb[0].mxu0 %v2708
    %v2710 = vpop.f32.mrb[0].mxu0
    %v2711 = vadd.f32 %v1823, %v2710
    %v2712 = vpop.f32.mrb[0].mxu0
    %2713 = vmatprep.mubr.f32.mxu0 0.0
    %v2714 = vand.u32 %v61, 4294901760
    %v2715 = vsub.f32 %v61, %v2714
    %2716 = vmatmul.mubr.f32.gmra.mrb[0].mxu0 %v2715
    %v2717 = vpop.f32.mrb[0].mxu0
    %v2718 = vadd.f32 %v1829, %v2717
    %v2719 = vpop.f32.mrb[0].mxu0
    %2720 = vmatprep.mubr.f32.mxu0 0.0
    %v2721 = vand.u32 %v62, 4294901760
    %v2722 = vsub.f32 %v62, %v2721
    %2723 = vmatmul.mubr.f32.gmra.mrb[0].mxu0 %v2722
    %v2724 = vpop.f32.mrb[0].mxu0
    %v2725 = vadd.f32 %v1835, %v2724
    %v2726 = vpop.f32.mrb[0].mxu0
    %2727 = vmatprep.mubr.f32.mxu0 0.0
    %v2728 = vand.u32 %v63, 4294901760
    %v2729 = vsub.f32 %v63, %v2728
    %2730 = vmatmul.mubr.f32.gmra.mrb[0].mxu0 %v2729
    %v2731 = vpop.f32.mrb[0].mxu0
    %v2732 = vadd.f32 %v1841, %v2731
    %v2733 = vpop.f32.mrb[0].mxu0
    %2734 = vmatprep.mubr.f32.mxu0 0.0
    %v2735 = vand.u32 %v64, 4294901760
    %v2736 = vsub.f32 %v64, %v2735
    %2737 = vmatmul.mubr.f32.gmra.mrb[0].mxu0 %v2736
    %v2738 = vpop.f32.mrb[0].mxu0
    %v2739 = vadd.f32 %v1847, %v2738
    %v2740 = vpop.f32.mrb[0].mxu0
    %2741 = vmatprep.mubr.f32.mxu0 0.0
    %v2742 = vand.u32 %v65, 4294901760
    %v2743 = vsub.f32 %v65, %v2742
    %2744 = vmatmul.mubr.f32.gmra.mrb[0].mxu0 %v2743
    %v2745 = vpop.f32.mrb[0].mxu0
    %v2746 = vadd.f32 %v1853, %v2745
    %v2747 = vpop.f32.mrb[0].mxu0
    %2748 = vmatprep.mubr.f32.mxu0 0.0
    %v2749 = vand.u32 %v66, 4294901760
    %v2750 = vsub.f32 %v66, %v2749
    %2751 = vmatmul.mubr.f32.gmra.mrb[0].mxu0 %v2750
    %v2752 = vpop.f32.mrb[0].mxu0
    %v2753 = vadd.f32 %v1859, %v2752
    %v2754 = vpop.f32.mrb[0].mxu0
    %2755 = vmatprep.mubr.f32.mxu0 0.0
    %v2756 = vand.u32 %v67, 4294901760
    %v2757 = vsub.f32 %v67, %v2756
    %2758 = vmatmul.mubr.f32.gmra.mrb[0].mxu0 %v2757
    %v2759 = vpop.f32.mrb[0].mxu0
    %v2760 = vadd.f32 %v1865, %v2759
    %v2761 = vpop.f32.mrb[0].mxu0
    %2762 = vmatprep.mubr.f32.mxu0 0.0
    %v2763 = vand.u32 %v68, 4294901760
    %v2764 = vsub.f32 %v68, %v2763
    %2765 = vmatmul.mubr.f32.gmra.mrb[0].mxu0 %v2764
    %v2766 = vpop.f32.mrb[0].mxu0
    %v2767 = vadd.f32 %v1871, %v2766
    %v2768 = vpop.f32.mrb[0].mxu0
    %2769 = vmatprep.mubr.f32.mxu0 0.0
    %v2770 = vand.u32 %v69, 4294901760
    %v2771 = vsub.f32 %v69, %v2770
    %2772 = vmatmul.mubr.f32.gmra.mrb[0].mxu0 %v2771
    %v2773 = vpop.f32.mrb[0].mxu0
    %v2774 = vadd.f32 %v1877, %v2773
    %v2775 = vpop.f32.mrb[0].mxu0
    %2776 = vmatprep.mubr.f32.mxu0 0.0
    %v2777 = vand.u32 %v70, 4294901760
    %v2778 = vsub.f32 %v70, %v2777
    %2779 = vmatmul.mubr.f32.gmra.mrb[0].mxu0 %v2778
    %v2780 = vpop.f32.mrb[0].mxu0
    %v2781 = vadd.f32 %v1883, %v2780
    %v2782 = vpop.f32.mrb[0].mxu0
    %2783 = vmatprep.mubr.f32.mxu0 0.0
    %v2784 = vand.u32 %v71, 4294901760
    %v2785 = vsub.f32 %v71, %v2784
    %2786 = vmatmul.mubr.f32.gmra.mrb[0].mxu0 %v2785
    %v2787 = vpop.f32.mrb[0].mxu0
    %v2788 = vadd.f32 %v1889, %v2787
    %v2789 = vpop.f32.mrb[0].mxu0
    %2790 = vmatprep.mubr.f32.mxu0 0.0
    %v2791 = vand.u32 %v72, 4294901760
    %v2792 = vsub.f32 %v72, %v2791
    %2793 = vmatmul.mubr.f32.gmra.mrb[0].mxu0 %v2792
    %v2794 = vpop.f32.mrb[0].mxu0
    %v2795 = vadd.f32 %v1895, %v2794
    %v2796 = vpop.f32.mrb[0].mxu0
    %2797 = vmatprep.mubr.f32.mxu0 0.0
    %v2798 = vand.u32 %v73, 4294901760
    %v2799 = vsub.f32 %v73, %v2798
    %2800 = vmatmul.mubr.f32.gmra.mrb[0].mxu0 %v2799
    %v2801 = vpop.f32.mrb[0].mxu0
    %v2802 = vadd.f32 %v1901, %v2801
    %v2803 = vpop.f32.mrb[0].mxu0
    %2804 = vmatprep.mubr.f32.mxu0 0.0
    %v2805 = vand.u32 %v74, 4294901760
    %v2806 = vsub.f32 %v74, %v2805
    %2807 = vmatmul.mubr.f32.gmra.mrb[0].mxu0 %v2806
    %v2808 = vpop.f32.mrb[0].mxu0
    %v2809 = vadd.f32 %v1907, %v2808
    %v2810 = vpop.f32.mrb[0].mxu0
    %2811 = vmatprep.mubr.f32.mxu0 0.0
    %v2812 = vand.u32 %v75, 4294901760
    %v2813 = vsub.f32 %v75, %v2812
    %2814 = vmatmul.mubr.f32.gmra.mrb[0].mxu0 %v2813
    %v2815 = vpop.f32.mrb[0].mxu0
    %v2816 = vadd.f32 %v1913, %v2815
    %v2817 = vpop.f32.mrb[0].mxu0
    %2818 = vmatprep.mubr.f32.mxu0 0.0
    %v2819 = vand.u32 %v76, 4294901760
    %v2820 = vsub.f32 %v76, %v2819
    %2821 = vmatmul.mubr.f32.gmra.mrb[0].mxu0 %v2820
    %v2822 = vpop.f32.mrb[0].mxu0
    %v2823 = vadd.f32 %v1919, %v2822
    %v2824 = vpop.f32.mrb[0].mxu0
    %2825 = vmatprep.mubr.f32.mxu0 0.0
    %v2826 = vand.u32 %v77, 4294901760
    %v2827 = vsub.f32 %v77, %v2826
    %2828 = vmatmul.mubr.f32.gmra.mrb[0].mxu0 %v2827
    %v2829 = vpop.f32.mrb[0].mxu0
    %v2830 = vadd.f32 %v1925, %v2829
    %v2831 = vpop.f32.mrb[0].mxu0
    %2832 = vmatprep.mubr.f32.mxu0 0.0
    %v2833 = vand.u32 %v78, 4294901760
    %v2834 = vsub.f32 %v78, %v2833
    %2835 = vmatmul.mubr.f32.gmra.mrb[0].mxu0 %v2834
    %v2836 = vpop.f32.mrb[0].mxu0
    %v2837 = vadd.f32 %v1931, %v2836
    %v2838 = vpop.f32.mrb[0].mxu0
    %2839 = vmatprep.mubr.f32.mxu0 0.0
    %v2840 = vand.u32 %v79, 4294901760
    %v2841 = vsub.f32 %v79, %v2840
    %2842 = vmatmul.mubr.f32.gmra.mrb[0].mxu0 %v2841
    %v2843 = vpop.f32.mrb[0].mxu0
    %v2844 = vadd.f32 %v1937, %v2843
    %v2845 = vpop.f32.mrb[0].mxu0
    %2846 = vmatprep.mubr.f32.mxu0 0.0
    %v2847 = vand.u32 %v80, 4294901760
    %v2848 = vsub.f32 %v80, %v2847
    %2849 = vmatmul.mubr.f32.gmra.mrb[0].mxu0 %v2848
    %v2850 = vpop.f32.mrb[0].mxu0
    %v2851 = vadd.f32 %v1943, %v2850
    %v2852 = vpop.f32.mrb[0].mxu0
    %2853 = vmatprep.mubr.f32.mxu0 0.0
    %v2854 = vand.u32 %v81, 4294901760
    %v2855 = vsub.f32 %v81, %v2854
    %2856 = vmatmul.mubr.f32.gmra.mrb[0].mxu0 %v2855
    %v2857 = vpop.f32.mrb[0].mxu0
    %v2858 = vadd.f32 %v1949, %v2857
    %v2859 = vpop.f32.mrb[0].mxu0
    %2860 = vmatprep.mubr.f32.mxu0 0.0
    %v2861 = vand.u32 %v82, 4294901760
    %v2862 = vsub.f32 %v82, %v2861
    %2863 = vmatmul.mubr.f32.gmra.mrb[0].mxu0 %v2862
    %v2864 = vpop.f32.mrb[0].mxu0
    %v2865 = vadd.f32 %v1955, %v2864
    %v2866 = vpop.f32.mrb[0].mxu0
    %2867 = vmatprep.mubr.f32.mxu0 0.0
    %v2868 = vand.u32 %v83, 4294901760
    %v2869 = vsub.f32 %v83, %v2868
    %2870 = vmatmul.mubr.f32.gmra.mrb[0].mxu0 %v2869
    %v2871 = vpop.f32.mrb[0].mxu0
    %v2872 = vadd.f32 %v1961, %v2871
    %v2873 = vpop.f32.mrb[0].mxu0
    %2874 = vmatprep.mubr.f32.mxu0 0.0
    %v2875 = vand.u32 %v84, 4294901760
    %v2876 = vsub.f32 %v84, %v2875
    %2877 = vmatmul.mubr.f32.gmra.mrb[0].mxu0 %v2876
    %v2878 = vpop.f32.mrb[0].mxu0
    %v2879 = vadd.f32 %v1967, %v2878
    %v2880 = vpop.f32.mrb[0].mxu0
    %2881 = vmatprep.mubr.f32.mxu0 0.0
    %v2882 = vand.u32 %v85, 4294901760
    %v2883 = vsub.f32 %v85, %v2882
    %2884 = vmatmul.mubr.f32.gmra.mrb[0].mxu0 %v2883
    %v2885 = vpop.f32.mrb[0].mxu0
    %v2886 = vadd.f32 %v1973, %v2885
    %v2887 = vpop.f32.mrb[0].mxu0
    %2888 = vmatprep.mubr.f32.mxu0 0.0
    %v2889 = vand.u32 %v86, 4294901760
    %v2890 = vsub.f32 %v86, %v2889
    %2891 = vmatmul.mubr.f32.gmra.mrb[0].mxu0 %v2890
    %v2892 = vpop.f32.mrb[0].mxu0
    %v2893 = vadd.f32 %v1979, %v2892
    %v2894 = vpop.f32.mrb[0].mxu0
    %2895 = vmatprep.mubr.f32.mxu0 0.0
    %v2896 = vand.u32 %v87, 4294901760
    %v2897 = vsub.f32 %v87, %v2896
    %2898 = vmatmul.mubr.f32.gmra.mrb[0].mxu0 %v2897
    %v2899 = vpop.f32.mrb[0].mxu0
    %v2900 = vadd.f32 %v1985, %v2899
    %v2901 = vpop.f32.mrb[0].mxu0
    %2902 = vmatprep.mubr.f32.mxu0 0.0
    %v2903 = vand.u32 %v88, 4294901760
    %v2904 = vsub.f32 %v88, %v2903
    %2905 = vmatmul.mubr.f32.gmra.mrb[0].mxu0 %v2904
    %v2906 = vpop.f32.mrb[0].mxu0
    %v2907 = vadd.f32 %v1991, %v2906
    %v2908 = vpop.f32.mrb[0].mxu0
    %2909 = vmatprep.mubr.f32.mxu0 0.0
    %v2910 = vand.u32 %v89, 4294901760
    %v2911 = vsub.f32 %v89, %v2910
    %2912 = vmatmul.mubr.f32.gmra.mrb[0].mxu0 %v2911
    %v2913 = vpop.f32.mrb[0].mxu0
    %v2914 = vadd.f32 %v1997, %v2913
    %v2915 = vpop.f32.mrb[0].mxu0
    %2916 = vmatprep.mubr.f32.mxu0 0.0
    %v2917 = vand.u32 %v90, 4294901760
    %v2918 = vsub.f32 %v90, %v2917
    %2919 = vmatmul.mubr.f32.gmra.mrb[0].mxu0 %v2918
    %v2920 = vpop.f32.mrb[0].mxu0
    %v2921 = vadd.f32 %v2003, %v2920
    %v2922 = vpop.f32.mrb[0].mxu0
    %2923 = vmatprep.mubr.f32.mxu0 0.0
    %v2924 = vand.u32 %v91, 4294901760
    %v2925 = vsub.f32 %v91, %v2924
    %2926 = vmatmul.mubr.f32.gmra.mrb[0].mxu0 %v2925
    %v2927 = vpop.f32.mrb[0].mxu0
    %v2928 = vadd.f32 %v2009, %v2927
    %v2929 = vpop.f32.mrb[0].mxu0
    %2930 = vmatprep.mubr.f32.mxu0 0.0
    %v2931 = vand.u32 %v92, 4294901760
    %v2932 = vsub.f32 %v92, %v2931
    %2933 = vmatmul.mubr.f32.gmra.mrb[0].mxu0 %v2932
    %v2934 = vpop.f32.mrb[0].mxu0
    %v2935 = vadd.f32 %v2015, %v2934
    %v2936 = vpop.f32.mrb[0].mxu0
    %2937 = vmatprep.mubr.f32.mxu0 0.0
    %v2938 = vand.u32 %v93, 4294901760
    %v2939 = vsub.f32 %v93, %v2938
    %2940 = vmatmul.mubr.f32.gmra.mrb[0].mxu0 %v2939
    %v2941 = vpop.f32.mrb[0].mxu0
    %v2942 = vadd.f32 %v2021, %v2941
    %v2943 = vpop.f32.mrb[0].mxu0
    %2944 = vmatprep.mubr.f32.mxu0 0.0
    %v2945 = vand.u32 %v94, 4294901760
    %v2946 = vsub.f32 %v94, %v2945
    %2947 = vmatmul.mubr.f32.gmra.mrb[0].mxu0 %v2946
    %v2948 = vpop.f32.mrb[0].mxu0
    %v2949 = vadd.f32 %v2027, %v2948
    %v2950 = vpop.f32.mrb[0].mxu0
    %2951 = vmatprep.mubr.f32.mxu0 0.0
    %v2952 = vand.u32 %v95, 4294901760
    %v2953 = vsub.f32 %v95, %v2952
    %2954 = vmatmul.mubr.f32.gmra.mrb[0].mxu0 %v2953
    %v2955 = vpop.f32.mrb[0].mxu0
    %v2956 = vadd.f32 %v2033, %v2955
    %v2957 = vpop.f32.mrb[0].mxu0
    %2958 = vmatprep.mubr.f32.mxu0 0.0
    %v2959 = vand.u32 %v96, 4294901760
    %v2960 = vsub.f32 %v96, %v2959
    %2961 = vmatmul.mubr.f32.gmra.mrb[0].mxu0 %v2960
    %v2962 = vpop.f32.mrb[0].mxu0
    %v2963 = vadd.f32 %v2039, %v2962
    %v2964 = vpop.f32.mrb[0].mxu0
    %2965 = vmatprep.mubr.f32.mxu0 0.0
    %v2966 = vand.u32 %v97, 4294901760
    %v2967 = vsub.f32 %v97, %v2966
    %2968 = vmatmul.mubr.f32.gmra.mrb[0].mxu0 %v2967
    %v2969 = vpop.f32.mrb[0].mxu0
    %v2970 = vadd.f32 %v2045, %v2969
    %v2971 = vpop.f32.mrb[0].mxu0
    %2972 = vmatprep.mubr.f32.mxu0 0.0
    %v2973 = vand.u32 %v98, 4294901760
    %v2974 = vsub.f32 %v98, %v2973
    %2975 = vmatmul.mubr.f32.gmra.mrb[0].mxu0 %v2974
    %v2976 = vpop.f32.mrb[0].mxu0
    %v2977 = vadd.f32 %v2051, %v2976
    %v2978 = vpop.f32.mrb[0].mxu0
    %2979 = vmatprep.mubr.f32.mxu0 0.0
    %v2980 = vand.u32 %v99, 4294901760
    %v2981 = vsub.f32 %v99, %v2980
    %2982 = vmatmul.mubr.f32.gmra.mrb[0].mxu0 %v2981
    %v2983 = vpop.f32.mrb[0].mxu0
    %v2984 = vadd.f32 %v2057, %v2983
    %v2985 = vpop.f32.mrb[0].mxu0
    %2986 = vmatprep.mubr.f32.mxu0 0.0
    %v2987 = vand.u32 %v100, 4294901760
    %v2988 = vsub.f32 %v100, %v2987
    %2989 = vmatmul.mubr.f32.gmra.mrb[0].mxu0 %v2988
    %v2990 = vpop.f32.mrb[0].mxu0
    %v2991 = vadd.f32 %v2063, %v2990
    %v2992 = vpop.f32.mrb[0].mxu0
    %2993 = vmatprep.mubr.f32.mxu0 0.0
    %v2994 = vand.u32 %v101, 4294901760
    %v2995 = vsub.f32 %v101, %v2994
    %2996 = vmatmul.mubr.f32.gmra.mrb[0].mxu0 %v2995
    %v2997 = vpop.f32.mrb[0].mxu0
    %v2998 = vadd.f32 %v2069, %v2997
    %v2999 = vpop.f32.mrb[0].mxu0
    %3000 = vmatprep.mubr.f32.mxu0 0.0
    %v3001 = vand.u32 %v102, 4294901760
    %v3002 = vsub.f32 %v102, %v3001
    %3003 = vmatmul.mubr.f32.gmra.mrb[0].mxu0 %v3002
    %v3004 = vpop.f32.mrb[0].mxu0
    %v3005 = vadd.f32 %v2075, %v3004
    %v3006 = vpop.f32.mrb[0].mxu0
    %3007 = vmatprep.mubr.f32.mxu0 0.0
    %v3008 = vand.u32 %v103, 4294901760
    %v3009 = vsub.f32 %v103, %v3008
    %3010 = vmatmul.mubr.f32.gmra.mrb[0].mxu0 %v3009
    %v3011 = vpop.f32.mrb[0].mxu0
    %v3012 = vadd.f32 %v2081, %v3011
    %v3013 = vpop.f32.mrb[0].mxu0
    %3014 = vmatprep.mubr.f32.mxu0 0.0
    %v3015 = vand.u32 %v104, 4294901760
    %v3016 = vsub.f32 %v104, %v3015
    %3017 = vmatmul.mubr.f32.gmra.mrb[0].mxu0 %v3016
    %v3018 = vpop.f32.mrb[0].mxu0
    %v3019 = vadd.f32 %v2087, %v3018
    %v3020 = vpop.f32.mrb[0].mxu0
    %3021 = vmatprep.mubr.f32.mxu0 0.0
    %v3022 = vand.u32 %v105, 4294901760
    %v3023 = vsub.f32 %v105, %v3022
    %3024 = vmatmul.mubr.f32.gmra.mrb[0].mxu0 %v3023
    %v3025 = vpop.f32.mrb[0].mxu0
    %v3026 = vadd.f32 %v2093, %v3025
    %v3027 = vpop.f32.mrb[0].mxu0
    %3028 = vmatprep.mubr.f32.mxu0 0.0
    %v3029 = vand.u32 %v106, 4294901760
    %v3030 = vsub.f32 %v106, %v3029
    %3031 = vmatmul.mubr.f32.gmra.mrb[0].mxu0 %v3030
    %v3032 = vpop.f32.mrb[0].mxu0
    %v3033 = vadd.f32 %v2099, %v3032
    %v3034 = vpop.f32.mrb[0].mxu0
    %3035 = vmatprep.mubr.f32.mxu0 0.0
    %v3036 = vand.u32 %v107, 4294901760
    %v3037 = vsub.f32 %v107, %v3036
    %3038 = vmatmul.mubr.f32.gmra.mrb[0].mxu0 %v3037
    %v3039 = vpop.f32.mrb[0].mxu0
    %v3040 = vadd.f32 %v2105, %v3039
    %v3041 = vpop.f32.mrb[0].mxu0
    %3042 = vmatprep.mubr.f32.mxu0 0.0
    %v3043 = vand.u32 %v108, 4294901760
    %v3044 = vsub.f32 %v108, %v3043
    %3045 = vmatmul.mubr.f32.gmra.mrb[0].mxu0 %v3044
    %v3046 = vpop.f32.mrb[0].mxu0
    %v3047 = vadd.f32 %v2111, %v3046
    %v3048 = vpop.f32.mrb[0].mxu0
    %3049 = vmatprep.mubr.f32.mxu0 0.0
    %v3050 = vand.u32 %v109, 4294901760
    %v3051 = vsub.f32 %v109, %v3050
    %3052 = vmatmul.mubr.f32.gmra.mrb[0].mxu0 %v3051
    %v3053 = vpop.f32.mrb[0].mxu0
    %v3054 = vadd.f32 %v2117, %v3053
    %v3055 = vpop.f32.mrb[0].mxu0
    %3056 = vmatprep.mubr.f32.mxu0 0.0
    %v3057 = vand.u32 %v110, 4294901760
    %v3058 = vsub.f32 %v110, %v3057
    %3059 = vmatmul.mubr.f32.gmra.mrb[0].mxu0 %v3058
    %v3060 = vpop.f32.mrb[0].mxu0
    %v3061 = vadd.f32 %v2123, %v3060
    %v3062 = vpop.f32.mrb[0].mxu0
    %3063 = vmatprep.mubr.f32.mxu0 0.0
    %v3064 = vand.u32 %v111, 4294901760
    %v3065 = vsub.f32 %v111, %v3064
    %3066 = vmatmul.mubr.f32.gmra.mrb[0].mxu0 %v3065
    %v3067 = vpop.f32.mrb[0].mxu0
    %v3068 = vadd.f32 %v2129, %v3067
    %v3069 = vpop.f32.mrb[0].mxu0
    %3070 = vmatprep.mubr.f32.mxu0 0.0
    %v3071 = vand.u32 %v112, 4294901760
    %v3072 = vsub.f32 %v112, %v3071
    %3073 = vmatmul.mubr.f32.gmra.mrb[0].mxu0 %v3072
    %v3074 = vpop.f32.mrb[0].mxu0
    %v3075 = vadd.f32 %v2135, %v3074
    %v3076 = vpop.f32.mrb[0].mxu0
    %3077 = vmatprep.mubr.f32.mxu0 0.0
    %v3078 = vand.u32 %v113, 4294901760
    %v3079 = vsub.f32 %v113, %v3078
    %3080 = vmatmul.mubr.f32.gmra.mrb[0].mxu0 %v3079
    %v3081 = vpop.f32.mrb[0].mxu0
    %v3082 = vadd.f32 %v2141, %v3081
    %v3083 = vpop.f32.mrb[0].mxu0
    %3084 = vmatprep.mubr.f32.mxu0 0.0
    %v3085 = vand.u32 %v114, 4294901760
    %v3086 = vsub.f32 %v114, %v3085
    %3087 = vmatmul.mubr.f32.gmra.mrb[0].mxu0 %v3086
    %v3088 = vpop.f32.mrb[0].mxu0
    %v3089 = vadd.f32 %v2147, %v3088
    %v3090 = vpop.f32.mrb[0].mxu0
    %3091 = vmatprep.mubr.f32.mxu0 0.0
    %v3092 = vand.u32 %v115, 4294901760
    %v3093 = vsub.f32 %v115, %v3092
    %3094 = vmatmul.mubr.f32.gmra.mrb[0].mxu0 %v3093
    %v3095 = vpop.f32.mrb[0].mxu0
    %v3096 = vadd.f32 %v2153, %v3095
    %v3097 = vpop.f32.mrb[0].mxu0
    %3098 = vmatprep.mubr.f32.mxu0 0.0
    %v3099 = vand.u32 %v116, 4294901760
    %v3100 = vsub.f32 %v116, %v3099
    %3101 = vmatmul.mubr.f32.gmra.mrb[0].mxu0 %v3100
    %v3102 = vpop.f32.mrb[0].mxu0
    %v3103 = vadd.f32 %v2159, %v3102
    %v3104 = vpop.f32.mrb[0].mxu0
    %3105 = vmatprep.mubr.f32.mxu0 0.0
    %v3106 = vand.u32 %v117, 4294901760
    %v3107 = vsub.f32 %v117, %v3106
    %3108 = vmatmul.mubr.f32.gmra.mrb[0].mxu0 %v3107
    %v3109 = vpop.f32.mrb[0].mxu0
    %v3110 = vadd.f32 %v2165, %v3109
    %v3111 = vpop.f32.mrb[0].mxu0
    %3112 = vmatprep.mubr.f32.mxu0 0.0
    %v3113 = vand.u32 %v118, 4294901760
    %v3114 = vsub.f32 %v118, %v3113
    %3115 = vmatmul.mubr.f32.gmra.mrb[0].mxu0 %v3114
    %v3116 = vpop.f32.mrb[0].mxu0
    %v3117 = vadd.f32 %v2171, %v3116
    %v3118 = vpop.f32.mrb[0].mxu0
    %3119 = vmatprep.mubr.f32.mxu0 0.0
    %v3120 = vand.u32 %v119, 4294901760
    %v3121 = vsub.f32 %v119, %v3120
    %3122 = vmatmul.mubr.f32.gmra.mrb[0].mxu0 %v3121
    %v3123 = vpop.f32.mrb[0].mxu0
    %v3124 = vadd.f32 %v2177, %v3123
    %v3125 = vpop.f32.mrb[0].mxu0
    %3126 = vmatprep.mubr.f32.mxu0 0.0
    %v3127 = vand.u32 %v120, 4294901760
    %v3128 = vsub.f32 %v120, %v3127
    %3129 = vmatmul.mubr.f32.gmra.mrb[0].mxu0 %v3128
    %v3130 = vpop.f32.mrb[0].mxu0
    %v3131 = vadd.f32 %v2183, %v3130
    %v3132 = vpop.f32.mrb[0].mxu0
    %3133 = vmatprep.mubr.f32.mxu0 0.0
    %v3134 = vand.u32 %v121, 4294901760
    %v3135 = vsub.f32 %v121, %v3134
    %3136 = vmatmul.mubr.f32.gmra.mrb[0].mxu0 %v3135
    %v3137 = vpop.f32.mrb[0].mxu0
    %v3138 = vadd.f32 %v2189, %v3137
    %v3139 = vpop.f32.mrb[0].mxu0
    %3140 = vmatprep.mubr.f32.mxu0 0.0
    %v3141 = vand.u32 %v122, 4294901760
    %v3142 = vsub.f32 %v122, %v3141
    %3143 = vmatmul.mubr.f32.gmra.mrb[0].mxu0 %v3142
    %v3144 = vpop.f32.mrb[0].mxu0
    %v3145 = vadd.f32 %v2195, %v3144
    %v3146 = vpop.f32.mrb[0].mxu0
    %3147 = vmatprep.mubr.f32.mxu0 0.0
    %v3148 = vand.u32 %v123, 4294901760
    %v3149 = vsub.f32 %v123, %v3148
    %3150 = vmatmul.mubr.f32.gmra.mrb[0].mxu0 %v3149
    %v3151 = vpop.f32.mrb[0].mxu0
    %v3152 = vadd.f32 %v2201, %v3151
    %v3153 = vpop.f32.mrb[0].mxu0
    %3154 = vmatprep.mubr.f32.mxu0 0.0
    %v3155 = vand.u32 %v124, 4294901760
    %v3156 = vsub.f32 %v124, %v3155
    %3157 = vmatmul.mubr.f32.gmra.mrb[0].mxu0 %v3156
    %v3158 = vpop.f32.mrb[0].mxu0
    %v3159 = vadd.f32 %v2207, %v3158
    %v3160 = vpop.f32.mrb[0].mxu0
    %3161 = vmatprep.mubr.f32.mxu0 0.0
    %v3162 = vand.u32 %v125, 4294901760
    %v3163 = vsub.f32 %v125, %v3162
    %3164 = vmatmul.mubr.f32.gmra.mrb[0].mxu0 %v3163
    %v3165 = vpop.f32.mrb[0].mxu0
    %v3166 = vadd.f32 %v2213, %v3165
    %v3167 = vpop.f32.mrb[0].mxu0
    %3168 = vmatprep.mubr.f32.mxu0 0.0
    %v3169 = vand.u32 %v126, 4294901760
    %v3170 = vsub.f32 %v126, %v3169
    %3171 = vmatmul.mubr.f32.gmra.mrb[0].mxu0 %v3170
    %v3172 = vpop.f32.mrb[0].mxu0
    %v3173 = vadd.f32 %v2219, %v3172
    %v3174 = vpop.f32.mrb[0].mxu0
    %3175 = vmatprep.mubr.f32.mxu0 0.0
    %v3176 = vand.u32 %v127, 4294901760
    %v3177 = vsub.f32 %v127, %v3176
    %3178 = vmatmul.mubr.f32.gmra.mrb[0].mxu0 %v3177
    %v3179 = vpop.f32.mrb[0].mxu0
    %v3180 = vadd.f32 %v2225, %v3179
    %v3181 = vpop.f32.mrb[0].mxu0
    %3182 = vmatprep.mubr.f32.mxu0 0.0
    %v3183 = vand.u32 %v128, 4294901760
    %v3184 = vsub.f32 %v128, %v3183
    %3185 = vmatmul.mubr.f32.gmra.mrb[0].mxu0 %v3184
    %v3186 = vpop.f32.mrb[0].mxu0
    %v3187 = vadd.f32 %v2231, %v3186
    %v3188 = vpop.f32.mrb[0].mxu0
    %3189 = vmatprep.mubr.f32.mxu0 0.0
    %v3190 = vand.u32 %v129, 4294901760
    %v3191 = vsub.f32 %v129, %v3190
    %3192 = vmatmul.mubr.f32.gmra.mrb[0].mxu0 %v3191
    %v3193 = vpop.f32.mrb[0].mxu0
    %v3194 = vadd.f32 %v2237, %v3193
    %v3195 = vpop.f32.mrb[0].mxu0
    %3196 = vmatprep.mubr.f32.mxu0 0.0
    %v3197 = vand.u32 %v130, 4294901760
    %v3198 = vsub.f32 %v130, %v3197
    %3199 = vmatmul.mubr.f32.gmra.mrb[0].mxu0 %v3198
    %v3200 = vpop.f32.mrb[0].mxu0
    %v3201 = vadd.f32 %v2243, %v3200
    %v3202 = vpop.f32.mrb[0].mxu0
    %3203 = vmatprep.mubr.f32.mxu0 0.0
    %v3204 = vand.u32 %v131, 4294901760
    %v3205 = vsub.f32 %v131, %v3204
    %3206 = vmatmul.mubr.f32.gmra.mrb[0].mxu0 %v3205
    %v3207 = vpop.f32.mrb[0].mxu0
    %v3208 = vadd.f32 %v2249, %v3207
    %v3209 = vpop.f32.mrb[0].mxu0
    %3210 = vmatprep.mubr.f32.mxu0 0.0
    %v3211 = vand.u32 %v132, 4294901760
    %v3212 = vsub.f32 %v132, %v3211
    %3213 = vmatmul.mubr.f32.gmra.mrb[0].mxu0 %v3212
    %v3214 = vpop.f32.mrb[0].mxu0
    %v3215 = vadd.f32 %v2255, %v3214
    %v3216 = vpop.f32.mrb[0].mxu0
    %3217 = vmatprep.mubr.f32.mxu0 0.0
    %v3218 = vand.u32 %v133, 4294901760
    %v3219 = vsub.f32 %v133, %v3218
    %3220 = vmatmul.mubr.f32.gmra.mrb[0].mxu0 %v3219
    %v3221 = vpop.f32.mrb[0].mxu0
    %v3222 = vadd.f32 %v2261, %v3221
    %v3223 = vpop.f32.mrb[0].mxu0
    %3224 = vmatprep.mubr.f32.mxu0 0.0
    %v3225 = vand.u32 %v134, 4294901760
    %v3226 = vsub.f32 %v134, %v3225
    %3227 = vmatmul.mubr.f32.gmra.mrb[0].mxu0 %v3226
    %v3228 = vpop.f32.mrb[0].mxu0
    %v3229 = vadd.f32 %v2267, %v3228
    %v3230 = vpop.f32.mrb[0].mxu0
    %3231 = vmatprep.mubr.f32.mxu0 0.0
    %v3232 = vand.u32 %v135, 4294901760
    %v3233 = vsub.f32 %v135, %v3232
    %3234 = vmatmul.mubr.f32.gmra.mrb[0].mxu0 %v3233
    %v3235 = vpop.f32.mrb[0].mxu0
    %v3236 = vadd.f32 %v2273, %v3235
    %v3237 = vpop.f32.mrb[0].mxu0
    %3238 = vmatprep.mubr.f32.mxu0 0.0
    %v3239 = vand.u32 %v136, 4294901760
    %v3240 = vsub.f32 %v136, %v3239
    %3241 = vmatmul.mubr.f32.gmra.mrb[0].mxu0 %v3240
    %v3242 = vpop.f32.mrb[0].mxu0
    %v3243 = vadd.f32 %v2279, %v3242
    %v3244 = vpop.f32.mrb[0].mxu0
    %3245 = vmatprep.mubr.f32.mxu0 0.0
    %v3246 = vand.u32 %v137, 4294901760
    %v3247 = vsub.f32 %v137, %v3246
    %3248 = vmatmul.mubr.f32.gmra.mrb[0].mxu0 %v3247
    %v3249 = vpop.f32.mrb[0].mxu0
    %v3250 = vadd.f32 %v2285, %v3249
    %v3251 = vpop.f32.mrb[0].mxu0
    %3252 = vmatprep.mubr.f32.mxu0 0.0
    %v3253 = vand.u32 %v138, 4294901760
    %v3254 = vsub.f32 %v138, %v3253
    %3255 = vmatmul.mubr.f32.gmra.mrb[0].mxu0 %v3254
    %v3256 = vpop.f32.mrb[0].mxu0
    %v3257 = vadd.f32 %v2291, %v3256
    %v3258 = vpop.f32.mrb[0].mxu0
    %3259 = vmatprep.mubr.f32.mxu0 0.0
    %v3260 = vand.u32 %v139, 4294901760
    %v3261 = vsub.f32 %v139, %v3260
    %3262 = vmatmul.mubr.f32.gmra.mrb[0].mxu0 %v3261
    %v3263 = vpop.f32.mrb[0].mxu0
    %v3264 = vadd.f32 %v2297, %v3263
    %v3265 = vpop.f32.mrb[0].mxu0
    %3266 = vmatprep.mubr.f32.mxu0 0.0
    %v3267 = vand.u32 %v140, 4294901760
    %v3268 = vsub.f32 %v140, %v3267
    %3269 = vmatmul.mubr.f32.gmra.mrb[0].mxu0 %v3268
    %v3270 = vpop.f32.mrb[0].mxu0
    %v3271 = vadd.f32 %v2303, %v3270
    %v3272 = vpop.f32.mrb[0].mxu0
    %3273 = vmatprep.mubr.f32.mxu0 0.0
    %v3274 = vand.u32 %v141, 4294901760
    %v3275 = vsub.f32 %v141, %v3274
    %3276 = vmatmul.mubr.f32.gmra.mrb[0].mxu0 %v3275
    %v3277 = vpop.f32.mrb[0].mxu0
    %v3278 = vadd.f32 %v2309, %v3277
    %v3279 = vpop.f32.mrb[0].mxu0
    %3280 = vmatprep.mubr.f32.mxu0 0.0
    %v3281 = vand.u32 %v142, 4294901760
    %v3282 = vsub.f32 %v142, %v3281
    %3283 = vmatmul.mubr.f32.gmra.mrb[0].mxu0 %v3282
    %v3284 = vpop.f32.mrb[0].mxu0
    %v3285 = vadd.f32 %v2315, %v3284
    %v3286 = vpop.f32.mrb[0].mxu0
    %3287 = vmatprep.mubr.f32.mxu0 0.0
    %v3288 = vand.u32 %v143, 4294901760
    %v3289 = vsub.f32 %v143, %v3288
    %3290 = vmatmul.mubr.f32.gmra.mrb[0].mxu0 %v3289
    %v3291 = vpop.f32.mrb[0].mxu0
    %v3292 = vadd.f32 %v2321, %v3291
    %v3293 = vpop.f32.mrb[0].mxu0
    %3294 = vmatprep.mubr.f32.mxu0 0.0
    %v3295 = vand.u32 %v144, 4294901760
    %v3296 = vsub.f32 %v144, %v3295
    %3297 = vmatmul.mubr.f32.gmra.mrb[0].mxu0 %v3296
    %v3298 = vpop.f32.mrb[0].mxu0
    %v3299 = vadd.f32 %v2327, %v3298
    %v3300 = vpop.f32.mrb[0].mxu0
    %3301 = vmatprep.mubr.f32.mxu0 0.0
    %v3302 = vand.u32 %v145, 4294901760
    %v3303 = vsub.f32 %v145, %v3302
    %3304 = vmatmul.mubr.f32.gmra.mrb[0].mxu0 %v3303
    %v3305 = vpop.f32.mrb[0].mxu0
    %v3306 = vadd.f32 %v2333, %v3305
    %v3307 = vpop.f32.mrb[0].mxu0
    %3308 = vmatprep.mubr.f32.mxu0 0.0
    %v3309 = vand.u32 %v146, 4294901760
    %v3310 = vsub.f32 %v146, %v3309
    %3311 = vmatmul.mubr.f32.gmra.mrb[0].mxu0 %v3310
    %v3312 = vpop.f32.mrb[0].mxu0
    %v3313 = vadd.f32 %v2339, %v3312
    %v3314 = vpop.f32.mrb[0].mxu0
    %3315 = vmatprep.mubr.f32.mxu0 0.0
    %v3316 = vand.u32 %v147, 4294901760
    %v3317 = vsub.f32 %v147, %v3316
    %3318 = vmatmul.mubr.f32.gmra.mrb[0].mxu0 %v3317
    %v3319 = vpop.f32.mrb[0].mxu0
    %v3320 = vadd.f32 %v2345, %v3319
    %v3321 = vpop.f32.mrb[0].mxu0
    %3322 = vmatprep.mubr.f32.mxu0 0.0
    %v3323 = vand.u32 %v148, 4294901760
    %v3324 = vsub.f32 %v148, %v3323
    %3325 = vmatmul.mubr.f32.gmra.mrb[0].mxu0 %v3324
    %v3326 = vpop.f32.mrb[0].mxu0
    %v3327 = vadd.f32 %v2351, %v3326
    %v3328 = vpop.f32.mrb[0].mxu0
    %3329 = vmatprep.mubr.f32.mxu0 0.0
    %v3330 = vand.u32 %v149, 4294901760
    %v3331 = vsub.f32 %v149, %v3330
    %3332 = vmatmul.mubr.f32.gmra.mrb[0].mxu0 %v3331
    %v3333 = vpop.f32.mrb[0].mxu0
    %v3334 = vadd.f32 %v2357, %v3333
    %v3335 = vpop.f32.mrb[0].mxu0
    %3336 = vmatprep.mubr.f32.mxu0 0.0
    %v3337 = vand.u32 %v150, 4294901760
    %v3338 = vsub.f32 %v150, %v3337
    %3339 = vmatmul.mubr.f32.gmra.mrb[0].mxu0 %v3338
    %v3340 = vpop.f32.mrb[0].mxu0
    %v3341 = vadd.f32 %v2363, %v3340
    %v3342 = vpop.f32.mrb[0].mxu0
    %3343 = vmatprep.mubr.f32.mxu0 0.0
    %v3344 = vand.u32 %v151, 4294901760
    %v3345 = vsub.f32 %v151, %v3344
    %3346 = vmatmul.mubr.f32.gmra.mrb[0].mxu0 %v3345
    %v3347 = vpop.f32.mrb[0].mxu0
    %v3348 = vadd.f32 %v2369, %v3347
    %v3349 = vpop.f32.mrb[0].mxu0
    %3350 = vmatprep.mubr.f32.mxu0 0.0
    %v3351 = vand.u32 %v152, 4294901760
    %v3352 = vsub.f32 %v152, %v3351
    %3353 = vmatmul.mubr.f32.gmra.mrb[0].mxu0 %v3352
    %v3354 = vpop.f32.mrb[0].mxu0
    %v3355 = vadd.f32 %v2375, %v3354
    %v3356 = vpop.f32.mrb[0].mxu0
    %3357 = vmatprep.mubr.f32.mxu0 0.0
    %v3358 = vand.u32 %v153, 4294901760
    %v3359 = vsub.f32 %v153, %v3358
    %3360 = vmatmul.mubr.f32.gmra.mrb[0].mxu0 %v3359
    %v3361 = vpop.f32.mrb[0].mxu0
    %v3362 = vadd.f32 %v2381, %v3361
    %v3363 = vpop.f32.mrb[0].mxu0
    %3364 = vmatprep.mubr.f32.mxu0 0.0
    %v3365 = vand.u32 %v154, 4294901760
    %v3366 = vsub.f32 %v154, %v3365
    %3367 = vmatmul.mubr.f32.gmra.mrb[0].mxu0 %v3366
    %v3368 = vpop.f32.mrb[0].mxu0
    %v3369 = vadd.f32 %v2387, %v3368
    %v3370 = vpop.f32.mrb[0].mxu0
    %3371 = vmatprep.mubr.f32.mxu0 0.0
    %v3372 = vand.u32 %v155, 4294901760
    %v3373 = vsub.f32 %v155, %v3372
    %3374 = vmatmul.mubr.f32.gmra.mrb[0].mxu0 %v3373
    %v3375 = vpop.f32.mrb[0].mxu0
    %v3376 = vadd.f32 %v2393, %v3375
    %v3377 = vpop.f32.mrb[0].mxu0
    %3378 = vmatprep.mubr.f32.mxu0 0.0
    %v3379 = vand.u32 %v156, 4294901760
    %v3380 = vsub.f32 %v156, %v3379
    %3381 = vmatmul.mubr.f32.gmra.mrb[0].mxu0 %v3380
    %v3382 = vpop.f32.mrb[0].mxu0
    %v3383 = vadd.f32 %v2399, %v3382
    %v3384 = vpop.f32.mrb[0].mxu0
    %3385 = vmatprep.mubr.f32.mxu0 0.0
    %v3386 = vand.u32 %v157, 4294901760
    %v3387 = vsub.f32 %v157, %v3386
    %3388 = vmatmul.mubr.f32.gmra.mrb[0].mxu0 %v3387
    %v3389 = vpop.f32.mrb[0].mxu0
    %v3390 = vadd.f32 %v2405, %v3389
    %v3391 = vpop.f32.mrb[0].mxu0
    %3392 = vmatprep.mubr.f32.mxu0 0.0
    %v3393 = vand.u32 %v158, 4294901760
    %v3394 = vsub.f32 %v158, %v3393
    %3395 = vmatmul.mubr.f32.gmra.mrb[0].mxu0 %v3394
    %v3396 = vpop.f32.mrb[0].mxu0
    %v3397 = vadd.f32 %v2411, %v3396
    %v3398 = vpop.f32.mrb[0].mxu0
    %3399 = vmatprep.mubr.f32.mxu0 0.0
    %v3400 = vand.u32 %v159, 4294901760
    %v3401 = vsub.f32 %v159, %v3400
    %3402 = vmatmul.mubr.f32.gmra.mrb[0].mxu0 %v3401
    %v3403 = vpop.f32.mrb[0].mxu0
    %v3404 = vadd.f32 %v2417, %v3403
    %v3405 = vpop.f32.mrb[0].mxu0
    %3406 = vmatprep.mubr.f32.mxu0 0.0
    %v3407 = vand.u32 %v160, 4294901760
    %v3408 = vsub.f32 %v160, %v3407
    %3409 = vmatmul.mubr.f32.gmra.mrb[0].mxu0 %v3408
    %v3410 = vpop.f32.mrb[0].mxu0
    %v3411 = vadd.f32 %v2423, %v3410
    %v3412 = vpop.f32.mrb[0].mxu0
    %3413 = vmatprep.mubr.f32.mxu0 0.0
    %v3414 = vand.u32 %v161, 4294901760
    %v3415 = vsub.f32 %v161, %v3414
    %3416 = vmatmul.mubr.f32.gmra.mrb[0].mxu0 %v3415
    %v3417 = vpop.f32.mrb[0].mxu0
    %v3418 = vadd.f32 %v2429, %v3417
    %v3419 = vpop.f32.mrb[0].mxu0
    %3420 = vmatprep.mubr.f32.mxu0 0.0
    %v3421 = vand.u32 %v162, 4294901760
    %v3422 = vsub.f32 %v162, %v3421
    %3423 = vmatmul.mubr.f32.gmra.mrb[0].mxu0 %v3422
    %v3424 = vpop.f32.mrb[0].mxu0
    %v3425 = vadd.f32 %v2435, %v3424
    %v3426 = vpop.f32.mrb[0].mxu0
    %3427 = vmatprep.mubr.f32.mxu0 0.0
    %v3428 = vand.u32 %v163, 4294901760
    %v3429 = vsub.f32 %v163, %v3428
    %3430 = vmatmul.mubr.f32.gmra.mrb[0].mxu0 %v3429
    %v3431 = vpop.f32.mrb[0].mxu0
    %v3432 = vadd.f32 %v2441, %v3431
    %v3433 = vpop.f32.mrb[0].mxu0
    %3434 = vmatprep.mubr.f32.mxu0 0.0
    %v3435 = vand.u32 %v164, 4294901760
    %v3436 = vsub.f32 %v164, %v3435
    %3437 = vmatmul.mubr.f32.gmra.mrb[0].mxu0 %v3436
    %v3438 = vpop.f32.mrb[0].mxu0
    %v3439 = vadd.f32 %v2447, %v3438
    %v3440 = vpop.f32.mrb[0].mxu0
    %3441 = vmatprep.mubr.f32.mxu0 0.0
    %v3442 = vand.u32 %v165, 4294901760
    %v3443 = vsub.f32 %v165, %v3442
    %3444 = vmatmul.mubr.f32.gmra.mrb[0].mxu0 %v3443
    %v3445 = vpop.f32.mrb[0].mxu0
    %v3446 = vadd.f32 %v2453, %v3445
    %v3447 = vpop.f32.mrb[0].mxu0
    %3448 = vdwg.mxu0
    %3449 = vmatprep.subr.mxu0 0.0
    %v3450 = vand.u32 %v166, 4294901760
    %3451 = vmatpush1.msra.mxu0 %v3450
    %3452 = vmatprep.subr.mxu0 0.0
    %v3453 = vand.u32 %v167, 4294901760
    %3454 = vmatpush1.msra.mxu0 %v3453
    %3455 = vmatprep.subr.mxu0 0.0
    %v3456 = vand.u32 %v168, 4294901760
    %3457 = vmatpush1.msra.mxu0 %v3456
    %3458 = vmatprep.subr.mxu0 0.0
    %v3459 = vand.u32 %v169, 4294901760
    %3460 = vmatpush1.msra.mxu0 %v3459
    %3461 = vmatprep.subr.mxu0 0.0
    %v3462 = vand.u32 %v170, 4294901760
    %3463 = vmatpush1.msra.mxu0 %v3462
    %3464 = vmatprep.subr.mxu0 0.0
    %v3465 = vand.u32 %v171, 4294901760
    %3466 = vmatpush1.msra.mxu0 %v3465
    %3467 = vmatprep.subr.mxu0 0.0
    %v3468 = vand.u32 %v172, 4294901760
    %3469 = vmatpush1.msra.mxu0 %v3468
    %3470 = vmatprep.subr.mxu0 0.0
    %v3471 = vand.u32 %v173, 4294901760
    %3472 = vmatpush1.msra.mxu0 %v3471
    %3473 = vmatprep.subr.mxu0 0.0
    %v3474 = vand.u32 %v174, 4294901760
    %3475 = vmatpush1.msra.mxu0 %v3474
    %3476 = vmatprep.subr.mxu0 0.0
    %v3477 = vand.u32 %v175, 4294901760
    %3478 = vmatpush1.msra.mxu0 %v3477
    %3479 = vmatprep.subr.mxu0 0.0
    %v3480 = vand.u32 %v176, 4294901760
    %3481 = vmatpush1.msra.mxu0 %v3480
    %3482 = vmatprep.subr.mxu0 0.0
    %v3483 = vand.u32 %v177, 4294901760
    %3484 = vmatpush1.msra.mxu0 %v3483
    %3485 = vmatprep.subr.mxu0 0.0
    %v3486 = vand.u32 %v178, 4294901760
    %3487 = vmatpush1.msra.mxu0 %v3486
    %3488 = vmatprep.subr.mxu0 0.0
    %v3489 = vand.u32 %v179, 4294901760
    %3490 = vmatpush1.msra.mxu0 %v3489
    %3491 = vmatprep.subr.mxu0 0.0
    %v3492 = vand.u32 %v180, 4294901760
    %3493 = vmatpush1.msra.mxu0 %v3492
    %3494 = vmatprep.subr.mxu0 0.0
    %v3495 = vand.u32 %v181, 4294901760
    %3496 = vmatpush1.msra.mxu0 %v3495
    %3497 = vmatprep.subr.mxu0 0.0
    %3498 = vmatpush1.msra.mxu0 0.0
    %3499 = vmatprep.subr.mxu0 0.0
    %3500 = vmatpush1.msra.mxu0 0.0
    %3501 = vmatprep.subr.mxu0 0.0
    %3502 = vmatpush1.msra.mxu0 0.0
    %3503 = vmatprep.subr.mxu0 0.0
    %3504 = vmatpush1.msra.mxu0 0.0
    %3505 = vmatprep.subr.mxu0 0.0
    %3506 = vmatpush1.msra.mxu0 0.0
    %3507 = vmatprep.subr.mxu0 0.0
    %3508 = vmatpush1.msra.mxu0 0.0
    %3509 = vmatprep.subr.mxu0 0.0
    %3510 = vmatpush1.msra.mxu0 0.0
    %3511 = vmatprep.subr.mxu0 0.0
    %3512 = vmatpush1.msra.mxu0 0.0
    %3513 = vmatprep.subr.mxu0 0.0
    %3514 = vmatpush1.msra.mxu0 0.0
    %3515 = vmatprep.subr.mxu0 0.0
    %3516 = vmatpush1.msra.mxu0 0.0
    %3517 = vmatprep.subr.mxu0 0.0
    %3518 = vmatpush1.msra.mxu0 0.0
    %3519 = vmatprep.subr.mxu0 0.0
    %3520 = vmatpush1.msra.mxu0 0.0
    %3521 = vmatprep.subr.mxu0 0.0
    %3522 = vmatpush1.msra.mxu0 0.0
    %3523 = vmatprep.subr.mxu0 0.0
    %3524 = vmatpush1.msra.mxu0 0.0
    %3525 = vmatprep.subr.mxu0 0.0
    %3526 = vmatpush1.msra.mxu0 0.0
    %3527 = vmatprep.subr.mxu0 0.0
    %3528 = vmatpush1.msra.mxu0 0.0
    %3529 = vmatprep.mubr.f32.mxu0 0.0
    %v3530 = vand.u32 %v38, 4294901760
    %v3531 = vsub.f32 %v38, %v3530
    %v3532 = vand.u32 %v3531, 4294901760
    %3533 = vmatmul.mubr.f32.gmra.mrb[0].mxu0 %v3532
    %v3534 = vpop.f32.mrb[0].mxu0
    %v3535 = vadd.f32 %v2557, %v3534
    %v3536 = vpop.f32.mrb[0].mxu0
    %3537 = vmatprep.mubr.f32.mxu0 0.0
    %v3538 = vand.u32 %v39, 4294901760
    %v3539 = vsub.f32 %v39, %v3538
    %v3540 = vand.u32 %v3539, 4294901760
    %3541 = vmatmul.mubr.f32.gmra.mrb[0].mxu0 %v3540
    %v3542 = vpop.f32.mrb[0].mxu0
    %v3543 = vadd.f32 %v2564, %v3542
    %v3544 = vpop.f32.mrb[0].mxu0
    %3545 = vmatprep.mubr.f32.mxu0 0.0
    %v3546 = vand.u32 %v40, 4294901760
    %v3547 = vsub.f32 %v40, %v3546
    %v3548 = vand.u32 %v3547, 4294901760
    %3549 = vmatmul.mubr.f32.gmra.mrb[0].mxu0 %v3548
    %v3550 = vpop.f32.mrb[0].mxu0
    %v3551 = vadd.f32 %v2571, %v3550
    %v3552 = vpop.f32.mrb[0].mxu0
    %3553 = vmatprep.mubr.f32.mxu0 0.0
    %v3554 = vand.u32 %v41, 4294901760
    %v3555 = vsub.f32 %v41, %v3554
    %v3556 = vand.u32 %v3555, 4294901760
    %3557 = vmatmul.mubr.f32.gmra.mrb[0].mxu0 %v3556
    %v3558 = vpop.f32.mrb[0].mxu0
    %v3559 = vadd.f32 %v2578, %v3558
    %v3560 = vpop.f32.mrb[0].mxu0
    %3561 = vmatprep.mubr.f32.mxu0 0.0
    %v3562 = vand.u32 %v42, 4294901760
    %v3563 = vsub.f32 %v42, %v3562
    %v3564 = vand.u32 %v3563, 4294901760
    %3565 = vmatmul.mubr.f32.gmra.mrb[0].mxu0 %v3564
    %v3566 = vpop.f32.mrb[0].mxu0
    %v3567 = vadd.f32 %v2585, %v3566
    %v3568 = vpop.f32.mrb[0].mxu0
    %3569 = vmatprep.mubr.f32.mxu0 0.0
    %v3570 = vand.u32 %v43, 4294901760
    %v3571 = vsub.f32 %v43, %v3570
    %v3572 = vand.u32 %v3571, 4294901760
    %3573 = vmatmul.mubr.f32.gmra.mrb[0].mxu0 %v3572
    %v3574 = vpop.f32.mrb[0].mxu0
    %v3575 = vadd.f32 %v2592, %v3574
    %v3576 = vpop.f32.mrb[0].mxu0
    %3577 = vmatprep.mubr.f32.mxu0 0.0
    %v3578 = vand.u32 %v44, 4294901760
    %v3579 = vsub.f32 %v44, %v3578
    %v3580 = vand.u32 %v3579, 4294901760
    %3581 = vmatmul.mubr.f32.gmra.mrb[0].mxu0 %v3580
    %v3582 = vpop.f32.mrb[0].mxu0
    %v3583 = vadd.f32 %v2599, %v3582
    %v3584 = vpop.f32.mrb[0].mxu0
    %3585 = vmatprep.mubr.f32.mxu0 0.0
    %v3586 = vand.u32 %v45, 4294901760
    %v3587 = vsub.f32 %v45, %v3586
    %v3588 = vand.u32 %v3587, 4294901760
    %3589 = vmatmul.mubr.f32.gmra.mrb[0].mxu0 %v3588
    %v3590 = vpop.f32.mrb[0].mxu0
    %v3591 = vadd.f32 %v2606, %v3590
    %v3592 = vpop.f32.mrb[0].mxu0
    %3593 = vmatprep.mubr.f32.mxu0 0.0
    %v3594 = vand.u32 %v46, 4294901760
    %v3595 = vsub.f32 %v46, %v3594
    %v3596 = vand.u32 %v3595, 4294901760
    %3597 = vmatmul.mubr.f32.gmra.mrb[0].mxu0 %v3596
    %v3598 = vpop.f32.mrb[0].mxu0
    %v3599 = vadd.f32 %v2613, %v3598
    %v3600 = vpop.f32.mrb[0].mxu0
    %3601 = vmatprep.mubr.f32.mxu0 0.0
    %v3602 = vand.u32 %v47, 4294901760
    %v3603 = vsub.f32 %v47, %v3602
    %v3604 = vand.u32 %v3603, 4294901760
    %3605 = vmatmul.mubr.f32.gmra.mrb[0].mxu0 %v3604
    %v3606 = vpop.f32.mrb[0].mxu0
    %v3607 = vadd.f32 %v2620, %v3606
    %v3608 = vpop.f32.mrb[0].mxu0
    %3609 = vmatprep.mubr.f32.mxu0 0.0
    %v3610 = vand.u32 %v48, 4294901760
    %v3611 = vsub.f32 %v48, %v3610
    %v3612 = vand.u32 %v3611, 4294901760
    %3613 = vmatmul.mubr.f32.gmra.mrb[0].mxu0 %v3612
    %v3614 = vpop.f32.mrb[0].mxu0
    %v3615 = vadd.f32 %v2627, %v3614
    %v3616 = vpop.f32.mrb[0].mxu0
    %3617 = vmatprep.mubr.f32.mxu0 0.0
    %v3618 = vand.u32 %v49, 4294901760
    %v3619 = vsub.f32 %v49, %v3618
    %v3620 = vand.u32 %v3619, 4294901760
    %3621 = vmatmul.mubr.f32.gmra.mrb[0].mxu0 %v3620
    %v3622 = vpop.f32.mrb[0].mxu0
    %v3623 = vadd.f32 %v2634, %v3622
    %v3624 = vpop.f32.mrb[0].mxu0
    %3625 = vmatprep.mubr.f32.mxu0 0.0
    %v3626 = vand.u32 %v50, 4294901760
    %v3627 = vsub.f32 %v50, %v3626
    %v3628 = vand.u32 %v3627, 4294901760
    %3629 = vmatmul.mubr.f32.gmra.mrb[0].mxu0 %v3628
    %v3630 = vpop.f32.mrb[0].mxu0
    %v3631 = vadd.f32 %v2641, %v3630
    %v3632 = vpop.f32.mrb[0].mxu0
    %3633 = vmatprep.mubr.f32.mxu0 0.0
    %v3634 = vand.u32 %v51, 4294901760
    %v3635 = vsub.f32 %v51, %v3634
    %v3636 = vand.u32 %v3635, 4294901760
    %3637 = vmatmul.mubr.f32.gmra.mrb[0].mxu0 %v3636
    %v3638 = vpop.f32.mrb[0].mxu0
    %v3639 = vadd.f32 %v2648, %v3638
    %v3640 = vpop.f32.mrb[0].mxu0
    %3641 = vmatprep.mubr.f32.mxu0 0.0
    %v3642 = vand.u32 %v52, 4294901760
    %v3643 = vsub.f32 %v52, %v3642
    %v3644 = vand.u32 %v3643, 4294901760
    %3645 = vmatmul.mubr.f32.gmra.mrb[0].mxu0 %v3644
    %v3646 = vpop.f32.mrb[0].mxu0
    %v3647 = vadd.f32 %v2655, %v3646
    %v3648 = vpop.f32.mrb[0].mxu0
    %3649 = vmatprep.mubr.f32.mxu0 0.0
    %v3650 = vand.u32 %v53, 4294901760
    %v3651 = vsub.f32 %v53, %v3650
    %v3652 = vand.u32 %v3651, 4294901760
    %3653 = vmatmul.mubr.f32.gmra.mrb[0].mxu0 %v3652
    %v3654 = vpop.f32.mrb[0].mxu0
    %v3655 = vadd.f32 %v2662, %v3654
    %v3656 = vpop.f32.mrb[0].mxu0
    %3657 = vmatprep.mubr.f32.mxu0 0.0
    %v3658 = vand.u32 %v54, 4294901760
    %v3659 = vsub.f32 %v54, %v3658
    %v3660 = vand.u32 %v3659, 4294901760
    %3661 = vmatmul.mubr.f32.gmra.mrb[0].mxu0 %v3660
    %v3662 = vpop.f32.mrb[0].mxu0
    %v3663 = vadd.f32 %v2669, %v3662
    %v3664 = vpop.f32.mrb[0].mxu0
    %3665 = vmatprep.mubr.f32.mxu0 0.0
    %v3666 = vand.u32 %v55, 4294901760
    %v3667 = vsub.f32 %v55, %v3666
    %v3668 = vand.u32 %v3667, 4294901760
    %3669 = vmatmul.mubr.f32.gmra.mrb[0].mxu0 %v3668
    %v3670 = vpop.f32.mrb[0].mxu0
    %v3671 = vadd.f32 %v2676, %v3670
    %v3672 = vpop.f32.mrb[0].mxu0
    %3673 = vmatprep.mubr.f32.mxu0 0.0
    %v3674 = vand.u32 %v56, 4294901760
    %v3675 = vsub.f32 %v56, %v3674
    %v3676 = vand.u32 %v3675, 4294901760
    %3677 = vmatmul.mubr.f32.gmra.mrb[0].mxu0 %v3676
    %v3678 = vpop.f32.mrb[0].mxu0
    %v3679 = vadd.f32 %v2683, %v3678
    %v3680 = vpop.f32.mrb[0].mxu0
    %3681 = vmatprep.mubr.f32.mxu0 0.0
    %v3682 = vand.u32 %v57, 4294901760
    %v3683 = vsub.f32 %v57, %v3682
    %v3684 = vand.u32 %v3683, 4294901760
    %3685 = vmatmul.mubr.f32.gmra.mrb[0].mxu0 %v3684
    %v3686 = vpop.f32.mrb[0].mxu0
    %v3687 = vadd.f32 %v2690, %v3686
    %v3688 = vpop.f32.mrb[0].mxu0
    %3689 = vmatprep.mubr.f32.mxu0 0.0
    %v3690 = vand.u32 %v58, 4294901760
    %v3691 = vsub.f32 %v58, %v3690
    %v3692 = vand.u32 %v3691, 4294901760
    %3693 = vmatmul.mubr.f32.gmra.mrb[0].mxu0 %v3692
    %v3694 = vpop.f32.mrb[0].mxu0
    %v3695 = vadd.f32 %v2697, %v3694
    %v3696 = vpop.f32.mrb[0].mxu0
    %3697 = vmatprep.mubr.f32.mxu0 0.0
    %v3698 = vand.u32 %v59, 4294901760
    %v3699 = vsub.f32 %v59, %v3698
    %v3700 = vand.u32 %v3699, 4294901760
    %3701 = vmatmul.mubr.f32.gmra.mrb[0].mxu0 %v3700
    %v3702 = vpop.f32.mrb[0].mxu0
    %v3703 = vadd.f32 %v2704, %v3702
    %v3704 = vpop.f32.mrb[0].mxu0
    %3705 = vmatprep.mubr.f32.mxu0 0.0
    %v3706 = vand.u32 %v60, 4294901760
    %v3707 = vsub.f32 %v60, %v3706
    %v3708 = vand.u32 %v3707, 4294901760
    %3709 = vmatmul.mubr.f32.gmra.mrb[0].mxu0 %v3708
    %v3710 = vpop.f32.mrb[0].mxu0
    %v3711 = vadd.f32 %v2711, %v3710
    %v3712 = vpop.f32.mrb[0].mxu0
    %3713 = vmatprep.mubr.f32.mxu0 0.0
    %v3714 = vand.u32 %v61, 4294901760
    %v3715 = vsub.f32 %v61, %v3714
    %v3716 = vand.u32 %v3715, 4294901760
    %3717 = vmatmul.mubr.f32.gmra.mrb[0].mxu0 %v3716
    %v3718 = vpop.f32.mrb[0].mxu0
    %v3719 = vadd.f32 %v2718, %v3718
    %v3720 = vpop.f32.mrb[0].mxu0
    %3721 = vmatprep.mubr.f32.mxu0 0.0
    %v3722 = vand.u32 %v62, 4294901760
    %v3723 = vsub.f32 %v62, %v3722
    %v3724 = vand.u32 %v3723, 4294901760
    %3725 = vmatmul.mubr.f32.gmra.mrb[0].mxu0 %v3724
    %v3726 = vpop.f32.mrb[0].mxu0
    %v3727 = vadd.f32 %v2725, %v3726
    %v3728 = vpop.f32.mrb[0].mxu0
    %3729 = vmatprep.mubr.f32.mxu0 0.0
    %v3730 = vand.u32 %v63, 4294901760
    %v3731 = vsub.f32 %v63, %v3730
    %v3732 = vand.u32 %v3731, 4294901760
    %3733 = vmatmul.mubr.f32.gmra.mrb[0].mxu0 %v3732
    %v3734 = vpop.f32.mrb[0].mxu0
    %v3735 = vadd.f32 %v2732, %v3734
    %v3736 = vpop.f32.mrb[0].mxu0
    %3737 = vmatprep.mubr.f32.mxu0 0.0
    %v3738 = vand.u32 %v64, 4294901760
    %v3739 = vsub.f32 %v64, %v3738
    %v3740 = vand.u32 %v3739, 4294901760
    %3741 = vmatmul.mubr.f32.gmra.mrb[0].mxu0 %v3740
    %v3742 = vpop.f32.mrb[0].mxu0
    %v3743 = vadd.f32 %v2739, %v3742
    %v3744 = vpop.f32.mrb[0].mxu0
    %3745 = vmatprep.mubr.f32.mxu0 0.0
    %v3746 = vand.u32 %v65, 4294901760
    %v3747 = vsub.f32 %v65, %v3746
    %v3748 = vand.u32 %v3747, 4294901760
    %3749 = vmatmul.mubr.f32.gmra.mrb[0].mxu0 %v3748
    %v3750 = vpop.f32.mrb[0].mxu0
    %v3751 = vadd.f32 %v2746, %v3750
    %v3752 = vpop.f32.mrb[0].mxu0
    %3753 = vmatprep.mubr.f32.mxu0 0.0
    %v3754 = vand.u32 %v66, 4294901760
    %v3755 = vsub.f32 %v66, %v3754
    %v3756 = vand.u32 %v3755, 4294901760
    %3757 = vmatmul.mubr.f32.gmra.mrb[0].mxu0 %v3756
    %v3758 = vpop.f32.mrb[0].mxu0
    %v3759 = vadd.f32 %v2753, %v3758
    %v3760 = vpop.f32.mrb[0].mxu0
    %3761 = vmatprep.mubr.f32.mxu0 0.0
    %v3762 = vand.u32 %v67, 4294901760
    %v3763 = vsub.f32 %v67, %v3762
    %v3764 = vand.u32 %v3763, 4294901760
    %3765 = vmatmul.mubr.f32.gmra.mrb[0].mxu0 %v3764
    %v3766 = vpop.f32.mrb[0].mxu0
    %v3767 = vadd.f32 %v2760, %v3766
    %v3768 = vpop.f32.mrb[0].mxu0
    %3769 = vmatprep.mubr.f32.mxu0 0.0
    %v3770 = vand.u32 %v68, 4294901760
    %v3771 = vsub.f32 %v68, %v3770
    %v3772 = vand.u32 %v3771, 4294901760
    %3773 = vmatmul.mubr.f32.gmra.mrb[0].mxu0 %v3772
    %v3774 = vpop.f32.mrb[0].mxu0
    %v3775 = vadd.f32 %v2767, %v3774
    %v3776 = vpop.f32.mrb[0].mxu0
    %3777 = vmatprep.mubr.f32.mxu0 0.0
    %v3778 = vand.u32 %v69, 4294901760
    %v3779 = vsub.f32 %v69, %v3778
    %v3780 = vand.u32 %v3779, 4294901760
    %3781 = vmatmul.mubr.f32.gmra.mrb[0].mxu0 %v3780
    %v3782 = vpop.f32.mrb[0].mxu0
    %v3783 = vadd.f32 %v2774, %v3782
    %v3784 = vpop.f32.mrb[0].mxu0
    %3785 = vmatprep.mubr.f32.mxu0 0.0
    %v3786 = vand.u32 %v70, 4294901760
    %v3787 = vsub.f32 %v70, %v3786
    %v3788 = vand.u32 %v3787, 4294901760
    %3789 = vmatmul.mubr.f32.gmra.mrb[0].mxu0 %v3788
    %v3790 = vpop.f32.mrb[0].mxu0
    %v3791 = vadd.f32 %v2781, %v3790
    %v3792 = vpop.f32.mrb[0].mxu0
    %3793 = vmatprep.mubr.f32.mxu0 0.0
    %v3794 = vand.u32 %v71, 4294901760
    %v3795 = vsub.f32 %v71, %v3794
    %v3796 = vand.u32 %v3795, 4294901760
    %3797 = vmatmul.mubr.f32.gmra.mrb[0].mxu0 %v3796
    %v3798 = vpop.f32.mrb[0].mxu0
    %v3799 = vadd.f32 %v2788, %v3798
    %v3800 = vpop.f32.mrb[0].mxu0
    %3801 = vmatprep.mubr.f32.mxu0 0.0
    %v3802 = vand.u32 %v72, 4294901760
    %v3803 = vsub.f32 %v72, %v3802
    %v3804 = vand.u32 %v3803, 4294901760
    %3805 = vmatmul.mubr.f32.gmra.mrb[0].mxu0 %v3804
    %v3806 = vpop.f32.mrb[0].mxu0
    %v3807 = vadd.f32 %v2795, %v3806
    %v3808 = vpop.f32.mrb[0].mxu0
    %3809 = vmatprep.mubr.f32.mxu0 0.0
    %v3810 = vand.u32 %v73, 4294901760
    %v3811 = vsub.f32 %v73, %v3810
    %v3812 = vand.u32 %v3811, 4294901760
    %3813 = vmatmul.mubr.f32.gmra.mrb[0].mxu0 %v3812
    %v3814 = vpop.f32.mrb[0].mxu0
    %v3815 = vadd.f32 %v2802, %v3814
    %v3816 = vpop.f32.mrb[0].mxu0
    %3817 = vmatprep.mubr.f32.mxu0 0.0
    %v3818 = vand.u32 %v74, 4294901760
    %v3819 = vsub.f32 %v74, %v3818
    %v3820 = vand.u32 %v3819, 4294901760
    %3821 = vmatmul.mubr.f32.gmra.mrb[0].mxu0 %v3820
    %v3822 = vpop.f32.mrb[0].mxu0
    %v3823 = vadd.f32 %v2809, %v3822
    %v3824 = vpop.f32.mrb[0].mxu0
    %3825 = vmatprep.mubr.f32.mxu0 0.0
    %v3826 = vand.u32 %v75, 4294901760
    %v3827 = vsub.f32 %v75, %v3826
    %v3828 = vand.u32 %v3827, 4294901760
    %3829 = vmatmul.mubr.f32.gmra.mrb[0].mxu0 %v3828
    %v3830 = vpop.f32.mrb[0].mxu0
    %v3831 = vadd.f32 %v2816, %v3830
    %v3832 = vpop.f32.mrb[0].mxu0
    %3833 = vmatprep.mubr.f32.mxu0 0.0
    %v3834 = vand.u32 %v76, 4294901760
    %v3835 = vsub.f32 %v76, %v3834
    %v3836 = vand.u32 %v3835, 4294901760
    %3837 = vmatmul.mubr.f32.gmra.mrb[0].mxu0 %v3836
    %v3838 = vpop.f32.mrb[0].mxu0
    %v3839 = vadd.f32 %v2823, %v3838
    %v3840 = vpop.f32.mrb[0].mxu0
    %3841 = vmatprep.mubr.f32.mxu0 0.0
    %v3842 = vand.u32 %v77, 4294901760
    %v3843 = vsub.f32 %v77, %v3842
    %v3844 = vand.u32 %v3843, 4294901760
    %3845 = vmatmul.mubr.f32.gmra.mrb[0].mxu0 %v3844
    %v3846 = vpop.f32.mrb[0].mxu0
    %v3847 = vadd.f32 %v2830, %v3846
    %v3848 = vpop.f32.mrb[0].mxu0
    %3849 = vmatprep.mubr.f32.mxu0 0.0
    %v3850 = vand.u32 %v78, 4294901760
    %v3851 = vsub.f32 %v78, %v3850
    %v3852 = vand.u32 %v3851, 4294901760
    %3853 = vmatmul.mubr.f32.gmra.mrb[0].mxu0 %v3852
    %v3854 = vpop.f32.mrb[0].mxu0
    %v3855 = vadd.f32 %v2837, %v3854
    %v3856 = vpop.f32.mrb[0].mxu0
    %3857 = vmatprep.mubr.f32.mxu0 0.0
    %v3858 = vand.u32 %v79, 4294901760
    %v3859 = vsub.f32 %v79, %v3858
    %v3860 = vand.u32 %v3859, 4294901760
    %3861 = vmatmul.mubr.f32.gmra.mrb[0].mxu0 %v3860
    %v3862 = vpop.f32.mrb[0].mxu0
    %v3863 = vadd.f32 %v2844, %v3862
    %v3864 = vpop.f32.mrb[0].mxu0
    %3865 = vmatprep.mubr.f32.mxu0 0.0
    %v3866 = vand.u32 %v80, 4294901760
    %v3867 = vsub.f32 %v80, %v3866
    %v3868 = vand.u32 %v3867, 4294901760
    %3869 = vmatmul.mubr.f32.gmra.mrb[0].mxu0 %v3868
    %v3870 = vpop.f32.mrb[0].mxu0
    %v3871 = vadd.f32 %v2851, %v3870
    %v3872 = vpop.f32.mrb[0].mxu0
    %3873 = vmatprep.mubr.f32.mxu0 0.0
    %v3874 = vand.u32 %v81, 4294901760
    %v3875 = vsub.f32 %v81, %v3874
    %v3876 = vand.u32 %v3875, 4294901760
    %3877 = vmatmul.mubr.f32.gmra.mrb[0].mxu0 %v3876
    %v3878 = vpop.f32.mrb[0].mxu0
    %v3879 = vadd.f32 %v2858, %v3878
    %v3880 = vpop.f32.mrb[0].mxu0
    %3881 = vmatprep.mubr.f32.mxu0 0.0
    %v3882 = vand.u32 %v82, 4294901760
    %v3883 = vsub.f32 %v82, %v3882
    %v3884 = vand.u32 %v3883, 4294901760
    %3885 = vmatmul.mubr.f32.gmra.mrb[0].mxu0 %v3884
    %v3886 = vpop.f32.mrb[0].mxu0
    %v3887 = vadd.f32 %v2865, %v3886
    %v3888 = vpop.f32.mrb[0].mxu0
    %3889 = vmatprep.mubr.f32.mxu0 0.0
    %v3890 = vand.u32 %v83, 4294901760
    %v3891 = vsub.f32 %v83, %v3890
    %v3892 = vand.u32 %v3891, 4294901760
    %3893 = vmatmul.mubr.f32.gmra.mrb[0].mxu0 %v3892
    %v3894 = vpop.f32.mrb[0].mxu0
    %v3895 = vadd.f32 %v2872, %v3894
    %v3896 = vpop.f32.mrb[0].mxu0
    %3897 = vmatprep.mubr.f32.mxu0 0.0
    %v3898 = vand.u32 %v84, 4294901760
    %v3899 = vsub.f32 %v84, %v3898
    %v3900 = vand.u32 %v3899, 4294901760
    %3901 = vmatmul.mubr.f32.gmra.mrb[0].mxu0 %v3900
    %v3902 = vpop.f32.mrb[0].mxu0
    %v3903 = vadd.f32 %v2879, %v3902
    %v3904 = vpop.f32.mrb[0].mxu0
    %3905 = vmatprep.mubr.f32.mxu0 0.0
    %v3906 = vand.u32 %v85, 4294901760
    %v3907 = vsub.f32 %v85, %v3906
    %v3908 = vand.u32 %v3907, 4294901760
    %3909 = vmatmul.mubr.f32.gmra.mrb[0].mxu0 %v3908
    %v3910 = vpop.f32.mrb[0].mxu0
    %v3911 = vadd.f32 %v2886, %v3910
    %v3912 = vpop.f32.mrb[0].mxu0
    %3913 = vmatprep.mubr.f32.mxu0 0.0
    %v3914 = vand.u32 %v86, 4294901760
    %v3915 = vsub.f32 %v86, %v3914
    %v3916 = vand.u32 %v3915, 4294901760
    %3917 = vmatmul.mubr.f32.gmra.mrb[0].mxu0 %v3916
    %v3918 = vpop.f32.mrb[0].mxu0
    %v3919 = vadd.f32 %v2893, %v3918
    %v3920 = vpop.f32.mrb[0].mxu0
    %3921 = vmatprep.mubr.f32.mxu0 0.0
    %v3922 = vand.u32 %v87, 4294901760
    %v3923 = vsub.f32 %v87, %v3922
    %v3924 = vand.u32 %v3923, 4294901760
    %3925 = vmatmul.mubr.f32.gmra.mrb[0].mxu0 %v3924
    %v3926 = vpop.f32.mrb[0].mxu0
    %v3927 = vadd.f32 %v2900, %v3926
    %v3928 = vpop.f32.mrb[0].mxu0
    %3929 = vmatprep.mubr.f32.mxu0 0.0
    %v3930 = vand.u32 %v88, 4294901760
    %v3931 = vsub.f32 %v88, %v3930
    %v3932 = vand.u32 %v3931, 4294901760
    %3933 = vmatmul.mubr.f32.gmra.mrb[0].mxu0 %v3932
    %v3934 = vpop.f32.mrb[0].mxu0
    %v3935 = vadd.f32 %v2907, %v3934
    %v3936 = vpop.f32.mrb[0].mxu0
    %3937 = vmatprep.mubr.f32.mxu0 0.0
    %v3938 = vand.u32 %v89, 4294901760
    %v3939 = vsub.f32 %v89, %v3938
    %v3940 = vand.u32 %v3939, 4294901760
    %3941 = vmatmul.mubr.f32.gmra.mrb[0].mxu0 %v3940
    %v3942 = vpop.f32.mrb[0].mxu0
    %v3943 = vadd.f32 %v2914, %v3942
    %v3944 = vpop.f32.mrb[0].mxu0
    %3945 = vmatprep.mubr.f32.mxu0 0.0
    %v3946 = vand.u32 %v90, 4294901760
    %v3947 = vsub.f32 %v90, %v3946
    %v3948 = vand.u32 %v3947, 4294901760
    %3949 = vmatmul.mubr.f32.gmra.mrb[0].mxu0 %v3948
    %v3950 = vpop.f32.mrb[0].mxu0
    %v3951 = vadd.f32 %v2921, %v3950
    %v3952 = vpop.f32.mrb[0].mxu0
    %3953 = vmatprep.mubr.f32.mxu0 0.0
    %v3954 = vand.u32 %v91, 4294901760
    %v3955 = vsub.f32 %v91, %v3954
    %v3956 = vand.u32 %v3955, 4294901760
    %3957 = vmatmul.mubr.f32.gmra.mrb[0].mxu0 %v3956
    %v3958 = vpop.f32.mrb[0].mxu0
    %v3959 = vadd.f32 %v2928, %v3958
    %v3960 = vpop.f32.mrb[0].mxu0
    %3961 = vmatprep.mubr.f32.mxu0 0.0
    %v3962 = vand.u32 %v92, 4294901760
    %v3963 = vsub.f32 %v92, %v3962
    %v3964 = vand.u32 %v3963, 4294901760
    %3965 = vmatmul.mubr.f32.gmra.mrb[0].mxu0 %v3964
    %v3966 = vpop.f32.mrb[0].mxu0
    %v3967 = vadd.f32 %v2935, %v3966
    %v3968 = vpop.f32.mrb[0].mxu0
    %3969 = vmatprep.mubr.f32.mxu0 0.0
    %v3970 = vand.u32 %v93, 4294901760
    %v3971 = vsub.f32 %v93, %v3970
    %v3972 = vand.u32 %v3971, 4294901760
    %3973 = vmatmul.mubr.f32.gmra.mrb[0].mxu0 %v3972
    %v3974 = vpop.f32.mrb[0].mxu0
    %v3975 = vadd.f32 %v2942, %v3974
    %v3976 = vpop.f32.mrb[0].mxu0
    %3977 = vmatprep.mubr.f32.mxu0 0.0
    %v3978 = vand.u32 %v94, 4294901760
    %v3979 = vsub.f32 %v94, %v3978
    %v3980 = vand.u32 %v3979, 4294901760
    %3981 = vmatmul.mubr.f32.gmra.mrb[0].mxu0 %v3980
    %v3982 = vpop.f32.mrb[0].mxu0
    %v3983 = vadd.f32 %v2949, %v3982
    %v3984 = vpop.f32.mrb[0].mxu0
    %3985 = vmatprep.mubr.f32.mxu0 0.0
    %v3986 = vand.u32 %v95, 4294901760
    %v3987 = vsub.f32 %v95, %v3986
    %v3988 = vand.u32 %v3987, 4294901760
    %3989 = vmatmul.mubr.f32.gmra.mrb[0].mxu0 %v3988
    %v3990 = vpop.f32.mrb[0].mxu0
    %v3991 = vadd.f32 %v2956, %v3990
    %v3992 = vpop.f32.mrb[0].mxu0
    %3993 = vmatprep.mubr.f32.mxu0 0.0
    %v3994 = vand.u32 %v96, 4294901760
    %v3995 = vsub.f32 %v96, %v3994
    %v3996 = vand.u32 %v3995, 4294901760
    %3997 = vmatmul.mubr.f32.gmra.mrb[0].mxu0 %v3996
    %v3998 = vpop.f32.mrb[0].mxu0
    %v3999 = vadd.f32 %v2963, %v3998
    %v4000 = vpop.f32.mrb[0].mxu0
    %4001 = vmatprep.mubr.f32.mxu0 0.0
    %v4002 = vand.u32 %v97, 4294901760
    %v4003 = vsub.f32 %v97, %v4002
    %v4004 = vand.u32 %v4003, 4294901760
    %4005 = vmatmul.mubr.f32.gmra.mrb[0].mxu0 %v4004
    %v4006 = vpop.f32.mrb[0].mxu0
    %v4007 = vadd.f32 %v2970, %v4006
    %v4008 = vpop.f32.mrb[0].mxu0
    %4009 = vmatprep.mubr.f32.mxu0 0.0
    %v4010 = vand.u32 %v98, 4294901760
    %v4011 = vsub.f32 %v98, %v4010
    %v4012 = vand.u32 %v4011, 4294901760
    %4013 = vmatmul.mubr.f32.gmra.mrb[0].mxu0 %v4012
    %v4014 = vpop.f32.mrb[0].mxu0
    %v4015 = vadd.f32 %v2977, %v4014
    %v4016 = vpop.f32.mrb[0].mxu0
    %4017 = vmatprep.mubr.f32.mxu0 0.0
    %v4018 = vand.u32 %v99, 4294901760
    %v4019 = vsub.f32 %v99, %v4018
    %v4020 = vand.u32 %v4019, 4294901760
    %4021 = vmatmul.mubr.f32.gmra.mrb[0].mxu0 %v4020
    %v4022 = vpop.f32.mrb[0].mxu0
    %v4023 = vadd.f32 %v2984, %v4022
    %v4024 = vpop.f32.mrb[0].mxu0
    %4025 = vmatprep.mubr.f32.mxu0 0.0
    %v4026 = vand.u32 %v100, 4294901760
    %v4027 = vsub.f32 %v100, %v4026
    %v4028 = vand.u32 %v4027, 4294901760
    %4029 = vmatmul.mubr.f32.gmra.mrb[0].mxu0 %v4028
    %v4030 = vpop.f32.mrb[0].mxu0
    %v4031 = vadd.f32 %v2991, %v4030
    %v4032 = vpop.f32.mrb[0].mxu0
    %4033 = vmatprep.mubr.f32.mxu0 0.0
    %v4034 = vand.u32 %v101, 4294901760
    %v4035 = vsub.f32 %v101, %v4034
    %v4036 = vand.u32 %v4035, 4294901760
    %4037 = vmatmul.mubr.f32.gmra.mrb[0].mxu0 %v4036
    %v4038 = vpop.f32.mrb[0].mxu0
    %v4039 = vadd.f32 %v2998, %v4038
    %v4040 = vpop.f32.mrb[0].mxu0
    %4041 = vmatprep.mubr.f32.mxu0 0.0
    %v4042 = vand.u32 %v102, 4294901760
    %v4043 = vsub.f32 %v102, %v4042
    %v4044 = vand.u32 %v4043, 4294901760
    %4045 = vmatmul.mubr.f32.gmra.mrb[0].mxu0 %v4044
    %v4046 = vpop.f32.mrb[0].mxu0
    %v4047 = vadd.f32 %v3005, %v4046
    %v4048 = vpop.f32.mrb[0].mxu0
    %4049 = vmatprep.mubr.f32.mxu0 0.0
    %v4050 = vand.u32 %v103, 4294901760
    %v4051 = vsub.f32 %v103, %v4050
    %v4052 = vand.u32 %v4051, 4294901760
    %4053 = vmatmul.mubr.f32.gmra.mrb[0].mxu0 %v4052
    %v4054 = vpop.f32.mrb[0].mxu0
    %v4055 = vadd.f32 %v3012, %v4054
    %v4056 = vpop.f32.mrb[0].mxu0
    %4057 = vmatprep.mubr.f32.mxu0 0.0
    %v4058 = vand.u32 %v104, 4294901760
    %v4059 = vsub.f32 %v104, %v4058
    %v4060 = vand.u32 %v4059, 4294901760
    %4061 = vmatmul.mubr.f32.gmra.mrb[0].mxu0 %v4060
    %v4062 = vpop.f32.mrb[0].mxu0
    %v4063 = vadd.f32 %v3019, %v4062
    %v4064 = vpop.f32.mrb[0].mxu0
    %4065 = vmatprep.mubr.f32.mxu0 0.0
    %v4066 = vand.u32 %v105, 4294901760
    %v4067 = vsub.f32 %v105, %v4066
    %v4068 = vand.u32 %v4067, 4294901760
    %4069 = vmatmul.mubr.f32.gmra.mrb[0].mxu0 %v4068
    %v4070 = vpop.f32.mrb[0].mxu0
    %v4071 = vadd.f32 %v3026, %v4070
    %v4072 = vpop.f32.mrb[0].mxu0
    %4073 = vmatprep.mubr.f32.mxu0 0.0
    %v4074 = vand.u32 %v106, 4294901760
    %v4075 = vsub.f32 %v106, %v4074
    %v4076 = vand.u32 %v4075, 4294901760
    %4077 = vmatmul.mubr.f32.gmra.mrb[0].mxu0 %v4076
    %v4078 = vpop.f32.mrb[0].mxu0
    %v4079 = vadd.f32 %v3033, %v4078
    %v4080 = vpop.f32.mrb[0].mxu0
    %4081 = vmatprep.mubr.f32.mxu0 0.0
    %v4082 = vand.u32 %v107, 4294901760
    %v4083 = vsub.f32 %v107, %v4082
    %v4084 = vand.u32 %v4083, 4294901760
    %4085 = vmatmul.mubr.f32.gmra.mrb[0].mxu0 %v4084
    %v4086 = vpop.f32.mrb[0].mxu0
    %v4087 = vadd.f32 %v3040, %v4086
    %v4088 = vpop.f32.mrb[0].mxu0
    %4089 = vmatprep.mubr.f32.mxu0 0.0
    %v4090 = vand.u32 %v108, 4294901760
    %v4091 = vsub.f32 %v108, %v4090
    %v4092 = vand.u32 %v4091, 4294901760
    %4093 = vmatmul.mubr.f32.gmra.mrb[0].mxu0 %v4092
    %v4094 = vpop.f32.mrb[0].mxu0
    %v4095 = vadd.f32 %v3047, %v4094
    %v4096 = vpop.f32.mrb[0].mxu0
    %4097 = vmatprep.mubr.f32.mxu0 0.0
    %v4098 = vand.u32 %v109, 4294901760
    %v4099 = vsub.f32 %v109, %v4098
    %v4100 = vand.u32 %v4099, 4294901760
    %4101 = vmatmul.mubr.f32.gmra.mrb[0].mxu0 %v4100
    %v4102 = vpop.f32.mrb[0].mxu0
    %v4103 = vadd.f32 %v3054, %v4102
    %v4104 = vpop.f32.mrb[0].mxu0
    %4105 = vmatprep.mubr.f32.mxu0 0.0
    %v4106 = vand.u32 %v110, 4294901760
    %v4107 = vsub.f32 %v110, %v4106
    %v4108 = vand.u32 %v4107, 4294901760
    %4109 = vmatmul.mubr.f32.gmra.mrb[0].mxu0 %v4108
    %v4110 = vpop.f32.mrb[0].mxu0
    %v4111 = vadd.f32 %v3061, %v4110
    %v4112 = vpop.f32.mrb[0].mxu0
    %4113 = vmatprep.mubr.f32.mxu0 0.0
    %v4114 = vand.u32 %v111, 4294901760
    %v4115 = vsub.f32 %v111, %v4114
    %v4116 = vand.u32 %v4115, 4294901760
    %4117 = vmatmul.mubr.f32.gmra.mrb[0].mxu0 %v4116
    %v4118 = vpop.f32.mrb[0].mxu0
    %v4119 = vadd.f32 %v3068, %v4118
    %v4120 = vpop.f32.mrb[0].mxu0
    %4121 = vmatprep.mubr.f32.mxu0 0.0
    %v4122 = vand.u32 %v112, 4294901760
    %v4123 = vsub.f32 %v112, %v4122
    %v4124 = vand.u32 %v4123, 4294901760
    %4125 = vmatmul.mubr.f32.gmra.mrb[0].mxu0 %v4124
    %v4126 = vpop.f32.mrb[0].mxu0
    %v4127 = vadd.f32 %v3075, %v4126
    %v4128 = vpop.f32.mrb[0].mxu0
    %4129 = vmatprep.mubr.f32.mxu0 0.0
    %v4130 = vand.u32 %v113, 4294901760
    %v4131 = vsub.f32 %v113, %v4130
    %v4132 = vand.u32 %v4131, 4294901760
    %4133 = vmatmul.mubr.f32.gmra.mrb[0].mxu0 %v4132
    %v4134 = vpop.f32.mrb[0].mxu0
    %v4135 = vadd.f32 %v3082, %v4134
    %v4136 = vpop.f32.mrb[0].mxu0
    %4137 = vmatprep.mubr.f32.mxu0 0.0
    %v4138 = vand.u32 %v114, 4294901760
    %v4139 = vsub.f32 %v114, %v4138
    %v4140 = vand.u32 %v4139, 4294901760
    %4141 = vmatmul.mubr.f32.gmra.mrb[0].mxu0 %v4140
    %v4142 = vpop.f32.mrb[0].mxu0
    %v4143 = vadd.f32 %v3089, %v4142
    %v4144 = vpop.f32.mrb[0].mxu0
    %4145 = vmatprep.mubr.f32.mxu0 0.0
    %v4146 = vand.u32 %v115, 4294901760
    %v4147 = vsub.f32 %v115, %v4146
    %v4148 = vand.u32 %v4147, 4294901760
    %4149 = vmatmul.mubr.f32.gmra.mrb[0].mxu0 %v4148
    %v4150 = vpop.f32.mrb[0].mxu0
    %v4151 = vadd.f32 %v3096, %v4150
    %v4152 = vpop.f32.mrb[0].mxu0
    %4153 = vmatprep.mubr.f32.mxu0 0.0
    %v4154 = vand.u32 %v116, 4294901760
    %v4155 = vsub.f32 %v116, %v4154
    %v4156 = vand.u32 %v4155, 4294901760
    %4157 = vmatmul.mubr.f32.gmra.mrb[0].mxu0 %v4156
    %v4158 = vpop.f32.mrb[0].mxu0
    %v4159 = vadd.f32 %v3103, %v4158
    %v4160 = vpop.f32.mrb[0].mxu0
    %4161 = vmatprep.mubr.f32.mxu0 0.0
    %v4162 = vand.u32 %v117, 4294901760
    %v4163 = vsub.f32 %v117, %v4162
    %v4164 = vand.u32 %v4163, 4294901760
    %4165 = vmatmul.mubr.f32.gmra.mrb[0].mxu0 %v4164
    %v4166 = vpop.f32.mrb[0].mxu0
    %v4167 = vadd.f32 %v3110, %v4166
    %v4168 = vpop.f32.mrb[0].mxu0
    %4169 = vmatprep.mubr.f32.mxu0 0.0
    %v4170 = vand.u32 %v118, 4294901760
    %v4171 = vsub.f32 %v118, %v4170
    %v4172 = vand.u32 %v4171, 4294901760
    %4173 = vmatmul.mubr.f32.gmra.mrb[0].mxu0 %v4172
    %v4174 = vpop.f32.mrb[0].mxu0
    %v4175 = vadd.f32 %v3117, %v4174
    %v4176 = vpop.f32.mrb[0].mxu0
    %4177 = vmatprep.mubr.f32.mxu0 0.0
    %v4178 = vand.u32 %v119, 4294901760
    %v4179 = vsub.f32 %v119, %v4178
    %v4180 = vand.u32 %v4179, 4294901760
    %4181 = vmatmul.mubr.f32.gmra.mrb[0].mxu0 %v4180
    %v4182 = vpop.f32.mrb[0].mxu0
    %v4183 = vadd.f32 %v3124, %v4182
    %v4184 = vpop.f32.mrb[0].mxu0
    %4185 = vmatprep.mubr.f32.mxu0 0.0
    %v4186 = vand.u32 %v120, 4294901760
    %v4187 = vsub.f32 %v120, %v4186
    %v4188 = vand.u32 %v4187, 4294901760
    %4189 = vmatmul.mubr.f32.gmra.mrb[0].mxu0 %v4188
    %v4190 = vpop.f32.mrb[0].mxu0
    %v4191 = vadd.f32 %v3131, %v4190
    %v4192 = vpop.f32.mrb[0].mxu0
    %4193 = vmatprep.mubr.f32.mxu0 0.0
    %v4194 = vand.u32 %v121, 4294901760
    %v4195 = vsub.f32 %v121, %v4194
    %v4196 = vand.u32 %v4195, 4294901760
    %4197 = vmatmul.mubr.f32.gmra.mrb[0].mxu0 %v4196
    %v4198 = vpop.f32.mrb[0].mxu0
    %v4199 = vadd.f32 %v3138, %v4198
    %v4200 = vpop.f32.mrb[0].mxu0
    %4201 = vmatprep.mubr.f32.mxu0 0.0
    %v4202 = vand.u32 %v122, 4294901760
    %v4203 = vsub.f32 %v122, %v4202
    %v4204 = vand.u32 %v4203, 4294901760
    %4205 = vmatmul.mubr.f32.gmra.mrb[0].mxu0 %v4204
    %v4206 = vpop.f32.mrb[0].mxu0
    %v4207 = vadd.f32 %v3145, %v4206
    %v4208 = vpop.f32.mrb[0].mxu0
    %4209 = vmatprep.mubr.f32.mxu0 0.0
    %v4210 = vand.u32 %v123, 4294901760
    %v4211 = vsub.f32 %v123, %v4210
    %v4212 = vand.u32 %v4211, 4294901760
    %4213 = vmatmul.mubr.f32.gmra.mrb[0].mxu0 %v4212
    %v4214 = vpop.f32.mrb[0].mxu0
    %v4215 = vadd.f32 %v3152, %v4214
    %v4216 = vpop.f32.mrb[0].mxu0
    %4217 = vmatprep.mubr.f32.mxu0 0.0
    %v4218 = vand.u32 %v124, 4294901760
    %v4219 = vsub.f32 %v124, %v4218
    %v4220 = vand.u32 %v4219, 4294901760
    %4221 = vmatmul.mubr.f32.gmra.mrb[0].mxu0 %v4220
    %v4222 = vpop.f32.mrb[0].mxu0
    %v4223 = vadd.f32 %v3159, %v4222
    %v4224 = vpop.f32.mrb[0].mxu0
    %4225 = vmatprep.mubr.f32.mxu0 0.0
    %v4226 = vand.u32 %v125, 4294901760
    %v4227 = vsub.f32 %v125, %v4226
    %v4228 = vand.u32 %v4227, 4294901760
    %4229 = vmatmul.mubr.f32.gmra.mrb[0].mxu0 %v4228
    %v4230 = vpop.f32.mrb[0].mxu0
    %v4231 = vadd.f32 %v3166, %v4230
    %v4232 = vpop.f32.mrb[0].mxu0
    %4233 = vmatprep.mubr.f32.mxu0 0.0
    %v4234 = vand.u32 %v126, 4294901760
    %v4235 = vsub.f32 %v126, %v4234
    %v4236 = vand.u32 %v4235, 4294901760
    %4237 = vmatmul.mubr.f32.gmra.mrb[0].mxu0 %v4236
    %v4238 = vpop.f32.mrb[0].mxu0
    %v4239 = vadd.f32 %v3173, %v4238
    %v4240 = vpop.f32.mrb[0].mxu0
    %4241 = vmatprep.mubr.f32.mxu0 0.0
    %v4242 = vand.u32 %v127, 4294901760
    %v4243 = vsub.f32 %v127, %v4242
    %v4244 = vand.u32 %v4243, 4294901760
    %4245 = vmatmul.mubr.f32.gmra.mrb[0].mxu0 %v4244
    %v4246 = vpop.f32.mrb[0].mxu0
    %v4247 = vadd.f32 %v3180, %v4246
    %v4248 = vpop.f32.mrb[0].mxu0
    %4249 = vmatprep.mubr.f32.mxu0 0.0
    %v4250 = vand.u32 %v128, 4294901760
    %v4251 = vsub.f32 %v128, %v4250
    %v4252 = vand.u32 %v4251, 4294901760
    %4253 = vmatmul.mubr.f32.gmra.mrb[0].mxu0 %v4252
    %v4254 = vpop.f32.mrb[0].mxu0
    %v4255 = vadd.f32 %v3187, %v4254
    %v4256 = vpop.f32.mrb[0].mxu0
    %4257 = vmatprep.mubr.f32.mxu0 0.0
    %v4258 = vand.u32 %v129, 4294901760
    %v4259 = vsub.f32 %v129, %v4258
    %v4260 = vand.u32 %v4259, 4294901760
    %4261 = vmatmul.mubr.f32.gmra.mrb[0].mxu0 %v4260
    %v4262 = vpop.f32.mrb[0].mxu0
    %v4263 = vadd.f32 %v3194, %v4262
    %v4264 = vpop.f32.mrb[0].mxu0
    %4265 = vmatprep.mubr.f32.mxu0 0.0
    %v4266 = vand.u32 %v130, 4294901760
    %v4267 = vsub.f32 %v130, %v4266
    %v4268 = vand.u32 %v4267, 4294901760
    %4269 = vmatmul.mubr.f32.gmra.mrb[0].mxu0 %v4268
    %v4270 = vpop.f32.mrb[0].mxu0
    %v4271 = vadd.f32 %v3201, %v4270
    %v4272 = vpop.f32.mrb[0].mxu0
    %4273 = vmatprep.mubr.f32.mxu0 0.0
    %v4274 = vand.u32 %v131, 4294901760
    %v4275 = vsub.f32 %v131, %v4274
    %v4276 = vand.u32 %v4275, 4294901760
    %4277 = vmatmul.mubr.f32.gmra.mrb[0].mxu0 %v4276
    %v4278 = vpop.f32.mrb[0].mxu0
    %v4279 = vadd.f32 %v3208, %v4278
    %v4280 = vpop.f32.mrb[0].mxu0
    %4281 = vmatprep.mubr.f32.mxu0 0.0
    %v4282 = vand.u32 %v132, 4294901760
    %v4283 = vsub.f32 %v132, %v4282
    %v4284 = vand.u32 %v4283, 4294901760
    %4285 = vmatmul.mubr.f32.gmra.mrb[0].mxu0 %v4284
    %v4286 = vpop.f32.mrb[0].mxu0
    %v4287 = vadd.f32 %v3215, %v4286
    %v4288 = vpop.f32.mrb[0].mxu0
    %4289 = vmatprep.mubr.f32.mxu0 0.0
    %v4290 = vand.u32 %v133, 4294901760
    %v4291 = vsub.f32 %v133, %v4290
    %v4292 = vand.u32 %v4291, 4294901760
    %4293 = vmatmul.mubr.f32.gmra.mrb[0].mxu0 %v4292
    %v4294 = vpop.f32.mrb[0].mxu0
    %v4295 = vadd.f32 %v3222, %v4294
    %v4296 = vpop.f32.mrb[0].mxu0
    %4297 = vmatprep.mubr.f32.mxu0 0.0
    %v4298 = vand.u32 %v134, 4294901760
    %v4299 = vsub.f32 %v134, %v4298
    %v4300 = vand.u32 %v4299, 4294901760
    %4301 = vmatmul.mubr.f32.gmra.mrb[0].mxu0 %v4300
    %v4302 = vpop.f32.mrb[0].mxu0
    %v4303 = vadd.f32 %v3229, %v4302
    %v4304 = vpop.f32.mrb[0].mxu0
    %4305 = vmatprep.mubr.f32.mxu0 0.0
    %v4306 = vand.u32 %v135, 4294901760
    %v4307 = vsub.f32 %v135, %v4306
    %v4308 = vand.u32 %v4307, 4294901760
    %4309 = vmatmul.mubr.f32.gmra.mrb[0].mxu0 %v4308
    %v4310 = vpop.f32.mrb[0].mxu0
    %v4311 = vadd.f32 %v3236, %v4310
    %v4312 = vpop.f32.mrb[0].mxu0
    %4313 = vmatprep.mubr.f32.mxu0 0.0
    %v4314 = vand.u32 %v136, 4294901760
    %v4315 = vsub.f32 %v136, %v4314
    %v4316 = vand.u32 %v4315, 4294901760
    %4317 = vmatmul.mubr.f32.gmra.mrb[0].mxu0 %v4316
    %v4318 = vpop.f32.mrb[0].mxu0
    %v4319 = vadd.f32 %v3243, %v4318
    %v4320 = vpop.f32.mrb[0].mxu0
    %4321 = vmatprep.mubr.f32.mxu0 0.0
    %v4322 = vand.u32 %v137, 4294901760
    %v4323 = vsub.f32 %v137, %v4322
    %v4324 = vand.u32 %v4323, 4294901760
    %4325 = vmatmul.mubr.f32.gmra.mrb[0].mxu0 %v4324
    %v4326 = vpop.f32.mrb[0].mxu0
    %v4327 = vadd.f32 %v3250, %v4326
    %v4328 = vpop.f32.mrb[0].mxu0
    %4329 = vmatprep.mubr.f32.mxu0 0.0
    %v4330 = vand.u32 %v138, 4294901760
    %v4331 = vsub.f32 %v138, %v4330
    %v4332 = vand.u32 %v4331, 4294901760
    %4333 = vmatmul.mubr.f32.gmra.mrb[0].mxu0 %v4332
    %v4334 = vpop.f32.mrb[0].mxu0
    %v4335 = vadd.f32 %v3257, %v4334
    %v4336 = vpop.f32.mrb[0].mxu0
    %4337 = vmatprep.mubr.f32.mxu0 0.0
    %v4338 = vand.u32 %v139, 4294901760
    %v4339 = vsub.f32 %v139, %v4338
    %v4340 = vand.u32 %v4339, 4294901760
    %4341 = vmatmul.mubr.f32.gmra.mrb[0].mxu0 %v4340
    %v4342 = vpop.f32.mrb[0].mxu0
    %v4343 = vadd.f32 %v3264, %v4342
    %v4344 = vpop.f32.mrb[0].mxu0
    %4345 = vmatprep.mubr.f32.mxu0 0.0
    %v4346 = vand.u32 %v140, 4294901760
    %v4347 = vsub.f32 %v140, %v4346
    %v4348 = vand.u32 %v4347, 4294901760
    %4349 = vmatmul.mubr.f32.gmra.mrb[0].mxu0 %v4348
    %v4350 = vpop.f32.mrb[0].mxu0
    %v4351 = vadd.f32 %v3271, %v4350
    %v4352 = vpop.f32.mrb[0].mxu0
    %4353 = vmatprep.mubr.f32.mxu0 0.0
    %v4354 = vand.u32 %v141, 4294901760
    %v4355 = vsub.f32 %v141, %v4354
    %v4356 = vand.u32 %v4355, 4294901760
    %4357 = vmatmul.mubr.f32.gmra.mrb[0].mxu0 %v4356
    %v4358 = vpop.f32.mrb[0].mxu0
    %v4359 = vadd.f32 %v3278, %v4358
    %v4360 = vpop.f32.mrb[0].mxu0
    %4361 = vmatprep.mubr.f32.mxu0 0.0
    %v4362 = vand.u32 %v142, 4294901760
    %v4363 = vsub.f32 %v142, %v4362
    %v4364 = vand.u32 %v4363, 4294901760
    %4365 = vmatmul.mubr.f32.gmra.mrb[0].mxu0 %v4364
    %v4366 = vpop.f32.mrb[0].mxu0
    %v4367 = vadd.f32 %v3285, %v4366
    %v4368 = vpop.f32.mrb[0].mxu0
    %4369 = vmatprep.mubr.f32.mxu0 0.0
    %v4370 = vand.u32 %v143, 4294901760
    %v4371 = vsub.f32 %v143, %v4370
    %v4372 = vand.u32 %v4371, 4294901760
    %4373 = vmatmul.mubr.f32.gmra.mrb[0].mxu0 %v4372
    %v4374 = vpop.f32.mrb[0].mxu0
    %v4375 = vadd.f32 %v3292, %v4374
    %v4376 = vpop.f32.mrb[0].mxu0
    %4377 = vmatprep.mubr.f32.mxu0 0.0
    %v4378 = vand.u32 %v144, 4294901760
    %v4379 = vsub.f32 %v144, %v4378
    %v4380 = vand.u32 %v4379, 4294901760
    %4381 = vmatmul.mubr.f32.gmra.mrb[0].mxu0 %v4380
    %v4382 = vpop.f32.mrb[0].mxu0
    %v4383 = vadd.f32 %v3299, %v4382
    %v4384 = vpop.f32.mrb[0].mxu0
    %4385 = vmatprep.mubr.f32.mxu0 0.0
    %v4386 = vand.u32 %v145, 4294901760
    %v4387 = vsub.f32 %v145, %v4386
    %v4388 = vand.u32 %v4387, 4294901760
    %4389 = vmatmul.mubr.f32.gmra.mrb[0].mxu0 %v4388
    %v4390 = vpop.f32.mrb[0].mxu0
    %v4391 = vadd.f32 %v3306, %v4390
    %v4392 = vpop.f32.mrb[0].mxu0
    %4393 = vmatprep.mubr.f32.mxu0 0.0
    %v4394 = vand.u32 %v146, 4294901760
    %v4395 = vsub.f32 %v146, %v4394
    %v4396 = vand.u32 %v4395, 4294901760
    %4397 = vmatmul.mubr.f32.gmra.mrb[0].mxu0 %v4396
    %v4398 = vpop.f32.mrb[0].mxu0
    %v4399 = vadd.f32 %v3313, %v4398
    %v4400 = vpop.f32.mrb[0].mxu0
    %4401 = vmatprep.mubr.f32.mxu0 0.0
    %v4402 = vand.u32 %v147, 4294901760
    %v4403 = vsub.f32 %v147, %v4402
    %v4404 = vand.u32 %v4403, 4294901760
    %4405 = vmatmul.mubr.f32.gmra.mrb[0].mxu0 %v4404
    %v4406 = vpop.f32.mrb[0].mxu0
    %v4407 = vadd.f32 %v3320, %v4406
    %v4408 = vpop.f32.mrb[0].mxu0
    %4409 = vmatprep.mubr.f32.mxu0 0.0
    %v4410 = vand.u32 %v148, 4294901760
    %v4411 = vsub.f32 %v148, %v4410
    %v4412 = vand.u32 %v4411, 4294901760
    %4413 = vmatmul.mubr.f32.gmra.mrb[0].mxu0 %v4412
    %v4414 = vpop.f32.mrb[0].mxu0
    %v4415 = vadd.f32 %v3327, %v4414
    %v4416 = vpop.f32.mrb[0].mxu0
    %4417 = vmatprep.mubr.f32.mxu0 0.0
    %v4418 = vand.u32 %v149, 4294901760
    %v4419 = vsub.f32 %v149, %v4418
    %v4420 = vand.u32 %v4419, 4294901760
    %4421 = vmatmul.mubr.f32.gmra.mrb[0].mxu0 %v4420
    %v4422 = vpop.f32.mrb[0].mxu0
    %v4423 = vadd.f32 %v3334, %v4422
    %v4424 = vpop.f32.mrb[0].mxu0
    %4425 = vmatprep.mubr.f32.mxu0 0.0
    %v4426 = vand.u32 %v150, 4294901760
    %v4427 = vsub.f32 %v150, %v4426
    %v4428 = vand.u32 %v4427, 4294901760
    %4429 = vmatmul.mubr.f32.gmra.mrb[0].mxu0 %v4428
    %v4430 = vpop.f32.mrb[0].mxu0
    %v4431 = vadd.f32 %v3341, %v4430
    %v4432 = vpop.f32.mrb[0].mxu0
    %4433 = vmatprep.mubr.f32.mxu0 0.0
    %v4434 = vand.u32 %v151, 4294901760
    %v4435 = vsub.f32 %v151, %v4434
    %v4436 = vand.u32 %v4435, 4294901760
    %4437 = vmatmul.mubr.f32.gmra.mrb[0].mxu0 %v4436
    %v4438 = vpop.f32.mrb[0].mxu0
    %v4439 = vadd.f32 %v3348, %v4438
    %v4440 = vpop.f32.mrb[0].mxu0
    %4441 = vmatprep.mubr.f32.mxu0 0.0
    %v4442 = vand.u32 %v152, 4294901760
    %v4443 = vsub.f32 %v152, %v4442
    %v4444 = vand.u32 %v4443, 4294901760
    %4445 = vmatmul.mubr.f32.gmra.mrb[0].mxu0 %v4444
    %v4446 = vpop.f32.mrb[0].mxu0
    %v4447 = vadd.f32 %v3355, %v4446
    %v4448 = vpop.f32.mrb[0].mxu0
    %4449 = vmatprep.mubr.f32.mxu0 0.0
    %v4450 = vand.u32 %v153, 4294901760
    %v4451 = vsub.f32 %v153, %v4450
    %v4452 = vand.u32 %v4451, 4294901760
    %4453 = vmatmul.mubr.f32.gmra.mrb[0].mxu0 %v4452
    %v4454 = vpop.f32.mrb[0].mxu0
    %v4455 = vadd.f32 %v3362, %v4454
    %v4456 = vpop.f32.mrb[0].mxu0
    %4457 = vmatprep.mubr.f32.mxu0 0.0
    %v4458 = vand.u32 %v154, 4294901760
    %v4459 = vsub.f32 %v154, %v4458
    %v4460 = vand.u32 %v4459, 4294901760
    %4461 = vmatmul.mubr.f32.gmra.mrb[0].mxu0 %v4460
    %v4462 = vpop.f32.mrb[0].mxu0
    %v4463 = vadd.f32 %v3369, %v4462
    %v4464 = vpop.f32.mrb[0].mxu0
    %4465 = vmatprep.mubr.f32.mxu0 0.0
    %v4466 = vand.u32 %v155, 4294901760
    %v4467 = vsub.f32 %v155, %v4466
    %v4468 = vand.u32 %v4467, 4294901760
    %4469 = vmatmul.mubr.f32.gmra.mrb[0].mxu0 %v4468
    %v4470 = vpop.f32.mrb[0].mxu0
    %v4471 = vadd.f32 %v3376, %v4470
    %v4472 = vpop.f32.mrb[0].mxu0
    %4473 = vmatprep.mubr.f32.mxu0 0.0
    %v4474 = vand.u32 %v156, 4294901760
    %v4475 = vsub.f32 %v156, %v4474
    %v4476 = vand.u32 %v4475, 4294901760
    %4477 = vmatmul.mubr.f32.gmra.mrb[0].mxu0 %v4476
    %v4478 = vpop.f32.mrb[0].mxu0
    %v4479 = vadd.f32 %v3383, %v4478
    %v4480 = vpop.f32.mrb[0].mxu0
    %4481 = vmatprep.mubr.f32.mxu0 0.0
    %v4482 = vand.u32 %v157, 4294901760
    %v4483 = vsub.f32 %v157, %v4482
    %v4484 = vand.u32 %v4483, 4294901760
    %4485 = vmatmul.mubr.f32.gmra.mrb[0].mxu0 %v4484
    %v4486 = vpop.f32.mrb[0].mxu0
    %v4487 = vadd.f32 %v3390, %v4486
    %v4488 = vpop.f32.mrb[0].mxu0
    %4489 = vmatprep.mubr.f32.mxu0 0.0
    %v4490 = vand.u32 %v158, 4294901760
    %v4491 = vsub.f32 %v158, %v4490
    %v4492 = vand.u32 %v4491, 4294901760
    %4493 = vmatmul.mubr.f32.gmra.mrb[0].mxu0 %v4492
    %v4494 = vpop.f32.mrb[0].mxu0
    %v4495 = vadd.f32 %v3397, %v4494
    %v4496 = vpop.f32.mrb[0].mxu0
    %4497 = vmatprep.mubr.f32.mxu0 0.0
    %v4498 = vand.u32 %v159, 4294901760
    %v4499 = vsub.f32 %v159, %v4498
    %v4500 = vand.u32 %v4499, 4294901760
    %4501 = vmatmul.mubr.f32.gmra.mrb[0].mxu0 %v4500
    %v4502 = vpop.f32.mrb[0].mxu0
    %v4503 = vadd.f32 %v3404, %v4502
    %v4504 = vpop.f32.mrb[0].mxu0
    %4505 = vmatprep.mubr.f32.mxu0 0.0
    %v4506 = vand.u32 %v160, 4294901760
    %v4507 = vsub.f32 %v160, %v4506
    %v4508 = vand.u32 %v4507, 4294901760
    %4509 = vmatmul.mubr.f32.gmra.mrb[0].mxu0 %v4508
    %v4510 = vpop.f32.mrb[0].mxu0
    %v4511 = vadd.f32 %v3411, %v4510
    %v4512 = vpop.f32.mrb[0].mxu0
    %4513 = vmatprep.mubr.f32.mxu0 0.0
    %v4514 = vand.u32 %v161, 4294901760
    %v4515 = vsub.f32 %v161, %v4514
    %v4516 = vand.u32 %v4515, 4294901760
    %4517 = vmatmul.mubr.f32.gmra.mrb[0].mxu0 %v4516
    %v4518 = vpop.f32.mrb[0].mxu0
    %v4519 = vadd.f32 %v3418, %v4518
    %v4520 = vpop.f32.mrb[0].mxu0
    %4521 = vmatprep.mubr.f32.mxu0 0.0
    %v4522 = vand.u32 %v162, 4294901760
    %v4523 = vsub.f32 %v162, %v4522
    %v4524 = vand.u32 %v4523, 4294901760
    %4525 = vmatmul.mubr.f32.gmra.mrb[0].mxu0 %v4524
    %v4526 = vpop.f32.mrb[0].mxu0
    %v4527 = vadd.f32 %v3425, %v4526
    %v4528 = vpop.f32.mrb[0].mxu0
    %4529 = vmatprep.mubr.f32.mxu0 0.0
    %v4530 = vand.u32 %v163, 4294901760
    %v4531 = vsub.f32 %v163, %v4530
    %v4532 = vand.u32 %v4531, 4294901760
    %4533 = vmatmul.mubr.f32.gmra.mrb[0].mxu0 %v4532
    %v4534 = vpop.f32.mrb[0].mxu0
    %v4535 = vadd.f32 %v3432, %v4534
    %v4536 = vpop.f32.mrb[0].mxu0
    %4537 = vmatprep.mubr.f32.mxu0 0.0
    %v4538 = vand.u32 %v164, 4294901760
    %v4539 = vsub.f32 %v164, %v4538
    %v4540 = vand.u32 %v4539, 4294901760
    %4541 = vmatmul.mubr.f32.gmra.mrb[0].mxu0 %v4540
    %v4542 = vpop.f32.mrb[0].mxu0
    %v4543 = vadd.f32 %v3439, %v4542
    %v4544 = vpop.f32.mrb[0].mxu0
    %4545 = vmatprep.mubr.f32.mxu0 0.0
    %v4546 = vand.u32 %v165, 4294901760
    %v4547 = vsub.f32 %v165, %v4546
    %v4548 = vand.u32 %v4547, 4294901760
    %4549 = vmatmul.mubr.f32.gmra.mrb[0].mxu0 %v4548
    %v4550 = vpop.f32.mrb[0].mxu0
    %v4551 = vadd.f32 %v3446, %v4550
    %v4552 = vpop.f32.mrb[0].mxu0
    %4553 = vdwg.mxu0
    %4554 = vmatprep.subr.mxu0 0.0
    %v4555 = vand.u32 %v166, 4294901760
    %v4556 = vsub.f32 %v166, %v4555
    %v4557 = vand.u32 %v4556, 4294901760
    %4558 = vmatpush1.msra.mxu0 %v4557
    %4559 = vmatprep.subr.mxu0 0.0
    %v4560 = vand.u32 %v167, 4294901760
    %v4561 = vsub.f32 %v167, %v4560
    %v4562 = vand.u32 %v4561, 4294901760
    %4563 = vmatpush1.msra.mxu0 %v4562
    %4564 = vmatprep.subr.mxu0 0.0
    %v4565 = vand.u32 %v168, 4294901760
    %v4566 = vsub.f32 %v168, %v4565
    %v4567 = vand.u32 %v4566, 4294901760
    %4568 = vmatpush1.msra.mxu0 %v4567
    %4569 = vmatprep.subr.mxu0 0.0
    %v4570 = vand.u32 %v169, 4294901760
    %v4571 = vsub.f32 %v169, %v4570
    %v4572 = vand.u32 %v4571, 4294901760
    %4573 = vmatpush1.msra.mxu0 %v4572
    %4574 = vmatprep.subr.mxu0 0.0
    %v4575 = vand.u32 %v170, 4294901760
    %v4576 = vsub.f32 %v170, %v4575
    %v4577 = vand.u32 %v4576, 4294901760
    %4578 = vmatpush1.msra.mxu0 %v4577
    %4579 = vmatprep.subr.mxu0 0.0
    %v4580 = vand.u32 %v171, 4294901760
    %v4581 = vsub.f32 %v171, %v4580
    %v4582 = vand.u32 %v4581, 4294901760
    %4583 = vmatpush1.msra.mxu0 %v4582
    %4584 = vmatprep.subr.mxu0 0.0
    %v4585 = vand.u32 %v172, 4294901760
    %v4586 = vsub.f32 %v172, %v4585
    %v4587 = vand.u32 %v4586, 4294901760
    %4588 = vmatpush1.msra.mxu0 %v4587
    %4589 = vmatprep.subr.mxu0 0.0
    %v4590 = vand.u32 %v173, 4294901760
    %v4591 = vsub.f32 %v173, %v4590
    %v4592 = vand.u32 %v4591, 4294901760
    %4593 = vmatpush1.msra.mxu0 %v4592
    %4594 = vmatprep.subr.mxu0 0.0
    %v4595 = vand.u32 %v174, 4294901760
    %v4596 = vsub.f32 %v174, %v4595
    %v4597 = vand.u32 %v4596, 4294901760
    %4598 = vmatpush1.msra.mxu0 %v4597
    %4599 = vmatprep.subr.mxu0 0.0
    %v4600 = vand.u32 %v175, 4294901760
    %v4601 = vsub.f32 %v175, %v4600
    %v4602 = vand.u32 %v4601, 4294901760
    %4603 = vmatpush1.msra.mxu0 %v4602
    %4604 = vmatprep.subr.mxu0 0.0
    %v4605 = vand.u32 %v176, 4294901760
    %v4606 = vsub.f32 %v176, %v4605
    %v4607 = vand.u32 %v4606, 4294901760
    %4608 = vmatpush1.msra.mxu0 %v4607
    %4609 = vmatprep.subr.mxu0 0.0
    %v4610 = vand.u32 %v177, 4294901760
    %v4611 = vsub.f32 %v177, %v4610
    %v4612 = vand.u32 %v4611, 4294901760
    %4613 = vmatpush1.msra.mxu0 %v4612
    %4614 = vmatprep.subr.mxu0 0.0
    %v4615 = vand.u32 %v178, 4294901760
    %v4616 = vsub.f32 %v178, %v4615
    %v4617 = vand.u32 %v4616, 4294901760
    %4618 = vmatpush1.msra.mxu0 %v4617
    %4619 = vmatprep.subr.mxu0 0.0
    %v4620 = vand.u32 %v179, 4294901760
    %v4621 = vsub.f32 %v179, %v4620
    %v4622 = vand.u32 %v4621, 4294901760
    %4623 = vmatpush1.msra.mxu0 %v4622
    %4624 = vmatprep.subr.mxu0 0.0
    %v4625 = vand.u32 %v180, 4294901760
    %v4626 = vsub.f32 %v180, %v4625
    %v4627 = vand.u32 %v4626, 4294901760
    %4628 = vmatpush1.msra.mxu0 %v4627
    %4629 = vmatprep.subr.mxu0 0.0
    %v4630 = vand.u32 %v181, 4294901760
    %v4631 = vsub.f32 %v181, %v4630
    %v4632 = vand.u32 %v4631, 4294901760
    %4633 = vmatpush1.msra.mxu0 %v4632
    %4634 = vmatprep.subr.mxu0 0.0
    %4635 = vmatpush1.msra.mxu0 0.0
    %4636 = vmatprep.subr.mxu0 0.0
    %4637 = vmatpush1.msra.mxu0 0.0
    %4638 = vmatprep.subr.mxu0 0.0
    %4639 = vmatpush1.msra.mxu0 0.0
    %4640 = vmatprep.subr.mxu0 0.0
    %4641 = vmatpush1.msra.mxu0 0.0
    %4642 = vmatprep.subr.mxu0 0.0
    %4643 = vmatpush1.msra.mxu0 0.0
    %4644 = vmatprep.subr.mxu0 0.0
    %4645 = vmatpush1.msra.mxu0 0.0
    %4646 = vmatprep.subr.mxu0 0.0
    %4647 = vmatpush1.msra.mxu0 0.0
    %4648 = vmatprep.subr.mxu0 0.0
    %4649 = vmatpush1.msra.mxu0 0.0
    %4650 = vmatprep.subr.mxu0 0.0
    %4651 = vmatpush1.msra.mxu0 0.0
    %4652 = vmatprep.subr.mxu0 0.0
    %4653 = vmatpush1.msra.mxu0 0.0
    %4654 = vmatprep.subr.mxu0 0.0
    %4655 = vmatpush1.msra.mxu0 0.0
    %4656 = vmatprep.subr.mxu0 0.0
    %4657 = vmatpush1.msra.mxu0 0.0
    %4658 = vmatprep.subr.mxu0 0.0
    %4659 = vmatpush1.msra.mxu0 0.0
    %4660 = vmatprep.subr.mxu0 0.0
    %4661 = vmatpush1.msra.mxu0 0.0
    %4662 = vmatprep.subr.mxu0 0.0
    %4663 = vmatpush1.msra.mxu0 0.0
    %4664 = vmatprep.subr.mxu0 0.0
    %4665 = vmatpush1.msra.mxu0 0.0
    %4666 = vmatprep.mubr.f32.mxu0 0.0
    %v4667 = vand.u32 %v38, 4294901760
    %4668 = vmatmul.mubr.f32.gmra.mrb[0].mxu0 %v4667
    %v4669 = vpop.f32.mrb[0].mxu0
    %v4670 = vadd.f32 %v3535, %v4669
    %v4671 = vpop.f32.mrb[0].mxu0
    %4672 = vmatprep.mubr.f32.mxu0 0.0
    %v4673 = vand.u32 %v39, 4294901760
    %4674 = vmatmul.mubr.f32.gmra.mrb[0].mxu0 %v4673
    %v4675 = vpop.f32.mrb[0].mxu0
    %v4676 = vadd.f32 %v3543, %v4675
    %v4677 = vpop.f32.mrb[0].mxu0
    %4678 = vmatprep.mubr.f32.mxu0 0.0
    %v4679 = vand.u32 %v40, 4294901760
    %4680 = vmatmul.mubr.f32.gmra.mrb[0].mxu0 %v4679
    %v4681 = vpop.f32.mrb[0].mxu0
    %v4682 = vadd.f32 %v3551, %v4681
    %v4683 = vpop.f32.mrb[0].mxu0
    %4684 = vmatprep.mubr.f32.mxu0 0.0
    %v4685 = vand.u32 %v41, 4294901760
    %4686 = vmatmul.mubr.f32.gmra.mrb[0].mxu0 %v4685
    %v4687 = vpop.f32.mrb[0].mxu0
    %v4688 = vadd.f32 %v3559, %v4687
    %v4689 = vpop.f32.mrb[0].mxu0
    %4690 = vmatprep.mubr.f32.mxu0 0.0
    %v4691 = vand.u32 %v42, 4294901760
    %4692 = vmatmul.mubr.f32.gmra.mrb[0].mxu0 %v4691
    %v4693 = vpop.f32.mrb[0].mxu0
    %v4694 = vadd.f32 %v3567, %v4693
    %v4695 = vpop.f32.mrb[0].mxu0
    %4696 = vmatprep.mubr.f32.mxu0 0.0
    %v4697 = vand.u32 %v43, 4294901760
    %4698 = vmatmul.mubr.f32.gmra.mrb[0].mxu0 %v4697
    %v4699 = vpop.f32.mrb[0].mxu0
    %v4700 = vadd.f32 %v3575, %v4699
    %v4701 = vpop.f32.mrb[0].mxu0
    %4702 = vmatprep.mubr.f32.mxu0 0.0
    %v4703 = vand.u32 %v44, 4294901760
    %4704 = vmatmul.mubr.f32.gmra.mrb[0].mxu0 %v4703
    %v4705 = vpop.f32.mrb[0].mxu0
    %v4706 = vadd.f32 %v3583, %v4705
    %v4707 = vpop.f32.mrb[0].mxu0
    %4708 = vmatprep.mubr.f32.mxu0 0.0
    %v4709 = vand.u32 %v45, 4294901760
    %4710 = vmatmul.mubr.f32.gmra.mrb[0].mxu0 %v4709
    %v4711 = vpop.f32.mrb[0].mxu0
    %v4712 = vadd.f32 %v3591, %v4711
    %v4713 = vpop.f32.mrb[0].mxu0
    %4714 = vmatprep.mubr.f32.mxu0 0.0
    %v4715 = vand.u32 %v46, 4294901760
    %4716 = vmatmul.mubr.f32.gmra.mrb[0].mxu0 %v4715
    %v4717 = vpop.f32.mrb[0].mxu0
    %v4718 = vadd.f32 %v3599, %v4717
    %v4719 = vpop.f32.mrb[0].mxu0
    %4720 = vmatprep.mubr.f32.mxu0 0.0
    %v4721 = vand.u32 %v47, 4294901760
    %4722 = vmatmul.mubr.f32.gmra.mrb[0].mxu0 %v4721
    %v4723 = vpop.f32.mrb[0].mxu0
    %v4724 = vadd.f32 %v3607, %v4723
    %v4725 = vpop.f32.mrb[0].mxu0
    %4726 = vmatprep.mubr.f32.mxu0 0.0
    %v4727 = vand.u32 %v48, 4294901760
    %4728 = vmatmul.mubr.f32.gmra.mrb[0].mxu0 %v4727
    %v4729 = vpop.f32.mrb[0].mxu0
    %v4730 = vadd.f32 %v3615, %v4729
    %v4731 = vpop.f32.mrb[0].mxu0
    %4732 = vmatprep.mubr.f32.mxu0 0.0
    %v4733 = vand.u32 %v49, 4294901760
    %4734 = vmatmul.mubr.f32.gmra.mrb[0].mxu0 %v4733
    %v4735 = vpop.f32.mrb[0].mxu0
    %v4736 = vadd.f32 %v3623, %v4735
    %v4737 = vpop.f32.mrb[0].mxu0
    %4738 = vmatprep.mubr.f32.mxu0 0.0
    %v4739 = vand.u32 %v50, 4294901760
    %4740 = vmatmul.mubr.f32.gmra.mrb[0].mxu0 %v4739
    %v4741 = vpop.f32.mrb[0].mxu0
    %v4742 = vadd.f32 %v3631, %v4741
    %v4743 = vpop.f32.mrb[0].mxu0
    %4744 = vmatprep.mubr.f32.mxu0 0.0
    %v4745 = vand.u32 %v51, 4294901760
    %4746 = vmatmul.mubr.f32.gmra.mrb[0].mxu0 %v4745
    %v4747 = vpop.f32.mrb[0].mxu0
    %v4748 = vadd.f32 %v3639, %v4747
    %v4749 = vpop.f32.mrb[0].mxu0
    %4750 = vmatprep.mubr.f32.mxu0 0.0
    %v4751 = vand.u32 %v52, 4294901760
    %4752 = vmatmul.mubr.f32.gmra.mrb[0].mxu0 %v4751
    %v4753 = vpop.f32.mrb[0].mxu0
    %v4754 = vadd.f32 %v3647, %v4753
    %v4755 = vpop.f32.mrb[0].mxu0
    %4756 = vmatprep.mubr.f32.mxu0 0.0
    %v4757 = vand.u32 %v53, 4294901760
    %4758 = vmatmul.mubr.f32.gmra.mrb[0].mxu0 %v4757
    %v4759 = vpop.f32.mrb[0].mxu0
    %v4760 = vadd.f32 %v3655, %v4759
    %v4761 = vpop.f32.mrb[0].mxu0
    %4762 = vmatprep.mubr.f32.mxu0 0.0
    %v4763 = vand.u32 %v54, 4294901760
    %4764 = vmatmul.mubr.f32.gmra.mrb[0].mxu0 %v4763
    %v4765 = vpop.f32.mrb[0].mxu0
    %v4766 = vadd.f32 %v3663, %v4765
    %v4767 = vpop.f32.mrb[0].mxu0
    %4768 = vmatprep.mubr.f32.mxu0 0.0
    %v4769 = vand.u32 %v55, 4294901760
    %4770 = vmatmul.mubr.f32.gmra.mrb[0].mxu0 %v4769
    %v4771 = vpop.f32.mrb[0].mxu0
    %v4772 = vadd.f32 %v3671, %v4771
    %v4773 = vpop.f32.mrb[0].mxu0
    %4774 = vmatprep.mubr.f32.mxu0 0.0
    %v4775 = vand.u32 %v56, 4294901760
    %4776 = vmatmul.mubr.f32.gmra.mrb[0].mxu0 %v4775
    %v4777 = vpop.f32.mrb[0].mxu0
    %v4778 = vadd.f32 %v3679, %v4777
    %v4779 = vpop.f32.mrb[0].mxu0
    %4780 = vmatprep.mubr.f32.mxu0 0.0
    %v4781 = vand.u32 %v57, 4294901760
    %4782 = vmatmul.mubr.f32.gmra.mrb[0].mxu0 %v4781
    %v4783 = vpop.f32.mrb[0].mxu0
    %v4784 = vadd.f32 %v3687, %v4783
    %v4785 = vpop.f32.mrb[0].mxu0
    %4786 = vmatprep.mubr.f32.mxu0 0.0
    %v4787 = vand.u32 %v58, 4294901760
    %4788 = vmatmul.mubr.f32.gmra.mrb[0].mxu0 %v4787
    %v4789 = vpop.f32.mrb[0].mxu0
    %v4790 = vadd.f32 %v3695, %v4789
    %v4791 = vpop.f32.mrb[0].mxu0
    %4792 = vmatprep.mubr.f32.mxu0 0.0
    %v4793 = vand.u32 %v59, 4294901760
    %4794 = vmatmul.mubr.f32.gmra.mrb[0].mxu0 %v4793
    %v4795 = vpop.f32.mrb[0].mxu0
    %v4796 = vadd.f32 %v3703, %v4795
    %v4797 = vpop.f32.mrb[0].mxu0
    %4798 = vmatprep.mubr.f32.mxu0 0.0
    %v4799 = vand.u32 %v60, 4294901760
    %4800 = vmatmul.mubr.f32.gmra.mrb[0].mxu0 %v4799
    %v4801 = vpop.f32.mrb[0].mxu0
    %v4802 = vadd.f32 %v3711, %v4801
    %v4803 = vpop.f32.mrb[0].mxu0
    %4804 = vmatprep.mubr.f32.mxu0 0.0
    %v4805 = vand.u32 %v61, 4294901760
    %4806 = vmatmul.mubr.f32.gmra.mrb[0].mxu0 %v4805
    %v4807 = vpop.f32.mrb[0].mxu0
    %v4808 = vadd.f32 %v3719, %v4807
    %v4809 = vpop.f32.mrb[0].mxu0
    %4810 = vmatprep.mubr.f32.mxu0 0.0
    %v4811 = vand.u32 %v62, 4294901760
    %4812 = vmatmul.mubr.f32.gmra.mrb[0].mxu0 %v4811
    %v4813 = vpop.f32.mrb[0].mxu0
    %v4814 = vadd.f32 %v3727, %v4813
    %v4815 = vpop.f32.mrb[0].mxu0
    %4816 = vmatprep.mubr.f32.mxu0 0.0
    %v4817 = vand.u32 %v63, 4294901760
    %4818 = vmatmul.mubr.f32.gmra.mrb[0].mxu0 %v4817
    %v4819 = vpop.f32.mrb[0].mxu0
    %v4820 = vadd.f32 %v3735, %v4819
    %v4821 = vpop.f32.mrb[0].mxu0
    %4822 = vmatprep.mubr.f32.mxu0 0.0
    %v4823 = vand.u32 %v64, 4294901760
    %4824 = vmatmul.mubr.f32.gmra.mrb[0].mxu0 %v4823
    %v4825 = vpop.f32.mrb[0].mxu0
    %v4826 = vadd.f32 %v3743, %v4825
    %v4827 = vpop.f32.mrb[0].mxu0
    %4828 = vmatprep.mubr.f32.mxu0 0.0
    %v4829 = vand.u32 %v65, 4294901760
    %4830 = vmatmul.mubr.f32.gmra.mrb[0].mxu0 %v4829
    %v4831 = vpop.f32.mrb[0].mxu0
    %v4832 = vadd.f32 %v3751, %v4831
    %v4833 = vpop.f32.mrb[0].mxu0
    %4834 = vmatprep.mubr.f32.mxu0 0.0
    %v4835 = vand.u32 %v66, 4294901760
    %4836 = vmatmul.mubr.f32.gmra.mrb[0].mxu0 %v4835
    %v4837 = vpop.f32.mrb[0].mxu0
    %v4838 = vadd.f32 %v3759, %v4837
    %v4839 = vpop.f32.mrb[0].mxu0
    %4840 = vmatprep.mubr.f32.mxu0 0.0
    %v4841 = vand.u32 %v67, 4294901760
    %4842 = vmatmul.mubr.f32.gmra.mrb[0].mxu0 %v4841
    %v4843 = vpop.f32.mrb[0].mxu0
    %v4844 = vadd.f32 %v3767, %v4843
    %v4845 = vpop.f32.mrb[0].mxu0
    %4846 = vmatprep.mubr.f32.mxu0 0.0
    %v4847 = vand.u32 %v68, 4294901760
    %4848 = vmatmul.mubr.f32.gmra.mrb[0].mxu0 %v4847
    %v4849 = vpop.f32.mrb[0].mxu0
    %v4850 = vadd.f32 %v3775, %v4849
    %v4851 = vpop.f32.mrb[0].mxu0
    %4852 = vmatprep.mubr.f32.mxu0 0.0
    %v4853 = vand.u32 %v69, 4294901760
    %4854 = vmatmul.mubr.f32.gmra.mrb[0].mxu0 %v4853
    %v4855 = vpop.f32.mrb[0].mxu0
    %v4856 = vadd.f32 %v3783, %v4855
    %v4857 = vpop.f32.mrb[0].mxu0
    %4858 = vmatprep.mubr.f32.mxu0 0.0
    %v4859 = vand.u32 %v70, 4294901760
    %4860 = vmatmul.mubr.f32.gmra.mrb[0].mxu0 %v4859
    %v4861 = vpop.f32.mrb[0].mxu0
    %v4862 = vadd.f32 %v3791, %v4861
    %v4863 = vpop.f32.mrb[0].mxu0
    %4864 = vmatprep.mubr.f32.mxu0 0.0
    %v4865 = vand.u32 %v71, 4294901760
    %4866 = vmatmul.mubr.f32.gmra.mrb[0].mxu0 %v4865
    %v4867 = vpop.f32.mrb[0].mxu0
    %v4868 = vadd.f32 %v3799, %v4867
    %v4869 = vpop.f32.mrb[0].mxu0
    %4870 = vmatprep.mubr.f32.mxu0 0.0
    %v4871 = vand.u32 %v72, 4294901760
    %4872 = vmatmul.mubr.f32.gmra.mrb[0].mxu0 %v4871
    %v4873 = vpop.f32.mrb[0].mxu0
    %v4874 = vadd.f32 %v3807, %v4873
    %v4875 = vpop.f32.mrb[0].mxu0
    %4876 = vmatprep.mubr.f32.mxu0 0.0
    %v4877 = vand.u32 %v73, 4294901760
    %4878 = vmatmul.mubr.f32.gmra.mrb[0].mxu0 %v4877
    %v4879 = vpop.f32.mrb[0].mxu0
    %v4880 = vadd.f32 %v3815, %v4879
    %v4881 = vpop.f32.mrb[0].mxu0
    %4882 = vmatprep.mubr.f32.mxu0 0.0
    %v4883 = vand.u32 %v74, 4294901760
    %4884 = vmatmul.mubr.f32.gmra.mrb[0].mxu0 %v4883
    %v4885 = vpop.f32.mrb[0].mxu0
    %v4886 = vadd.f32 %v3823, %v4885
    %v4887 = vpop.f32.mrb[0].mxu0
    %4888 = vmatprep.mubr.f32.mxu0 0.0
    %v4889 = vand.u32 %v75, 4294901760
    %4890 = vmatmul.mubr.f32.gmra.mrb[0].mxu0 %v4889
    %v4891 = vpop.f32.mrb[0].mxu0
    %v4892 = vadd.f32 %v3831, %v4891
    %v4893 = vpop.f32.mrb[0].mxu0
    %4894 = vmatprep.mubr.f32.mxu0 0.0
    %v4895 = vand.u32 %v76, 4294901760
    %4896 = vmatmul.mubr.f32.gmra.mrb[0].mxu0 %v4895
    %v4897 = vpop.f32.mrb[0].mxu0
    %v4898 = vadd.f32 %v3839, %v4897
    %v4899 = vpop.f32.mrb[0].mxu0
    %4900 = vmatprep.mubr.f32.mxu0 0.0
    %v4901 = vand.u32 %v77, 4294901760
    %4902 = vmatmul.mubr.f32.gmra.mrb[0].mxu0 %v4901
    %v4903 = vpop.f32.mrb[0].mxu0
    %v4904 = vadd.f32 %v3847, %v4903
    %v4905 = vpop.f32.mrb[0].mxu0
    %4906 = vmatprep.mubr.f32.mxu0 0.0
    %v4907 = vand.u32 %v78, 4294901760
    %4908 = vmatmul.mubr.f32.gmra.mrb[0].mxu0 %v4907
    %v4909 = vpop.f32.mrb[0].mxu0
    %v4910 = vadd.f32 %v3855, %v4909
    %v4911 = vpop.f32.mrb[0].mxu0
    %4912 = vmatprep.mubr.f32.mxu0 0.0
    %v4913 = vand.u32 %v79, 4294901760
    %4914 = vmatmul.mubr.f32.gmra.mrb[0].mxu0 %v4913
    %v4915 = vpop.f32.mrb[0].mxu0
    %v4916 = vadd.f32 %v3863, %v4915
    %v4917 = vpop.f32.mrb[0].mxu0
    %4918 = vmatprep.mubr.f32.mxu0 0.0
    %v4919 = vand.u32 %v80, 4294901760
    %4920 = vmatmul.mubr.f32.gmra.mrb[0].mxu0 %v4919
    %v4921 = vpop.f32.mrb[0].mxu0
    %v4922 = vadd.f32 %v3871, %v4921
    %v4923 = vpop.f32.mrb[0].mxu0
    %4924 = vmatprep.mubr.f32.mxu0 0.0
    %v4925 = vand.u32 %v81, 4294901760
    %4926 = vmatmul.mubr.f32.gmra.mrb[0].mxu0 %v4925
    %v4927 = vpop.f32.mrb[0].mxu0
    %v4928 = vadd.f32 %v3879, %v4927
    %v4929 = vpop.f32.mrb[0].mxu0
    %4930 = vmatprep.mubr.f32.mxu0 0.0
    %v4931 = vand.u32 %v82, 4294901760
    %4932 = vmatmul.mubr.f32.gmra.mrb[0].mxu0 %v4931
    %v4933 = vpop.f32.mrb[0].mxu0
    %v4934 = vadd.f32 %v3887, %v4933
    %v4935 = vpop.f32.mrb[0].mxu0
    %4936 = vmatprep.mubr.f32.mxu0 0.0
    %v4937 = vand.u32 %v83, 4294901760
    %4938 = vmatmul.mubr.f32.gmra.mrb[0].mxu0 %v4937
    %v4939 = vpop.f32.mrb[0].mxu0
    %v4940 = vadd.f32 %v3895, %v4939
    %v4941 = vpop.f32.mrb[0].mxu0
    %4942 = vmatprep.mubr.f32.mxu0 0.0
    %v4943 = vand.u32 %v84, 4294901760
    %4944 = vmatmul.mubr.f32.gmra.mrb[0].mxu0 %v4943
    %v4945 = vpop.f32.mrb[0].mxu0
    %v4946 = vadd.f32 %v3903, %v4945
    %v4947 = vpop.f32.mrb[0].mxu0
    %4948 = vmatprep.mubr.f32.mxu0 0.0
    %v4949 = vand.u32 %v85, 4294901760
    %4950 = vmatmul.mubr.f32.gmra.mrb[0].mxu0 %v4949
    %v4951 = vpop.f32.mrb[0].mxu0
    %v4952 = vadd.f32 %v3911, %v4951
    %v4953 = vpop.f32.mrb[0].mxu0
    %4954 = vmatprep.mubr.f32.mxu0 0.0
    %v4955 = vand.u32 %v86, 4294901760
    %4956 = vmatmul.mubr.f32.gmra.mrb[0].mxu0 %v4955
    %v4957 = vpop.f32.mrb[0].mxu0
    %v4958 = vadd.f32 %v3919, %v4957
    %v4959 = vpop.f32.mrb[0].mxu0
    %4960 = vmatprep.mubr.f32.mxu0 0.0
    %v4961 = vand.u32 %v87, 4294901760
    %4962 = vmatmul.mubr.f32.gmra.mrb[0].mxu0 %v4961
    %v4963 = vpop.f32.mrb[0].mxu0
    %v4964 = vadd.f32 %v3927, %v4963
    %v4965 = vpop.f32.mrb[0].mxu0
    %4966 = vmatprep.mubr.f32.mxu0 0.0
    %v4967 = vand.u32 %v88, 4294901760
    %4968 = vmatmul.mubr.f32.gmra.mrb[0].mxu0 %v4967
    %v4969 = vpop.f32.mrb[0].mxu0
    %v4970 = vadd.f32 %v3935, %v4969
    %v4971 = vpop.f32.mrb[0].mxu0
    %4972 = vmatprep.mubr.f32.mxu0 0.0
    %v4973 = vand.u32 %v89, 4294901760
    %4974 = vmatmul.mubr.f32.gmra.mrb[0].mxu0 %v4973
    %v4975 = vpop.f32.mrb[0].mxu0
    %v4976 = vadd.f32 %v3943, %v4975
    %v4977 = vpop.f32.mrb[0].mxu0
    %4978 = vmatprep.mubr.f32.mxu0 0.0
    %v4979 = vand.u32 %v90, 4294901760
    %4980 = vmatmul.mubr.f32.gmra.mrb[0].mxu0 %v4979
    %v4981 = vpop.f32.mrb[0].mxu0
    %v4982 = vadd.f32 %v3951, %v4981
    %v4983 = vpop.f32.mrb[0].mxu0
    %4984 = vmatprep.mubr.f32.mxu0 0.0
    %v4985 = vand.u32 %v91, 4294901760
    %4986 = vmatmul.mubr.f32.gmra.mrb[0].mxu0 %v4985
    %v4987 = vpop.f32.mrb[0].mxu0
    %v4988 = vadd.f32 %v3959, %v4987
    %v4989 = vpop.f32.mrb[0].mxu0
    %4990 = vmatprep.mubr.f32.mxu0 0.0
    %v4991 = vand.u32 %v92, 4294901760
    %4992 = vmatmul.mubr.f32.gmra.mrb[0].mxu0 %v4991
    %v4993 = vpop.f32.mrb[0].mxu0
    %v4994 = vadd.f32 %v3967, %v4993
    %v4995 = vpop.f32.mrb[0].mxu0
    %4996 = vmatprep.mubr.f32.mxu0 0.0
    %v4997 = vand.u32 %v93, 4294901760
    %4998 = vmatmul.mubr.f32.gmra.mrb[0].mxu0 %v4997
    %v4999 = vpop.f32.mrb[0].mxu0
    %v5000 = vadd.f32 %v3975, %v4999
    %v5001 = vpop.f32.mrb[0].mxu0
    %5002 = vmatprep.mubr.f32.mxu0 0.0
    %v5003 = vand.u32 %v94, 4294901760
    %5004 = vmatmul.mubr.f32.gmra.mrb[0].mxu0 %v5003
    %v5005 = vpop.f32.mrb[0].mxu0
    %v5006 = vadd.f32 %v3983, %v5005
    %v5007 = vpop.f32.mrb[0].mxu0
    %5008 = vmatprep.mubr.f32.mxu0 0.0
    %v5009 = vand.u32 %v95, 4294901760
    %5010 = vmatmul.mubr.f32.gmra.mrb[0].mxu0 %v5009
    %v5011 = vpop.f32.mrb[0].mxu0
    %v5012 = vadd.f32 %v3991, %v5011
    %v5013 = vpop.f32.mrb[0].mxu0
    %5014 = vmatprep.mubr.f32.mxu0 0.0
    %v5015 = vand.u32 %v96, 4294901760
    %5016 = vmatmul.mubr.f32.gmra.mrb[0].mxu0 %v5015
    %v5017 = vpop.f32.mrb[0].mxu0
    %v5018 = vadd.f32 %v3999, %v5017
    %v5019 = vpop.f32.mrb[0].mxu0
    %5020 = vmatprep.mubr.f32.mxu0 0.0
    %v5021 = vand.u32 %v97, 4294901760
    %5022 = vmatmul.mubr.f32.gmra.mrb[0].mxu0 %v5021
    %v5023 = vpop.f32.mrb[0].mxu0
    %v5024 = vadd.f32 %v4007, %v5023
    %v5025 = vpop.f32.mrb[0].mxu0
    %5026 = vmatprep.mubr.f32.mxu0 0.0
    %v5027 = vand.u32 %v98, 4294901760
    %5028 = vmatmul.mubr.f32.gmra.mrb[0].mxu0 %v5027
    %v5029 = vpop.f32.mrb[0].mxu0
    %v5030 = vadd.f32 %v4015, %v5029
    %v5031 = vpop.f32.mrb[0].mxu0
    %5032 = vmatprep.mubr.f32.mxu0 0.0
    %v5033 = vand.u32 %v99, 4294901760
    %5034 = vmatmul.mubr.f32.gmra.mrb[0].mxu0 %v5033
    %v5035 = vpop.f32.mrb[0].mxu0
    %v5036 = vadd.f32 %v4023, %v5035
    %v5037 = vpop.f32.mrb[0].mxu0
    %5038 = vmatprep.mubr.f32.mxu0 0.0
    %v5039 = vand.u32 %v100, 4294901760
    %5040 = vmatmul.mubr.f32.gmra.mrb[0].mxu0 %v5039
    %v5041 = vpop.f32.mrb[0].mxu0
    %v5042 = vadd.f32 %v4031, %v5041
    %v5043 = vpop.f32.mrb[0].mxu0
    %5044 = vmatprep.mubr.f32.mxu0 0.0
    %v5045 = vand.u32 %v101, 4294901760
    %5046 = vmatmul.mubr.f32.gmra.mrb[0].mxu0 %v5045
    %v5047 = vpop.f32.mrb[0].mxu0
    %v5048 = vadd.f32 %v4039, %v5047
    %v5049 = vpop.f32.mrb[0].mxu0
    %5050 = vmatprep.mubr.f32.mxu0 0.0
    %v5051 = vand.u32 %v102, 4294901760
    %5052 = vmatmul.mubr.f32.gmra.mrb[0].mxu0 %v5051
    %v5053 = vpop.f32.mrb[0].mxu0
    %v5054 = vadd.f32 %v4047, %v5053
    %v5055 = vpop.f32.mrb[0].mxu0
    %5056 = vmatprep.mubr.f32.mxu0 0.0
    %v5057 = vand.u32 %v103, 4294901760
    %5058 = vmatmul.mubr.f32.gmra.mrb[0].mxu0 %v5057
    %v5059 = vpop.f32.mrb[0].mxu0
    %v5060 = vadd.f32 %v4055, %v5059
    %v5061 = vpop.f32.mrb[0].mxu0
    %5062 = vmatprep.mubr.f32.mxu0 0.0
    %v5063 = vand.u32 %v104, 4294901760
    %5064 = vmatmul.mubr.f32.gmra.mrb[0].mxu0 %v5063
    %v5065 = vpop.f32.mrb[0].mxu0
    %v5066 = vadd.f32 %v4063, %v5065
    %v5067 = vpop.f32.mrb[0].mxu0
    %5068 = vmatprep.mubr.f32.mxu0 0.0
    %v5069 = vand.u32 %v105, 4294901760
    %5070 = vmatmul.mubr.f32.gmra.mrb[0].mxu0 %v5069
    %v5071 = vpop.f32.mrb[0].mxu0
    %v5072 = vadd.f32 %v4071, %v5071
    %v5073 = vpop.f32.mrb[0].mxu0
    %5074 = vmatprep.mubr.f32.mxu0 0.0
    %v5075 = vand.u32 %v106, 4294901760
    %5076 = vmatmul.mubr.f32.gmra.mrb[0].mxu0 %v5075
    %v5077 = vpop.f32.mrb[0].mxu0
    %v5078 = vadd.f32 %v4079, %v5077
    %v5079 = vpop.f32.mrb[0].mxu0
    %5080 = vmatprep.mubr.f32.mxu0 0.0
    %v5081 = vand.u32 %v107, 4294901760
    %5082 = vmatmul.mubr.f32.gmra.mrb[0].mxu0 %v5081
    %v5083 = vpop.f32.mrb[0].mxu0
    %v5084 = vadd.f32 %v4087, %v5083
    %v5085 = vpop.f32.mrb[0].mxu0
    %5086 = vmatprep.mubr.f32.mxu0 0.0
    %v5087 = vand.u32 %v108, 4294901760
    %5088 = vmatmul.mubr.f32.gmra.mrb[0].mxu0 %v5087
    %v5089 = vpop.f32.mrb[0].mxu0
    %v5090 = vadd.f32 %v4095, %v5089
    %v5091 = vpop.f32.mrb[0].mxu0
    %5092 = vmatprep.mubr.f32.mxu0 0.0
    %v5093 = vand.u32 %v109, 4294901760
    %5094 = vmatmul.mubr.f32.gmra.mrb[0].mxu0 %v5093
    %v5095 = vpop.f32.mrb[0].mxu0
    %v5096 = vadd.f32 %v4103, %v5095
    %v5097 = vpop.f32.mrb[0].mxu0
    %5098 = vmatprep.mubr.f32.mxu0 0.0
    %v5099 = vand.u32 %v110, 4294901760
    %5100 = vmatmul.mubr.f32.gmra.mrb[0].mxu0 %v5099
    %v5101 = vpop.f32.mrb[0].mxu0
    %v5102 = vadd.f32 %v4111, %v5101
    %v5103 = vpop.f32.mrb[0].mxu0
    %5104 = vmatprep.mubr.f32.mxu0 0.0
    %v5105 = vand.u32 %v111, 4294901760
    %5106 = vmatmul.mubr.f32.gmra.mrb[0].mxu0 %v5105
    %v5107 = vpop.f32.mrb[0].mxu0
    %v5108 = vadd.f32 %v4119, %v5107
    %v5109 = vpop.f32.mrb[0].mxu0
    %5110 = vmatprep.mubr.f32.mxu0 0.0
    %v5111 = vand.u32 %v112, 4294901760
    %5112 = vmatmul.mubr.f32.gmra.mrb[0].mxu0 %v5111
    %v5113 = vpop.f32.mrb[0].mxu0
    %v5114 = vadd.f32 %v4127, %v5113
    %v5115 = vpop.f32.mrb[0].mxu0
    %5116 = vmatprep.mubr.f32.mxu0 0.0
    %v5117 = vand.u32 %v113, 4294901760
    %5118 = vmatmul.mubr.f32.gmra.mrb[0].mxu0 %v5117
    %v5119 = vpop.f32.mrb[0].mxu0
    %v5120 = vadd.f32 %v4135, %v5119
    %v5121 = vpop.f32.mrb[0].mxu0
    %5122 = vmatprep.mubr.f32.mxu0 0.0
    %v5123 = vand.u32 %v114, 4294901760
    %5124 = vmatmul.mubr.f32.gmra.mrb[0].mxu0 %v5123
    %v5125 = vpop.f32.mrb[0].mxu0
    %v5126 = vadd.f32 %v4143, %v5125
    %v5127 = vpop.f32.mrb[0].mxu0
    %5128 = vmatprep.mubr.f32.mxu0 0.0
    %v5129 = vand.u32 %v115, 4294901760
    %5130 = vmatmul.mubr.f32.gmra.mrb[0].mxu0 %v5129
    %v5131 = vpop.f32.mrb[0].mxu0
    %v5132 = vadd.f32 %v4151, %v5131
    %v5133 = vpop.f32.mrb[0].mxu0
    %5134 = vmatprep.mubr.f32.mxu0 0.0
    %v5135 = vand.u32 %v116, 4294901760
    %5136 = vmatmul.mubr.f32.gmra.mrb[0].mxu0 %v5135
    %v5137 = vpop.f32.mrb[0].mxu0
    %v5138 = vadd.f32 %v4159, %v5137
    %v5139 = vpop.f32.mrb[0].mxu0
    %5140 = vmatprep.mubr.f32.mxu0 0.0
    %v5141 = vand.u32 %v117, 4294901760
    %5142 = vmatmul.mubr.f32.gmra.mrb[0].mxu0 %v5141
    %v5143 = vpop.f32.mrb[0].mxu0
    %v5144 = vadd.f32 %v4167, %v5143
    %v5145 = vpop.f32.mrb[0].mxu0
    %5146 = vmatprep.mubr.f32.mxu0 0.0
    %v5147 = vand.u32 %v118, 4294901760
    %5148 = vmatmul.mubr.f32.gmra.mrb[0].mxu0 %v5147
    %v5149 = vpop.f32.mrb[0].mxu0
    %v5150 = vadd.f32 %v4175, %v5149
    %v5151 = vpop.f32.mrb[0].mxu0
    %5152 = vmatprep.mubr.f32.mxu0 0.0
    %v5153 = vand.u32 %v119, 4294901760
    %5154 = vmatmul.mubr.f32.gmra.mrb[0].mxu0 %v5153
    %v5155 = vpop.f32.mrb[0].mxu0
    %v5156 = vadd.f32 %v4183, %v5155
    %v5157 = vpop.f32.mrb[0].mxu0
    %5158 = vmatprep.mubr.f32.mxu0 0.0
    %v5159 = vand.u32 %v120, 4294901760
    %5160 = vmatmul.mubr.f32.gmra.mrb[0].mxu0 %v5159
    %v5161 = vpop.f32.mrb[0].mxu0
    %v5162 = vadd.f32 %v4191, %v5161
    %v5163 = vpop.f32.mrb[0].mxu0
    %5164 = vmatprep.mubr.f32.mxu0 0.0
    %v5165 = vand.u32 %v121, 4294901760
    %5166 = vmatmul.mubr.f32.gmra.mrb[0].mxu0 %v5165
    %v5167 = vpop.f32.mrb[0].mxu0
    %v5168 = vadd.f32 %v4199, %v5167
    %v5169 = vpop.f32.mrb[0].mxu0
    %5170 = vmatprep.mubr.f32.mxu0 0.0
    %v5171 = vand.u32 %v122, 4294901760
    %5172 = vmatmul.mubr.f32.gmra.mrb[0].mxu0 %v5171
    %v5173 = vpop.f32.mrb[0].mxu0
    %v5174 = vadd.f32 %v4207, %v5173
    %v5175 = vpop.f32.mrb[0].mxu0
    %5176 = vmatprep.mubr.f32.mxu0 0.0
    %v5177 = vand.u32 %v123, 4294901760
    %5178 = vmatmul.mubr.f32.gmra.mrb[0].mxu0 %v5177
    %v5179 = vpop.f32.mrb[0].mxu0
    %v5180 = vadd.f32 %v4215, %v5179
    %v5181 = vpop.f32.mrb[0].mxu0
    %5182 = vmatprep.mubr.f32.mxu0 0.0
    %v5183 = vand.u32 %v124, 4294901760
    %5184 = vmatmul.mubr.f32.gmra.mrb[0].mxu0 %v5183
    %v5185 = vpop.f32.mrb[0].mxu0
    %v5186 = vadd.f32 %v4223, %v5185
    %v5187 = vpop.f32.mrb[0].mxu0
    %5188 = vmatprep.mubr.f32.mxu0 0.0
    %v5189 = vand.u32 %v125, 4294901760
    %5190 = vmatmul.mubr.f32.gmra.mrb[0].mxu0 %v5189
    %v5191 = vpop.f32.mrb[0].mxu0
    %v5192 = vadd.f32 %v4231, %v5191
    %v5193 = vpop.f32.mrb[0].mxu0
    %5194 = vmatprep.mubr.f32.mxu0 0.0
    %v5195 = vand.u32 %v126, 4294901760
    %5196 = vmatmul.mubr.f32.gmra.mrb[0].mxu0 %v5195
    %v5197 = vpop.f32.mrb[0].mxu0
    %v5198 = vadd.f32 %v4239, %v5197
    %v5199 = vpop.f32.mrb[0].mxu0
    %5200 = vmatprep.mubr.f32.mxu0 0.0
    %v5201 = vand.u32 %v127, 4294901760
    %5202 = vmatmul.mubr.f32.gmra.mrb[0].mxu0 %v5201
    %v5203 = vpop.f32.mrb[0].mxu0
    %v5204 = vadd.f32 %v4247, %v5203
    %v5205 = vpop.f32.mrb[0].mxu0
    %5206 = vmatprep.mubr.f32.mxu0 0.0
    %v5207 = vand.u32 %v128, 4294901760
    %5208 = vmatmul.mubr.f32.gmra.mrb[0].mxu0 %v5207
    %v5209 = vpop.f32.mrb[0].mxu0
    %v5210 = vadd.f32 %v4255, %v5209
    %v5211 = vpop.f32.mrb[0].mxu0
    %5212 = vmatprep.mubr.f32.mxu0 0.0
    %v5213 = vand.u32 %v129, 4294901760
    %5214 = vmatmul.mubr.f32.gmra.mrb[0].mxu0 %v5213
    %v5215 = vpop.f32.mrb[0].mxu0
    %v5216 = vadd.f32 %v4263, %v5215
    %v5217 = vpop.f32.mrb[0].mxu0
    %5218 = vmatprep.mubr.f32.mxu0 0.0
    %v5219 = vand.u32 %v130, 4294901760
    %5220 = vmatmul.mubr.f32.gmra.mrb[0].mxu0 %v5219
    %v5221 = vpop.f32.mrb[0].mxu0
    %v5222 = vadd.f32 %v4271, %v5221
    %v5223 = vpop.f32.mrb[0].mxu0
    %5224 = vmatprep.mubr.f32.mxu0 0.0
    %v5225 = vand.u32 %v131, 4294901760
    %5226 = vmatmul.mubr.f32.gmra.mrb[0].mxu0 %v5225
    %v5227 = vpop.f32.mrb[0].mxu0
    %v5228 = vadd.f32 %v4279, %v5227
    %v5229 = vpop.f32.mrb[0].mxu0
    %5230 = vmatprep.mubr.f32.mxu0 0.0
    %v5231 = vand.u32 %v132, 4294901760
    %5232 = vmatmul.mubr.f32.gmra.mrb[0].mxu0 %v5231
    %v5233 = vpop.f32.mrb[0].mxu0
    %v5234 = vadd.f32 %v4287, %v5233
    %v5235 = vpop.f32.mrb[0].mxu0
    %5236 = vmatprep.mubr.f32.mxu0 0.0
    %v5237 = vand.u32 %v133, 4294901760
    %5238 = vmatmul.mubr.f32.gmra.mrb[0].mxu0 %v5237
    %v5239 = vpop.f32.mrb[0].mxu0
    %v5240 = vadd.f32 %v4295, %v5239
    %v5241 = vpop.f32.mrb[0].mxu0
    %5242 = vmatprep.mubr.f32.mxu0 0.0
    %v5243 = vand.u32 %v134, 4294901760
    %5244 = vmatmul.mubr.f32.gmra.mrb[0].mxu0 %v5243
    %v5245 = vpop.f32.mrb[0].mxu0
    %v5246 = vadd.f32 %v4303, %v5245
    %v5247 = vpop.f32.mrb[0].mxu0
    %5248 = vmatprep.mubr.f32.mxu0 0.0
    %v5249 = vand.u32 %v135, 4294901760
    %5250 = vmatmul.mubr.f32.gmra.mrb[0].mxu0 %v5249
    %v5251 = vpop.f32.mrb[0].mxu0
    %v5252 = vadd.f32 %v4311, %v5251
    %v5253 = vpop.f32.mrb[0].mxu0
    %5254 = vmatprep.mubr.f32.mxu0 0.0
    %v5255 = vand.u32 %v136, 4294901760
    %5256 = vmatmul.mubr.f32.gmra.mrb[0].mxu0 %v5255
    %v5257 = vpop.f32.mrb[0].mxu0
    %v5258 = vadd.f32 %v4319, %v5257
    %v5259 = vpop.f32.mrb[0].mxu0
    %5260 = vmatprep.mubr.f32.mxu0 0.0
    %v5261 = vand.u32 %v137, 4294901760
    %5262 = vmatmul.mubr.f32.gmra.mrb[0].mxu0 %v5261
    %v5263 = vpop.f32.mrb[0].mxu0
    %v5264 = vadd.f32 %v4327, %v5263
    %v5265 = vpop.f32.mrb[0].mxu0
    %5266 = vmatprep.mubr.f32.mxu0 0.0
    %v5267 = vand.u32 %v138, 4294901760
    %5268 = vmatmul.mubr.f32.gmra.mrb[0].mxu0 %v5267
    %v5269 = vpop.f32.mrb[0].mxu0
    %v5270 = vadd.f32 %v4335, %v5269
    %v5271 = vpop.f32.mrb[0].mxu0
    %5272 = vmatprep.mubr.f32.mxu0 0.0
    %v5273 = vand.u32 %v139, 4294901760
    %5274 = vmatmul.mubr.f32.gmra.mrb[0].mxu0 %v5273
    %v5275 = vpop.f32.mrb[0].mxu0
    %v5276 = vadd.f32 %v4343, %v5275
    %v5277 = vpop.f32.mrb[0].mxu0
    %5278 = vmatprep.mubr.f32.mxu0 0.0
    %v5279 = vand.u32 %v140, 4294901760
    %5280 = vmatmul.mubr.f32.gmra.mrb[0].mxu0 %v5279
    %v5281 = vpop.f32.mrb[0].mxu0
    %v5282 = vadd.f32 %v4351, %v5281
    %v5283 = vpop.f32.mrb[0].mxu0
    %5284 = vmatprep.mubr.f32.mxu0 0.0
    %v5285 = vand.u32 %v141, 4294901760
    %5286 = vmatmul.mubr.f32.gmra.mrb[0].mxu0 %v5285
    %v5287 = vpop.f32.mrb[0].mxu0
    %v5288 = vadd.f32 %v4359, %v5287
    %v5289 = vpop.f32.mrb[0].mxu0
    %5290 = vmatprep.mubr.f32.mxu0 0.0
    %v5291 = vand.u32 %v142, 4294901760
    %5292 = vmatmul.mubr.f32.gmra.mrb[0].mxu0 %v5291
    %v5293 = vpop.f32.mrb[0].mxu0
    %v5294 = vadd.f32 %v4367, %v5293
    %v5295 = vpop.f32.mrb[0].mxu0
    %5296 = vmatprep.mubr.f32.mxu0 0.0
    %v5297 = vand.u32 %v143, 4294901760
    %5298 = vmatmul.mubr.f32.gmra.mrb[0].mxu0 %v5297
    %v5299 = vpop.f32.mrb[0].mxu0
    %v5300 = vadd.f32 %v4375, %v5299
    %v5301 = vpop.f32.mrb[0].mxu0
    %5302 = vmatprep.mubr.f32.mxu0 0.0
    %v5303 = vand.u32 %v144, 4294901760
    %5304 = vmatmul.mubr.f32.gmra.mrb[0].mxu0 %v5303
    %v5305 = vpop.f32.mrb[0].mxu0
    %v5306 = vadd.f32 %v4383, %v5305
    %v5307 = vpop.f32.mrb[0].mxu0
    %5308 = vmatprep.mubr.f32.mxu0 0.0
    %v5309 = vand.u32 %v145, 4294901760
    %5310 = vmatmul.mubr.f32.gmra.mrb[0].mxu0 %v5309
    %v5311 = vpop.f32.mrb[0].mxu0
    %v5312 = vadd.f32 %v4391, %v5311
    %v5313 = vpop.f32.mrb[0].mxu0
    %5314 = vmatprep.mubr.f32.mxu0 0.0
    %v5315 = vand.u32 %v146, 4294901760
    %5316 = vmatmul.mubr.f32.gmra.mrb[0].mxu0 %v5315
    %v5317 = vpop.f32.mrb[0].mxu0
    %v5318 = vadd.f32 %v4399, %v5317
    %v5319 = vpop.f32.mrb[0].mxu0
    %5320 = vmatprep.mubr.f32.mxu0 0.0
    %v5321 = vand.u32 %v147, 4294901760
    %5322 = vmatmul.mubr.f32.gmra.mrb[0].mxu0 %v5321
    %v5323 = vpop.f32.mrb[0].mxu0
    %v5324 = vadd.f32 %v4407, %v5323
    %v5325 = vpop.f32.mrb[0].mxu0
    %5326 = vmatprep.mubr.f32.mxu0 0.0
    %v5327 = vand.u32 %v148, 4294901760
    %5328 = vmatmul.mubr.f32.gmra.mrb[0].mxu0 %v5327
    %v5329 = vpop.f32.mrb[0].mxu0
    %v5330 = vadd.f32 %v4415, %v5329
    %v5331 = vpop.f32.mrb[0].mxu0
    %5332 = vmatprep.mubr.f32.mxu0 0.0
    %v5333 = vand.u32 %v149, 4294901760
    %5334 = vmatmul.mubr.f32.gmra.mrb[0].mxu0 %v5333
    %v5335 = vpop.f32.mrb[0].mxu0
    %v5336 = vadd.f32 %v4423, %v5335
    %v5337 = vpop.f32.mrb[0].mxu0
    %5338 = vmatprep.mubr.f32.mxu0 0.0
    %v5339 = vand.u32 %v150, 4294901760
    %5340 = vmatmul.mubr.f32.gmra.mrb[0].mxu0 %v5339
    %v5341 = vpop.f32.mrb[0].mxu0
    %v5342 = vadd.f32 %v4431, %v5341
    %v5343 = vpop.f32.mrb[0].mxu0
    %5344 = vmatprep.mubr.f32.mxu0 0.0
    %v5345 = vand.u32 %v151, 4294901760
    %5346 = vmatmul.mubr.f32.gmra.mrb[0].mxu0 %v5345
    %v5347 = vpop.f32.mrb[0].mxu0
    %v5348 = vadd.f32 %v4439, %v5347
    %v5349 = vpop.f32.mrb[0].mxu0
    %5350 = vmatprep.mubr.f32.mxu0 0.0
    %v5351 = vand.u32 %v152, 4294901760
    %5352 = vmatmul.mubr.f32.gmra.mrb[0].mxu0 %v5351
    %v5353 = vpop.f32.mrb[0].mxu0
    %v5354 = vadd.f32 %v4447, %v5353
    %v5355 = vpop.f32.mrb[0].mxu0
    %5356 = vmatprep.mubr.f32.mxu0 0.0
    %v5357 = vand.u32 %v153, 4294901760
    %5358 = vmatmul.mubr.f32.gmra.mrb[0].mxu0 %v5357
    %v5359 = vpop.f32.mrb[0].mxu0
    %v5360 = vadd.f32 %v4455, %v5359
    %v5361 = vpop.f32.mrb[0].mxu0
    %5362 = vmatprep.mubr.f32.mxu0 0.0
    %v5363 = vand.u32 %v154, 4294901760
    %5364 = vmatmul.mubr.f32.gmra.mrb[0].mxu0 %v5363
    %v5365 = vpop.f32.mrb[0].mxu0
    %v5366 = vadd.f32 %v4463, %v5365
    %v5367 = vpop.f32.mrb[0].mxu0
    %5368 = vmatprep.mubr.f32.mxu0 0.0
    %v5369 = vand.u32 %v155, 4294901760
    %5370 = vmatmul.mubr.f32.gmra.mrb[0].mxu0 %v5369
    %v5371 = vpop.f32.mrb[0].mxu0
    %v5372 = vadd.f32 %v4471, %v5371
    %v5373 = vpop.f32.mrb[0].mxu0
    %5374 = vmatprep.mubr.f32.mxu0 0.0
    %v5375 = vand.u32 %v156, 4294901760
    %5376 = vmatmul.mubr.f32.gmra.mrb[0].mxu0 %v5375
    %v5377 = vpop.f32.mrb[0].mxu0
    %v5378 = vadd.f32 %v4479, %v5377
    %v5379 = vpop.f32.mrb[0].mxu0
    %5380 = vmatprep.mubr.f32.mxu0 0.0
    %v5381 = vand.u32 %v157, 4294901760
    %5382 = vmatmul.mubr.f32.gmra.mrb[0].mxu0 %v5381
    %v5383 = vpop.f32.mrb[0].mxu0
    %v5384 = vadd.f32 %v4487, %v5383
    %v5385 = vpop.f32.mrb[0].mxu0
    %5386 = vmatprep.mubr.f32.mxu0 0.0
    %v5387 = vand.u32 %v158, 4294901760
    %5388 = vmatmul.mubr.f32.gmra.mrb[0].mxu0 %v5387
    %v5389 = vpop.f32.mrb[0].mxu0
    %v5390 = vadd.f32 %v4495, %v5389
    %v5391 = vpop.f32.mrb[0].mxu0
    %5392 = vmatprep.mubr.f32.mxu0 0.0
    %v5393 = vand.u32 %v159, 4294901760
    %5394 = vmatmul.mubr.f32.gmra.mrb[0].mxu0 %v5393
    %v5395 = vpop.f32.mrb[0].mxu0
    %v5396 = vadd.f32 %v4503, %v5395
    %v5397 = vpop.f32.mrb[0].mxu0
    %5398 = vmatprep.mubr.f32.mxu0 0.0
    %v5399 = vand.u32 %v160, 4294901760
    %5400 = vmatmul.mubr.f32.gmra.mrb[0].mxu0 %v5399
    %v5401 = vpop.f32.mrb[0].mxu0
    %v5402 = vadd.f32 %v4511, %v5401
    %v5403 = vpop.f32.mrb[0].mxu0
    %5404 = vmatprep.mubr.f32.mxu0 0.0
    %v5405 = vand.u32 %v161, 4294901760
    %5406 = vmatmul.mubr.f32.gmra.mrb[0].mxu0 %v5405
    %v5407 = vpop.f32.mrb[0].mxu0
    %v5408 = vadd.f32 %v4519, %v5407
    %v5409 = vpop.f32.mrb[0].mxu0
    %5410 = vmatprep.mubr.f32.mxu0 0.0
    %v5411 = vand.u32 %v162, 4294901760
    %5412 = vmatmul.mubr.f32.gmra.mrb[0].mxu0 %v5411
    %v5413 = vpop.f32.mrb[0].mxu0
    %v5414 = vadd.f32 %v4527, %v5413
    %v5415 = vpop.f32.mrb[0].mxu0
    %5416 = vmatprep.mubr.f32.mxu0 0.0
    %v5417 = vand.u32 %v163, 4294901760
    %5418 = vmatmul.mubr.f32.gmra.mrb[0].mxu0 %v5417
    %v5419 = vpop.f32.mrb[0].mxu0
    %v5420 = vadd.f32 %v4535, %v5419
    %v5421 = vpop.f32.mrb[0].mxu0
    %5422 = vmatprep.mubr.f32.mxu0 0.0
    %v5423 = vand.u32 %v164, 4294901760
    %5424 = vmatmul.mubr.f32.gmra.mrb[0].mxu0 %v5423
    %v5425 = vpop.f32.mrb[0].mxu0
    %v5426 = vadd.f32 %v4543, %v5425
    %v5427 = vpop.f32.mrb[0].mxu0
    %5428 = vmatprep.mubr.f32.mxu0 0.0
    %v5429 = vand.u32 %v165, 4294901760
    %5430 = vmatmul.mubr.f32.gmra.mrb[0].mxu0 %v5429
    %v5431 = vpop.f32.mrb[0].mxu0
    %v5432 = vadd.f32 %v4551, %v5431
    %v5433 = vpop.f32.mrb[0].mxu0
    %5434 = vdwg.mxu0
    %5435 = vmatprep.subr.mxu0 0.0
    %v5436 = vand.u32 %v166, 4294901760
    %5437 = vmatpush1.msra.mxu0 %v5436
    %5438 = vmatprep.subr.mxu0 0.0
    %v5439 = vand.u32 %v167, 4294901760
    %5440 = vmatpush1.msra.mxu0 %v5439
    %5441 = vmatprep.subr.mxu0 0.0
    %v5442 = vand.u32 %v168, 4294901760
    %5443 = vmatpush1.msra.mxu0 %v5442
    %5444 = vmatprep.subr.mxu0 0.0
    %v5445 = vand.u32 %v169, 4294901760
    %5446 = vmatpush1.msra.mxu0 %v5445
    %5447 = vmatprep.subr.mxu0 0.0
    %v5448 = vand.u32 %v170, 4294901760
    %5449 = vmatpush1.msra.mxu0 %v5448
    %5450 = vmatprep.subr.mxu0 0.0
    %v5451 = vand.u32 %v171, 4294901760
    %5452 = vmatpush1.msra.mxu0 %v5451
    %5453 = vmatprep.subr.mxu0 0.0
    %v5454 = vand.u32 %v172, 4294901760
    %5455 = vmatpush1.msra.mxu0 %v5454
    %5456 = vmatprep.subr.mxu0 0.0
    %v5457 = vand.u32 %v173, 4294901760
    %5458 = vmatpush1.msra.mxu0 %v5457
    %5459 = vmatprep.subr.mxu0 0.0
    %v5460 = vand.u32 %v174, 4294901760
    %5461 = vmatpush1.msra.mxu0 %v5460
    %5462 = vmatprep.subr.mxu0 0.0
    %v5463 = vand.u32 %v175, 4294901760
    %5464 = vmatpush1.msra.mxu0 %v5463
    %5465 = vmatprep.subr.mxu0 0.0
    %v5466 = vand.u32 %v176, 4294901760
    %5467 = vmatpush1.msra.mxu0 %v5466
    %5468 = vmatprep.subr.mxu0 0.0
    %v5469 = vand.u32 %v177, 4294901760
    %5470 = vmatpush1.msra.mxu0 %v5469
    %5471 = vmatprep.subr.mxu0 0.0
    %v5472 = vand.u32 %v178, 4294901760
    %5473 = vmatpush1.msra.mxu0 %v5472
    %5474 = vmatprep.subr.mxu0 0.0
    %v5475 = vand.u32 %v179, 4294901760
    %5476 = vmatpush1.msra.mxu0 %v5475
    %5477 = vmatprep.subr.mxu0 0.0
    %v5478 = vand.u32 %v180, 4294901760
    %5479 = vmatpush1.msra.mxu0 %v5478
    %5480 = vmatprep.subr.mxu0 0.0
    %v5481 = vand.u32 %v181, 4294901760
    %5482 = vmatpush1.msra.mxu0 %v5481
    %5483 = vmatprep.subr.mxu0 0.0
    %5484 = vmatpush1.msra.mxu0 0.0
    %5485 = vmatprep.subr.mxu0 0.0
    %5486 = vmatpush1.msra.mxu0 0.0
    %5487 = vmatprep.subr.mxu0 0.0
    %5488 = vmatpush1.msra.mxu0 0.0
    %5489 = vmatprep.subr.mxu0 0.0
    %5490 = vmatpush1.msra.mxu0 0.0
    %5491 = vmatprep.subr.mxu0 0.0
    %5492 = vmatpush1.msra.mxu0 0.0
    %5493 = vmatprep.subr.mxu0 0.0
    %5494 = vmatpush1.msra.mxu0 0.0
    %5495 = vmatprep.subr.mxu0 0.0
    %5496 = vmatpush1.msra.mxu0 0.0
    %5497 = vmatprep.subr.mxu0 0.0
    %5498 = vmatpush1.msra.mxu0 0.0
    %5499 = vmatprep.subr.mxu0 0.0
    %5500 = vmatpush1.msra.mxu0 0.0
    %5501 = vmatprep.subr.mxu0 0.0
    %5502 = vmatpush1.msra.mxu0 0.0
    %5503 = vmatprep.subr.mxu0 0.0
    %5504 = vmatpush1.msra.mxu0 0.0
    %5505 = vmatprep.subr.mxu0 0.0
    %5506 = vmatpush1.msra.mxu0 0.0
    %5507 = vmatprep.subr.mxu0 0.0
    %5508 = vmatpush1.msra.mxu0 0.0
    %5509 = vmatprep.subr.mxu0 0.0
    %5510 = vmatpush1.msra.mxu0 0.0
    %5511 = vmatprep.subr.mxu0 0.0
    %5512 = vmatpush1.msra.mxu0 0.0
    %5513 = vmatprep.subr.mxu0 0.0
    %5514 = vmatpush1.msra.mxu0 0.0
    %5515 = vmatprep.mubr.f32.mxu0 0.0
    %v5516 = vand.u32 %v38, 4294901760
    %5517 = vmatmul.mubr.f32.gmra.mrb[0].mxu0 %v5516
    %v5518 = vpop.f32.mrb[0].mxu0
    %v5519 = vadd.f32 %v4670, %v5518
    %v5520 = vpop.f32.mrb[0].mxu0
    %5521 = vmatprep.mubr.f32.mxu0 0.0
    %v5522 = vand.u32 %v39, 4294901760
    %5523 = vmatmul.mubr.f32.gmra.mrb[0].mxu0 %v5522
    %v5524 = vpop.f32.mrb[0].mxu0
    %v5525 = vadd.f32 %v4676, %v5524
    %v5526 = vpop.f32.mrb[0].mxu0
    %5527 = vmatprep.mubr.f32.mxu0 0.0
    %v5528 = vand.u32 %v40, 4294901760
    %5529 = vmatmul.mubr.f32.gmra.mrb[0].mxu0 %v5528
    %v5530 = vpop.f32.mrb[0].mxu0
    %v5531 = vadd.f32 %v4682, %v5530
    %v5532 = vpop.f32.mrb[0].mxu0
    %5533 = vmatprep.mubr.f32.mxu0 0.0
    %v5534 = vand.u32 %v41, 4294901760
    %5535 = vmatmul.mubr.f32.gmra.mrb[0].mxu0 %v5534
    %v5536 = vpop.f32.mrb[0].mxu0
    %v5537 = vadd.f32 %v4688, %v5536
    %v5538 = vpop.f32.mrb[0].mxu0
    %5539 = vmatprep.mubr.f32.mxu0 0.0
    %v5540 = vand.u32 %v42, 4294901760
    %5541 = vmatmul.mubr.f32.gmra.mrb[0].mxu0 %v5540
    %v5542 = vpop.f32.mrb[0].mxu0
    %v5543 = vadd.f32 %v4694, %v5542
    %v5544 = vpop.f32.mrb[0].mxu0
    %5545 = vmatprep.mubr.f32.mxu0 0.0
    %v5546 = vand.u32 %v43, 4294901760
    %5547 = vmatmul.mubr.f32.gmra.mrb[0].mxu0 %v5546
    %v5548 = vpop.f32.mrb[0].mxu0
    %v5549 = vadd.f32 %v4700, %v5548
    %v5550 = vpop.f32.mrb[0].mxu0
    %5551 = vmatprep.mubr.f32.mxu0 0.0
    %v5552 = vand.u32 %v44, 4294901760
    %5553 = vmatmul.mubr.f32.gmra.mrb[0].mxu0 %v5552
    %v5554 = vpop.f32.mrb[0].mxu0
    %v5555 = vadd.f32 %v4706, %v5554
    %v5556 = vpop.f32.mrb[0].mxu0
    %5557 = vmatprep.mubr.f32.mxu0 0.0
    %v5558 = vand.u32 %v45, 4294901760
    %5559 = vmatmul.mubr.f32.gmra.mrb[0].mxu0 %v5558
    %v5560 = vpop.f32.mrb[0].mxu0
    %v5561 = vadd.f32 %v4712, %v5560
    %v5562 = vpop.f32.mrb[0].mxu0
    %5563 = vmatprep.mubr.f32.mxu0 0.0
    %v5564 = vand.u32 %v46, 4294901760
    %5565 = vmatmul.mubr.f32.gmra.mrb[0].mxu0 %v5564
    %v5566 = vpop.f32.mrb[0].mxu0
    %v5567 = vadd.f32 %v4718, %v5566
    %v5568 = vpop.f32.mrb[0].mxu0
    %5569 = vmatprep.mubr.f32.mxu0 0.0
    %v5570 = vand.u32 %v47, 4294901760
    %5571 = vmatmul.mubr.f32.gmra.mrb[0].mxu0 %v5570
    %v5572 = vpop.f32.mrb[0].mxu0
    %v5573 = vadd.f32 %v4724, %v5572
    %v5574 = vpop.f32.mrb[0].mxu0
    %5575 = vmatprep.mubr.f32.mxu0 0.0
    %v5576 = vand.u32 %v48, 4294901760
    %5577 = vmatmul.mubr.f32.gmra.mrb[0].mxu0 %v5576
    %v5578 = vpop.f32.mrb[0].mxu0
    %v5579 = vadd.f32 %v4730, %v5578
    %v5580 = vpop.f32.mrb[0].mxu0
    %5581 = vmatprep.mubr.f32.mxu0 0.0
    %v5582 = vand.u32 %v49, 4294901760
    %5583 = vmatmul.mubr.f32.gmra.mrb[0].mxu0 %v5582
    %v5584 = vpop.f32.mrb[0].mxu0
    %v5585 = vadd.f32 %v4736, %v5584
    %v5586 = vpop.f32.mrb[0].mxu0
    %5587 = vmatprep.mubr.f32.mxu0 0.0
    %v5588 = vand.u32 %v50, 4294901760
    %5589 = vmatmul.mubr.f32.gmra.mrb[0].mxu0 %v5588
    %v5590 = vpop.f32.mrb[0].mxu0
    %v5591 = vadd.f32 %v4742, %v5590
    %v5592 = vpop.f32.mrb[0].mxu0
    %5593 = vmatprep.mubr.f32.mxu0 0.0
    %v5594 = vand.u32 %v51, 4294901760
    %5595 = vmatmul.mubr.f32.gmra.mrb[0].mxu0 %v5594
    %v5596 = vpop.f32.mrb[0].mxu0
    %v5597 = vadd.f32 %v4748, %v5596
    %v5598 = vpop.f32.mrb[0].mxu0
    %5599 = vmatprep.mubr.f32.mxu0 0.0
    %v5600 = vand.u32 %v52, 4294901760
    %5601 = vmatmul.mubr.f32.gmra.mrb[0].mxu0 %v5600
    %v5602 = vpop.f32.mrb[0].mxu0
    %v5603 = vadd.f32 %v4754, %v5602
    %v5604 = vpop.f32.mrb[0].mxu0
    %5605 = vmatprep.mubr.f32.mxu0 0.0
    %v5606 = vand.u32 %v53, 4294901760
    %5607 = vmatmul.mubr.f32.gmra.mrb[0].mxu0 %v5606
    %v5608 = vpop.f32.mrb[0].mxu0
    %v5609 = vadd.f32 %v4760, %v5608
    %v5610 = vpop.f32.mrb[0].mxu0
    %5611 = vmatprep.mubr.f32.mxu0 0.0
    %v5612 = vand.u32 %v54, 4294901760
    %5613 = vmatmul.mubr.f32.gmra.mrb[0].mxu0 %v5612
    %v5614 = vpop.f32.mrb[0].mxu0
    %v5615 = vadd.f32 %v4766, %v5614
    %v5616 = vpop.f32.mrb[0].mxu0
    %5617 = vmatprep.mubr.f32.mxu0 0.0
    %v5618 = vand.u32 %v55, 4294901760
    %5619 = vmatmul.mubr.f32.gmra.mrb[0].mxu0 %v5618
    %v5620 = vpop.f32.mrb[0].mxu0
    %v5621 = vadd.f32 %v4772, %v5620
    %v5622 = vpop.f32.mrb[0].mxu0
    %5623 = vmatprep.mubr.f32.mxu0 0.0
    %v5624 = vand.u32 %v56, 4294901760
    %5625 = vmatmul.mubr.f32.gmra.mrb[0].mxu0 %v5624
    %v5626 = vpop.f32.mrb[0].mxu0
    %v5627 = vadd.f32 %v4778, %v5626
    %v5628 = vpop.f32.mrb[0].mxu0
    %5629 = vmatprep.mubr.f32.mxu0 0.0
    %v5630 = vand.u32 %v57, 4294901760
    %5631 = vmatmul.mubr.f32.gmra.mrb[0].mxu0 %v5630
    %v5632 = vpop.f32.mrb[0].mxu0
    %v5633 = vadd.f32 %v4784, %v5632
    %v5634 = vpop.f32.mrb[0].mxu0
    %5635 = vmatprep.mubr.f32.mxu0 0.0
    %v5636 = vand.u32 %v58, 4294901760
    %5637 = vmatmul.mubr.f32.gmra.mrb[0].mxu0 %v5636
    %v5638 = vpop.f32.mrb[0].mxu0
    %v5639 = vadd.f32 %v4790, %v5638
    %v5640 = vpop.f32.mrb[0].mxu0
    %5641 = vmatprep.mubr.f32.mxu0 0.0
    %v5642 = vand.u32 %v59, 4294901760
    %5643 = vmatmul.mubr.f32.gmra.mrb[0].mxu0 %v5642
    %v5644 = vpop.f32.mrb[0].mxu0
    %v5645 = vadd.f32 %v4796, %v5644
    %v5646 = vpop.f32.mrb[0].mxu0
    %5647 = vmatprep.mubr.f32.mxu0 0.0
    %v5648 = vand.u32 %v60, 4294901760
    %5649 = vmatmul.mubr.f32.gmra.mrb[0].mxu0 %v5648
    %v5650 = vpop.f32.mrb[0].mxu0
    %v5651 = vadd.f32 %v4802, %v5650
    %v5652 = vpop.f32.mrb[0].mxu0
    %5653 = vmatprep.mubr.f32.mxu0 0.0
    %v5654 = vand.u32 %v61, 4294901760
    %5655 = vmatmul.mubr.f32.gmra.mrb[0].mxu0 %v5654
    %v5656 = vpop.f32.mrb[0].mxu0
    %v5657 = vadd.f32 %v4808, %v5656
    %v5658 = vpop.f32.mrb[0].mxu0
    %5659 = vmatprep.mubr.f32.mxu0 0.0
    %v5660 = vand.u32 %v62, 4294901760
    %5661 = vmatmul.mubr.f32.gmra.mrb[0].mxu0 %v5660
    %v5662 = vpop.f32.mrb[0].mxu0
    %v5663 = vadd.f32 %v4814, %v5662
    %v5664 = vpop.f32.mrb[0].mxu0
    %5665 = vmatprep.mubr.f32.mxu0 0.0
    %v5666 = vand.u32 %v63, 4294901760
    %5667 = vmatmul.mubr.f32.gmra.mrb[0].mxu0 %v5666
    %v5668 = vpop.f32.mrb[0].mxu0
    %v5669 = vadd.f32 %v4820, %v5668
    %v5670 = vpop.f32.mrb[0].mxu0
    %5671 = vmatprep.mubr.f32.mxu0 0.0
    %v5672 = vand.u32 %v64, 4294901760
    %5673 = vmatmul.mubr.f32.gmra.mrb[0].mxu0 %v5672
    %v5674 = vpop.f32.mrb[0].mxu0
    %v5675 = vadd.f32 %v4826, %v5674
    %v5676 = vpop.f32.mrb[0].mxu0
    %5677 = vmatprep.mubr.f32.mxu0 0.0
    %v5678 = vand.u32 %v65, 4294901760
    %5679 = vmatmul.mubr.f32.gmra.mrb[0].mxu0 %v5678
    %v5680 = vpop.f32.mrb[0].mxu0
    %v5681 = vadd.f32 %v4832, %v5680
    %v5682 = vpop.f32.mrb[0].mxu0
    %5683 = vmatprep.mubr.f32.mxu0 0.0
    %v5684 = vand.u32 %v66, 4294901760
    %5685 = vmatmul.mubr.f32.gmra.mrb[0].mxu0 %v5684
    %v5686 = vpop.f32.mrb[0].mxu0
    %v5687 = vadd.f32 %v4838, %v5686
    %v5688 = vpop.f32.mrb[0].mxu0
    %5689 = vmatprep.mubr.f32.mxu0 0.0
    %v5690 = vand.u32 %v67, 4294901760
    %5691 = vmatmul.mubr.f32.gmra.mrb[0].mxu0 %v5690
    %v5692 = vpop.f32.mrb[0].mxu0
    %v5693 = vadd.f32 %v4844, %v5692
    %v5694 = vpop.f32.mrb[0].mxu0
    %5695 = vmatprep.mubr.f32.mxu0 0.0
    %v5696 = vand.u32 %v68, 4294901760
    %5697 = vmatmul.mubr.f32.gmra.mrb[0].mxu0 %v5696
    %v5698 = vpop.f32.mrb[0].mxu0
    %v5699 = vadd.f32 %v4850, %v5698
    %v5700 = vpop.f32.mrb[0].mxu0
    %5701 = vmatprep.mubr.f32.mxu0 0.0
    %v5702 = vand.u32 %v69, 4294901760
    %5703 = vmatmul.mubr.f32.gmra.mrb[0].mxu0 %v5702
    %v5704 = vpop.f32.mrb[0].mxu0
    %v5705 = vadd.f32 %v4856, %v5704
    %v5706 = vpop.f32.mrb[0].mxu0
    %5707 = vmatprep.mubr.f32.mxu0 0.0
    %v5708 = vand.u32 %v70, 4294901760
    %5709 = vmatmul.mubr.f32.gmra.mrb[0].mxu0 %v5708
    %v5710 = vpop.f32.mrb[0].mxu0
    %v5711 = vadd.f32 %v4862, %v5710
    %v5712 = vpop.f32.mrb[0].mxu0
    %5713 = vmatprep.mubr.f32.mxu0 0.0
    %v5714 = vand.u32 %v71, 4294901760
    %5715 = vmatmul.mubr.f32.gmra.mrb[0].mxu0 %v5714
    %v5716 = vpop.f32.mrb[0].mxu0
    %v5717 = vadd.f32 %v4868, %v5716
    %v5718 = vpop.f32.mrb[0].mxu0
    %5719 = vmatprep.mubr.f32.mxu0 0.0
    %v5720 = vand.u32 %v72, 4294901760
    %5721 = vmatmul.mubr.f32.gmra.mrb[0].mxu0 %v5720
    %v5722 = vpop.f32.mrb[0].mxu0
    %v5723 = vadd.f32 %v4874, %v5722
    %v5724 = vpop.f32.mrb[0].mxu0
    %5725 = vmatprep.mubr.f32.mxu0 0.0
    %v5726 = vand.u32 %v73, 4294901760
    %5727 = vmatmul.mubr.f32.gmra.mrb[0].mxu0 %v5726
    %v5728 = vpop.f32.mrb[0].mxu0
    %v5729 = vadd.f32 %v4880, %v5728
    %v5730 = vpop.f32.mrb[0].mxu0
    %5731 = vmatprep.mubr.f32.mxu0 0.0
    %v5732 = vand.u32 %v74, 4294901760
    %5733 = vmatmul.mubr.f32.gmra.mrb[0].mxu0 %v5732
    %v5734 = vpop.f32.mrb[0].mxu0
    %v5735 = vadd.f32 %v4886, %v5734
    %v5736 = vpop.f32.mrb[0].mxu0
    %5737 = vmatprep.mubr.f32.mxu0 0.0
    %v5738 = vand.u32 %v75, 4294901760
    %5739 = vmatmul.mubr.f32.gmra.mrb[0].mxu0 %v5738
    %v5740 = vpop.f32.mrb[0].mxu0
    %v5741 = vadd.f32 %v4892, %v5740
    %v5742 = vpop.f32.mrb[0].mxu0
    %5743 = vmatprep.mubr.f32.mxu0 0.0
    %v5744 = vand.u32 %v76, 4294901760
    %5745 = vmatmul.mubr.f32.gmra.mrb[0].mxu0 %v5744
    %v5746 = vpop.f32.mrb[0].mxu0
    %v5747 = vadd.f32 %v4898, %v5746
    %v5748 = vpop.f32.mrb[0].mxu0
    %5749 = vmatprep.mubr.f32.mxu0 0.0
    %v5750 = vand.u32 %v77, 4294901760
    %5751 = vmatmul.mubr.f32.gmra.mrb[0].mxu0 %v5750
    %v5752 = vpop.f32.mrb[0].mxu0
    %v5753 = vadd.f32 %v4904, %v5752
    %v5754 = vpop.f32.mrb[0].mxu0
    %5755 = vmatprep.mubr.f32.mxu0 0.0
    %v5756 = vand.u32 %v78, 4294901760
    %5757 = vmatmul.mubr.f32.gmra.mrb[0].mxu0 %v5756
    %v5758 = vpop.f32.mrb[0].mxu0
    %v5759 = vadd.f32 %v4910, %v5758
    %v5760 = vpop.f32.mrb[0].mxu0
    %5761 = vmatprep.mubr.f32.mxu0 0.0
    %v5762 = vand.u32 %v79, 4294901760
    %5763 = vmatmul.mubr.f32.gmra.mrb[0].mxu0 %v5762
    %v5764 = vpop.f32.mrb[0].mxu0
    %v5765 = vadd.f32 %v4916, %v5764
    %v5766 = vpop.f32.mrb[0].mxu0
    %5767 = vmatprep.mubr.f32.mxu0 0.0
    %v5768 = vand.u32 %v80, 4294901760
    %5769 = vmatmul.mubr.f32.gmra.mrb[0].mxu0 %v5768
    %v5770 = vpop.f32.mrb[0].mxu0
    %v5771 = vadd.f32 %v4922, %v5770
    %v5772 = vpop.f32.mrb[0].mxu0
    %5773 = vmatprep.mubr.f32.mxu0 0.0
    %v5774 = vand.u32 %v81, 4294901760
    %5775 = vmatmul.mubr.f32.gmra.mrb[0].mxu0 %v5774
    %v5776 = vpop.f32.mrb[0].mxu0
    %v5777 = vadd.f32 %v4928, %v5776
    %v5778 = vpop.f32.mrb[0].mxu0
    %5779 = vmatprep.mubr.f32.mxu0 0.0
    %v5780 = vand.u32 %v82, 4294901760
    %5781 = vmatmul.mubr.f32.gmra.mrb[0].mxu0 %v5780
    %v5782 = vpop.f32.mrb[0].mxu0
    %v5783 = vadd.f32 %v4934, %v5782
    %v5784 = vpop.f32.mrb[0].mxu0
    %5785 = vmatprep.mubr.f32.mxu0 0.0
    %v5786 = vand.u32 %v83, 4294901760
    %5787 = vmatmul.mubr.f32.gmra.mrb[0].mxu0 %v5786
    %v5788 = vpop.f32.mrb[0].mxu0
    %v5789 = vadd.f32 %v4940, %v5788
    %v5790 = vpop.f32.mrb[0].mxu0
    %5791 = vmatprep.mubr.f32.mxu0 0.0
    %v5792 = vand.u32 %v84, 4294901760
    %5793 = vmatmul.mubr.f32.gmra.mrb[0].mxu0 %v5792
    %v5794 = vpop.f32.mrb[0].mxu0
    %v5795 = vadd.f32 %v4946, %v5794
    %v5796 = vpop.f32.mrb[0].mxu0
    %5797 = vmatprep.mubr.f32.mxu0 0.0
    %v5798 = vand.u32 %v85, 4294901760
    %5799 = vmatmul.mubr.f32.gmra.mrb[0].mxu0 %v5798
    %v5800 = vpop.f32.mrb[0].mxu0
    %v5801 = vadd.f32 %v4952, %v5800
    %v5802 = vpop.f32.mrb[0].mxu0
    %5803 = vmatprep.mubr.f32.mxu0 0.0
    %v5804 = vand.u32 %v86, 4294901760
    %5805 = vmatmul.mubr.f32.gmra.mrb[0].mxu0 %v5804
    %v5806 = vpop.f32.mrb[0].mxu0
    %v5807 = vadd.f32 %v4958, %v5806
    %v5808 = vpop.f32.mrb[0].mxu0
    %5809 = vmatprep.mubr.f32.mxu0 0.0
    %v5810 = vand.u32 %v87, 4294901760
    %5811 = vmatmul.mubr.f32.gmra.mrb[0].mxu0 %v5810
    %v5812 = vpop.f32.mrb[0].mxu0
    %v5813 = vadd.f32 %v4964, %v5812
    %v5814 = vpop.f32.mrb[0].mxu0
    %5815 = vmatprep.mubr.f32.mxu0 0.0
    %v5816 = vand.u32 %v88, 4294901760
    %5817 = vmatmul.mubr.f32.gmra.mrb[0].mxu0 %v5816
    %v5818 = vpop.f32.mrb[0].mxu0
    %v5819 = vadd.f32 %v4970, %v5818
    %v5820 = vpop.f32.mrb[0].mxu0
    %5821 = vmatprep.mubr.f32.mxu0 0.0
    %v5822 = vand.u32 %v89, 4294901760
    %5823 = vmatmul.mubr.f32.gmra.mrb[0].mxu0 %v5822
    %v5824 = vpop.f32.mrb[0].mxu0
    %v5825 = vadd.f32 %v4976, %v5824
    %v5826 = vpop.f32.mrb[0].mxu0
    %5827 = vmatprep.mubr.f32.mxu0 0.0
    %v5828 = vand.u32 %v90, 4294901760
    %5829 = vmatmul.mubr.f32.gmra.mrb[0].mxu0 %v5828
    %v5830 = vpop.f32.mrb[0].mxu0
    %v5831 = vadd.f32 %v4982, %v5830
    %v5832 = vpop.f32.mrb[0].mxu0
    %5833 = vmatprep.mubr.f32.mxu0 0.0
    %v5834 = vand.u32 %v91, 4294901760
    %5835 = vmatmul.mubr.f32.gmra.mrb[0].mxu0 %v5834
    %v5836 = vpop.f32.mrb[0].mxu0
    %v5837 = vadd.f32 %v4988, %v5836
    %v5838 = vpop.f32.mrb[0].mxu0
    %5839 = vmatprep.mubr.f32.mxu0 0.0
    %v5840 = vand.u32 %v92, 4294901760
    %5841 = vmatmul.mubr.f32.gmra.mrb[0].mxu0 %v5840
    %v5842 = vpop.f32.mrb[0].mxu0
    %v5843 = vadd.f32 %v4994, %v5842
    %v5844 = vpop.f32.mrb[0].mxu0
    %5845 = vmatprep.mubr.f32.mxu0 0.0
    %v5846 = vand.u32 %v93, 4294901760
    %5847 = vmatmul.mubr.f32.gmra.mrb[0].mxu0 %v5846
    %v5848 = vpop.f32.mrb[0].mxu0
    %v5849 = vadd.f32 %v5000, %v5848
    %v5850 = vpop.f32.mrb[0].mxu0
    %5851 = vmatprep.mubr.f32.mxu0 0.0
    %v5852 = vand.u32 %v94, 4294901760
    %5853 = vmatmul.mubr.f32.gmra.mrb[0].mxu0 %v5852
    %v5854 = vpop.f32.mrb[0].mxu0
    %v5855 = vadd.f32 %v5006, %v5854
    %v5856 = vpop.f32.mrb[0].mxu0
    %5857 = vmatprep.mubr.f32.mxu0 0.0
    %v5858 = vand.u32 %v95, 4294901760
    %5859 = vmatmul.mubr.f32.gmra.mrb[0].mxu0 %v5858
    %v5860 = vpop.f32.mrb[0].mxu0
    %v5861 = vadd.f32 %v5012, %v5860
    %v5862 = vpop.f32.mrb[0].mxu0
    %5863 = vmatprep.mubr.f32.mxu0 0.0
    %v5864 = vand.u32 %v96, 4294901760
    %5865 = vmatmul.mubr.f32.gmra.mrb[0].mxu0 %v5864
    %v5866 = vpop.f32.mrb[0].mxu0
    %v5867 = vadd.f32 %v5018, %v5866
    %v5868 = vpop.f32.mrb[0].mxu0
    %5869 = vmatprep.mubr.f32.mxu0 0.0
    %v5870 = vand.u32 %v97, 4294901760
    %5871 = vmatmul.mubr.f32.gmra.mrb[0].mxu0 %v5870
    %v5872 = vpop.f32.mrb[0].mxu0
    %v5873 = vadd.f32 %v5024, %v5872
    %v5874 = vpop.f32.mrb[0].mxu0
    %5875 = vmatprep.mubr.f32.mxu0 0.0
    %v5876 = vand.u32 %v98, 4294901760
    %5877 = vmatmul.mubr.f32.gmra.mrb[0].mxu0 %v5876
    %v5878 = vpop.f32.mrb[0].mxu0
    %v5879 = vadd.f32 %v5030, %v5878
    %v5880 = vpop.f32.mrb[0].mxu0
    %5881 = vmatprep.mubr.f32.mxu0 0.0
    %v5882 = vand.u32 %v99, 4294901760
    %5883 = vmatmul.mubr.f32.gmra.mrb[0].mxu0 %v5882
    %v5884 = vpop.f32.mrb[0].mxu0
    %v5885 = vadd.f32 %v5036, %v5884
    %v5886 = vpop.f32.mrb[0].mxu0
    %5887 = vmatprep.mubr.f32.mxu0 0.0
    %v5888 = vand.u32 %v100, 4294901760
    %5889 = vmatmul.mubr.f32.gmra.mrb[0].mxu0 %v5888
    %v5890 = vpop.f32.mrb[0].mxu0
    %v5891 = vadd.f32 %v5042, %v5890
    %v5892 = vpop.f32.mrb[0].mxu0
    %5893 = vmatprep.mubr.f32.mxu0 0.0
    %v5894 = vand.u32 %v101, 4294901760
    %5895 = vmatmul.mubr.f32.gmra.mrb[0].mxu0 %v5894
    %v5896 = vpop.f32.mrb[0].mxu0
    %v5897 = vadd.f32 %v5048, %v5896
    %v5898 = vpop.f32.mrb[0].mxu0
    %5899 = vmatprep.mubr.f32.mxu0 0.0
    %v5900 = vand.u32 %v102, 4294901760
    %5901 = vmatmul.mubr.f32.gmra.mrb[0].mxu0 %v5900
    %v5902 = vpop.f32.mrb[0].mxu0
    %v5903 = vadd.f32 %v5054, %v5902
    %v5904 = vpop.f32.mrb[0].mxu0
    %5905 = vmatprep.mubr.f32.mxu0 0.0
    %v5906 = vand.u32 %v103, 4294901760
    %5907 = vmatmul.mubr.f32.gmra.mrb[0].mxu0 %v5906
    %v5908 = vpop.f32.mrb[0].mxu0
    %v5909 = vadd.f32 %v5060, %v5908
    %v5910 = vpop.f32.mrb[0].mxu0
    %5911 = vmatprep.mubr.f32.mxu0 0.0
    %v5912 = vand.u32 %v104, 4294901760
    %5913 = vmatmul.mubr.f32.gmra.mrb[0].mxu0 %v5912
    %v5914 = vpop.f32.mrb[0].mxu0
    %v5915 = vadd.f32 %v5066, %v5914
    %v5916 = vpop.f32.mrb[0].mxu0
    %5917 = vmatprep.mubr.f32.mxu0 0.0
    %v5918 = vand.u32 %v105, 4294901760
    %5919 = vmatmul.mubr.f32.gmra.mrb[0].mxu0 %v5918
    %v5920 = vpop.f32.mrb[0].mxu0
    %v5921 = vadd.f32 %v5072, %v5920
    %v5922 = vpop.f32.mrb[0].mxu0
    %5923 = vmatprep.mubr.f32.mxu0 0.0
    %v5924 = vand.u32 %v106, 4294901760
    %5925 = vmatmul.mubr.f32.gmra.mrb[0].mxu0 %v5924
    %v5926 = vpop.f32.mrb[0].mxu0
    %v5927 = vadd.f32 %v5078, %v5926
    %v5928 = vpop.f32.mrb[0].mxu0
    %5929 = vmatprep.mubr.f32.mxu0 0.0
    %v5930 = vand.u32 %v107, 4294901760
    %5931 = vmatmul.mubr.f32.gmra.mrb[0].mxu0 %v5930
    %v5932 = vpop.f32.mrb[0].mxu0
    %v5933 = vadd.f32 %v5084, %v5932
    %v5934 = vpop.f32.mrb[0].mxu0
    %5935 = vmatprep.mubr.f32.mxu0 0.0
    %v5936 = vand.u32 %v108, 4294901760
    %5937 = vmatmul.mubr.f32.gmra.mrb[0].mxu0 %v5936
    %v5938 = vpop.f32.mrb[0].mxu0
    %v5939 = vadd.f32 %v5090, %v5938
    %v5940 = vpop.f32.mrb[0].mxu0
    %5941 = vmatprep.mubr.f32.mxu0 0.0
    %v5942 = vand.u32 %v109, 4294901760
    %5943 = vmatmul.mubr.f32.gmra.mrb[0].mxu0 %v5942
    %v5944 = vpop.f32.mrb[0].mxu0
    %v5945 = vadd.f32 %v5096, %v5944
    %v5946 = vpop.f32.mrb[0].mxu0
    %5947 = vmatprep.mubr.f32.mxu0 0.0
    %v5948 = vand.u32 %v110, 4294901760
    %5949 = vmatmul.mubr.f32.gmra.mrb[0].mxu0 %v5948
    %v5950 = vpop.f32.mrb[0].mxu0
    %v5951 = vadd.f32 %v5102, %v5950
    %v5952 = vpop.f32.mrb[0].mxu0
    %5953 = vmatprep.mubr.f32.mxu0 0.0
    %v5954 = vand.u32 %v111, 4294901760
    %5955 = vmatmul.mubr.f32.gmra.mrb[0].mxu0 %v5954
    %v5956 = vpop.f32.mrb[0].mxu0
    %v5957 = vadd.f32 %v5108, %v5956
    %v5958 = vpop.f32.mrb[0].mxu0
    %5959 = vmatprep.mubr.f32.mxu0 0.0
    %v5960 = vand.u32 %v112, 4294901760
    %5961 = vmatmul.mubr.f32.gmra.mrb[0].mxu0 %v5960
    %v5962 = vpop.f32.mrb[0].mxu0
    %v5963 = vadd.f32 %v5114, %v5962
    %v5964 = vpop.f32.mrb[0].mxu0
    %5965 = vmatprep.mubr.f32.mxu0 0.0
    %v5966 = vand.u32 %v113, 4294901760
    %5967 = vmatmul.mubr.f32.gmra.mrb[0].mxu0 %v5966
    %v5968 = vpop.f32.mrb[0].mxu0
    %v5969 = vadd.f32 %v5120, %v5968
    %v5970 = vpop.f32.mrb[0].mxu0
    %5971 = vmatprep.mubr.f32.mxu0 0.0
    %v5972 = vand.u32 %v114, 4294901760
    %5973 = vmatmul.mubr.f32.gmra.mrb[0].mxu0 %v5972
    %v5974 = vpop.f32.mrb[0].mxu0
    %v5975 = vadd.f32 %v5126, %v5974
    %v5976 = vpop.f32.mrb[0].mxu0
    %5977 = vmatprep.mubr.f32.mxu0 0.0
    %v5978 = vand.u32 %v115, 4294901760
    %5979 = vmatmul.mubr.f32.gmra.mrb[0].mxu0 %v5978
    %v5980 = vpop.f32.mrb[0].mxu0
    %v5981 = vadd.f32 %v5132, %v5980
    %v5982 = vpop.f32.mrb[0].mxu0
    %5983 = vmatprep.mubr.f32.mxu0 0.0
    %v5984 = vand.u32 %v116, 4294901760
    %5985 = vmatmul.mubr.f32.gmra.mrb[0].mxu0 %v5984
    %v5986 = vpop.f32.mrb[0].mxu0
    %v5987 = vadd.f32 %v5138, %v5986
    %v5988 = vpop.f32.mrb[0].mxu0
    %5989 = vmatprep.mubr.f32.mxu0 0.0
    %v5990 = vand.u32 %v117, 4294901760
    %5991 = vmatmul.mubr.f32.gmra.mrb[0].mxu0 %v5990
    %v5992 = vpop.f32.mrb[0].mxu0
    %v5993 = vadd.f32 %v5144, %v5992
    %v5994 = vpop.f32.mrb[0].mxu0
    %5995 = vmatprep.mubr.f32.mxu0 0.0
    %v5996 = vand.u32 %v118, 4294901760
    %5997 = vmatmul.mubr.f32.gmra.mrb[0].mxu0 %v5996
    %v5998 = vpop.f32.mrb[0].mxu0
    %v5999 = vadd.f32 %v5150, %v5998
    %v6000 = vpop.f32.mrb[0].mxu0
    %6001 = vmatprep.mubr.f32.mxu0 0.0
    %v6002 = vand.u32 %v119, 4294901760
    %6003 = vmatmul.mubr.f32.gmra.mrb[0].mxu0 %v6002
    %v6004 = vpop.f32.mrb[0].mxu0
    %v6005 = vadd.f32 %v5156, %v6004
    %v6006 = vpop.f32.mrb[0].mxu0
    %6007 = vmatprep.mubr.f32.mxu0 0.0
    %v6008 = vand.u32 %v120, 4294901760
    %6009 = vmatmul.mubr.f32.gmra.mrb[0].mxu0 %v6008
    %v6010 = vpop.f32.mrb[0].mxu0
    %v6011 = vadd.f32 %v5162, %v6010
    %v6012 = vpop.f32.mrb[0].mxu0
    %6013 = vmatprep.mubr.f32.mxu0 0.0
    %v6014 = vand.u32 %v121, 4294901760
    %6015 = vmatmul.mubr.f32.gmra.mrb[0].mxu0 %v6014
    %v6016 = vpop.f32.mrb[0].mxu0
    %v6017 = vadd.f32 %v5168, %v6016
    %v6018 = vpop.f32.mrb[0].mxu0
    %6019 = vmatprep.mubr.f32.mxu0 0.0
    %v6020 = vand.u32 %v122, 4294901760
    %6021 = vmatmul.mubr.f32.gmra.mrb[0].mxu0 %v6020
    %v6022 = vpop.f32.mrb[0].mxu0
    %v6023 = vadd.f32 %v5174, %v6022
    %v6024 = vpop.f32.mrb[0].mxu0
    %6025 = vmatprep.mubr.f32.mxu0 0.0
    %v6026 = vand.u32 %v123, 4294901760
    %6027 = vmatmul.mubr.f32.gmra.mrb[0].mxu0 %v6026
    %v6028 = vpop.f32.mrb[0].mxu0
    %v6029 = vadd.f32 %v5180, %v6028
    %v6030 = vpop.f32.mrb[0].mxu0
    %6031 = vmatprep.mubr.f32.mxu0 0.0
    %v6032 = vand.u32 %v124, 4294901760
    %6033 = vmatmul.mubr.f32.gmra.mrb[0].mxu0 %v6032
    %v6034 = vpop.f32.mrb[0].mxu0
    %v6035 = vadd.f32 %v5186, %v6034
    %v6036 = vpop.f32.mrb[0].mxu0
    %6037 = vmatprep.mubr.f32.mxu0 0.0
    %v6038 = vand.u32 %v125, 4294901760
    %6039 = vmatmul.mubr.f32.gmra.mrb[0].mxu0 %v6038
    %v6040 = vpop.f32.mrb[0].mxu0
    %v6041 = vadd.f32 %v5192, %v6040
    %v6042 = vpop.f32.mrb[0].mxu0
    %6043 = vmatprep.mubr.f32.mxu0 0.0
    %v6044 = vand.u32 %v126, 4294901760
    %6045 = vmatmul.mubr.f32.gmra.mrb[0].mxu0 %v6044
    %v6046 = vpop.f32.mrb[0].mxu0
    %v6047 = vadd.f32 %v5198, %v6046
    %v6048 = vpop.f32.mrb[0].mxu0
    %6049 = vmatprep.mubr.f32.mxu0 0.0
    %v6050 = vand.u32 %v127, 4294901760
    %6051 = vmatmul.mubr.f32.gmra.mrb[0].mxu0 %v6050
    %v6052 = vpop.f32.mrb[0].mxu0
    %v6053 = vadd.f32 %v5204, %v6052
    %v6054 = vpop.f32.mrb[0].mxu0
    %6055 = vmatprep.mubr.f32.mxu0 0.0
    %v6056 = vand.u32 %v128, 4294901760
    %6057 = vmatmul.mubr.f32.gmra.mrb[0].mxu0 %v6056
    %v6058 = vpop.f32.mrb[0].mxu0
    %v6059 = vadd.f32 %v5210, %v6058
    %v6060 = vpop.f32.mrb[0].mxu0
    %6061 = vmatprep.mubr.f32.mxu0 0.0
    %v6062 = vand.u32 %v129, 4294901760
    %6063 = vmatmul.mubr.f32.gmra.mrb[0].mxu0 %v6062
    %v6064 = vpop.f32.mrb[0].mxu0
    %v6065 = vadd.f32 %v5216, %v6064
    %v6066 = vpop.f32.mrb[0].mxu0
    %6067 = vmatprep.mubr.f32.mxu0 0.0
    %v6068 = vand.u32 %v130, 4294901760
    %6069 = vmatmul.mubr.f32.gmra.mrb[0].mxu0 %v6068
    %v6070 = vpop.f32.mrb[0].mxu0
    %v6071 = vadd.f32 %v5222, %v6070
    %v6072 = vpop.f32.mrb[0].mxu0
    %6073 = vmatprep.mubr.f32.mxu0 0.0
    %v6074 = vand.u32 %v131, 4294901760
    %6075 = vmatmul.mubr.f32.gmra.mrb[0].mxu0 %v6074
    %v6076 = vpop.f32.mrb[0].mxu0
    %v6077 = vadd.f32 %v5228, %v6076
    %v6078 = vpop.f32.mrb[0].mxu0
    %6079 = vmatprep.mubr.f32.mxu0 0.0
    %v6080 = vand.u32 %v132, 4294901760
    %6081 = vmatmul.mubr.f32.gmra.mrb[0].mxu0 %v6080
    %v6082 = vpop.f32.mrb[0].mxu0
    %v6083 = vadd.f32 %v5234, %v6082
    %v6084 = vpop.f32.mrb[0].mxu0
    %6085 = vmatprep.mubr.f32.mxu0 0.0
    %v6086 = vand.u32 %v133, 4294901760
    %6087 = vmatmul.mubr.f32.gmra.mrb[0].mxu0 %v6086
    %v6088 = vpop.f32.mrb[0].mxu0
    %v6089 = vadd.f32 %v5240, %v6088
    %v6090 = vpop.f32.mrb[0].mxu0
    %6091 = vmatprep.mubr.f32.mxu0 0.0
    %v6092 = vand.u32 %v134, 4294901760
    %6093 = vmatmul.mubr.f32.gmra.mrb[0].mxu0 %v6092
    %v6094 = vpop.f32.mrb[0].mxu0
    %v6095 = vadd.f32 %v5246, %v6094
    %v6096 = vpop.f32.mrb[0].mxu0
    %6097 = vmatprep.mubr.f32.mxu0 0.0
    %v6098 = vand.u32 %v135, 4294901760
    %6099 = vmatmul.mubr.f32.gmra.mrb[0].mxu0 %v6098
    %v6100 = vpop.f32.mrb[0].mxu0
    %v6101 = vadd.f32 %v5252, %v6100
    %v6102 = vpop.f32.mrb[0].mxu0
    %6103 = vmatprep.mubr.f32.mxu0 0.0
    %v6104 = vand.u32 %v136, 4294901760
    %6105 = vmatmul.mubr.f32.gmra.mrb[0].mxu0 %v6104
    %v6106 = vpop.f32.mrb[0].mxu0
    %v6107 = vadd.f32 %v5258, %v6106
    %v6108 = vpop.f32.mrb[0].mxu0
    %6109 = vmatprep.mubr.f32.mxu0 0.0
    %v6110 = vand.u32 %v137, 4294901760
    %6111 = vmatmul.mubr.f32.gmra.mrb[0].mxu0 %v6110
    %v6112 = vpop.f32.mrb[0].mxu0
    %v6113 = vadd.f32 %v5264, %v6112
    %v6114 = vpop.f32.mrb[0].mxu0
    %6115 = vmatprep.mubr.f32.mxu0 0.0
    %v6116 = vand.u32 %v138, 4294901760
    %6117 = vmatmul.mubr.f32.gmra.mrb[0].mxu0 %v6116
    %v6118 = vpop.f32.mrb[0].mxu0
    %v6119 = vadd.f32 %v5270, %v6118
    %v6120 = vpop.f32.mrb[0].mxu0
    %6121 = vmatprep.mubr.f32.mxu0 0.0
    %v6122 = vand.u32 %v139, 4294901760
    %6123 = vmatmul.mubr.f32.gmra.mrb[0].mxu0 %v6122
    %v6124 = vpop.f32.mrb[0].mxu0
    %v6125 = vadd.f32 %v5276, %v6124
    %v6126 = vpop.f32.mrb[0].mxu0
    %6127 = vmatprep.mubr.f32.mxu0 0.0
    %v6128 = vand.u32 %v140, 4294901760
    %6129 = vmatmul.mubr.f32.gmra.mrb[0].mxu0 %v6128
    %v6130 = vpop.f32.mrb[0].mxu0
    %v6131 = vadd.f32 %v5282, %v6130
    %v6132 = vpop.f32.mrb[0].mxu0
    %6133 = vmatprep.mubr.f32.mxu0 0.0
    %v6134 = vand.u32 %v141, 4294901760
    %6135 = vmatmul.mubr.f32.gmra.mrb[0].mxu0 %v6134
    %v6136 = vpop.f32.mrb[0].mxu0
    %v6137 = vadd.f32 %v5288, %v6136
    %v6138 = vpop.f32.mrb[0].mxu0
    %6139 = vmatprep.mubr.f32.mxu0 0.0
    %v6140 = vand.u32 %v142, 4294901760
    %6141 = vmatmul.mubr.f32.gmra.mrb[0].mxu0 %v6140
    %v6142 = vpop.f32.mrb[0].mxu0
    %v6143 = vadd.f32 %v5294, %v6142
    %v6144 = vpop.f32.mrb[0].mxu0
    %6145 = vmatprep.mubr.f32.mxu0 0.0
    %v6146 = vand.u32 %v143, 4294901760
    %6147 = vmatmul.mubr.f32.gmra.mrb[0].mxu0 %v6146
    %v6148 = vpop.f32.mrb[0].mxu0
    %v6149 = vadd.f32 %v5300, %v6148
    %v6150 = vpop.f32.mrb[0].mxu0
    %6151 = vmatprep.mubr.f32.mxu0 0.0
    %v6152 = vand.u32 %v144, 4294901760
    %6153 = vmatmul.mubr.f32.gmra.mrb[0].mxu0 %v6152
    %v6154 = vpop.f32.mrb[0].mxu0
    %v6155 = vadd.f32 %v5306, %v6154
    %v6156 = vpop.f32.mrb[0].mxu0
    %6157 = vmatprep.mubr.f32.mxu0 0.0
    %v6158 = vand.u32 %v145, 4294901760
    %6159 = vmatmul.mubr.f32.gmra.mrb[0].mxu0 %v6158
    %v6160 = vpop.f32.mrb[0].mxu0
    %v6161 = vadd.f32 %v5312, %v6160
    %v6162 = vpop.f32.mrb[0].mxu0
    %6163 = vmatprep.mubr.f32.mxu0 0.0
    %v6164 = vand.u32 %v146, 4294901760
    %6165 = vmatmul.mubr.f32.gmra.mrb[0].mxu0 %v6164
    %v6166 = vpop.f32.mrb[0].mxu0
    %v6167 = vadd.f32 %v5318, %v6166
    %v6168 = vpop.f32.mrb[0].mxu0
    %6169 = vmatprep.mubr.f32.mxu0 0.0
    %v6170 = vand.u32 %v147, 4294901760
    %6171 = vmatmul.mubr.f32.gmra.mrb[0].mxu0 %v6170
    %v6172 = vpop.f32.mrb[0].mxu0
    %v6173 = vadd.f32 %v5324, %v6172
    %v6174 = vpop.f32.mrb[0].mxu0
    %6175 = vmatprep.mubr.f32.mxu0 0.0
    %v6176 = vand.u32 %v148, 4294901760
    %6177 = vmatmul.mubr.f32.gmra.mrb[0].mxu0 %v6176
    %v6178 = vpop.f32.mrb[0].mxu0
    %v6179 = vadd.f32 %v5330, %v6178
    %v6180 = vpop.f32.mrb[0].mxu0
    %6181 = vmatprep.mubr.f32.mxu0 0.0
    %v6182 = vand.u32 %v149, 4294901760
    %6183 = vmatmul.mubr.f32.gmra.mrb[0].mxu0 %v6182
    %v6184 = vpop.f32.mrb[0].mxu0
    %v6185 = vadd.f32 %v5336, %v6184
    %v6186 = vpop.f32.mrb[0].mxu0
    %6187 = vmatprep.mubr.f32.mxu0 0.0
    %v6188 = vand.u32 %v150, 4294901760
    %6189 = vmatmul.mubr.f32.gmra.mrb[0].mxu0 %v6188
    %v6190 = vpop.f32.mrb[0].mxu0
    %v6191 = vadd.f32 %v5342, %v6190
    %v6192 = vpop.f32.mrb[0].mxu0
    %6193 = vmatprep.mubr.f32.mxu0 0.0
    %v6194 = vand.u32 %v151, 4294901760
    %6195 = vmatmul.mubr.f32.gmra.mrb[0].mxu0 %v6194
    %v6196 = vpop.f32.mrb[0].mxu0
    %v6197 = vadd.f32 %v5348, %v6196
    %v6198 = vpop.f32.mrb[0].mxu0
    %6199 = vmatprep.mubr.f32.mxu0 0.0
    %v6200 = vand.u32 %v152, 4294901760
    %6201 = vmatmul.mubr.f32.gmra.mrb[0].mxu0 %v6200
    %v6202 = vpop.f32.mrb[0].mxu0
    %v6203 = vadd.f32 %v5354, %v6202
    %v6204 = vpop.f32.mrb[0].mxu0
    %6205 = vmatprep.mubr.f32.mxu0 0.0
    %v6206 = vand.u32 %v153, 4294901760
    %6207 = vmatmul.mubr.f32.gmra.mrb[0].mxu0 %v6206
    %v6208 = vpop.f32.mrb[0].mxu0
    %v6209 = vadd.f32 %v5360, %v6208
    %v6210 = vpop.f32.mrb[0].mxu0
    %6211 = vmatprep.mubr.f32.mxu0 0.0
    %v6212 = vand.u32 %v154, 4294901760
    %6213 = vmatmul.mubr.f32.gmra.mrb[0].mxu0 %v6212
    %v6214 = vpop.f32.mrb[0].mxu0
    %v6215 = vadd.f32 %v5366, %v6214
    %v6216 = vpop.f32.mrb[0].mxu0
    %6217 = vmatprep.mubr.f32.mxu0 0.0
    %v6218 = vand.u32 %v155, 4294901760
    %6219 = vmatmul.mubr.f32.gmra.mrb[0].mxu0 %v6218
    %v6220 = vpop.f32.mrb[0].mxu0
    %v6221 = vadd.f32 %v5372, %v6220
    %v6222 = vpop.f32.mrb[0].mxu0
    %6223 = vmatprep.mubr.f32.mxu0 0.0
    %v6224 = vand.u32 %v156, 4294901760
    %6225 = vmatmul.mubr.f32.gmra.mrb[0].mxu0 %v6224
    %v6226 = vpop.f32.mrb[0].mxu0
    %v6227 = vadd.f32 %v5378, %v6226
    %v6228 = vpop.f32.mrb[0].mxu0
    %6229 = vmatprep.mubr.f32.mxu0 0.0
    %v6230 = vand.u32 %v157, 4294901760
    %6231 = vmatmul.mubr.f32.gmra.mrb[0].mxu0 %v6230
    %v6232 = vpop.f32.mrb[0].mxu0
    %v6233 = vadd.f32 %v5384, %v6232
    %v6234 = vpop.f32.mrb[0].mxu0
    %6235 = vmatprep.mubr.f32.mxu0 0.0
    %v6236 = vand.u32 %v158, 4294901760
    %6237 = vmatmul.mubr.f32.gmra.mrb[0].mxu0 %v6236
    %v6238 = vpop.f32.mrb[0].mxu0
    %v6239 = vadd.f32 %v5390, %v6238
    %v6240 = vpop.f32.mrb[0].mxu0
    %6241 = vmatprep.mubr.f32.mxu0 0.0
    %v6242 = vand.u32 %v159, 4294901760
    %6243 = vmatmul.mubr.f32.gmra.mrb[0].mxu0 %v6242
    %v6244 = vpop.f32.mrb[0].mxu0
    %v6245 = vadd.f32 %v5396, %v6244
    %v6246 = vpop.f32.mrb[0].mxu0
    %6247 = vmatprep.mubr.f32.mxu0 0.0
    %v6248 = vand.u32 %v160, 4294901760
    %6249 = vmatmul.mubr.f32.gmra.mrb[0].mxu0 %v6248
    %v6250 = vpop.f32.mrb[0].mxu0
    %v6251 = vadd.f32 %v5402, %v6250
    %v6252 = vpop.f32.mrb[0].mxu0
    %6253 = vmatprep.mubr.f32.mxu0 0.0
    %v6254 = vand.u32 %v161, 4294901760
    %6255 = vmatmul.mubr.f32.gmra.mrb[0].mxu0 %v6254
    %v6256 = vpop.f32.mrb[0].mxu0
    %v6257 = vadd.f32 %v5408, %v6256
    %v6258 = vpop.f32.mrb[0].mxu0
    %6259 = vmatprep.mubr.f32.mxu0 0.0
    %v6260 = vand.u32 %v162, 4294901760
    %6261 = vmatmul.mubr.f32.gmra.mrb[0].mxu0 %v6260
    %v6262 = vpop.f32.mrb[0].mxu0
    %v6263 = vadd.f32 %v5414, %v6262
    %v6264 = vpop.f32.mrb[0].mxu0
    %6265 = vmatprep.mubr.f32.mxu0 0.0
    %v6266 = vand.u32 %v163, 4294901760
    %6267 = vmatmul.mubr.f32.gmra.mrb[0].mxu0 %v6266
    %v6268 = vpop.f32.mrb[0].mxu0
    %v6269 = vadd.f32 %v5420, %v6268
    %v6270 = vpop.f32.mrb[0].mxu0
    %6271 = vmatprep.mubr.f32.mxu0 0.0
    %v6272 = vand.u32 %v164, 4294901760
    %6273 = vmatmul.mubr.f32.gmra.mrb[0].mxu0 %v6272
    %v6274 = vpop.f32.mrb[0].mxu0
    %v6275 = vadd.f32 %v5426, %v6274
    %v6276 = vpop.f32.mrb[0].mxu0
    %6277 = vmatprep.mubr.f32.mxu0 0.0
    %v6278 = vand.u32 %v165, 4294901760
    %6279 = vmatmul.mubr.f32.gmra.mrb[0].mxu0 %v6278
    %v6280 = vpop.f32.mrb[0].mxu0
    %v6281 = vadd.f32 %v5432, %v6280
    %v6282 = vpop.f32.mrb[0].mxu0
    %6283 = vdwg.mxu0
    %v6284 = vld [vmem:[%s1] sm:$0xff]
    %v6285 = vld [vmem:[%s3] sm:$0xff]
    %v6286 = vld [vmem:[%s3 + $0x8] sm:$0xff]
    %v6287 = vld [vmem:[%s3 + $0x10] sm:$0xff]
    %v6288 = vld [vmem:[%s3 + $0x18] sm:$0xff]
    %v6289 = vld [vmem:[%s3 + $0x20] sm:$0xff]
    %v6290 = vld [vmem:[%s3 + $0x28] sm:$0xff]
    %v6291 = vld [vmem:[%s3 + $0x30] sm:$0xff]
    %v6292 = vld [vmem:[%s3 + $0x38] sm:$0xff]
    %v6293 = vld [vmem:[%s3 + $0x40] sm:$0xff]
    %v6294 = vld [vmem:[%s3 + $0x48] sm:$0xff]
    %v6295 = vld [vmem:[%s3 + $0x50] sm:$0xff]
    %v6296 = vld [vmem:[%s3 + $0x58] sm:$0xff]
    %v6297 = vld [vmem:[%s3 + $0x60] sm:$0xff]
    %v6298 = vld [vmem:[%s3 + $0x68] sm:$0xff]
    %v6299 = vld [vmem:[%s3 + $0x70] sm:$0xff]
    %v6300 = vld [vmem:[%s3 + $0x78] sm:$0xff]
    %6301 = vmatprep.subr.mxu0 0.0
    %v6302 = vand.u32 %v6285, 4294901760
    %6303 = vmatpush1.msra.mxu0 %v6302
    %6304 = vmatprep.subr.mxu0 0.0
    %v6305 = vand.u32 %v6286, 4294901760
    %6306 = vmatpush1.msra.mxu0 %v6305
    %6307 = vmatprep.subr.mxu0 0.0
    %v6308 = vand.u32 %v6287, 4294901760
    %6309 = vmatpush1.msra.mxu0 %v6308
    %6310 = vmatprep.subr.mxu0 0.0
    %v6311 = vand.u32 %v6288, 4294901760
    %6312 = vmatpush1.msra.mxu0 %v6311
    %6313 = vmatprep.subr.mxu0 0.0
    %v6314 = vand.u32 %v6289, 4294901760
    %6315 = vmatpush1.msra.mxu0 %v6314
    %6316 = vmatprep.subr.mxu0 0.0
    %v6317 = vand.u32 %v6290, 4294901760
    %6318 = vmatpush1.msra.mxu0 %v6317
    %6319 = vmatprep.subr.mxu0 0.0
    %v6320 = vand.u32 %v6291, 4294901760
    %6321 = vmatpush1.msra.mxu0 %v6320
    %6322 = vmatprep.subr.mxu0 0.0
    %v6323 = vand.u32 %v6292, 4294901760
    %6324 = vmatpush1.msra.mxu0 %v6323
    %6325 = vmatprep.subr.mxu0 0.0
    %v6326 = vand.u32 %v6293, 4294901760
    %6327 = vmatpush1.msra.mxu0 %v6326
    %6328 = vmatprep.subr.mxu0 0.0
    %v6329 = vand.u32 %v6294, 4294901760
    %6330 = vmatpush1.msra.mxu0 %v6329
    %6331 = vmatprep.subr.mxu0 0.0
    %v6332 = vand.u32 %v6295, 4294901760
    %6333 = vmatpush1.msra.mxu0 %v6332
    %6334 = vmatprep.subr.mxu0 0.0
    %v6335 = vand.u32 %v6296, 4294901760
    %6336 = vmatpush1.msra.mxu0 %v6335
    %6337 = vmatprep.subr.mxu0 0.0
    %v6338 = vand.u32 %v6297, 4294901760
    %6339 = vmatpush1.msra.mxu0 %v6338
    %6340 = vmatprep.subr.mxu0 0.0
    %v6341 = vand.u32 %v6298, 4294901760
    %6342 = vmatpush1.msra.mxu0 %v6341
    %6343 = vmatprep.subr.mxu0 0.0
    %v6344 = vand.u32 %v6299, 4294901760
    %6345 = vmatpush1.msra.mxu0 %v6344
    %6346 = vmatprep.subr.mxu0 0.0
    %v6347 = vand.u32 %v6300, 4294901760
    %6348 = vmatpush1.msra.mxu0 %v6347
    %6349 = vmatprep.subr.mxu0 0.0
    %6350 = vmatpush1.msra.mxu0 0.0
    %6351 = vmatprep.subr.mxu0 0.0
    %6352 = vmatpush1.msra.mxu0 0.0
    %6353 = vmatprep.subr.mxu0 0.0
    %6354 = vmatpush1.msra.mxu0 0.0
    %6355 = vmatprep.subr.mxu0 0.0
    %6356 = vmatpush1.msra.mxu0 0.0
    %6357 = vmatprep.subr.mxu0 0.0
    %6358 = vmatpush1.msra.mxu0 0.0
    %6359 = vmatprep.subr.mxu0 0.0
    %6360 = vmatpush1.msra.mxu0 0.0
    %6361 = vmatprep.subr.mxu0 0.0
    %6362 = vmatpush1.msra.mxu0 0.0
    %6363 = vmatprep.subr.mxu0 0.0
    %6364 = vmatpush1.msra.mxu0 0.0
    %6365 = vmatprep.subr.mxu0 0.0
    %6366 = vmatpush1.msra.mxu0 0.0
    %6367 = vmatprep.subr.mxu0 0.0
    %6368 = vmatpush1.msra.mxu0 0.0
    %6369 = vmatprep.subr.mxu0 0.0
    %6370 = vmatpush1.msra.mxu0 0.0
    %6371 = vmatprep.subr.mxu0 0.0
    %6372 = vmatpush1.msra.mxu0 0.0
    %6373 = vmatprep.subr.mxu0 0.0
    %6374 = vmatpush1.msra.mxu0 0.0
    %6375 = vmatprep.subr.mxu0 0.0
    %6376 = vmatpush1.msra.mxu0 0.0
    %6377 = vmatprep.subr.mxu0 0.0
    %6378 = vmatpush1.msra.mxu0 0.0
    %6379 = vmatprep.subr.mxu0 0.0
    %6380 = vmatpush1.msra.mxu0 0.0
    %6381 = vmatprep.mubr.f32.mxu0 0.0
    %v6382 = vand.u32 %v6284, 4294901760
    %v6383 = vsub.f32 %v6284, %v6382
    %v6384 = vand.u32 %v6383, 4294901760
    %v6385 = vsub.f32 %v6383, %v6384
    %v6386 = vand.u32 %v6385, 4294901760
    %6387 = vmatmul.mubr.f32.gmra.mrb[0].mxu0 %v6386
    %v6388 = vpop.f32.mrb[0].mxu0
    %v6389 = vadd.f32 0.0, %v6388
    %v6390 = vpop.f32.mrb[0].mxu0
    %6391 = vdwg.mxu0
    %6392 = vmatprep.subr.mxu0 0.0
    %v6393 = vand.u32 %v6285, 4294901760
    %v6394 = vsub.f32 %v6285, %v6393
    %v6395 = vand.u32 %v6394, 4294901760
    %v6396 = vsub.f32 %v6394, %v6395
    %v6397 = vand.u32 %v6396, 4294901760
    %6398 = vmatpush1.msra.mxu0 %v6397
    %6399 = vmatprep.subr.mxu0 0.0
    %v6400 = vand.u32 %v6286, 4294901760
    %v6401 = vsub.f32 %v6286, %v6400
    %v6402 = vand.u32 %v6401, 4294901760
    %v6403 = vsub.f32 %v6401, %v6402
    %v6404 = vand.u32 %v6403, 4294901760
    %6405 = vmatpush1.msra.mxu0 %v6404
    %6406 = vmatprep.subr.mxu0 0.0
    %v6407 = vand.u32 %v6287, 4294901760
    %v6408 = vsub.f32 %v6287, %v6407
    %v6409 = vand.u32 %v6408, 4294901760
    %v6410 = vsub.f32 %v6408, %v6409
    %v6411 = vand.u32 %v6410, 4294901760
    %6412 = vmatpush1.msra.mxu0 %v6411
    %6413 = vmatprep.subr.mxu0 0.0
    %v6414 = vand.u32 %v6288, 4294901760
    %v6415 = vsub.f32 %v6288, %v6414
    %v6416 = vand.u32 %v6415, 4294901760
    %v6417 = vsub.f32 %v6415, %v6416
    %v6418 = vand.u32 %v6417, 4294901760
    %6419 = vmatpush1.msra.mxu0 %v6418
    %6420 = vmatprep.subr.mxu0 0.0
    %v6421 = vand.u32 %v6289, 4294901760
    %v6422 = vsub.f32 %v6289, %v6421
    %v6423 = vand.u32 %v6422, 4294901760
    %v6424 = vsub.f32 %v6422, %v6423
    %v6425 = vand.u32 %v6424, 4294901760
    %6426 = vmatpush1.msra.mxu0 %v6425
    %6427 = vmatprep.subr.mxu0 0.0
    %v6428 = vand.u32 %v6290, 4294901760
    %v6429 = vsub.f32 %v6290, %v6428
    %v6430 = vand.u32 %v6429, 4294901760
    %v6431 = vsub.f32 %v6429, %v6430
    %v6432 = vand.u32 %v6431, 4294901760
    %6433 = vmatpush1.msra.mxu0 %v6432
    %6434 = vmatprep.subr.mxu0 0.0
    %v6435 = vand.u32 %v6291, 4294901760
    %v6436 = vsub.f32 %v6291, %v6435
    %v6437 = vand.u32 %v6436, 4294901760
    %v6438 = vsub.f32 %v6436, %v6437
    %v6439 = vand.u32 %v6438, 4294901760
    %6440 = vmatpush1.msra.mxu0 %v6439
    %6441 = vmatprep.subr.mxu0 0.0
    %v6442 = vand.u32 %v6292, 4294901760
    %v6443 = vsub.f32 %v6292, %v6442
    %v6444 = vand.u32 %v6443, 4294901760
    %v6445 = vsub.f32 %v6443, %v6444
    %v6446 = vand.u32 %v6445, 4294901760
    %6447 = vmatpush1.msra.mxu0 %v6446
    %6448 = vmatprep.subr.mxu0 0.0
    %v6449 = vand.u32 %v6293, 4294901760
    %v6450 = vsub.f32 %v6293, %v6449
    %v6451 = vand.u32 %v6450, 4294901760
    %v6452 = vsub.f32 %v6450, %v6451
    %v6453 = vand.u32 %v6452, 4294901760
    %6454 = vmatpush1.msra.mxu0 %v6453
    %6455 = vmatprep.subr.mxu0 0.0
    %v6456 = vand.u32 %v6294, 4294901760
    %v6457 = vsub.f32 %v6294, %v6456
    %v6458 = vand.u32 %v6457, 4294901760
    %v6459 = vsub.f32 %v6457, %v6458
    %v6460 = vand.u32 %v6459, 4294901760
    %6461 = vmatpush1.msra.mxu0 %v6460
    %6462 = vmatprep.subr.mxu0 0.0
    %v6463 = vand.u32 %v6295, 4294901760
    %v6464 = vsub.f32 %v6295, %v6463
    %v6465 = vand.u32 %v6464, 4294901760
    %v6466 = vsub.f32 %v6464, %v6465
    %v6467 = vand.u32 %v6466, 4294901760
    %6468 = vmatpush1.msra.mxu0 %v6467
    %6469 = vmatprep.subr.mxu0 0.0
    %v6470 = vand.u32 %v6296, 4294901760
    %v6471 = vsub.f32 %v6296, %v6470
    %v6472 = vand.u32 %v6471, 4294901760
    %v6473 = vsub.f32 %v6471, %v6472
    %v6474 = vand.u32 %v6473, 4294901760
    %6475 = vmatpush1.msra.mxu0 %v6474
    %6476 = vmatprep.subr.mxu0 0.0
    %v6477 = vand.u32 %v6297, 4294901760
    %v6478 = vsub.f32 %v6297, %v6477
    %v6479 = vand.u32 %v6478, 4294901760
    %v6480 = vsub.f32 %v6478, %v6479
    %v6481 = vand.u32 %v6480, 4294901760
    %6482 = vmatpush1.msra.mxu0 %v6481
    %6483 = vmatprep.subr.mxu0 0.0
    %v6484 = vand.u32 %v6298, 4294901760
    %v6485 = vsub.f32 %v6298, %v6484
    %v6486 = vand.u32 %v6485, 4294901760
    %v6487 = vsub.f32 %v6485, %v6486
    %v6488 = vand.u32 %v6487, 4294901760
    %6489 = vmatpush1.msra.mxu0 %v6488
    %6490 = vmatprep.subr.mxu0 0.0
    %v6491 = vand.u32 %v6299, 4294901760
    %v6492 = vsub.f32 %v6299, %v6491
    %v6493 = vand.u32 %v6492, 4294901760
    %v6494 = vsub.f32 %v6492, %v6493
    %v6495 = vand.u32 %v6494, 4294901760
    %6496 = vmatpush1.msra.mxu0 %v6495
    %6497 = vmatprep.subr.mxu0 0.0
    %v6498 = vand.u32 %v6300, 4294901760
    %v6499 = vsub.f32 %v6300, %v6498
    %v6500 = vand.u32 %v6499, 4294901760
    %v6501 = vsub.f32 %v6499, %v6500
    %v6502 = vand.u32 %v6501, 4294901760
    %6503 = vmatpush1.msra.mxu0 %v6502
    %6504 = vmatprep.subr.mxu0 0.0
    %6505 = vmatpush1.msra.mxu0 0.0
    %6506 = vmatprep.subr.mxu0 0.0
    %6507 = vmatpush1.msra.mxu0 0.0
    %6508 = vmatprep.subr.mxu0 0.0
    %6509 = vmatpush1.msra.mxu0 0.0
    %6510 = vmatprep.subr.mxu0 0.0
    %6511 = vmatpush1.msra.mxu0 0.0
    %6512 = vmatprep.subr.mxu0 0.0
    %6513 = vmatpush1.msra.mxu0 0.0
    %6514 = vmatprep.subr.mxu0 0.0
    %6515 = vmatpush1.msra.mxu0 0.0
    %6516 = vmatprep.subr.mxu0 0.0
    %6517 = vmatpush1.msra.mxu0 0.0
    %6518 = vmatprep.subr.mxu0 0.0
    %6519 = vmatpush1.msra.mxu0 0.0
    %6520 = vmatprep.subr.mxu0 0.0
    %6521 = vmatpush1.msra.mxu0 0.0
    %6522 = vmatprep.subr.mxu0 0.0
    %6523 = vmatpush1.msra.mxu0 0.0
    %6524 = vmatprep.subr.mxu0 0.0
    %6525 = vmatpush1.msra.mxu0 0.0
    %6526 = vmatprep.subr.mxu0 0.0
    %6527 = vmatpush1.msra.mxu0 0.0
    %6528 = vmatprep.subr.mxu0 0.0
    %6529 = vmatpush1.msra.mxu0 0.0
    %6530 = vmatprep.subr.mxu0 0.0
    %6531 = vmatpush1.msra.mxu0 0.0
    %6532 = vmatprep.subr.mxu0 0.0
    %6533 = vmatpush1.msra.mxu0 0.0
    %6534 = vmatprep.subr.mxu0 0.0
    %6535 = vmatpush1.msra.mxu0 0.0
    %6536 = vmatprep.mubr.f32.mxu0 0.0
    %v6537 = vand.u32 %v6284, 4294901760
    %6538 = vmatmul.mubr.f32.gmra.mrb[0].mxu0 %v6537
    %v6539 = vpop.f32.mrb[0].mxu0
    %v6540 = vadd.f32 %v6389, %v6539
    %v6541 = vpop.f32.mrb[0].mxu0
    %6542 = vdwg.mxu0
    %6543 = vmatprep.subr.mxu0 0.0
    %v6544 = vand.u32 %v6285, 4294901760
    %v6545 = vsub.f32 %v6285, %v6544
    %6546 = vmatpush1.msra.mxu0 %v6545
    %6547 = vmatprep.subr.mxu0 0.0
    %v6548 = vand.u32 %v6286, 4294901760
    %v6549 = vsub.f32 %v6286, %v6548
    %6550 = vmatpush1.msra.mxu0 %v6549
    %6551 = vmatprep.subr.mxu0 0.0
    %v6552 = vand.u32 %v6287, 4294901760
    %v6553 = vsub.f32 %v6287, %v6552
    %6554 = vmatpush1.msra.mxu0 %v6553
    %6555 = vmatprep.subr.mxu0 0.0
    %v6556 = vand.u32 %v6288, 4294901760
    %v6557 = vsub.f32 %v6288, %v6556
    %6558 = vmatpush1.msra.mxu0 %v6557
    %6559 = vmatprep.subr.mxu0 0.0
    %v6560 = vand.u32 %v6289, 4294901760
    %v6561 = vsub.f32 %v6289, %v6560
    %6562 = vmatpush1.msra.mxu0 %v6561
    %6563 = vmatprep.subr.mxu0 0.0
    %v6564 = vand.u32 %v6290, 4294901760
    %v6565 = vsub.f32 %v6290, %v6564
    %6566 = vmatpush1.msra.mxu0 %v6565
    %6567 = vmatprep.subr.mxu0 0.0
    %v6568 = vand.u32 %v6291, 4294901760
    %v6569 = vsub.f32 %v6291, %v6568
    %6570 = vmatpush1.msra.mxu0 %v6569
    %6571 = vmatprep.subr.mxu0 0.0
    %v6572 = vand.u32 %v6292, 4294901760
    %v6573 = vsub.f32 %v6292, %v6572
    %6574 = vmatpush1.msra.mxu0 %v6573
    %6575 = vmatprep.subr.mxu0 0.0
    %v6576 = vand.u32 %v6293, 4294901760
    %v6577 = vsub.f32 %v6293, %v6576
    %6578 = vmatpush1.msra.mxu0 %v6577
    %6579 = vmatprep.subr.mxu0 0.0
    %v6580 = vand.u32 %v6294, 4294901760
    %v6581 = vsub.f32 %v6294, %v6580
    %6582 = vmatpush1.msra.mxu0 %v6581
    %6583 = vmatprep.subr.mxu0 0.0
    %v6584 = vand.u32 %v6295, 4294901760
    %v6585 = vsub.f32 %v6295, %v6584
    %6586 = vmatpush1.msra.mxu0 %v6585
    %6587 = vmatprep.subr.mxu0 0.0
    %v6588 = vand.u32 %v6296, 4294901760
    %v6589 = vsub.f32 %v6296, %v6588
    %6590 = vmatpush1.msra.mxu0 %v6589
    %6591 = vmatprep.subr.mxu0 0.0
    %v6592 = vand.u32 %v6297, 4294901760
    %v6593 = vsub.f32 %v6297, %v6592
    %6594 = vmatpush1.msra.mxu0 %v6593
    %6595 = vmatprep.subr.mxu0 0.0
    %v6596 = vand.u32 %v6298, 4294901760
    %v6597 = vsub.f32 %v6298, %v6596
    %6598 = vmatpush1.msra.mxu0 %v6597
    %6599 = vmatprep.subr.mxu0 0.0
    %v6600 = vand.u32 %v6299, 4294901760
    %v6601 = vsub.f32 %v6299, %v6600
    %6602 = vmatpush1.msra.mxu0 %v6601
    %6603 = vmatprep.subr.mxu0 0.0
    %v6604 = vand.u32 %v6300, 4294901760
    %v6605 = vsub.f32 %v6300, %v6604
    %6606 = vmatpush1.msra.mxu0 %v6605
    %6607 = vmatprep.subr.mxu0 0.0
    %6608 = vmatpush1.msra.mxu0 0.0
    %6609 = vmatprep.subr.mxu0 0.0
    %6610 = vmatpush1.msra.mxu0 0.0
    %6611 = vmatprep.subr.mxu0 0.0
    %6612 = vmatpush1.msra.mxu0 0.0
    %6613 = vmatprep.subr.mxu0 0.0
    %6614 = vmatpush1.msra.mxu0 0.0
    %6615 = vmatprep.subr.mxu0 0.0
    %6616 = vmatpush1.msra.mxu0 0.0
    %6617 = vmatprep.subr.mxu0 0.0
    %6618 = vmatpush1.msra.mxu0 0.0
    %6619 = vmatprep.subr.mxu0 0.0
    %6620 = vmatpush1.msra.mxu0 0.0
    %6621 = vmatprep.subr.mxu0 0.0
    %6622 = vmatpush1.msra.mxu0 0.0
    %6623 = vmatprep.subr.mxu0 0.0
    %6624 = vmatpush1.msra.mxu0 0.0
    %6625 = vmatprep.subr.mxu0 0.0
    %6626 = vmatpush1.msra.mxu0 0.0
    %6627 = vmatprep.subr.mxu0 0.0
    %6628 = vmatpush1.msra.mxu0 0.0
    %6629 = vmatprep.subr.mxu0 0.0
    %6630 = vmatpush1.msra.mxu0 0.0
    %6631 = vmatprep.subr.mxu0 0.0
    %6632 = vmatpush1.msra.mxu0 0.0
    %6633 = vmatprep.subr.mxu0 0.0
    %6634 = vmatpush1.msra.mxu0 0.0
    %6635 = vmatprep.subr.mxu0 0.0
    %6636 = vmatpush1.msra.mxu0 0.0
    %6637 = vmatprep.subr.mxu0 0.0
    %6638 = vmatpush1.msra.mxu0 0.0
    %6639 = vmatprep.mubr.f32.mxu0 0.0
    %v6640 = vand.u32 %v6284, 4294901760
    %v6641 = vsub.f32 %v6284, %v6640
    %6642 = vmatmul.mubr.f32.gmra.mrb[0].mxu0 %v6641
    %v6643 = vpop.f32.mrb[0].mxu0
    %v6644 = vadd.f32 %v6540, %v6643
    %v6645 = vpop.f32.mrb[0].mxu0
    %6646 = vdwg.mxu0
    %6647 = vmatprep.subr.mxu0 0.0
    %v6648 = vand.u32 %v6285, 4294901760
    %6649 = vmatpush1.msra.mxu0 %v6648
    %6650 = vmatprep.subr.mxu0 0.0
    %v6651 = vand.u32 %v6286, 4294901760
    %6652 = vmatpush1.msra.mxu0 %v6651
    %6653 = vmatprep.subr.mxu0 0.0
    %v6654 = vand.u32 %v6287, 4294901760
    %6655 = vmatpush1.msra.mxu0 %v6654
    %6656 = vmatprep.subr.mxu0 0.0
    %v6657 = vand.u32 %v6288, 4294901760
    %6658 = vmatpush1.msra.mxu0 %v6657
    %6659 = vmatprep.subr.mxu0 0.0
    %v6660 = vand.u32 %v6289, 4294901760
    %6661 = vmatpush1.msra.mxu0 %v6660
    %6662 = vmatprep.subr.mxu0 0.0
    %v6663 = vand.u32 %v6290, 4294901760
    %6664 = vmatpush1.msra.mxu0 %v6663
    %6665 = vmatprep.subr.mxu0 0.0
    %v6666 = vand.u32 %v6291, 4294901760
    %6667 = vmatpush1.msra.mxu0 %v6666
    %6668 = vmatprep.subr.mxu0 0.0
    %v6669 = vand.u32 %v6292, 4294901760
    %6670 = vmatpush1.msra.mxu0 %v6669
    %6671 = vmatprep.subr.mxu0 0.0
    %v6672 = vand.u32 %v6293, 4294901760
    %6673 = vmatpush1.msra.mxu0 %v6672
    %6674 = vmatprep.subr.mxu0 0.0
    %v6675 = vand.u32 %v6294, 4294901760
    %6676 = vmatpush1.msra.mxu0 %v6675
    %6677 = vmatprep.subr.mxu0 0.0
    %v6678 = vand.u32 %v6295, 4294901760
    %6679 = vmatpush1.msra.mxu0 %v6678
    %6680 = vmatprep.subr.mxu0 0.0
    %v6681 = vand.u32 %v6296, 4294901760
    %6682 = vmatpush1.msra.mxu0 %v6681
    %6683 = vmatprep.subr.mxu0 0.0
    %v6684 = vand.u32 %v6297, 4294901760
    %6685 = vmatpush1.msra.mxu0 %v6684
    %6686 = vmatprep.subr.mxu0 0.0
    %v6687 = vand.u32 %v6298, 4294901760
    %6688 = vmatpush1.msra.mxu0 %v6687
    %6689 = vmatprep.subr.mxu0 0.0
    %v6690 = vand.u32 %v6299, 4294901760
    %6691 = vmatpush1.msra.mxu0 %v6690
    %6692 = vmatprep.subr.mxu0 0.0
    %v6693 = vand.u32 %v6300, 4294901760
    %6694 = vmatpush1.msra.mxu0 %v6693
    %6695 = vmatprep.subr.mxu0 0.0
    %6696 = vmatpush1.msra.mxu0 0.0
    %6697 = vmatprep.subr.mxu0 0.0
    %6698 = vmatpush1.msra.mxu0 0.0
    %6699 = vmatprep.subr.mxu0 0.0
    %6700 = vmatpush1.msra.mxu0 0.0
    %6701 = vmatprep.subr.mxu0 0.0
    %6702 = vmatpush1.msra.mxu0 0.0
    %6703 = vmatprep.subr.mxu0 0.0
    %6704 = vmatpush1.msra.mxu0 0.0
    %6705 = vmatprep.subr.mxu0 0.0
    %6706 = vmatpush1.msra.mxu0 0.0
    %6707 = vmatprep.subr.mxu0 0.0
    %6708 = vmatpush1.msra.mxu0 0.0
    %6709 = vmatprep.subr.mxu0 0.0
    %6710 = vmatpush1.msra.mxu0 0.0
    %6711 = vmatprep.subr.mxu0 0.0
    %6712 = vmatpush1.msra.mxu0 0.0
    %6713 = vmatprep.subr.mxu0 0.0
    %6714 = vmatpush1.msra.mxu0 0.0
    %6715 = vmatprep.subr.mxu0 0.0
    %6716 = vmatpush1.msra.mxu0 0.0
    %6717 = vmatprep.subr.mxu0 0.0
    %6718 = vmatpush1.msra.mxu0 0.0
    %6719 = vmatprep.subr.mxu0 0.0
    %6720 = vmatpush1.msra.mxu0 0.0
    %6721 = vmatprep.subr.mxu0 0.0
    %6722 = vmatpush1.msra.mxu0 0.0
    %6723 = vmatprep.subr.mxu0 0.0
    %6724 = vmatpush1.msra.mxu0 0.0
    %6725 = vmatprep.subr.mxu0 0.0
    %6726 = vmatpush1.msra.mxu0 0.0
    %6727 = vmatprep.mubr.f32.mxu0 0.0
    %v6728 = vand.u32 %v6284, 4294901760
    %v6729 = vsub.f32 %v6284, %v6728
    %v6730 = vand.u32 %v6729, 4294901760
    %6731 = vmatmul.mubr.f32.gmra.mrb[0].mxu0 %v6730
    %v6732 = vpop.f32.mrb[0].mxu0
    %v6733 = vadd.f32 %v6644, %v6732
    %v6734 = vpop.f32.mrb[0].mxu0
    %6735 = vdwg.mxu0
    %6736 = vmatprep.subr.mxu0 0.0
    %v6737 = vand.u32 %v6285, 4294901760
    %v6738 = vsub.f32 %v6285, %v6737
    %v6739 = vand.u32 %v6738, 4294901760
    %6740 = vmatpush1.msra.mxu0 %v6739
    %6741 = vmatprep.subr.mxu0 0.0
    %v6742 = vand.u32 %v6286, 4294901760
    %v6743 = vsub.f32 %v6286, %v6742
    %v6744 = vand.u32 %v6743, 4294901760
    %6745 = vmatpush1.msra.mxu0 %v6744
    %6746 = vmatprep.subr.mxu0 0.0
    %v6747 = vand.u32 %v6287, 4294901760
    %v6748 = vsub.f32 %v6287, %v6747
    %v6749 = vand.u32 %v6748, 4294901760
    %6750 = vmatpush1.msra.mxu0 %v6749
    %6751 = vmatprep.subr.mxu0 0.0
    %v6752 = vand.u32 %v6288, 4294901760
    %v6753 = vsub.f32 %v6288, %v6752
    %v6754 = vand.u32 %v6753, 4294901760
    %6755 = vmatpush1.msra.mxu0 %v6754
    %6756 = vmatprep.subr.mxu0 0.0
    %v6757 = vand.u32 %v6289, 4294901760
    %v6758 = vsub.f32 %v6289, %v6757
    %v6759 = vand.u32 %v6758, 4294901760
    %6760 = vmatpush1.msra.mxu0 %v6759
    %6761 = vmatprep.subr.mxu0 0.0
    %v6762 = vand.u32 %v6290, 4294901760
    %v6763 = vsub.f32 %v6290, %v6762
    %v6764 = vand.u32 %v6763, 4294901760
    %6765 = vmatpush1.msra.mxu0 %v6764
    %6766 = vmatprep.subr.mxu0 0.0
    %v6767 = vand.u32 %v6291, 4294901760
    %v6768 = vsub.f32 %v6291, %v6767
    %v6769 = vand.u32 %v6768, 4294901760
    %6770 = vmatpush1.msra.mxu0 %v6769
    %6771 = vmatprep.subr.mxu0 0.0
    %v6772 = vand.u32 %v6292, 4294901760
    %v6773 = vsub.f32 %v6292, %v6772
    %v6774 = vand.u32 %v6773, 4294901760
    %6775 = vmatpush1.msra.mxu0 %v6774
    %6776 = vmatprep.subr.mxu0 0.0
    %v6777 = vand.u32 %v6293, 4294901760
    %v6778 = vsub.f32 %v6293, %v6777
    %v6779 = vand.u32 %v6778, 4294901760
    %6780 = vmatpush1.msra.mxu0 %v6779
    %6781 = vmatprep.subr.mxu0 0.0
    %v6782 = vand.u32 %v6294, 4294901760
    %v6783 = vsub.f32 %v6294, %v6782
    %v6784 = vand.u32 %v6783, 4294901760
    %6785 = vmatpush1.msra.mxu0 %v6784
    %6786 = vmatprep.subr.mxu0 0.0
    %v6787 = vand.u32 %v6295, 4294901760
    %v6788 = vsub.f32 %v6295, %v6787
    %v6789 = vand.u32 %v6788, 4294901760
    %6790 = vmatpush1.msra.mxu0 %v6789
    %6791 = vmatprep.subr.mxu0 0.0
    %v6792 = vand.u32 %v6296, 4294901760
    %v6793 = vsub.f32 %v6296, %v6792
    %v6794 = vand.u32 %v6793, 4294901760
    %6795 = vmatpush1.msra.mxu0 %v6794
    %6796 = vmatprep.subr.mxu0 0.0
    %v6797 = vand.u32 %v6297, 4294901760
    %v6798 = vsub.f32 %v6297, %v6797
    %v6799 = vand.u32 %v6798, 4294901760
    %6800 = vmatpush1.msra.mxu0 %v6799
    %6801 = vmatprep.subr.mxu0 0.0
    %v6802 = vand.u32 %v6298, 4294901760
    %v6803 = vsub.f32 %v6298, %v6802
    %v6804 = vand.u32 %v6803, 4294901760
    %6805 = vmatpush1.msra.mxu0 %v6804
    %6806 = vmatprep.subr.mxu0 0.0
    %v6807 = vand.u32 %v6299, 4294901760
    %v6808 = vsub.f32 %v6299, %v6807
    %v6809 = vand.u32 %v6808, 4294901760
    %6810 = vmatpush1.msra.mxu0 %v6809
    %6811 = vmatprep.subr.mxu0 0.0
    %v6812 = vand.u32 %v6300, 4294901760
    %v6813 = vsub.f32 %v6300, %v6812
    %v6814 = vand.u32 %v6813, 4294901760
    %6815 = vmatpush1.msra.mxu0 %v6814
    %6816 = vmatprep.subr.mxu0 0.0
    %6817 = vmatpush1.msra.mxu0 0.0
    %6818 = vmatprep.subr.mxu0 0.0
    %6819 = vmatpush1.msra.mxu0 0.0
    %6820 = vmatprep.subr.mxu0 0.0
    %6821 = vmatpush1.msra.mxu0 0.0
    %6822 = vmatprep.subr.mxu0 0.0
    %6823 = vmatpush1.msra.mxu0 0.0
    %6824 = vmatprep.subr.mxu0 0.0
    %6825 = vmatpush1.msra.mxu0 0.0
    %6826 = vmatprep.subr.mxu0 0.0
    %6827 = vmatpush1.msra.mxu0 0.0
    %6828 = vmatprep.subr.mxu0 0.0
    %6829 = vmatpush1.msra.mxu0 0.0
    %6830 = vmatprep.subr.mxu0 0.0
    %6831 = vmatpush1.msra.mxu0 0.0
    %6832 = vmatprep.subr.mxu0 0.0
    %6833 = vmatpush1.msra.mxu0 0.0
    %6834 = vmatprep.subr.mxu0 0.0
    %6835 = vmatpush1.msra.mxu0 0.0
    %6836 = vmatprep.subr.mxu0 0.0
    %6837 = vmatpush1.msra.mxu0 0.0
    %6838 = vmatprep.subr.mxu0 0.0
    %6839 = vmatpush1.msra.mxu0 0.0
    %6840 = vmatprep.subr.mxu0 0.0
    %6841 = vmatpush1.msra.mxu0 0.0
    %6842 = vmatprep.subr.mxu0 0.0
    %6843 = vmatpush1.msra.mxu0 0.0
    %6844 = vmatprep.subr.mxu0 0.0
    %6845 = vmatpush1.msra.mxu0 0.0
    %6846 = vmatprep.subr.mxu0 0.0
    %6847 = vmatpush1.msra.mxu0 0.0
    %6848 = vmatprep.mubr.f32.mxu0 0.0
    %v6849 = vand.u32 %v6284, 4294901760
    %6850 = vmatmul.mubr.f32.gmra.mrb[0].mxu0 %v6849
    %v6851 = vpop.f32.mrb[0].mxu0
    %v6852 = vadd.f32 %v6733, %v6851
    %v6853 = vpop.f32.mrb[0].mxu0
    %6854 = vdwg.mxu0
    %6855 = vmatprep.subr.mxu0 0.0
    %v6856 = vand.u32 %v6285, 4294901760
    %6857 = vmatpush1.msra.mxu0 %v6856
    %6858 = vmatprep.subr.mxu0 0.0
    %v6859 = vand.u32 %v6286, 4294901760
    %6860 = vmatpush1.msra.mxu0 %v6859
    %6861 = vmatprep.subr.mxu0 0.0
    %v6862 = vand.u32 %v6287, 4294901760
    %6863 = vmatpush1.msra.mxu0 %v6862
    %6864 = vmatprep.subr.mxu0 0.0
    %v6865 = vand.u32 %v6288, 4294901760
    %6866 = vmatpush1.msra.mxu0 %v6865
    %6867 = vmatprep.subr.mxu0 0.0
    %v6868 = vand.u32 %v6289, 4294901760
    %6869 = vmatpush1.msra.mxu0 %v6868
    %6870 = vmatprep.subr.mxu0 0.0
    %v6871 = vand.u32 %v6290, 4294901760
    %6872 = vmatpush1.msra.mxu0 %v6871
    %6873 = vmatprep.subr.mxu0 0.0
    %v6874 = vand.u32 %v6291, 4294901760
    %6875 = vmatpush1.msra.mxu0 %v6874
    %6876 = vmatprep.subr.mxu0 0.0
    %v6877 = vand.u32 %v6292, 4294901760
    %6878 = vmatpush1.msra.mxu0 %v6877
    %6879 = vmatprep.subr.mxu0 0.0
    %v6880 = vand.u32 %v6293, 4294901760
    %6881 = vmatpush1.msra.mxu0 %v6880
    %6882 = vmatprep.subr.mxu0 0.0
    %v6883 = vand.u32 %v6294, 4294901760
    %6884 = vmatpush1.msra.mxu0 %v6883
    %6885 = vmatprep.subr.mxu0 0.0
    %v6886 = vand.u32 %v6295, 4294901760
    %6887 = vmatpush1.msra.mxu0 %v6886
    %6888 = vmatprep.subr.mxu0 0.0
    %v6889 = vand.u32 %v6296, 4294901760
    %6890 = vmatpush1.msra.mxu0 %v6889
    %6891 = vmatprep.subr.mxu0 0.0
    %v6892 = vand.u32 %v6297, 4294901760
    %6893 = vmatpush1.msra.mxu0 %v6892
    %6894 = vmatprep.subr.mxu0 0.0
    %v6895 = vand.u32 %v6298, 4294901760
    %6896 = vmatpush1.msra.mxu0 %v6895
    %6897 = vmatprep.subr.mxu0 0.0
    %v6898 = vand.u32 %v6299, 4294901760
    %6899 = vmatpush1.msra.mxu0 %v6898
    %6900 = vmatprep.subr.mxu0 0.0
    %v6901 = vand.u32 %v6300, 4294901760
    %6902 = vmatpush1.msra.mxu0 %v6901
    %6903 = vmatprep.subr.mxu0 0.0
    %6904 = vmatpush1.msra.mxu0 0.0
    %6905 = vmatprep.subr.mxu0 0.0
    %6906 = vmatpush1.msra.mxu0 0.0
    %6907 = vmatprep.subr.mxu0 0.0
    %6908 = vmatpush1.msra.mxu0 0.0
    %6909 = vmatprep.subr.mxu0 0.0
    %6910 = vmatpush1.msra.mxu0 0.0
    %6911 = vmatprep.subr.mxu0 0.0
    %6912 = vmatpush1.msra.mxu0 0.0
    %6913 = vmatprep.subr.mxu0 0.0
    %6914 = vmatpush1.msra.mxu0 0.0
    %6915 = vmatprep.subr.mxu0 0.0
    %6916 = vmatpush1.msra.mxu0 0.0
    %6917 = vmatprep.subr.mxu0 0.0
    %6918 = vmatpush1.msra.mxu0 0.0
    %6919 = vmatprep.subr.mxu0 0.0
    %6920 = vmatpush1.msra.mxu0 0.0
    %6921 = vmatprep.subr.mxu0 0.0
    %6922 = vmatpush1.msra.mxu0 0.0
    %6923 = vmatprep.subr.mxu0 0.0
    %6924 = vmatpush1.msra.mxu0 0.0
    %6925 = vmatprep.subr.mxu0 0.0
    %6926 = vmatpush1.msra.mxu0 0.0
    %6927 = vmatprep.subr.mxu0 0.0
    %6928 = vmatpush1.msra.mxu0 0.0
    %6929 = vmatprep.subr.mxu0 0.0
    %6930 = vmatpush1.msra.mxu0 0.0
    %6931 = vmatprep.subr.mxu0 0.0
    %6932 = vmatpush1.msra.mxu0 0.0
    %6933 = vmatprep.subr.mxu0 0.0
    %6934 = vmatpush1.msra.mxu0 0.0
    %6935 = vmatprep.mubr.f32.mxu0 0.0
    %v6936 = vand.u32 %v6284, 4294901760
    %6937 = vmatmul.mubr.f32.gmra.mrb[0].mxu0 %v6936
    %v6938 = vpop.f32.mrb[0].mxu0
    %v6939 = vadd.f32 %v6852, %v6938
    %v6940 = vpop.f32.mrb[0].mxu0
    %6941 = vdwg.mxu0
    %v6943 = vcombine.high %v6939, %v6939
    %v6945 = vunpack.c.l.s4 1966171168
    %v6946 = vunpack.c.0.s8 %v6945
    %v6947 = vlaneseq
    %v6948 = vshrl.u32 %v6947, 7
    %v6949 = vsub.s32 %v6946, %v6948
    %v6950 = vrot.slane %v6939, %v6949
    %v6952 = vunpack.c.l.s4 1966171168
    %v6953 = vunpack.c.0.s8 %v6952
    %v6954 = vlaneseq
    %v6955 = vshrl.u32 %v6954, 7
    %v6956 = vsub.s32 %v6953, %v6955
    %v6957 = vrot.slane %v6943, %v6956
    %v6958 = vcombine.high %v6950, %v6950
    %v6959 = vcombine.high %v6957, %v6957
    %v6961 = vunpack.c.l.s4 1966171168
    %v6962 = vunpack.c.0.s8 %v6961
    %v6963 = vlaneseq
    %v6964 = vshrl.u32 %v6963, 7
    %v6965 = vsub.s32 %v6962, %v6964
    %v6966 = vrot.slane %v6950, %v6965
    %v6968 = vunpack.c.l.s4 1966171168
    %v6969 = vunpack.c.0.s8 %v6968
    %v6970 = vlaneseq
    %v6971 = vshrl.u32 %v6970, 7
    %v6972 = vsub.s32 %v6969, %v6971
    %v6973 = vrot.slane %v6957, %v6972
    %v6975 = vunpack.c.l.s4 1966171168
    %v6976 = vunpack.c.0.s8 %v6975
    %v6977 = vlaneseq
    %v6978 = vshrl.u32 %v6977, 7
    %v6979 = vsub.s32 %v6976, %v6978
    %v6980 = vrot.slane %v6958, %v6979
    %v6982 = vunpack.c.l.s4 1966171168
    %v6983 = vunpack.c.0.s8 %v6982
    %v6984 = vlaneseq
    %v6985 = vshrl.u32 %v6984, 7
    %v6986 = vsub.s32 %v6983, %v6985
    %v6987 = vrot.slane %v6959, %v6986
    %v6988 = vcombine.high %v6966, %v6966
    %v6989 = vcombine.high %v6973, %v6973
    %v6990 = vcombine.high %v6980, %v6980
    %v6991 = vcombine.high %v6987, %v6987
    %v6992 = vlaneseq
    %v6993 = vshrl.u32 %v6992, 7
    %v6994 = vsub.s32 0, %v6993
    %v6995 = vrot.slane %v6966, %v6994
    %v6996 = vlaneseq
    %v6997 = vshrl.u32 %v6996, 7
    %v6998 = vsub.s32 0, %v6997
    %v6999 = vrot.slane %v6980, %v6998
    %v7000 = vlaneseq
    %v7001 = vshrl.u32 %v7000, 7
    %v7002 = vsub.s32 0, %v7001
    %v7003 = vrot.slane %v6988, %v7002
    %v7004 = vlaneseq
    %v7005 = vshrl.u32 %v7004, 7
    %v7006 = vsub.s32 0, %v7005
    %v7007 = vrot.slane %v6990, %v7006
    %v7008 = vlaneseq
    %v7009 = vshrl.u32 %v7008, 7
    %v7010 = vsub.s32 0, %v7009
    %v7011 = vrot.slane %v6973, %v7010
    %v7012 = vlaneseq
    %v7013 = vshrl.u32 %v7012, 7
    %v7014 = vsub.s32 0, %v7013
    %v7015 = vrot.slane %v6987, %v7014
    %v7016 = vlaneseq
    %v7017 = vshrl.u32 %v7016, 7
    %v7018 = vsub.s32 0, %v7017
    %v7019 = vrot.slane %v6989, %v7018
    %v7020 = vlaneseq
    %v7021 = vshrl.u32 %v7020, 7
    %v7022 = vsub.s32 0, %v7021
    %v7023 = vrot.slane %v6991, %v7022
    %v7032 = vadd.f32 %v5519, %v6995
    %v7033 = vadd.f32 %v5525, %v6995
    %v7034 = vadd.f32 %v5531, %v6995
    %v7035 = vadd.f32 %v5537, %v6995
    %v7036 = vadd.f32 %v5543, %v6995
    %v7037 = vadd.f32 %v5549, %v6995
    %v7038 = vadd.f32 %v5555, %v6995
    %v7039 = vadd.f32 %v5561, %v6995
    %v7040 = vadd.f32 %v5567, %v6995
    %v7041 = vadd.f32 %v5573, %v6995
    %v7042 = vadd.f32 %v5579, %v6995
    %v7043 = vadd.f32 %v5585, %v6995
    %v7044 = vadd.f32 %v5591, %v6995
    %v7045 = vadd.f32 %v5597, %v6995
    %v7046 = vadd.f32 %v5603, %v6995
    %v7047 = vadd.f32 %v5609, %v6995
    %v7048 = vadd.f32 %v5615, %v6999
    %v7049 = vadd.f32 %v5621, %v6999
    %v7050 = vadd.f32 %v5627, %v6999
    %v7051 = vadd.f32 %v5633, %v6999
    %v7052 = vadd.f32 %v5639, %v6999
    %v7053 = vadd.f32 %v5645, %v6999
    %v7054 = vadd.f32 %v5651, %v6999
    %v7055 = vadd.f32 %v5657, %v6999
    %v7056 = vadd.f32 %v5663, %v6999
    %v7057 = vadd.f32 %v5669, %v6999
    %v7058 = vadd.f32 %v5675, %v6999
    %v7059 = vadd.f32 %v5681, %v6999
    %v7060 = vadd.f32 %v5687, %v6999
    %v7061 = vadd.f32 %v5693, %v6999
    %v7062 = vadd.f32 %v5699, %v6999
    %v7063 = vadd.f32 %v5705, %v6999
    %v7064 = vadd.f32 %v5711, %v7003
    %v7065 = vadd.f32 %v5717, %v7003
    %v7066 = vadd.f32 %v5723, %v7003
    %v7067 = vadd.f32 %v5729, %v7003
    %v7068 = vadd.f32 %v5735, %v7003
    %v7069 = vadd.f32 %v5741, %v7003
    %v7070 = vadd.f32 %v5747, %v7003
    %v7071 = vadd.f32 %v5753, %v7003
    %v7072 = vadd.f32 %v5759, %v7003
    %v7073 = vadd.f32 %v5765, %v7003
    %v7074 = vadd.f32 %v5771, %v7003
    %v7075 = vadd.f32 %v5777, %v7003
    %v7076 = vadd.f32 %v5783, %v7003
    %v7077 = vadd.f32 %v5789, %v7003
    %v7078 = vadd.f32 %v5795, %v7003
    %v7079 = vadd.f32 %v5801, %v7003
    %v7080 = vadd.f32 %v5807, %v7007
    %v7081 = vadd.f32 %v5813, %v7007
    %v7082 = vadd.f32 %v5819, %v7007
    %v7083 = vadd.f32 %v5825, %v7007
    %v7084 = vadd.f32 %v5831, %v7007
    %v7085 = vadd.f32 %v5837, %v7007
    %v7086 = vadd.f32 %v5843, %v7007
    %v7087 = vadd.f32 %v5849, %v7007
    %v7088 = vadd.f32 %v5855, %v7007
    %v7089 = vadd.f32 %v5861, %v7007
    %v7090 = vadd.f32 %v5867, %v7007
    %v7091 = vadd.f32 %v5873, %v7007
    %v7092 = vadd.f32 %v5879, %v7007
    %v7093 = vadd.f32 %v5885, %v7007
    %v7094 = vadd.f32 %v5891, %v7007
    %v7095 = vadd.f32 %v5897, %v7007
    %v7096 = vadd.f32 %v5903, %v7011
    %v7097 = vadd.f32 %v5909, %v7011
    %v7098 = vadd.f32 %v5915, %v7011
    %v7099 = vadd.f32 %v5921, %v7011
    %v7100 = vadd.f32 %v5927, %v7011
    %v7101 = vadd.f32 %v5933, %v7011
    %v7102 = vadd.f32 %v5939, %v7011
    %v7103 = vadd.f32 %v5945, %v7011
    %v7104 = vadd.f32 %v5951, %v7011
    %v7105 = vadd.f32 %v5957, %v7011
    %v7106 = vadd.f32 %v5963, %v7011
    %v7107 = vadd.f32 %v5969, %v7011
    %v7108 = vadd.f32 %v5975, %v7011
    %v7109 = vadd.f32 %v5981, %v7011
    %v7110 = vadd.f32 %v5987, %v7011
    %v7111 = vadd.f32 %v5993, %v7011
    %v7112 = vadd.f32 %v5999, %v7015
    %v7113 = vadd.f32 %v6005, %v7015
    %v7114 = vadd.f32 %v6011, %v7015
    %v7115 = vadd.f32 %v6017, %v7015
    %v7116 = vadd.f32 %v6023, %v7015
    %v7117 = vadd.f32 %v6029, %v7015
    %v7118 = vadd.f32 %v6035, %v7015
    %v7119 = vadd.f32 %v6041, %v7015
    %v7120 = vadd.f32 %v6047, %v7015
    %v7121 = vadd.f32 %v6053, %v7015
    %v7122 = vadd.f32 %v6059, %v7015
    %v7123 = vadd.f32 %v6065, %v7015
    %v7124 = vadd.f32 %v6071, %v7015
    %v7125 = vadd.f32 %v6077, %v7015
    %v7126 = vadd.f32 %v6083, %v7015
    %v7127 = vadd.f32 %v6089, %v7015
    %v7128 = vadd.f32 %v6095, %v7019
    %v7129 = vadd.f32 %v6101, %v7019
    %v7130 = vadd.f32 %v6107, %v7019
    %v7131 = vadd.f32 %v6113, %v7019
    %v7132 = vadd.f32 %v6119, %v7019
    %v7133 = vadd.f32 %v6125, %v7019
    %v7134 = vadd.f32 %v6131, %v7019
    %v7135 = vadd.f32 %v6137, %v7019
    %v7136 = vadd.f32 %v6143, %v7019
    %v7137 = vadd.f32 %v6149, %v7019
    %v7138 = vadd.f32 %v6155, %v7019
    %v7139 = vadd.f32 %v6161, %v7019
    %v7140 = vadd.f32 %v6167, %v7019
    %v7141 = vadd.f32 %v6173, %v7019
    %v7142 = vadd.f32 %v6179, %v7019
    %v7143 = vadd.f32 %v6185, %v7019
    %v7144 = vadd.f32 %v6191, %v7023
    %v7145 = vadd.f32 %v6197, %v7023
    %v7146 = vadd.f32 %v6203, %v7023
    %v7147 = vadd.f32 %v6209, %v7023
    %v7148 = vadd.f32 %v6215, %v7023
    %v7149 = vadd.f32 %v6221, %v7023
    %v7150 = vadd.f32 %v6227, %v7023
    %v7151 = vadd.f32 %v6233, %v7023
    %v7152 = vadd.f32 %v6239, %v7023
    %v7153 = vadd.f32 %v6245, %v7023
    %v7154 = vadd.f32 %v6251, %v7023
    %v7155 = vadd.f32 %v6257, %v7023
    %v7156 = vadd.f32 %v6263, %v7023
    %v7157 = vadd.f32 %v6269, %v7023
    %v7158 = vadd.f32 %v6275, %v7023
    %v7159 = vadd.f32 %v6281, %v7023
    %v7160 = vtanh.pop %v7032
    %v7161 = vtanh.pop %v7033
    %v7162 = vtanh.pop %v7034
    %v7163 = vtanh.pop %v7035
    %v7164 = vtanh.pop %v7036
    %v7165 = vtanh.pop %v7037
    %v7166 = vtanh.pop %v7038
    %v7167 = vtanh.pop %v7039
    %v7168 = vtanh.pop %v7040
    %v7169 = vtanh.pop %v7041
    %v7170 = vtanh.pop %v7042
    %v7171 = vtanh.pop %v7043
    %v7172 = vtanh.pop %v7044
    %v7173 = vtanh.pop %v7045
    %v7174 = vtanh.pop %v7046
    %v7175 = vtanh.pop %v7047
    %v7176 = vtanh.pop %v7048
    %v7177 = vtanh.pop %v7049
    %v7178 = vtanh.pop %v7050
    %v7179 = vtanh.pop %v7051
    %v7180 = vtanh.pop %v7052
    %v7181 = vtanh.pop %v7053
    %v7182 = vtanh.pop %v7054
    %v7183 = vtanh.pop %v7055
    %v7184 = vtanh.pop %v7056
    %v7185 = vtanh.pop %v7057
    %v7186 = vtanh.pop %v7058
    %v7187 = vtanh.pop %v7059
    %v7188 = vtanh.pop %v7060
    %v7189 = vtanh.pop %v7061
    %v7190 = vtanh.pop %v7062
    %v7191 = vtanh.pop %v7063
    %v7192 = vtanh.pop %v7064
    %v7193 = vtanh.pop %v7065
    %v7194 = vtanh.pop %v7066
    %v7195 = vtanh.pop %v7067
    %v7196 = vtanh.pop %v7068
    %v7197 = vtanh.pop %v7069
    %v7198 = vtanh.pop %v7070
    %v7199 = vtanh.pop %v7071
    %v7200 = vtanh.pop %v7072
    %v7201 = vtanh.pop %v7073
    %v7202 = vtanh.pop %v7074
    %v7203 = vtanh.pop %v7075
    %v7204 = vtanh.pop %v7076
    %v7205 = vtanh.pop %v7077
    %v7206 = vtanh.pop %v7078
    %v7207 = vtanh.pop %v7079
    %v7208 = vtanh.pop %v7080
    %v7209 = vtanh.pop %v7081
    %v7210 = vtanh.pop %v7082
    %v7211 = vtanh.pop %v7083
    %v7212 = vtanh.pop %v7084
    %v7213 = vtanh.pop %v7085
    %v7214 = vtanh.pop %v7086
    %v7215 = vtanh.pop %v7087
    %v7216 = vtanh.pop %v7088
    %v7217 = vtanh.pop %v7089
    %v7218 = vtanh.pop %v7090
    %v7219 = vtanh.pop %v7091
    %v7220 = vtanh.pop %v7092
    %v7221 = vtanh.pop %v7093
    %v7222 = vtanh.pop %v7094
    %v7223 = vtanh.pop %v7095
    %v7224 = vtanh.pop %v7096
    %v7225 = vtanh.pop %v7097
    %v7226 = vtanh.pop %v7098
    %v7227 = vtanh.pop %v7099
    %v7228 = vtanh.pop %v7100
    %v7229 = vtanh.pop %v7101
    %v7230 = vtanh.pop %v7102
    %v7231 = vtanh.pop %v7103
    %v7232 = vtanh.pop %v7104
    %v7233 = vtanh.pop %v7105
    %v7234 = vtanh.pop %v7106
    %v7235 = vtanh.pop %v7107
    %v7236 = vtanh.pop %v7108
    %v7237 = vtanh.pop %v7109
    %v7238 = vtanh.pop %v7110
    %v7239 = vtanh.pop %v7111
    %v7240 = vtanh.pop %v7112
    %v7241 = vtanh.pop %v7113
    %v7242 = vtanh.pop %v7114
    %v7243 = vtanh.pop %v7115
    %v7244 = vtanh.pop %v7116
    %v7245 = vtanh.pop %v7117
    %v7246 = vtanh.pop %v7118
    %v7247 = vtanh.pop %v7119
    %v7248 = vtanh.pop %v7120
    %v7249 = vtanh.pop %v7121
    %v7250 = vtanh.pop %v7122
    %v7251 = vtanh.pop %v7123
    %v7252 = vtanh.pop %v7124
    %v7253 = vtanh.pop %v7125
    %v7254 = vtanh.pop %v7126
    %v7255 = vtanh.pop %v7127
    %v7256 = vtanh.pop %v7128
    %v7257 = vtanh.pop %v7129
    %v7258 = vtanh.pop %v7130
    %v7259 = vtanh.pop %v7131
    %v7260 = vtanh.pop %v7132
    %v7261 = vtanh.pop %v7133
    %v7262 = vtanh.pop %v7134
    %v7263 = vtanh.pop %v7135
    %v7264 = vtanh.pop %v7136
    %v7265 = vtanh.pop %v7137
    %v7266 = vtanh.pop %v7138
    %v7267 = vtanh.pop %v7139
    %v7268 = vtanh.pop %v7140
    %v7269 = vtanh.pop %v7141
    %v7270 = vtanh.pop %v7142
    %v7271 = vtanh.pop %v7143
    %v7272 = vtanh.pop %v7144
    %v7273 = vtanh.pop %v7145
    %v7274 = vtanh.pop %v7146
    %v7275 = vtanh.pop %v7147
    %v7276 = vtanh.pop %v7148
    %v7277 = vtanh.pop %v7149
    %v7278 = vtanh.pop %v7150
    %v7279 = vtanh.pop %v7151
    %v7280 = vtanh.pop %v7152
    %v7281 = vtanh.pop %v7153
    %v7282 = vtanh.pop %v7154
    %v7283 = vtanh.pop %v7155
    %v7284 = vtanh.pop %v7156
    %v7285 = vtanh.pop %v7157
    %v7286 = vtanh.pop %v7158
    %v7287 = vtanh.pop %v7159
    %v7288 = vld [vmem:[%s4] sm:$0x1]
    %v7290 = vlaneseq
    %v7291 = vshrl.u32 %v7290, 7
    %v7292 = vsub.s32 0, %v7291
    %v7293 = vrot.slane %v7288, %v7292
    %v7295 = vmul.f32 %v7160, %v7293
    %v7296 = vmul.f32 %v7161, %v7293
    %v7297 = vmul.f32 %v7162, %v7293
    %v7298 = vmul.f32 %v7163, %v7293
    %v7299 = vmul.f32 %v7164, %v7293
    %v7300 = vmul.f32 %v7165, %v7293
    %v7301 = vmul.f32 %v7166, %v7293
    %v7302 = vmul.f32 %v7167, %v7293
    %v7303 = vmul.f32 %v7168, %v7293
    %v7304 = vmul.f32 %v7169, %v7293
    %v7305 = vmul.f32 %v7170, %v7293
    %v7306 = vmul.f32 %v7171, %v7293
    %v7307 = vmul.f32 %v7172, %v7293
    %v7308 = vmul.f32 %v7173, %v7293
    %v7309 = vmul.f32 %v7174, %v7293
    %v7310 = vmul.f32 %v7175, %v7293
    %v7311 = vmul.f32 %v7176, %v7293
    %v7312 = vmul.f32 %v7177, %v7293
    %v7313 = vmul.f32 %v7178, %v7293
    %v7314 = vmul.f32 %v7179, %v7293
    %v7315 = vmul.f32 %v7180, %v7293
    %v7316 = vmul.f32 %v7181, %v7293
    %v7317 = vmul.f32 %v7182, %v7293
    %v7318 = vmul.f32 %v7183, %v7293
    %v7319 = vmul.f32 %v7184, %v7293
    %v7320 = vmul.f32 %v7185, %v7293
    %v7321 = vmul.f32 %v7186, %v7293
    %v7322 = vmul.f32 %v7187, %v7293
    %v7323 = vmul.f32 %v7188, %v7293
    %v7324 = vmul.f32 %v7189, %v7293
    %v7325 = vmul.f32 %v7190, %v7293
    %v7326 = vmul.f32 %v7191, %v7293
    %v7327 = vmul.f32 %v7192, %v7293
    %v7328 = vmul.f32 %v7193, %v7293
    %v7329 = vmul.f32 %v7194, %v7293
    %v7330 = vmul.f32 %v7195, %v7293
    %v7331 = vmul.f32 %v7196, %v7293
    %v7332 = vmul.f32 %v7197, %v7293
    %v7333 = vmul.f32 %v7198, %v7293
    %v7334 = vmul.f32 %v7199, %v7293
    %v7335 = vmul.f32 %v7200, %v7293
    %v7336 = vmul.f32 %v7201, %v7293
    %v7337 = vmul.f32 %v7202, %v7293
    %v7338 = vmul.f32 %v7203, %v7293
    %v7339 = vmul.f32 %v7204, %v7293
    %v7340 = vmul.f32 %v7205, %v7293
    %v7341 = vmul.f32 %v7206, %v7293
    %v7342 = vmul.f32 %v7207, %v7293
    %v7343 = vmul.f32 %v7208, %v7293
    %v7344 = vmul.f32 %v7209, %v7293
    %v7345 = vmul.f32 %v7210, %v7293
    %v7346 = vmul.f32 %v7211, %v7293
    %v7347 = vmul.f32 %v7212, %v7293
    %v7348 = vmul.f32 %v7213, %v7293
    %v7349 = vmul.f32 %v7214, %v7293
    %v7350 = vmul.f32 %v7215, %v7293
    %v7351 = vmul.f32 %v7216, %v7293
    %v7352 = vmul.f32 %v7217, %v7293
    %v7353 = vmul.f32 %v7218, %v7293
    %v7354 = vmul.f32 %v7219, %v7293
    %v7355 = vmul.f32 %v7220, %v7293
    %v7356 = vmul.f32 %v7221, %v7293
    %v7357 = vmul.f32 %v7222, %v7293
    %v7358 = vmul.f32 %v7223, %v7293
    %v7359 = vmul.f32 %v7224, %v7293
    %v7360 = vmul.f32 %v7225, %v7293
    %v7361 = vmul.f32 %v7226, %v7293
    %v7362 = vmul.f32 %v7227, %v7293
    %v7363 = vmul.f32 %v7228, %v7293
    %v7364 = vmul.f32 %v7229, %v7293
    %v7365 = vmul.f32 %v7230, %v7293
    %v7366 = vmul.f32 %v7231, %v7293
    %v7367 = vmul.f32 %v7232, %v7293
    %v7368 = vmul.f32 %v7233, %v7293
    %v7369 = vmul.f32 %v7234, %v7293
    %v7370 = vmul.f32 %v7235, %v7293
    %v7371 = vmul.f32 %v7236, %v7293
    %v7372 = vmul.f32 %v7237, %v7293
    %v7373 = vmul.f32 %v7238, %v7293
    %v7374 = vmul.f32 %v7239, %v7293
    %v7375 = vmul.f32 %v7240, %v7293
    %v7376 = vmul.f32 %v7241, %v7293
    %v7377 = vmul.f32 %v7242, %v7293
    %v7378 = vmul.f32 %v7243, %v7293
    %v7379 = vmul.f32 %v7244, %v7293
    %v7380 = vmul.f32 %v7245, %v7293
    %v7381 = vmul.f32 %v7246, %v7293
    %v7382 = vmul.f32 %v7247, %v7293
    %v7383 = vmul.f32 %v7248, %v7293
    %v7384 = vmul.f32 %v7249, %v7293
    %v7385 = vmul.f32 %v7250, %v7293
    %v7386 = vmul.f32 %v7251, %v7293
    %v7387 = vmul.f32 %v7252, %v7293
    %v7388 = vmul.f32 %v7253, %v7293
    %v7389 = vmul.f32 %v7254, %v7293
    %v7390 = vmul.f32 %v7255, %v7293
    %v7391 = vmul.f32 %v7256, %v7293
    %v7392 = vmul.f32 %v7257, %v7293
    %v7393 = vmul.f32 %v7258, %v7293
    %v7394 = vmul.f32 %v7259, %v7293
    %v7395 = vmul.f32 %v7260, %v7293
    %v7396 = vmul.f32 %v7261, %v7293
    %v7397 = vmul.f32 %v7262, %v7293
    %v7398 = vmul.f32 %v7263, %v7293
    %v7399 = vmul.f32 %v7264, %v7293
    %v7400 = vmul.f32 %v7265, %v7293
    %v7401 = vmul.f32 %v7266, %v7293
    %v7402 = vmul.f32 %v7267, %v7293
    %v7403 = vmul.f32 %v7268, %v7293
    %v7404 = vmul.f32 %v7269, %v7293
    %v7405 = vmul.f32 %v7270, %v7293
    %v7406 = vmul.f32 %v7271, %v7293
    %v7407 = vmul.f32 %v7272, %v7293
    %v7408 = vmul.f32 %v7273, %v7293
    %v7409 = vmul.f32 %v7274, %v7293
    %v7410 = vmul.f32 %v7275, %v7293
    %v7411 = vmul.f32 %v7276, %v7293
    %v7412 = vmul.f32 %v7277, %v7293
    %v7413 = vmul.f32 %v7278, %v7293
    %v7414 = vmul.f32 %v7279, %v7293
    %v7415 = vmul.f32 %v7280, %v7293
    %v7416 = vmul.f32 %v7281, %v7293
    %v7417 = vmul.f32 %v7282, %v7293
    %v7418 = vmul.f32 %v7283, %v7293
    %v7419 = vmul.f32 %v7284, %v7293
    %v7420 = vmul.f32 %v7285, %v7293
    %v7421 = vmul.f32 %v7286, %v7293
    %v7422 = vmul.f32 %v7287, %v7293
    %vm7423 = vcmask 130048
    %v7424 = vsel %vm7423, %v7295, 0.0
    %7425 = vadd.xlane.f32.xlu0 %v7424
    %v7426 = vpop.xlane.xlu0 %7425
    %v7427 = vsel %vm7423, %v7296, 0.0
    %7428 = vadd.xlane.f32.xlu0 %v7427
    %v7429 = vpop.xlane.xlu0 %7428
    %v7430 = vsel %vm7423, %v7297, 0.0
    %7431 = vadd.xlane.f32.xlu0 %v7430
    %v7432 = vpop.xlane.xlu0 %7431
    %v7433 = vsel %vm7423, %v7298, 0.0
    %7434 = vadd.xlane.f32.xlu0 %v7433
    %v7435 = vpop.xlane.xlu0 %7434
    %v7436 = vsel %vm7423, %v7299, 0.0
    %7437 = vadd.xlane.f32.xlu0 %v7436
    %v7438 = vpop.xlane.xlu0 %7437
    %v7439 = vsel %vm7423, %v7300, 0.0
    %7440 = vadd.xlane.f32.xlu0 %v7439
    %v7441 = vpop.xlane.xlu0 %7440
    %v7442 = vsel %vm7423, %v7301, 0.0
    %7443 = vadd.xlane.f32.xlu0 %v7442
    %v7444 = vpop.xlane.xlu0 %7443
    %v7445 = vsel %vm7423, %v7302, 0.0
    %7446 = vadd.xlane.f32.xlu0 %v7445
    %v7447 = vpop.xlane.xlu0 %7446
    %v7448 = vsel %vm7423, %v7303, 0.0
    %7449 = vadd.xlane.f32.xlu0 %v7448
    %v7450 = vpop.xlane.xlu0 %7449
    %v7451 = vsel %vm7423, %v7304, 0.0
    %7452 = vadd.xlane.f32.xlu0 %v7451
    %v7453 = vpop.xlane.xlu0 %7452
    %v7454 = vsel %vm7423, %v7305, 0.0
    %7455 = vadd.xlane.f32.xlu0 %v7454
    %v7456 = vpop.xlane.xlu0 %7455
    %v7457 = vsel %vm7423, %v7306, 0.0
    %7458 = vadd.xlane.f32.xlu0 %v7457
    %v7459 = vpop.xlane.xlu0 %7458
    %v7460 = vsel %vm7423, %v7307, 0.0
    %7461 = vadd.xlane.f32.xlu0 %v7460
    %v7462 = vpop.xlane.xlu0 %7461
    %v7463 = vsel %vm7423, %v7308, 0.0
    %7464 = vadd.xlane.f32.xlu0 %v7463
    %v7465 = vpop.xlane.xlu0 %7464
    %v7466 = vsel %vm7423, %v7309, 0.0
    %7467 = vadd.xlane.f32.xlu0 %v7466
    %v7468 = vpop.xlane.xlu0 %7467
    %v7469 = vsel %vm7423, %v7310, 0.0
    %7470 = vadd.xlane.f32.xlu0 %v7469
    %v7471 = vpop.xlane.xlu0 %7470
    %v7472 = vsel %vm7423, %v7311, 0.0
    %7473 = vadd.xlane.f32.xlu0 %v7472
    %v7474 = vpop.xlane.xlu0 %7473
    %v7475 = vsel %vm7423, %v7312, 0.0
    %7476 = vadd.xlane.f32.xlu0 %v7475
    %v7477 = vpop.xlane.xlu0 %7476
    %v7478 = vsel %vm7423, %v7313, 0.0
    %7479 = vadd.xlane.f32.xlu0 %v7478
    %v7480 = vpop.xlane.xlu0 %7479
    %v7481 = vsel %vm7423, %v7314, 0.0
    %7482 = vadd.xlane.f32.xlu0 %v7481
    %v7483 = vpop.xlane.xlu0 %7482
    %v7484 = vsel %vm7423, %v7315, 0.0
    %7485 = vadd.xlane.f32.xlu0 %v7484
    %v7486 = vpop.xlane.xlu0 %7485
    %v7487 = vsel %vm7423, %v7316, 0.0
    %7488 = vadd.xlane.f32.xlu0 %v7487
    %v7489 = vpop.xlane.xlu0 %7488
    %v7490 = vsel %vm7423, %v7317, 0.0
    %7491 = vadd.xlane.f32.xlu0 %v7490
    %v7492 = vpop.xlane.xlu0 %7491
    %v7493 = vsel %vm7423, %v7318, 0.0
    %7494 = vadd.xlane.f32.xlu0 %v7493
    %v7495 = vpop.xlane.xlu0 %7494
    %v7496 = vsel %vm7423, %v7319, 0.0
    %7497 = vadd.xlane.f32.xlu0 %v7496
    %v7498 = vpop.xlane.xlu0 %7497
    %v7499 = vsel %vm7423, %v7320, 0.0
    %7500 = vadd.xlane.f32.xlu0 %v7499
    %v7501 = vpop.xlane.xlu0 %7500
    %v7502 = vsel %vm7423, %v7321, 0.0
    %7503 = vadd.xlane.f32.xlu0 %v7502
    %v7504 = vpop.xlane.xlu0 %7503
    %v7505 = vsel %vm7423, %v7322, 0.0
    %7506 = vadd.xlane.f32.xlu0 %v7505
    %v7507 = vpop.xlane.xlu0 %7506
    %v7508 = vsel %vm7423, %v7323, 0.0
    %7509 = vadd.xlane.f32.xlu0 %v7508
    %v7510 = vpop.xlane.xlu0 %7509
    %v7511 = vsel %vm7423, %v7324, 0.0
    %7512 = vadd.xlane.f32.xlu0 %v7511
    %v7513 = vpop.xlane.xlu0 %7512
    %v7514 = vsel %vm7423, %v7325, 0.0
    %7515 = vadd.xlane.f32.xlu0 %v7514
    %v7516 = vpop.xlane.xlu0 %7515
    %v7517 = vsel %vm7423, %v7326, 0.0
    %7518 = vadd.xlane.f32.xlu0 %v7517
    %v7519 = vpop.xlane.xlu0 %7518
    %v7520 = vsel %vm7423, %v7327, 0.0
    %7521 = vadd.xlane.f32.xlu0 %v7520
    %v7522 = vpop.xlane.xlu0 %7521
    %v7523 = vsel %vm7423, %v7328, 0.0
    %7524 = vadd.xlane.f32.xlu0 %v7523
    %v7525 = vpop.xlane.xlu0 %7524
    %v7526 = vsel %vm7423, %v7329, 0.0
    %7527 = vadd.xlane.f32.xlu0 %v7526
    %v7528 = vpop.xlane.xlu0 %7527
    %v7529 = vsel %vm7423, %v7330, 0.0
    %7530 = vadd.xlane.f32.xlu0 %v7529
    %v7531 = vpop.xlane.xlu0 %7530
    %v7532 = vsel %vm7423, %v7331, 0.0
    %7533 = vadd.xlane.f32.xlu0 %v7532
    %v7534 = vpop.xlane.xlu0 %7533
    %v7535 = vsel %vm7423, %v7332, 0.0
    %7536 = vadd.xlane.f32.xlu0 %v7535
    %v7537 = vpop.xlane.xlu0 %7536
    %v7538 = vsel %vm7423, %v7333, 0.0
    %7539 = vadd.xlane.f32.xlu0 %v7538
    %v7540 = vpop.xlane.xlu0 %7539
    %v7541 = vsel %vm7423, %v7334, 0.0
    %7542 = vadd.xlane.f32.xlu0 %v7541
    %v7543 = vpop.xlane.xlu0 %7542
    %v7544 = vsel %vm7423, %v7335, 0.0
    %7545 = vadd.xlane.f32.xlu0 %v7544
    %v7546 = vpop.xlane.xlu0 %7545
    %v7547 = vsel %vm7423, %v7336, 0.0
    %7548 = vadd.xlane.f32.xlu0 %v7547
    %v7549 = vpop.xlane.xlu0 %7548
    %v7550 = vsel %vm7423, %v7337, 0.0
    %7551 = vadd.xlane.f32.xlu0 %v7550
    %v7552 = vpop.xlane.xlu0 %7551
    %v7553 = vsel %vm7423, %v7338, 0.0
    %7554 = vadd.xlane.f32.xlu0 %v7553
    %v7555 = vpop.xlane.xlu0 %7554
    %v7556 = vsel %vm7423, %v7339, 0.0
    %7557 = vadd.xlane.f32.xlu0 %v7556
    %v7558 = vpop.xlane.xlu0 %7557
    %v7559 = vsel %vm7423, %v7340, 0.0
    %7560 = vadd.xlane.f32.xlu0 %v7559
    %v7561 = vpop.xlane.xlu0 %7560
    %v7562 = vsel %vm7423, %v7341, 0.0
    %7563 = vadd.xlane.f32.xlu0 %v7562
    %v7564 = vpop.xlane.xlu0 %7563
    %v7565 = vsel %vm7423, %v7342, 0.0
    %7566 = vadd.xlane.f32.xlu0 %v7565
    %v7567 = vpop.xlane.xlu0 %7566
    %v7568 = vsel %vm7423, %v7343, 0.0
    %7569 = vadd.xlane.f32.xlu0 %v7568
    %v7570 = vpop.xlane.xlu0 %7569
    %v7571 = vsel %vm7423, %v7344, 0.0
    %7572 = vadd.xlane.f32.xlu0 %v7571
    %v7573 = vpop.xlane.xlu0 %7572
    %v7574 = vsel %vm7423, %v7345, 0.0
    %7575 = vadd.xlane.f32.xlu0 %v7574
    %v7576 = vpop.xlane.xlu0 %7575
    %v7577 = vsel %vm7423, %v7346, 0.0
    %7578 = vadd.xlane.f32.xlu0 %v7577
    %v7579 = vpop.xlane.xlu0 %7578
    %v7580 = vsel %vm7423, %v7347, 0.0
    %7581 = vadd.xlane.f32.xlu0 %v7580
    %v7582 = vpop.xlane.xlu0 %7581
    %v7583 = vsel %vm7423, %v7348, 0.0
    %7584 = vadd.xlane.f32.xlu0 %v7583
    %v7585 = vpop.xlane.xlu0 %7584
    %v7586 = vsel %vm7423, %v7349, 0.0
    %7587 = vadd.xlane.f32.xlu0 %v7586
    %v7588 = vpop.xlane.xlu0 %7587
    %v7589 = vsel %vm7423, %v7350, 0.0
    %7590 = vadd.xlane.f32.xlu0 %v7589
    %v7591 = vpop.xlane.xlu0 %7590
    %v7592 = vsel %vm7423, %v7351, 0.0
    %7593 = vadd.xlane.f32.xlu0 %v7592
    %v7594 = vpop.xlane.xlu0 %7593
    %v7595 = vsel %vm7423, %v7352, 0.0
    %7596 = vadd.xlane.f32.xlu0 %v7595
    %v7597 = vpop.xlane.xlu0 %7596
    %v7598 = vsel %vm7423, %v7353, 0.0
    %7599 = vadd.xlane.f32.xlu0 %v7598
    %v7600 = vpop.xlane.xlu0 %7599
    %v7601 = vsel %vm7423, %v7354, 0.0
    %7602 = vadd.xlane.f32.xlu0 %v7601
    %v7603 = vpop.xlane.xlu0 %7602
    %v7604 = vsel %vm7423, %v7355, 0.0
    %7605 = vadd.xlane.f32.xlu0 %v7604
    %v7606 = vpop.xlane.xlu0 %7605
    %v7607 = vsel %vm7423, %v7356, 0.0
    %7608 = vadd.xlane.f32.xlu0 %v7607
    %v7609 = vpop.xlane.xlu0 %7608
    %v7610 = vsel %vm7423, %v7357, 0.0
    %7611 = vadd.xlane.f32.xlu0 %v7610
    %v7612 = vpop.xlane.xlu0 %7611
    %v7613 = vsel %vm7423, %v7358, 0.0
    %7614 = vadd.xlane.f32.xlu0 %v7613
    %v7615 = vpop.xlane.xlu0 %7614
    %v7616 = vsel %vm7423, %v7359, 0.0
    %7617 = vadd.xlane.f32.xlu0 %v7616
    %v7618 = vpop.xlane.xlu0 %7617
    %v7619 = vsel %vm7423, %v7360, 0.0
    %7620 = vadd.xlane.f32.xlu0 %v7619
    %v7621 = vpop.xlane.xlu0 %7620
    %v7622 = vsel %vm7423, %v7361, 0.0
    %7623 = vadd.xlane.f32.xlu0 %v7622
    %v7624 = vpop.xlane.xlu0 %7623
    %v7625 = vsel %vm7423, %v7362, 0.0
    %7626 = vadd.xlane.f32.xlu0 %v7625
    %v7627 = vpop.xlane.xlu0 %7626
    %v7628 = vsel %vm7423, %v7363, 0.0
    %7629 = vadd.xlane.f32.xlu0 %v7628
    %v7630 = vpop.xlane.xlu0 %7629
    %v7631 = vsel %vm7423, %v7364, 0.0
    %7632 = vadd.xlane.f32.xlu0 %v7631
    %v7633 = vpop.xlane.xlu0 %7632
    %v7634 = vsel %vm7423, %v7365, 0.0
    %7635 = vadd.xlane.f32.xlu0 %v7634
    %v7636 = vpop.xlane.xlu0 %7635
    %v7637 = vsel %vm7423, %v7366, 0.0
    %7638 = vadd.xlane.f32.xlu0 %v7637
    %v7639 = vpop.xlane.xlu0 %7638
    %v7640 = vsel %vm7423, %v7367, 0.0
    %7641 = vadd.xlane.f32.xlu0 %v7640
    %v7642 = vpop.xlane.xlu0 %7641
    %v7643 = vsel %vm7423, %v7368, 0.0
    %7644 = vadd.xlane.f32.xlu0 %v7643
    %v7645 = vpop.xlane.xlu0 %7644
    %v7646 = vsel %vm7423, %v7369, 0.0
    %7647 = vadd.xlane.f32.xlu0 %v7646
    %v7648 = vpop.xlane.xlu0 %7647
    %v7649 = vsel %vm7423, %v7370, 0.0
    %7650 = vadd.xlane.f32.xlu0 %v7649
    %v7651 = vpop.xlane.xlu0 %7650
    %v7652 = vsel %vm7423, %v7371, 0.0
    %7653 = vadd.xlane.f32.xlu0 %v7652
    %v7654 = vpop.xlane.xlu0 %7653
    %v7655 = vsel %vm7423, %v7372, 0.0
    %7656 = vadd.xlane.f32.xlu0 %v7655
    %v7657 = vpop.xlane.xlu0 %7656
    %v7658 = vsel %vm7423, %v7373, 0.0
    %7659 = vadd.xlane.f32.xlu0 %v7658
    %v7660 = vpop.xlane.xlu0 %7659
    %v7661 = vsel %vm7423, %v7374, 0.0
    %7662 = vadd.xlane.f32.xlu0 %v7661
    %v7663 = vpop.xlane.xlu0 %7662
    %v7664 = vsel %vm7423, %v7375, 0.0
    %7665 = vadd.xlane.f32.xlu0 %v7664
    %v7666 = vpop.xlane.xlu0 %7665
    %v7667 = vsel %vm7423, %v7376, 0.0
    %7668 = vadd.xlane.f32.xlu0 %v7667
    %v7669 = vpop.xlane.xlu0 %7668
    %v7670 = vsel %vm7423, %v7377, 0.0
    %7671 = vadd.xlane.f32.xlu0 %v7670
    %v7672 = vpop.xlane.xlu0 %7671
    %v7673 = vsel %vm7423, %v7378, 0.0
    %7674 = vadd.xlane.f32.xlu0 %v7673
    %v7675 = vpop.xlane.xlu0 %7674
    %v7676 = vsel %vm7423, %v7379, 0.0
    %7677 = vadd.xlane.f32.xlu0 %v7676
    %v7678 = vpop.xlane.xlu0 %7677
    %v7679 = vsel %vm7423, %v7380, 0.0
    %7680 = vadd.xlane.f32.xlu0 %v7679
    %v7681 = vpop.xlane.xlu0 %7680
    %v7682 = vsel %vm7423, %v7381, 0.0
    %7683 = vadd.xlane.f32.xlu0 %v7682
    %v7684 = vpop.xlane.xlu0 %7683
    %v7685 = vsel %vm7423, %v7382, 0.0
    %7686 = vadd.xlane.f32.xlu0 %v7685
    %v7687 = vpop.xlane.xlu0 %7686
    %v7688 = vsel %vm7423, %v7383, 0.0
    %7689 = vadd.xlane.f32.xlu0 %v7688
    %v7690 = vpop.xlane.xlu0 %7689
    %v7691 = vsel %vm7423, %v7384, 0.0
    %7692 = vadd.xlane.f32.xlu0 %v7691
    %v7693 = vpop.xlane.xlu0 %7692
    %v7694 = vsel %vm7423, %v7385, 0.0
    %7695 = vadd.xlane.f32.xlu0 %v7694
    %v7696 = vpop.xlane.xlu0 %7695
    %v7697 = vsel %vm7423, %v7386, 0.0
    %7698 = vadd.xlane.f32.xlu0 %v7697
    %v7699 = vpop.xlane.xlu0 %7698
    %v7700 = vsel %vm7423, %v7387, 0.0
    %7701 = vadd.xlane.f32.xlu0 %v7700
    %v7702 = vpop.xlane.xlu0 %7701
    %v7703 = vsel %vm7423, %v7388, 0.0
    %7704 = vadd.xlane.f32.xlu0 %v7703
    %v7705 = vpop.xlane.xlu0 %7704
    %v7706 = vsel %vm7423, %v7389, 0.0
    %7707 = vadd.xlane.f32.xlu0 %v7706
    %v7708 = vpop.xlane.xlu0 %7707
    %v7709 = vsel %vm7423, %v7390, 0.0
    %7710 = vadd.xlane.f32.xlu0 %v7709
    %v7711 = vpop.xlane.xlu0 %7710
    %v7712 = vsel %vm7423, %v7391, 0.0
    %7713 = vadd.xlane.f32.xlu0 %v7712
    %v7714 = vpop.xlane.xlu0 %7713
    %v7715 = vsel %vm7423, %v7392, 0.0
    %7716 = vadd.xlane.f32.xlu0 %v7715
    %v7717 = vpop.xlane.xlu0 %7716
    %v7718 = vsel %vm7423, %v7393, 0.0
    %7719 = vadd.xlane.f32.xlu0 %v7718
    %v7720 = vpop.xlane.xlu0 %7719
    %v7721 = vsel %vm7423, %v7394, 0.0
    %7722 = vadd.xlane.f32.xlu0 %v7721
    %v7723 = vpop.xlane.xlu0 %7722
    %v7724 = vsel %vm7423, %v7395, 0.0
    %7725 = vadd.xlane.f32.xlu0 %v7724
    %v7726 = vpop.xlane.xlu0 %7725
    %v7727 = vsel %vm7423, %v7396, 0.0
    %7728 = vadd.xlane.f32.xlu0 %v7727
    %v7729 = vpop.xlane.xlu0 %7728
    %v7730 = vsel %vm7423, %v7397, 0.0
    %7731 = vadd.xlane.f32.xlu0 %v7730
    %v7732 = vpop.xlane.xlu0 %7731
    %v7733 = vsel %vm7423, %v7398, 0.0
    %7734 = vadd.xlane.f32.xlu0 %v7733
    %v7735 = vpop.xlane.xlu0 %7734
    %v7736 = vsel %vm7423, %v7399, 0.0
    %7737 = vadd.xlane.f32.xlu0 %v7736
    %v7738 = vpop.xlane.xlu0 %7737
    %v7739 = vsel %vm7423, %v7400, 0.0
    %7740 = vadd.xlane.f32.xlu0 %v7739
    %v7741 = vpop.xlane.xlu0 %7740
    %v7742 = vsel %vm7423, %v7401, 0.0
    %7743 = vadd.xlane.f32.xlu0 %v7742
    %v7744 = vpop.xlane.xlu0 %7743
    %v7745 = vsel %vm7423, %v7402, 0.0
    %7746 = vadd.xlane.f32.xlu0 %v7745
    %v7747 = vpop.xlane.xlu0 %7746
    %v7748 = vsel %vm7423, %v7403, 0.0
    %7749 = vadd.xlane.f32.xlu0 %v7748
    %v7750 = vpop.xlane.xlu0 %7749
    %v7751 = vsel %vm7423, %v7404, 0.0
    %7752 = vadd.xlane.f32.xlu0 %v7751
    %v7753 = vpop.xlane.xlu0 %7752
    %v7754 = vsel %vm7423, %v7405, 0.0
    %7755 = vadd.xlane.f32.xlu0 %v7754
    %v7756 = vpop.xlane.xlu0 %7755
    %v7757 = vsel %vm7423, %v7406, 0.0
    %7758 = vadd.xlane.f32.xlu0 %v7757
    %v7759 = vpop.xlane.xlu0 %7758
    %v7760 = vsel %vm7423, %v7407, 0.0
    %7761 = vadd.xlane.f32.xlu0 %v7760
    %v7762 = vpop.xlane.xlu0 %7761
    %v7763 = vsel %vm7423, %v7408, 0.0
    %7764 = vadd.xlane.f32.xlu0 %v7763
    %v7765 = vpop.xlane.xlu0 %7764
    %v7766 = vsel %vm7423, %v7409, 0.0
    %7767 = vadd.xlane.f32.xlu0 %v7766
    %v7768 = vpop.xlane.xlu0 %7767
    %v7769 = vsel %vm7423, %v7410, 0.0
    %7770 = vadd.xlane.f32.xlu0 %v7769
    %v7771 = vpop.xlane.xlu0 %7770
    %v7772 = vsel %vm7423, %v7411, 0.0
    %7773 = vadd.xlane.f32.xlu0 %v7772
    %v7774 = vpop.xlane.xlu0 %7773
    %v7775 = vsel %vm7423, %v7412, 0.0
    %7776 = vadd.xlane.f32.xlu0 %v7775
    %v7777 = vpop.xlane.xlu0 %7776
    %v7778 = vsel %vm7423, %v7413, 0.0
    %7779 = vadd.xlane.f32.xlu0 %v7778
    %v7780 = vpop.xlane.xlu0 %7779
    %v7781 = vsel %vm7423, %v7414, 0.0
    %7782 = vadd.xlane.f32.xlu0 %v7781
    %v7783 = vpop.xlane.xlu0 %7782
    %v7784 = vsel %vm7423, %v7415, 0.0
    %7785 = vadd.xlane.f32.xlu0 %v7784
    %v7786 = vpop.xlane.xlu0 %7785
    %v7787 = vsel %vm7423, %v7416, 0.0
    %7788 = vadd.xlane.f32.xlu0 %v7787
    %v7789 = vpop.xlane.xlu0 %7788
    %v7790 = vsel %vm7423, %v7417, 0.0
    %7791 = vadd.xlane.f32.xlu0 %v7790
    %v7792 = vpop.xlane.xlu0 %7791
    %v7793 = vsel %vm7423, %v7418, 0.0
    %7794 = vadd.xlane.f32.xlu0 %v7793
    %v7795 = vpop.xlane.xlu0 %7794
    %v7796 = vsel %vm7423, %v7419, 0.0
    %7797 = vadd.xlane.f32.xlu0 %v7796
    %v7798 = vpop.xlane.xlu0 %7797
    %v7799 = vsel %vm7423, %v7420, 0.0
    %7800 = vadd.xlane.f32.xlu0 %v7799
    %v7801 = vpop.xlane.xlu0 %7800
    %v7802 = vsel %vm7423, %v7421, 0.0
    %7803 = vadd.xlane.f32.xlu0 %v7802
    %v7804 = vpop.xlane.xlu0 %7803
    %v7805 = vsel %vm7423, %v7422, 0.0
    %7806 = vadd.xlane.f32.xlu0 %v7805
    %v7807 = vpop.xlane.xlu0 %7806
    %v7808 = vlaneseq
    %v7809 = vand.u32 %v7808, 127
    %vm7810 = vcmp.lt.s32.totalorder %v7809, 8
    %v7939 = vlaneseq
    %v7940 = vshrl.u32 %v7939, 7
    %v7941 = vsub.s32 %v7809, %v7940
    %v7942 = vrot.slane %v7426, %v7941
    %v7943 = vadd.s32 %v7809, 4294967288
    %v7944 = vlaneseq
    %v7945 = vshrl.u32 %v7944, 7
    %v7946 = vsub.s32 %v7943, %v7945
    %v7947 = vrot.slane %v7429, %v7946
    %vm7948 = vcmask 130112
    %v7949 = vsel %vm7948, %v7947, %v7942
    %v7950 = vadd.s32 %v7809, 4294967280
    %v7951 = vlaneseq
    %v7952 = vshrl.u32 %v7951, 7
    %v7953 = vsub.s32 %v7950, %v7952
    %v7954 = vrot.slane %v7432, %v7953
    %vm7955 = vcmask 195712
    %v7956 = vsel %vm7955, %v7954, %v7949
    %v7957 = vadd.s32 %v7809, 4294967272
    %v7958 = vlaneseq
    %v7959 = vshrl.u32 %v7958, 7
    %v7960 = vsub.s32 %v7957, %v7959
    %v7961 = vrot.slane %v7435, %v7960
    %vm7962 = vcmask 261312
    %v7963 = vsel %vm7962, %v7961, %v7956
    %v7964 = vadd.s32 %v7809, 4294967264
    %v7965 = vlaneseq
    %v7966 = vshrl.u32 %v7965, 7
    %v7967 = vsub.s32 %v7964, %v7966
    %v7968 = vrot.slane %v7438, %v7967
    %vm7969 = vcmask 326912
    %v7970 = vsel %vm7969, %v7968, %v7963
    %v7971 = vadd.s32 %v7809, 4294967256
    %v7972 = vlaneseq
    %v7973 = vshrl.u32 %v7972, 7
    %v7974 = vsub.s32 %v7971, %v7973
    %v7975 = vrot.slane %v7441, %v7974
    %vm7976 = vcmask 392512
    %v7977 = vsel %vm7976, %v7975, %v7970
    %v7978 = vadd.s32 %v7809, 4294967248
    %v7979 = vlaneseq
    %v7980 = vshrl.u32 %v7979, 7
    %v7981 = vsub.s32 %v7978, %v7980
    %v7982 = vrot.slane %v7444, %v7981
    %vm7983 = vcmask 458112
    %v7984 = vsel %vm7983, %v7982, %v7977
    %v7985 = vadd.s32 %v7809, 4294967240
    %v7986 = vlaneseq
    %v7987 = vshrl.u32 %v7986, 7
    %v7988 = vsub.s32 %v7985, %v7987
    %v7989 = vrot.slane %v7447, %v7988
    %vm7990 = vcmask 523712
    %v7991 = vsel %vm7990, %v7989, %v7984
    %v7992 = vadd.s32 %v7809, 4294967232
    %v7993 = vlaneseq
    %v7994 = vshrl.u32 %v7993, 7
    %v7995 = vsub.s32 %v7992, %v7994
    %v7996 = vrot.slane %v7450, %v7995
    %vm7997 = vcmask 589312
    %v7998 = vsel %vm7997, %v7996, %v7991
    %v7999 = vadd.s32 %v7809, 4294967224
    %v8000 = vlaneseq
    %v8001 = vshrl.u32 %v8000, 7
    %v8002 = vsub.s32 %v7999, %v8001
    %v8003 = vrot.slane %v7453, %v8002
    %vm8004 = vcmask 654912
    %v8005 = vsel %vm8004, %v8003, %v7998
    %v8006 = vadd.s32 %v7809, 4294967216
    %v8007 = vlaneseq
    %v8008 = vshrl.u32 %v8007, 7
    %v8009 = vsub.s32 %v8006, %v8008
    %v8010 = vrot.slane %v7456, %v8009
    %vm8011 = vcmask 720512
    %v8012 = vsel %vm8011, %v8010, %v8005
    %v8013 = vadd.s32 %v7809, 4294967208
    %v8014 = vlaneseq
    %v8015 = vshrl.u32 %v8014, 7
    %v8016 = vsub.s32 %v8013, %v8015
    %v8017 = vrot.slane %v7459, %v8016
    %vm8018 = vcmask 786112
    %v8019 = vsel %vm8018, %v8017, %v8012
    %v8020 = vadd.s32 %v7809, 4294967200
    %v8021 = vlaneseq
    %v8022 = vshrl.u32 %v8021, 7
    %v8023 = vsub.s32 %v8020, %v8022
    %v8024 = vrot.slane %v7462, %v8023
    %vm8025 = vcmask 851712
    %v8026 = vsel %vm8025, %v8024, %v8019
    %v8027 = vadd.s32 %v7809, 4294967192
    %v8028 = vlaneseq
    %v8029 = vshrl.u32 %v8028, 7
    %v8030 = vsub.s32 %v8027, %v8029
    %v8031 = vrot.slane %v7465, %v8030
    %vm8032 = vcmask 917312
    %v8033 = vsel %vm8032, %v8031, %v8026
    %v8034 = vadd.s32 %v7809, 4294967184
    %v8035 = vlaneseq
    %v8036 = vshrl.u32 %v8035, 7
    %v8037 = vsub.s32 %v8034, %v8036
    %v8038 = vrot.slane %v7468, %v8037
    %vm8039 = vcmask 982912
    %v8040 = vsel %vm8039, %v8038, %v8033
    %v8041 = vadd.s32 %v7809, 4294967176
    %v8042 = vlaneseq
    %v8043 = vshrl.u32 %v8042, 7
    %v8044 = vsub.s32 %v8041, %v8043
    %v8045 = vrot.slane %v7471, %v8044
    %vm8046 = vcmask 1048512
    %v8047 = vsel %vm8046, %v8045, %v8040
    %v8048 = vlaneseq
    %v8049 = vshrl.u32 %v8048, 7
    %v8050 = vsub.s32 %v7809, %v8049
    %v8051 = vrot.slane %v7474, %v8050
    %v8052 = vlaneseq
    %v8053 = vshrl.u32 %v8052, 7
    %v8054 = vsub.s32 %v7943, %v8053
    %v8055 = vrot.slane %v7477, %v8054
    %v8056 = vsel %vm7948, %v8055, %v8051
    %v8057 = vlaneseq
    %v8058 = vshrl.u32 %v8057, 7
    %v8059 = vsub.s32 %v7950, %v8058
    %v8060 = vrot.slane %v7480, %v8059
    %v8061 = vsel %vm7955, %v8060, %v8056
    %v8062 = vlaneseq
    %v8063 = vshrl.u32 %v8062, 7
    %v8064 = vsub.s32 %v7957, %v8063
    %v8065 = vrot.slane %v7483, %v8064
    %v8066 = vsel %vm7962, %v8065, %v8061
    %v8067 = vlaneseq
    %v8068 = vshrl.u32 %v8067, 7
    %v8069 = vsub.s32 %v7964, %v8068
    %v8070 = vrot.slane %v7486, %v8069
    %v8071 = vsel %vm7969, %v8070, %v8066
    %v8072 = vlaneseq
    %v8073 = vshrl.u32 %v8072, 7
    %v8074 = vsub.s32 %v7971, %v8073
    %v8075 = vrot.slane %v7489, %v8074
    %v8076 = vsel %vm7976, %v8075, %v8071
    %v8077 = vlaneseq
    %v8078 = vshrl.u32 %v8077, 7
    %v8079 = vsub.s32 %v7978, %v8078
    %v8080 = vrot.slane %v7492, %v8079
    %v8081 = vsel %vm7983, %v8080, %v8076
    %v8082 = vlaneseq
    %v8083 = vshrl.u32 %v8082, 7
    %v8084 = vsub.s32 %v7985, %v8083
    %v8085 = vrot.slane %v7495, %v8084
    %v8086 = vsel %vm7990, %v8085, %v8081
    %v8087 = vlaneseq
    %v8088 = vshrl.u32 %v8087, 7
    %v8089 = vsub.s32 %v7992, %v8088
    %v8090 = vrot.slane %v7498, %v8089
    %v8091 = vsel %vm7997, %v8090, %v8086
    %v8092 = vlaneseq
    %v8093 = vshrl.u32 %v8092, 7
    %v8094 = vsub.s32 %v7999, %v8093
    %v8095 = vrot.slane %v7501, %v8094
    %v8096 = vsel %vm8004, %v8095, %v8091
    %v8097 = vlaneseq
    %v8098 = vshrl.u32 %v8097, 7
    %v8099 = vsub.s32 %v8006, %v8098
    %v8100 = vrot.slane %v7504, %v8099
    %v8101 = vsel %vm8011, %v8100, %v8096
    %v8102 = vlaneseq
    %v8103 = vshrl.u32 %v8102, 7
    %v8104 = vsub.s32 %v8013, %v8103
    %v8105 = vrot.slane %v7507, %v8104
    %v8106 = vsel %vm8018, %v8105, %v8101
    %v8107 = vlaneseq
    %v8108 = vshrl.u32 %v8107, 7
    %v8109 = vsub.s32 %v8020, %v8108
    %v8110 = vrot.slane %v7510, %v8109
    %v8111 = vsel %vm8025, %v8110, %v8106
    %v8112 = vlaneseq
    %v8113 = vshrl.u32 %v8112, 7
    %v8114 = vsub.s32 %v8027, %v8113
    %v8115 = vrot.slane %v7513, %v8114
    %v8116 = vsel %vm8032, %v8115, %v8111
    %v8117 = vlaneseq
    %v8118 = vshrl.u32 %v8117, 7
    %v8119 = vsub.s32 %v8034, %v8118
    %v8120 = vrot.slane %v7516, %v8119
    %v8121 = vsel %vm8039, %v8120, %v8116
    %v8122 = vlaneseq
    %v8123 = vshrl.u32 %v8122, 7
    %v8124 = vsub.s32 %v8041, %v8123
    %v8125 = vrot.slane %v7519, %v8124
    %v8126 = vsel %vm8046, %v8125, %v8121
    %v8127 = vlaneseq
    %v8128 = vshrl.u32 %v8127, 7
    %v8129 = vsub.s32 %v7809, %v8128
    %v8130 = vrot.slane %v7522, %v8129
    %v8131 = vlaneseq
    %v8132 = vshrl.u32 %v8131, 7
    %v8133 = vsub.s32 %v7943, %v8132
    %v8134 = vrot.slane %v7525, %v8133
    %v8135 = vsel %vm7948, %v8134, %v8130
    %v8136 = vlaneseq
    %v8137 = vshrl.u32 %v8136, 7
    %v8138 = vsub.s32 %v7950, %v8137
    %v8139 = vrot.slane %v7528, %v8138
    %v8140 = vsel %vm7955, %v8139, %v8135
    %v8141 = vlaneseq
    %v8142 = vshrl.u32 %v8141, 7
    %v8143 = vsub.s32 %v7957, %v8142
    %v8144 = vrot.slane %v7531, %v8143
    %v8145 = vsel %vm7962, %v8144, %v8140
    %v8146 = vlaneseq
    %v8147 = vshrl.u32 %v8146, 7
    %v8148 = vsub.s32 %v7964, %v8147
    %v8149 = vrot.slane %v7534, %v8148
    %v8150 = vsel %vm7969, %v8149, %v8145
    %v8151 = vlaneseq
    %v8152 = vshrl.u32 %v8151, 7
    %v8153 = vsub.s32 %v7971, %v8152
    %v8154 = vrot.slane %v7537, %v8153
    %v8155 = vsel %vm7976, %v8154, %v8150
    %v8156 = vlaneseq
    %v8157 = vshrl.u32 %v8156, 7
    %v8158 = vsub.s32 %v7978, %v8157
    %v8159 = vrot.slane %v7540, %v8158
    %v8160 = vsel %vm7983, %v8159, %v8155
    %v8161 = vlaneseq
    %v8162 = vshrl.u32 %v8161, 7
    %v8163 = vsub.s32 %v7985, %v8162
    %v8164 = vrot.slane %v7543, %v8163
    %v8165 = vsel %vm7990, %v8164, %v8160
    %v8166 = vlaneseq
    %v8167 = vshrl.u32 %v8166, 7
    %v8168 = vsub.s32 %v7992, %v8167
    %v8169 = vrot.slane %v7546, %v8168
    %v8170 = vsel %vm7997, %v8169, %v8165
    %v8171 = vlaneseq
    %v8172 = vshrl.u32 %v8171, 7
    %v8173 = vsub.s32 %v7999, %v8172
    %v8174 = vrot.slane %v7549, %v8173
    %v8175 = vsel %vm8004, %v8174, %v8170
    %v8176 = vlaneseq
    %v8177 = vshrl.u32 %v8176, 7
    %v8178 = vsub.s32 %v8006, %v8177
    %v8179 = vrot.slane %v7552, %v8178
    %v8180 = vsel %vm8011, %v8179, %v8175
    %v8181 = vlaneseq
    %v8182 = vshrl.u32 %v8181, 7
    %v8183 = vsub.s32 %v8013, %v8182
    %v8184 = vrot.slane %v7555, %v8183
    %v8185 = vsel %vm8018, %v8184, %v8180
    %v8186 = vlaneseq
    %v8187 = vshrl.u32 %v8186, 7
    %v8188 = vsub.s32 %v8020, %v8187
    %v8189 = vrot.slane %v7558, %v8188
    %v8190 = vsel %vm8025, %v8189, %v8185
    %v8191 = vlaneseq
    %v8192 = vshrl.u32 %v8191, 7
    %v8193 = vsub.s32 %v8027, %v8192
    %v8194 = vrot.slane %v7561, %v8193
    %v8195 = vsel %vm8032, %v8194, %v8190
    %v8196 = vlaneseq
    %v8197 = vshrl.u32 %v8196, 7
    %v8198 = vsub.s32 %v8034, %v8197
    %v8199 = vrot.slane %v7564, %v8198
    %v8200 = vsel %vm8039, %v8199, %v8195
    %v8201 = vlaneseq
    %v8202 = vshrl.u32 %v8201, 7
    %v8203 = vsub.s32 %v8041, %v8202
    %v8204 = vrot.slane %v7567, %v8203
    %v8205 = vsel %vm8046, %v8204, %v8200
    %v8206 = vlaneseq
    %v8207 = vshrl.u32 %v8206, 7
    %v8208 = vsub.s32 %v7809, %v8207
    %v8209 = vrot.slane %v7570, %v8208
    %v8210 = vlaneseq
    %v8211 = vshrl.u32 %v8210, 7
    %v8212 = vsub.s32 %v7943, %v8211
    %v8213 = vrot.slane %v7573, %v8212
    %v8214 = vsel %vm7948, %v8213, %v8209
    %v8215 = vlaneseq
    %v8216 = vshrl.u32 %v8215, 7
    %v8217 = vsub.s32 %v7950, %v8216
    %v8218 = vrot.slane %v7576, %v8217
    %v8219 = vsel %vm7955, %v8218, %v8214
    %v8220 = vlaneseq
    %v8221 = vshrl.u32 %v8220, 7
    %v8222 = vsub.s32 %v7957, %v8221
    %v8223 = vrot.slane %v7579, %v8222
    %v8224 = vsel %vm7962, %v8223, %v8219
    %v8225 = vlaneseq
    %v8226 = vshrl.u32 %v8225, 7
    %v8227 = vsub.s32 %v7964, %v8226
    %v8228 = vrot.slane %v7582, %v8227
    %v8229 = vsel %vm7969, %v8228, %v8224
    %v8230 = vlaneseq
    %v8231 = vshrl.u32 %v8230, 7
    %v8232 = vsub.s32 %v7971, %v8231
    %v8233 = vrot.slane %v7585, %v8232
    %v8234 = vsel %vm7976, %v8233, %v8229
    %v8235 = vlaneseq
    %v8236 = vshrl.u32 %v8235, 7
    %v8237 = vsub.s32 %v7978, %v8236
    %v8238 = vrot.slane %v7588, %v8237
    %v8239 = vsel %vm7983, %v8238, %v8234
    %v8240 = vlaneseq
    %v8241 = vshrl.u32 %v8240, 7
    %v8242 = vsub.s32 %v7985, %v8241
    %v8243 = vrot.slane %v7591, %v8242
    %v8244 = vsel %vm7990, %v8243, %v8239
    %v8245 = vlaneseq
    %v8246 = vshrl.u32 %v8245, 7
    %v8247 = vsub.s32 %v7992, %v8246
    %v8248 = vrot.slane %v7594, %v8247
    %v8249 = vsel %vm7997, %v8248, %v8244
    %v8250 = vlaneseq
    %v8251 = vshrl.u32 %v8250, 7
    %v8252 = vsub.s32 %v7999, %v8251
    %v8253 = vrot.slane %v7597, %v8252
    %v8254 = vsel %vm8004, %v8253, %v8249
    %v8255 = vlaneseq
    %v8256 = vshrl.u32 %v8255, 7
    %v8257 = vsub.s32 %v8006, %v8256
    %v8258 = vrot.slane %v7600, %v8257
    %v8259 = vsel %vm8011, %v8258, %v8254
    %v8260 = vlaneseq
    %v8261 = vshrl.u32 %v8260, 7
    %v8262 = vsub.s32 %v8013, %v8261
    %v8263 = vrot.slane %v7603, %v8262
    %v8264 = vsel %vm8018, %v8263, %v8259
    %v8265 = vlaneseq
    %v8266 = vshrl.u32 %v8265, 7
    %v8267 = vsub.s32 %v8020, %v8266
    %v8268 = vrot.slane %v7606, %v8267
    %v8269 = vsel %vm8025, %v8268, %v8264
    %v8270 = vlaneseq
    %v8271 = vshrl.u32 %v8270, 7
    %v8272 = vsub.s32 %v8027, %v8271
    %v8273 = vrot.slane %v7609, %v8272
    %v8274 = vsel %vm8032, %v8273, %v8269
    %v8275 = vlaneseq
    %v8276 = vshrl.u32 %v8275, 7
    %v8277 = vsub.s32 %v8034, %v8276
    %v8278 = vrot.slane %v7612, %v8277
    %v8279 = vsel %vm8039, %v8278, %v8274
    %v8280 = vlaneseq
    %v8281 = vshrl.u32 %v8280, 7
    %v8282 = vsub.s32 %v8041, %v8281
    %v8283 = vrot.slane %v7615, %v8282
    %v8284 = vsel %vm8046, %v8283, %v8279
    %v8285 = vlaneseq
    %v8286 = vshrl.u32 %v8285, 7
    %v8287 = vsub.s32 %v7809, %v8286
    %v8288 = vrot.slane %v7618, %v8287
    %v8289 = vlaneseq
    %v8290 = vshrl.u32 %v8289, 7
    %v8291 = vsub.s32 %v7943, %v8290
    %v8292 = vrot.slane %v7621, %v8291
    %v8293 = vsel %vm7948, %v8292, %v8288
    %v8294 = vlaneseq
    %v8295 = vshrl.u32 %v8294, 7
    %v8296 = vsub.s32 %v7950, %v8295
    %v8297 = vrot.slane %v7624, %v8296
    %v8298 = vsel %vm7955, %v8297, %v8293
    %v8299 = vlaneseq
    %v8300 = vshrl.u32 %v8299, 7
    %v8301 = vsub.s32 %v7957, %v8300
    %v8302 = vrot.slane %v7627, %v8301
    %v8303 = vsel %vm7962, %v8302, %v8298
    %v8304 = vlaneseq
    %v8305 = vshrl.u32 %v8304, 7
    %v8306 = vsub.s32 %v7964, %v8305
    %v8307 = vrot.slane %v7630, %v8306
    %v8308 = vsel %vm7969, %v8307, %v8303
    %v8309 = vlaneseq
    %v8310 = vshrl.u32 %v8309, 7
    %v8311 = vsub.s32 %v7971, %v8310
    %v8312 = vrot.slane %v7633, %v8311
    %v8313 = vsel %vm7976, %v8312, %v8308
    %v8314 = vlaneseq
    %v8315 = vshrl.u32 %v8314, 7
    %v8316 = vsub.s32 %v7978, %v8315
    %v8317 = vrot.slane %v7636, %v8316
    %v8318 = vsel %vm7983, %v8317, %v8313
    %v8319 = vlaneseq
    %v8320 = vshrl.u32 %v8319, 7
    %v8321 = vsub.s32 %v7985, %v8320
    %v8322 = vrot.slane %v7639, %v8321
    %v8323 = vsel %vm7990, %v8322, %v8318
    %v8324 = vlaneseq
    %v8325 = vshrl.u32 %v8324, 7
    %v8326 = vsub.s32 %v7992, %v8325
    %v8327 = vrot.slane %v7642, %v8326
    %v8328 = vsel %vm7997, %v8327, %v8323
    %v8329 = vlaneseq
    %v8330 = vshrl.u32 %v8329, 7
    %v8331 = vsub.s32 %v7999, %v8330
    %v8332 = vrot.slane %v7645, %v8331
    %v8333 = vsel %vm8004, %v8332, %v8328
    %v8334 = vlaneseq
    %v8335 = vshrl.u32 %v8334, 7
    %v8336 = vsub.s32 %v8006, %v8335
    %v8337 = vrot.slane %v7648, %v8336
    %v8338 = vsel %vm8011, %v8337, %v8333
    %v8339 = vlaneseq
    %v8340 = vshrl.u32 %v8339, 7
    %v8341 = vsub.s32 %v8013, %v8340
    %v8342 = vrot.slane %v7651, %v8341
    %v8343 = vsel %vm8018, %v8342, %v8338
    %v8344 = vlaneseq
    %v8345 = vshrl.u32 %v8344, 7
    %v8346 = vsub.s32 %v8020, %v8345
    %v8347 = vrot.slane %v7654, %v8346
    %v8348 = vsel %vm8025, %v8347, %v8343
    %v8349 = vlaneseq
    %v8350 = vshrl.u32 %v8349, 7
    %v8351 = vsub.s32 %v8027, %v8350
    %v8352 = vrot.slane %v7657, %v8351
    %v8353 = vsel %vm8032, %v8352, %v8348
    %v8354 = vlaneseq
    %v8355 = vshrl.u32 %v8354, 7
    %v8356 = vsub.s32 %v8034, %v8355
    %v8357 = vrot.slane %v7660, %v8356
    %v8358 = vsel %vm8039, %v8357, %v8353
    %v8359 = vlaneseq
    %v8360 = vshrl.u32 %v8359, 7
    %v8361 = vsub.s32 %v8041, %v8360
    %v8362 = vrot.slane %v7663, %v8361
    %v8363 = vsel %vm8046, %v8362, %v8358
    %v8364 = vlaneseq
    %v8365 = vshrl.u32 %v8364, 7
    %v8366 = vsub.s32 %v7809, %v8365
    %v8367 = vrot.slane %v7666, %v8366
    %v8368 = vlaneseq
    %v8369 = vshrl.u32 %v8368, 7
    %v8370 = vsub.s32 %v7943, %v8369
    %v8371 = vrot.slane %v7669, %v8370
    %v8372 = vsel %vm7948, %v8371, %v8367
    %v8373 = vlaneseq
    %v8374 = vshrl.u32 %v8373, 7
    %v8375 = vsub.s32 %v7950, %v8374
    %v8376 = vrot.slane %v7672, %v8375
    %v8377 = vsel %vm7955, %v8376, %v8372
    %v8378 = vlaneseq
    %v8379 = vshrl.u32 %v8378, 7
    %v8380 = vsub.s32 %v7957, %v8379
    %v8381 = vrot.slane %v7675, %v8380
    %v8382 = vsel %vm7962, %v8381, %v8377
    %v8383 = vlaneseq
    %v8384 = vshrl.u32 %v8383, 7
    %v8385 = vsub.s32 %v7964, %v8384
    %v8386 = vrot.slane %v7678, %v8385
    %v8387 = vsel %vm7969, %v8386, %v8382
    %v8388 = vlaneseq
    %v8389 = vshrl.u32 %v8388, 7
    %v8390 = vsub.s32 %v7971, %v8389
    %v8391 = vrot.slane %v7681, %v8390
    %v8392 = vsel %vm7976, %v8391, %v8387
    %v8393 = vlaneseq
    %v8394 = vshrl.u32 %v8393, 7
    %v8395 = vsub.s32 %v7978, %v8394
    %v8396 = vrot.slane %v7684, %v8395
    %v8397 = vsel %vm7983, %v8396, %v8392
    %v8398 = vlaneseq
    %v8399 = vshrl.u32 %v8398, 7
    %v8400 = vsub.s32 %v7985, %v8399
    %v8401 = vrot.slane %v7687, %v8400
    %v8402 = vsel %vm7990, %v8401, %v8397
    %v8403 = vlaneseq
    %v8404 = vshrl.u32 %v8403, 7
    %v8405 = vsub.s32 %v7992, %v8404
    %v8406 = vrot.slane %v7690, %v8405
    %v8407 = vsel %vm7997, %v8406, %v8402
    %v8408 = vlaneseq
    %v8409 = vshrl.u32 %v8408, 7
    %v8410 = vsub.s32 %v7999, %v8409
    %v8411 = vrot.slane %v7693, %v8410
    %v8412 = vsel %vm8004, %v8411, %v8407
    %v8413 = vlaneseq
    %v8414 = vshrl.u32 %v8413, 7
    %v8415 = vsub.s32 %v8006, %v8414
    %v8416 = vrot.slane %v7696, %v8415
    %v8417 = vsel %vm8011, %v8416, %v8412
    %v8418 = vlaneseq
    %v8419 = vshrl.u32 %v8418, 7
    %v8420 = vsub.s32 %v8013, %v8419
    %v8421 = vrot.slane %v7699, %v8420
    %v8422 = vsel %vm8018, %v8421, %v8417
    %v8423 = vlaneseq
    %v8424 = vshrl.u32 %v8423, 7
    %v8425 = vsub.s32 %v8020, %v8424
    %v8426 = vrot.slane %v7702, %v8425
    %v8427 = vsel %vm8025, %v8426, %v8422
    %v8428 = vlaneseq
    %v8429 = vshrl.u32 %v8428, 7
    %v8430 = vsub.s32 %v8027, %v8429
    %v8431 = vrot.slane %v7705, %v8430
    %v8432 = vsel %vm8032, %v8431, %v8427
    %v8433 = vlaneseq
    %v8434 = vshrl.u32 %v8433, 7
    %v8435 = vsub.s32 %v8034, %v8434
    %v8436 = vrot.slane %v7708, %v8435
    %v8437 = vsel %vm8039, %v8436, %v8432
    %v8438 = vlaneseq
    %v8439 = vshrl.u32 %v8438, 7
    %v8440 = vsub.s32 %v8041, %v8439
    %v8441 = vrot.slane %v7711, %v8440
    %v8442 = vsel %vm8046, %v8441, %v8437
    %v8443 = vlaneseq
    %v8444 = vshrl.u32 %v8443, 7
    %v8445 = vsub.s32 %v7809, %v8444
    %v8446 = vrot.slane %v7714, %v8445
    %v8447 = vlaneseq
    %v8448 = vshrl.u32 %v8447, 7
    %v8449 = vsub.s32 %v7943, %v8448
    %v8450 = vrot.slane %v7717, %v8449
    %v8451 = vsel %vm7948, %v8450, %v8446
    %v8452 = vlaneseq
    %v8453 = vshrl.u32 %v8452, 7
    %v8454 = vsub.s32 %v7950, %v8453
    %v8455 = vrot.slane %v7720, %v8454
    %v8456 = vsel %vm7955, %v8455, %v8451
    %v8457 = vlaneseq
    %v8458 = vshrl.u32 %v8457, 7
    %v8459 = vsub.s32 %v7957, %v8458
    %v8460 = vrot.slane %v7723, %v8459
    %v8461 = vsel %vm7962, %v8460, %v8456
    %v8462 = vlaneseq
    %v8463 = vshrl.u32 %v8462, 7
    %v8464 = vsub.s32 %v7964, %v8463
    %v8465 = vrot.slane %v7726, %v8464
    %v8466 = vsel %vm7969, %v8465, %v8461
    %v8467 = vlaneseq
    %v8468 = vshrl.u32 %v8467, 7
    %v8469 = vsub.s32 %v7971, %v8468
    %v8470 = vrot.slane %v7729, %v8469
    %v8471 = vsel %vm7976, %v8470, %v8466
    %v8472 = vlaneseq
    %v8473 = vshrl.u32 %v8472, 7
    %v8474 = vsub.s32 %v7978, %v8473
    %v8475 = vrot.slane %v7732, %v8474
    %v8476 = vsel %vm7983, %v8475, %v8471
    %v8477 = vlaneseq
    %v8478 = vshrl.u32 %v8477, 7
    %v8479 = vsub.s32 %v7985, %v8478
    %v8480 = vrot.slane %v7735, %v8479
    %v8481 = vsel %vm7990, %v8480, %v8476
    %v8482 = vlaneseq
    %v8483 = vshrl.u32 %v8482, 7
    %v8484 = vsub.s32 %v7992, %v8483
    %v8485 = vrot.slane %v7738, %v8484
    %v8486 = vsel %vm7997, %v8485, %v8481
    %v8487 = vlaneseq
    %v8488 = vshrl.u32 %v8487, 7
    %v8489 = vsub.s32 %v7999, %v8488
    %v8490 = vrot.slane %v7741, %v8489
    %v8491 = vsel %vm8004, %v8490, %v8486
    %v8492 = vlaneseq
    %v8493 = vshrl.u32 %v8492, 7
    %v8494 = vsub.s32 %v8006, %v8493
    %v8495 = vrot.slane %v7744, %v8494
    %v8496 = vsel %vm8011, %v8495, %v8491
    %v8497 = vlaneseq
    %v8498 = vshrl.u32 %v8497, 7
    %v8499 = vsub.s32 %v8013, %v8498
    %v8500 = vrot.slane %v7747, %v8499
    %v8501 = vsel %vm8018, %v8500, %v8496
    %v8502 = vlaneseq
    %v8503 = vshrl.u32 %v8502, 7
    %v8504 = vsub.s32 %v8020, %v8503
    %v8505 = vrot.slane %v7750, %v8504
    %v8506 = vsel %vm8025, %v8505, %v8501
    %v8507 = vlaneseq
    %v8508 = vshrl.u32 %v8507, 7
    %v8509 = vsub.s32 %v8027, %v8508
    %v8510 = vrot.slane %v7753, %v8509
    %v8511 = vsel %vm8032, %v8510, %v8506
    %v8512 = vlaneseq
    %v8513 = vshrl.u32 %v8512, 7
    %v8514 = vsub.s32 %v8034, %v8513
    %v8515 = vrot.slane %v7756, %v8514
    %v8516 = vsel %vm8039, %v8515, %v8511
    %v8517 = vlaneseq
    %v8518 = vshrl.u32 %v8517, 7
    %v8519 = vsub.s32 %v8041, %v8518
    %v8520 = vrot.slane %v7759, %v8519
    %v8521 = vsel %vm8046, %v8520, %v8516
    %v8522 = vlaneseq
    %v8523 = vshrl.u32 %v8522, 7
    %v8524 = vsub.s32 %v7809, %v8523
    %v8525 = vrot.slane %v7762, %v8524
    %v8526 = vlaneseq
    %v8527 = vshrl.u32 %v8526, 7
    %v8528 = vsub.s32 %v7943, %v8527
    %v8529 = vrot.slane %v7765, %v8528
    %v8530 = vsel %vm7948, %v8529, %v8525
    %v8531 = vlaneseq
    %v8532 = vshrl.u32 %v8531, 7
    %v8533 = vsub.s32 %v7950, %v8532
    %v8534 = vrot.slane %v7768, %v8533
    %v8535 = vsel %vm7955, %v8534, %v8530
    %v8536 = vlaneseq
    %v8537 = vshrl.u32 %v8536, 7
    %v8538 = vsub.s32 %v7957, %v8537
    %v8539 = vrot.slane %v7771, %v8538
    %v8540 = vsel %vm7962, %v8539, %v8535
    %v8541 = vlaneseq
    %v8542 = vshrl.u32 %v8541, 7
    %v8543 = vsub.s32 %v7964, %v8542
    %v8544 = vrot.slane %v7774, %v8543
    %v8545 = vsel %vm7969, %v8544, %v8540
    %v8546 = vlaneseq
    %v8547 = vshrl.u32 %v8546, 7
    %v8548 = vsub.s32 %v7971, %v8547
    %v8549 = vrot.slane %v7777, %v8548
    %v8550 = vsel %vm7976, %v8549, %v8545
    %v8551 = vlaneseq
    %v8552 = vshrl.u32 %v8551, 7
    %v8553 = vsub.s32 %v7978, %v8552
    %v8554 = vrot.slane %v7780, %v8553
    %v8555 = vsel %vm7983, %v8554, %v8550
    %v8556 = vlaneseq
    %v8557 = vshrl.u32 %v8556, 7
    %v8558 = vsub.s32 %v7985, %v8557
    %v8559 = vrot.slane %v7783, %v8558
    %v8560 = vsel %vm7990, %v8559, %v8555
    %v8561 = vlaneseq
    %v8562 = vshrl.u32 %v8561, 7
    %v8563 = vsub.s32 %v7992, %v8562
    %v8564 = vrot.slane %v7786, %v8563
    %v8565 = vsel %vm7997, %v8564, %v8560
    %v8566 = vlaneseq
    %v8567 = vshrl.u32 %v8566, 7
    %v8568 = vsub.s32 %v7999, %v8567
    %v8569 = vrot.slane %v7789, %v8568
    %v8570 = vsel %vm8004, %v8569, %v8565
    %v8571 = vlaneseq
    %v8572 = vshrl.u32 %v8571, 7
    %v8573 = vsub.s32 %v8006, %v8572
    %v8574 = vrot.slane %v7792, %v8573
    %v8575 = vsel %vm8011, %v8574, %v8570
    %v8576 = vlaneseq
    %v8577 = vshrl.u32 %v8576, 7
    %v8578 = vsub.s32 %v8013, %v8577
    %v8579 = vrot.slane %v7795, %v8578
    %v8580 = vsel %vm8018, %v8579, %v8575
    %v8581 = vlaneseq
    %v8582 = vshrl.u32 %v8581, 7
    %v8583 = vsub.s32 %v8020, %v8582
    %v8584 = vrot.slane %v7798, %v8583
    %v8585 = vsel %vm8025, %v8584, %v8580
    %v8586 = vlaneseq
    %v8587 = vshrl.u32 %v8586, 7
    %v8588 = vsub.s32 %v8027, %v8587
    %v8589 = vrot.slane %v7801, %v8588
    %v8590 = vsel %vm8032, %v8589, %v8585
    %v8591 = vlaneseq
    %v8592 = vshrl.u32 %v8591, 7
    %v8593 = vsub.s32 %v8034, %v8592
    %v8594 = vrot.slane %v7804, %v8593
    %v8595 = vsel %vm8039, %v8594, %v8590
    %v8596 = vlaneseq
    %v8597 = vshrl.u32 %v8596, 7
    %v8598 = vsub.s32 %v8041, %v8597
    %v8599 = vrot.slane %v7807, %v8598
    %v8600 = vsel %vm8046, %v8599, %v8595
    %vm8601 = vcmask 1041409
    %v8602 = vsel %vm8601, %v8126, %v8047
    %vm8603 = vcmask 1042434
    %v8604 = vsel %vm8603, %v8205, %v8602
    %vm8605 = vcmask 1043459
    %v8606 = vsel %vm8605, %v8284, %v8604
    %vm8607 = vcmask 1044484
    %v8608 = vsel %vm8607, %v8363, %v8606
    %vm8609 = vcmask 1045509
    %v8610 = vsel %vm8609, %v8442, %v8608
    %vm8611 = vcmask 1046534
    %v8612 = vsel %vm8611, %v8521, %v8610
    %vm8613 = vcmask 1047559
    %v8614 = vsel %vm8613, %v8600, %v8612
    %v8616 = vsel %vm7810, %v8614, -1e+30
    %8617 = vmax.xlane.f32.xlu0 %v8616
    %v8618 = vpop.xlane.xlu0 %8617
    %v8619 = vsub.f32 %v8616, %v8618
    %v8620 = vmul.f32 %v8619, 1.442695
    %v8621 = vpow.pop %v8620
    %8622 = vadd.xlane.f32.xlu0 %v8621
    %v8623 = vpop.xlane.xlu0 %8622
    %v8624 = vrcp.pop %v8623
    %v8625 = vmul.f32 %v8621, %v8624
    %v8626 = vlaneseq
    %v8627 = vshrl.u32 %v8626, 7
    %v8628 = vsub.s32 0, %v8627
    %v8629 = vrot.slane %v8625, %v8628
    %8631 = vbcast.lane.b32.xlu0 %v8629, 256
    %v8632 = vpop.permute.xlu0 %8631
    %s8634 = sor.u32 256, 8
    %8635 = vbcast.lane.b32.xlu0 %v8629, %s8634
    %v8636 = vpop.permute.xlu0 %8635
    %s8638 = sor.u32 256, 16
    %8639 = vbcast.lane.b32.xlu0 %v8629, %s8638
    %v8640 = vpop.permute.xlu0 %8639
    %s8642 = sor.u32 256, 24
    %8643 = vbcast.lane.b32.xlu0 %v8629, %s8642
    %v8644 = vpop.permute.xlu0 %8643
    %s8646 = sor.u32 256, 32
    %8647 = vbcast.lane.b32.xlu0 %v8629, %s8646
    %v8648 = vpop.permute.xlu0 %8647
    %s8650 = sor.u32 256, 40
    %8651 = vbcast.lane.b32.xlu0 %v8629, %s8650
    %v8652 = vpop.permute.xlu0 %8651
    %s8654 = sor.u32 256, 48
    %8655 = vbcast.lane.b32.xlu0 %v8629, %s8654
    %v8656 = vpop.permute.xlu0 %8655
    %s8658 = sor.u32 256, 56
    %8659 = vbcast.lane.b32.xlu0 %v8629, %s8658
    %v8660 = vpop.permute.xlu0 %8659
    %s8662 = sor.u32 256, 64
    %8663 = vbcast.lane.b32.xlu0 %v8629, %s8662
    %v8664 = vpop.permute.xlu0 %8663
    %s8666 = sor.u32 256, 72
    %8667 = vbcast.lane.b32.xlu0 %v8629, %s8666
    %v8668 = vpop.permute.xlu0 %8667
    %s8670 = sor.u32 256, 80
    %8671 = vbcast.lane.b32.xlu0 %v8629, %s8670
    %v8672 = vpop.permute.xlu0 %8671
    %s8674 = sor.u32 256, 88
    %8675 = vbcast.lane.b32.xlu0 %v8629, %s8674
    %v8676 = vpop.permute.xlu0 %8675
    %s8678 = sor.u32 256, 96
    %8679 = vbcast.lane.b32.xlu0 %v8629, %s8678
    %v8680 = vpop.permute.xlu0 %8679
    %s8682 = sor.u32 256, 104
    %8683 = vbcast.lane.b32.xlu0 %v8629, %s8682
    %v8684 = vpop.permute.xlu0 %8683
    %s8686 = sor.u32 256, 112
    %8687 = vbcast.lane.b32.xlu0 %v8629, %s8686
    %v8688 = vpop.permute.xlu0 %8687
    %s8690 = sor.u32 256, 120
    %8691 = vbcast.lane.b32.xlu0 %v8629, %s8690
    %v8692 = vpop.permute.xlu0 %8691
    %v8693 = vlaneseq
    %v8694 = vshrl.u32 %v8693, 7
    %v8695 = vsub.s32 1, %v8694
    %v8696 = vrot.slane %v8625, %v8695
    %8698 = vbcast.lane.b32.xlu0 %v8696, 256
    %v8699 = vpop.permute.xlu0 %8698
    %s8701 = sor.u32 256, 8
    %8702 = vbcast.lane.b32.xlu0 %v8696, %s8701
    %v8703 = vpop.permute.xlu0 %8702
    %s8705 = sor.u32 256, 16
    %8706 = vbcast.lane.b32.xlu0 %v8696, %s8705
    %v8707 = vpop.permute.xlu0 %8706
    %s8709 = sor.u32 256, 24
    %8710 = vbcast.lane.b32.xlu0 %v8696, %s8709
    %v8711 = vpop.permute.xlu0 %8710
    %s8713 = sor.u32 256, 32
    %8714 = vbcast.lane.b32.xlu0 %v8696, %s8713
    %v8715 = vpop.permute.xlu0 %8714
    %s8717 = sor.u32 256, 40
    %8718 = vbcast.lane.b32.xlu0 %v8696, %s8717
    %v8719 = vpop.permute.xlu0 %8718
    %s8721 = sor.u32 256, 48
    %8722 = vbcast.lane.b32.xlu0 %v8696, %s8721
    %v8723 = vpop.permute.xlu0 %8722
    %s8725 = sor.u32 256, 56
    %8726 = vbcast.lane.b32.xlu0 %v8696, %s8725
    %v8727 = vpop.permute.xlu0 %8726
    %s8729 = sor.u32 256, 64
    %8730 = vbcast.lane.b32.xlu0 %v8696, %s8729
    %v8731 = vpop.permute.xlu0 %8730
    %s8733 = sor.u32 256, 72
    %8734 = vbcast.lane.b32.xlu0 %v8696, %s8733
    %v8735 = vpop.permute.xlu0 %8734
    %s8737 = sor.u32 256, 80
    %8738 = vbcast.lane.b32.xlu0 %v8696, %s8737
    %v8739 = vpop.permute.xlu0 %8738
    %s8741 = sor.u32 256, 88
    %8742 = vbcast.lane.b32.xlu0 %v8696, %s8741
    %v8743 = vpop.permute.xlu0 %8742
    %s8745 = sor.u32 256, 96
    %8746 = vbcast.lane.b32.xlu0 %v8696, %s8745
    %v8747 = vpop.permute.xlu0 %8746
    %s8749 = sor.u32 256, 104
    %8750 = vbcast.lane.b32.xlu0 %v8696, %s8749
    %v8751 = vpop.permute.xlu0 %8750
    %s8753 = sor.u32 256, 112
    %8754 = vbcast.lane.b32.xlu0 %v8696, %s8753
    %v8755 = vpop.permute.xlu0 %8754
    %s8757 = sor.u32 256, 120
    %8758 = vbcast.lane.b32.xlu0 %v8696, %s8757
    %v8759 = vpop.permute.xlu0 %8758
    %v8760 = vlaneseq
    %v8761 = vshrl.u32 %v8760, 7
    %v8762 = vsub.s32 2, %v8761
    %v8763 = vrot.slane %v8625, %v8762
    %8765 = vbcast.lane.b32.xlu0 %v8763, 256
    %v8766 = vpop.permute.xlu0 %8765
    %s8768 = sor.u32 256, 8
    %8769 = vbcast.lane.b32.xlu0 %v8763, %s8768
    %v8770 = vpop.permute.xlu0 %8769
    %s8772 = sor.u32 256, 16
    %8773 = vbcast.lane.b32.xlu0 %v8763, %s8772
    %v8774 = vpop.permute.xlu0 %8773
    %s8776 = sor.u32 256, 24
    %8777 = vbcast.lane.b32.xlu0 %v8763, %s8776
    %v8778 = vpop.permute.xlu0 %8777
    %s8780 = sor.u32 256, 32
    %8781 = vbcast.lane.b32.xlu0 %v8763, %s8780
    %v8782 = vpop.permute.xlu0 %8781
    %s8784 = sor.u32 256, 40
    %8785 = vbcast.lane.b32.xlu0 %v8763, %s8784
    %v8786 = vpop.permute.xlu0 %8785
    %s8788 = sor.u32 256, 48
    %8789 = vbcast.lane.b32.xlu0 %v8763, %s8788
    %v8790 = vpop.permute.xlu0 %8789
    %s8792 = sor.u32 256, 56
    %8793 = vbcast.lane.b32.xlu0 %v8763, %s8792
    %v8794 = vpop.permute.xlu0 %8793
    %s8796 = sor.u32 256, 64
    %8797 = vbcast.lane.b32.xlu0 %v8763, %s8796
    %v8798 = vpop.permute.xlu0 %8797
    %s8800 = sor.u32 256, 72
    %8801 = vbcast.lane.b32.xlu0 %v8763, %s8800
    %v8802 = vpop.permute.xlu0 %8801
    %s8804 = sor.u32 256, 80
    %8805 = vbcast.lane.b32.xlu0 %v8763, %s8804
    %v8806 = vpop.permute.xlu0 %8805
    %s8808 = sor.u32 256, 88
    %8809 = vbcast.lane.b32.xlu0 %v8763, %s8808
    %v8810 = vpop.permute.xlu0 %8809
    %s8812 = sor.u32 256, 96
    %8813 = vbcast.lane.b32.xlu0 %v8763, %s8812
    %v8814 = vpop.permute.xlu0 %8813
    %s8816 = sor.u32 256, 104
    %8817 = vbcast.lane.b32.xlu0 %v8763, %s8816
    %v8818 = vpop.permute.xlu0 %8817
    %s8820 = sor.u32 256, 112
    %8821 = vbcast.lane.b32.xlu0 %v8763, %s8820
    %v8822 = vpop.permute.xlu0 %8821
    %s8824 = sor.u32 256, 120
    %8825 = vbcast.lane.b32.xlu0 %v8763, %s8824
    %v8826 = vpop.permute.xlu0 %8825
    %v8827 = vlaneseq
    %v8828 = vshrl.u32 %v8827, 7
    %v8829 = vsub.s32 3, %v8828
    %v8830 = vrot.slane %v8625, %v8829
    %8832 = vbcast.lane.b32.xlu0 %v8830, 256
    %v8833 = vpop.permute.xlu0 %8832
    %s8835 = sor.u32 256, 8
    %8836 = vbcast.lane.b32.xlu0 %v8830, %s8835
    %v8837 = vpop.permute.xlu0 %8836
    %s8839 = sor.u32 256, 16
    %8840 = vbcast.lane.b32.xlu0 %v8830, %s8839
    %v8841 = vpop.permute.xlu0 %8840
    %s8843 = sor.u32 256, 24
    %8844 = vbcast.lane.b32.xlu0 %v8830, %s8843
    %v8845 = vpop.permute.xlu0 %8844
    %s8847 = sor.u32 256, 32
    %8848 = vbcast.lane.b32.xlu0 %v8830, %s8847
    %v8849 = vpop.permute.xlu0 %8848
    %s8851 = sor.u32 256, 40
    %8852 = vbcast.lane.b32.xlu0 %v8830, %s8851
    %v8853 = vpop.permute.xlu0 %8852
    %s8855 = sor.u32 256, 48
    %8856 = vbcast.lane.b32.xlu0 %v8830, %s8855
    %v8857 = vpop.permute.xlu0 %8856
    %s8859 = sor.u32 256, 56
    %8860 = vbcast.lane.b32.xlu0 %v8830, %s8859
    %v8861 = vpop.permute.xlu0 %8860
    %s8863 = sor.u32 256, 64
    %8864 = vbcast.lane.b32.xlu0 %v8830, %s8863
    %v8865 = vpop.permute.xlu0 %8864
    %s8867 = sor.u32 256, 72
    %8868 = vbcast.lane.b32.xlu0 %v8830, %s8867
    %v8869 = vpop.permute.xlu0 %8868
    %s8871 = sor.u32 256, 80
    %8872 = vbcast.lane.b32.xlu0 %v8830, %s8871
    %v8873 = vpop.permute.xlu0 %8872
    %s8875 = sor.u32 256, 88
    %8876 = vbcast.lane.b32.xlu0 %v8830, %s8875
    %v8877 = vpop.permute.xlu0 %8876
    %s8879 = sor.u32 256, 96
    %8880 = vbcast.lane.b32.xlu0 %v8830, %s8879
    %v8881 = vpop.permute.xlu0 %8880
    %s8883 = sor.u32 256, 104
    %8884 = vbcast.lane.b32.xlu0 %v8830, %s8883
    %v8885 = vpop.permute.xlu0 %8884
    %s8887 = sor.u32 256, 112
    %8888 = vbcast.lane.b32.xlu0 %v8830, %s8887
    %v8889 = vpop.permute.xlu0 %8888
    %s8891 = sor.u32 256, 120
    %8892 = vbcast.lane.b32.xlu0 %v8830, %s8891
    %v8893 = vpop.permute.xlu0 %8892
    %v8894 = vlaneseq
    %v8895 = vshrl.u32 %v8894, 7
    %v8896 = vsub.s32 4, %v8895
    %v8897 = vrot.slane %v8625, %v8896
    %8899 = vbcast.lane.b32.xlu0 %v8897, 256
    %v8900 = vpop.permute.xlu0 %8899
    %s8902 = sor.u32 256, 8
    %8903 = vbcast.lane.b32.xlu0 %v8897, %s8902
    %v8904 = vpop.permute.xlu0 %8903
    %s8906 = sor.u32 256, 16
    %8907 = vbcast.lane.b32.xlu0 %v8897, %s8906
    %v8908 = vpop.permute.xlu0 %8907
    %s8910 = sor.u32 256, 24
    %8911 = vbcast.lane.b32.xlu0 %v8897, %s8910
    %v8912 = vpop.permute.xlu0 %8911
    %s8914 = sor.u32 256, 32
    %8915 = vbcast.lane.b32.xlu0 %v8897, %s8914
    %v8916 = vpop.permute.xlu0 %8915
    %s8918 = sor.u32 256, 40
    %8919 = vbcast.lane.b32.xlu0 %v8897, %s8918
    %v8920 = vpop.permute.xlu0 %8919
    %s8922 = sor.u32 256, 48
    %8923 = vbcast.lane.b32.xlu0 %v8897, %s8922
    %v8924 = vpop.permute.xlu0 %8923
    %s8926 = sor.u32 256, 56
    %8927 = vbcast.lane.b32.xlu0 %v8897, %s8926
    %v8928 = vpop.permute.xlu0 %8927
    %s8930 = sor.u32 256, 64
    %8931 = vbcast.lane.b32.xlu0 %v8897, %s8930
    %v8932 = vpop.permute.xlu0 %8931
    %s8934 = sor.u32 256, 72
    %8935 = vbcast.lane.b32.xlu0 %v8897, %s8934
    %v8936 = vpop.permute.xlu0 %8935
    %s8938 = sor.u32 256, 80
    %8939 = vbcast.lane.b32.xlu0 %v8897, %s8938
    %v8940 = vpop.permute.xlu0 %8939
    %s8942 = sor.u32 256, 88
    %8943 = vbcast.lane.b32.xlu0 %v8897, %s8942
    %v8944 = vpop.permute.xlu0 %8943
    %s8946 = sor.u32 256, 96
    %8947 = vbcast.lane.b32.xlu0 %v8897, %s8946
    %v8948 = vpop.permute.xlu0 %8947
    %s8950 = sor.u32 256, 104
    %8951 = vbcast.lane.b32.xlu0 %v8897, %s8950
    %v8952 = vpop.permute.xlu0 %8951
    %s8954 = sor.u32 256, 112
    %8955 = vbcast.lane.b32.xlu0 %v8897, %s8954
    %v8956 = vpop.permute.xlu0 %8955
    %s8958 = sor.u32 256, 120
    %8959 = vbcast.lane.b32.xlu0 %v8897, %s8958
    %v8960 = vpop.permute.xlu0 %8959
    %v8961 = vlaneseq
    %v8962 = vshrl.u32 %v8961, 7
    %v8963 = vsub.s32 5, %v8962
    %v8964 = vrot.slane %v8625, %v8963
    %8966 = vbcast.lane.b32.xlu0 %v8964, 256
    %v8967 = vpop.permute.xlu0 %8966
    %s8969 = sor.u32 256, 8
    %8970 = vbcast.lane.b32.xlu0 %v8964, %s8969
    %v8971 = vpop.permute.xlu0 %8970
    %s8973 = sor.u32 256, 16
    %8974 = vbcast.lane.b32.xlu0 %v8964, %s8973
    %v8975 = vpop.permute.xlu0 %8974
    %s8977 = sor.u32 256, 24
    %8978 = vbcast.lane.b32.xlu0 %v8964, %s8977
    %v8979 = vpop.permute.xlu0 %8978
    %s8981 = sor.u32 256, 32
    %8982 = vbcast.lane.b32.xlu0 %v8964, %s8981
    %v8983 = vpop.permute.xlu0 %8982
    %s8985 = sor.u32 256, 40
    %8986 = vbcast.lane.b32.xlu0 %v8964, %s8985
    %v8987 = vpop.permute.xlu0 %8986
    %s8989 = sor.u32 256, 48
    %8990 = vbcast.lane.b32.xlu0 %v8964, %s8989
    %v8991 = vpop.permute.xlu0 %8990
    %s8993 = sor.u32 256, 56
    %8994 = vbcast.lane.b32.xlu0 %v8964, %s8993
    %v8995 = vpop.permute.xlu0 %8994
    %s8997 = sor.u32 256, 64
    %8998 = vbcast.lane.b32.xlu0 %v8964, %s8997
    %v8999 = vpop.permute.xlu0 %8998
    %s9001 = sor.u32 256, 72
    %9002 = vbcast.lane.b32.xlu0 %v8964, %s9001
    %v9003 = vpop.permute.xlu0 %9002
    %s9005 = sor.u32 256, 80
    %9006 = vbcast.lane.b32.xlu0 %v8964, %s9005
    %v9007 = vpop.permute.xlu0 %9006
    %s9009 = sor.u32 256, 88
    %9010 = vbcast.lane.b32.xlu0 %v8964, %s9009
    %v9011 = vpop.permute.xlu0 %9010
    %s9013 = sor.u32 256, 96
    %9014 = vbcast.lane.b32.xlu0 %v8964, %s9013
    %v9015 = vpop.permute.xlu0 %9014
    %s9017 = sor.u32 256, 104
    %9018 = vbcast.lane.b32.xlu0 %v8964, %s9017
    %v9019 = vpop.permute.xlu0 %9018
    %s9021 = sor.u32 256, 112
    %9022 = vbcast.lane.b32.xlu0 %v8964, %s9021
    %v9023 = vpop.permute.xlu0 %9022
    %s9025 = sor.u32 256, 120
    %9026 = vbcast.lane.b32.xlu0 %v8964, %s9025
    %v9027 = vpop.permute.xlu0 %9026
    %v9028 = vlaneseq
    %v9029 = vshrl.u32 %v9028, 7
    %v9030 = vsub.s32 6, %v9029
    %v9031 = vrot.slane %v8625, %v9030
    %9033 = vbcast.lane.b32.xlu0 %v9031, 256
    %v9034 = vpop.permute.xlu0 %9033
    %s9036 = sor.u32 256, 8
    %9037 = vbcast.lane.b32.xlu0 %v9031, %s9036
    %v9038 = vpop.permute.xlu0 %9037
    %s9040 = sor.u32 256, 16
    %9041 = vbcast.lane.b32.xlu0 %v9031, %s9040
    %v9042 = vpop.permute.xlu0 %9041
    %s9044 = sor.u32 256, 24
    %9045 = vbcast.lane.b32.xlu0 %v9031, %s9044
    %v9046 = vpop.permute.xlu0 %9045
    %s9048 = sor.u32 256, 32
    %9049 = vbcast.lane.b32.xlu0 %v9031, %s9048
    %v9050 = vpop.permute.xlu0 %9049
    %s9052 = sor.u32 256, 40
    %9053 = vbcast.lane.b32.xlu0 %v9031, %s9052
    %v9054 = vpop.permute.xlu0 %9053
    %s9056 = sor.u32 256, 48
    %9057 = vbcast.lane.b32.xlu0 %v9031, %s9056
    %v9058 = vpop.permute.xlu0 %9057
    %s9060 = sor.u32 256, 56
    %9061 = vbcast.lane.b32.xlu0 %v9031, %s9060
    %v9062 = vpop.permute.xlu0 %9061
    %s9064 = sor.u32 256, 64
    %9065 = vbcast.lane.b32.xlu0 %v9031, %s9064
    %v9066 = vpop.permute.xlu0 %9065
    %s9068 = sor.u32 256, 72
    %9069 = vbcast.lane.b32.xlu0 %v9031, %s9068
    %v9070 = vpop.permute.xlu0 %9069
    %s9072 = sor.u32 256, 80
    %9073 = vbcast.lane.b32.xlu0 %v9031, %s9072
    %v9074 = vpop.permute.xlu0 %9073
    %s9076 = sor.u32 256, 88
    %9077 = vbcast.lane.b32.xlu0 %v9031, %s9076
    %v9078 = vpop.permute.xlu0 %9077
    %s9080 = sor.u32 256, 96
    %9081 = vbcast.lane.b32.xlu0 %v9031, %s9080
    %v9082 = vpop.permute.xlu0 %9081
    %s9084 = sor.u32 256, 104
    %9085 = vbcast.lane.b32.xlu0 %v9031, %s9084
    %v9086 = vpop.permute.xlu0 %9085
    %s9088 = sor.u32 256, 112
    %9089 = vbcast.lane.b32.xlu0 %v9031, %s9088
    %v9090 = vpop.permute.xlu0 %9089
    %s9092 = sor.u32 256, 120
    %9093 = vbcast.lane.b32.xlu0 %v9031, %s9092
    %v9094 = vpop.permute.xlu0 %9093
    %v9095 = vlaneseq
    %v9096 = vshrl.u32 %v9095, 7
    %v9097 = vsub.s32 7, %v9096
    %v9098 = vrot.slane %v8625, %v9097
    %9100 = vbcast.lane.b32.xlu0 %v9098, 256
    %v9101 = vpop.permute.xlu0 %9100
    %s9103 = sor.u32 256, 8
    %9104 = vbcast.lane.b32.xlu0 %v9098, %s9103
    %v9105 = vpop.permute.xlu0 %9104
    %s9107 = sor.u32 256, 16
    %9108 = vbcast.lane.b32.xlu0 %v9098, %s9107
    %v9109 = vpop.permute.xlu0 %9108
    %s9111 = sor.u32 256, 24
    %9112 = vbcast.lane.b32.xlu0 %v9098, %s9111
    %v9113 = vpop.permute.xlu0 %9112
    %s9115 = sor.u32 256, 32
    %9116 = vbcast.lane.b32.xlu0 %v9098, %s9115
    %v9117 = vpop.permute.xlu0 %9116
    %s9119 = sor.u32 256, 40
    %9120 = vbcast.lane.b32.xlu0 %v9098, %s9119
    %v9121 = vpop.permute.xlu0 %9120
    %s9123 = sor.u32 256, 48
    %9124 = vbcast.lane.b32.xlu0 %v9098, %s9123
    %v9125 = vpop.permute.xlu0 %9124
    %s9127 = sor.u32 256, 56
    %9128 = vbcast.lane.b32.xlu0 %v9098, %s9127
    %v9129 = vpop.permute.xlu0 %9128
    %s9131 = sor.u32 256, 64
    %9132 = vbcast.lane.b32.xlu0 %v9098, %s9131
    %v9133 = vpop.permute.xlu0 %9132
    %s9135 = sor.u32 256, 72
    %9136 = vbcast.lane.b32.xlu0 %v9098, %s9135
    %v9137 = vpop.permute.xlu0 %9136
    %s9139 = sor.u32 256, 80
    %9140 = vbcast.lane.b32.xlu0 %v9098, %s9139
    %v9141 = vpop.permute.xlu0 %9140
    %s9143 = sor.u32 256, 88
    %9144 = vbcast.lane.b32.xlu0 %v9098, %s9143
    %v9145 = vpop.permute.xlu0 %9144
    %s9147 = sor.u32 256, 96
    %9148 = vbcast.lane.b32.xlu0 %v9098, %s9147
    %v9149 = vpop.permute.xlu0 %9148
    %s9151 = sor.u32 256, 104
    %9152 = vbcast.lane.b32.xlu0 %v9098, %s9151
    %v9153 = vpop.permute.xlu0 %9152
    %s9155 = sor.u32 256, 112
    %9156 = vbcast.lane.b32.xlu0 %v9098, %s9155
    %v9157 = vpop.permute.xlu0 %9156
    %s9159 = sor.u32 256, 120
    %9160 = vbcast.lane.b32.xlu0 %v9098, %s9159
    %v9161 = vpop.permute.xlu0 %9160
    %v9162 = vmul.f32 %v8632, %v38
    %v9163 = vmul.f32 %v8636, %v39
    %v9164 = vmul.f32 %v8640, %v40
    %v9165 = vmul.f32 %v8644, %v41
    %v9166 = vmul.f32 %v8648, %v42
    %v9167 = vmul.f32 %v8652, %v43
    %v9168 = vmul.f32 %v8656, %v44
    %v9169 = vmul.f32 %v8660, %v45
    %v9170 = vmul.f32 %v8664, %v46
    %v9171 = vmul.f32 %v8668, %v47
    %v9172 = vmul.f32 %v8672, %v48
    %v9173 = vmul.f32 %v8676, %v49
    %v9174 = vmul.f32 %v8680, %v50
    %v9175 = vmul.f32 %v8684, %v51
    %v9176 = vmul.f32 %v8688, %v52
    %v9177 = vmul.f32 %v8692, %v53
    %v9178 = vmul.f32 %v8699, %v54
    %v9179 = vmul.f32 %v8703, %v55
    %v9180 = vmul.f32 %v8707, %v56
    %v9181 = vmul.f32 %v8711, %v57
    %v9182 = vmul.f32 %v8715, %v58
    %v9183 = vmul.f32 %v8719, %v59
    %v9184 = vmul.f32 %v8723, %v60
    %v9185 = vmul.f32 %v8727, %v61
    %v9186 = vmul.f32 %v8731, %v62
    %v9187 = vmul.f32 %v8735, %v63
    %v9188 = vmul.f32 %v8739, %v64
    %v9189 = vmul.f32 %v8743, %v65
    %v9190 = vmul.f32 %v8747, %v66
    %v9191 = vmul.f32 %v8751, %v67
    %v9192 = vmul.f32 %v8755, %v68
    %v9193 = vmul.f32 %v8759, %v69
    %v9194 = vmul.f32 %v8766, %v70
    %v9195 = vmul.f32 %v8770, %v71
    %v9196 = vmul.f32 %v8774, %v72
    %v9197 = vmul.f32 %v8778, %v73
    %v9198 = vmul.f32 %v8782, %v74
    %v9199 = vmul.f32 %v8786, %v75
    %v9200 = vmul.f32 %v8790, %v76
    %v9201 = vmul.f32 %v8794, %v77
    %v9202 = vmul.f32 %v8798, %v78
    %v9203 = vmul.f32 %v8802, %v79
    %v9204 = vmul.f32 %v8806, %v80
    %v9205 = vmul.f32 %v8810, %v81
    %v9206 = vmul.f32 %v8814, %v82
    %v9207 = vmul.f32 %v8818, %v83
    %v9208 = vmul.f32 %v8822, %v84
    %v9209 = vmul.f32 %v8826, %v85
    %v9210 = vmul.f32 %v8833, %v86
    %v9211 = vmul.f32 %v8837, %v87
    %v9212 = vmul.f32 %v8841, %v88
    %v9213 = vmul.f32 %v8845, %v89
    %v9214 = vmul.f32 %v8849, %v90
    %v9215 = vmul.f32 %v8853, %v91
    %v9216 = vmul.f32 %v8857, %v92
    %v9217 = vmul.f32 %v8861, %v93
    %v9218 = vmul.f32 %v8865, %v94
    %v9219 = vmul.f32 %v8869, %v95
    %v9220 = vmul.f32 %v8873, %v96
    %v9221 = vmul.f32 %v8877, %v97
    %v9222 = vmul.f32 %v8881, %v98
    %v9223 = vmul.f32 %v8885, %v99
    %v9224 = vmul.f32 %v8889, %v100
    %v9225 = vmul.f32 %v8893, %v101
    %v9226 = vmul.f32 %v8900, %v102
    %v9227 = vmul.f32 %v8904, %v103
    %v9228 = vmul.f32 %v8908, %v104
    %v9229 = vmul.f32 %v8912, %v105
    %v9230 = vmul.f32 %v8916, %v106
    %v9231 = vmul.f32 %v8920, %v107
    %v9232 = vmul.f32 %v8924, %v108
    %v9233 = vmul.f32 %v8928, %v109
    %v9234 = vmul.f32 %v8932, %v110
    %v9235 = vmul.f32 %v8936, %v111
    %v9236 = vmul.f32 %v8940, %v112
    %v9237 = vmul.f32 %v8944, %v113
    %v9238 = vmul.f32 %v8948, %v114
    %v9239 = vmul.f32 %v8952, %v115
    %v9240 = vmul.f32 %v8956, %v116
    %v9241 = vmul.f32 %v8960, %v117
    %v9242 = vmul.f32 %v8967, %v118
    %v9243 = vmul.f32 %v8971, %v119
    %v9244 = vmul.f32 %v8975, %v120
    %v9245 = vmul.f32 %v8979, %v121
    %v9246 = vmul.f32 %v8983, %v122
    %v9247 = vmul.f32 %v8987, %v123
    %v9248 = vmul.f32 %v8991, %v124
    %v9249 = vmul.f32 %v8995, %v125
    %v9250 = vmul.f32 %v8999, %v126
    %v9251 = vmul.f32 %v9003, %v127
    %v9252 = vmul.f32 %v9007, %v128
    %v9253 = vmul.f32 %v9011, %v129
    %v9254 = vmul.f32 %v9015, %v130
    %v9255 = vmul.f32 %v9019, %v131
    %v9256 = vmul.f32 %v9023, %v132
    %v9257 = vmul.f32 %v9027, %v133
    %v9258 = vmul.f32 %v9034, %v134
    %v9259 = vmul.f32 %v9038, %v135
    %v9260 = vmul.f32 %v9042, %v136
    %v9261 = vmul.f32 %v9046, %v137
    %v9262 = vmul.f32 %v9050, %v138
    %v9263 = vmul.f32 %v9054, %v139
    %v9264 = vmul.f32 %v9058, %v140
    %v9265 = vmul.f32 %v9062, %v141
    %v9266 = vmul.f32 %v9066, %v142
    %v9267 = vmul.f32 %v9070, %v143
    %v9268 = vmul.f32 %v9074, %v144
    %v9269 = vmul.f32 %v9078, %v145
    %v9270 = vmul.f32 %v9082, %v146
    %v9271 = vmul.f32 %v9086, %v147
    %v9272 = vmul.f32 %v9090, %v148
    %v9273 = vmul.f32 %v9094, %v149
    %v9274 = vmul.f32 %v9101, %v150
    %v9275 = vmul.f32 %v9105, %v151
    %v9276 = vmul.f32 %v9109, %v152
    %v9277 = vmul.f32 %v9113, %v153
    %v9278 = vmul.f32 %v9117, %v154
    %v9279 = vmul.f32 %v9121, %v155
    %v9280 = vmul.f32 %v9125, %v156
    %v9281 = vmul.f32 %v9129, %v157
    %v9282 = vmul.f32 %v9133, %v158
    %v9283 = vmul.f32 %v9137, %v159
    %v9284 = vmul.f32 %v9141, %v160
    %v9285 = vmul.f32 %v9145, %v161
    %v9286 = vmul.f32 %v9149, %v162
    %v9287 = vmul.f32 %v9153, %v163
    %v9288 = vmul.f32 %v9157, %v164
    %v9289 = vmul.f32 %v9161, %v165
    %v9290 = vadd.f32 %v9162, %v9163
    %v9291 = vadd.f32 %v9290, %v9164
    %v9292 = vadd.f32 %v9291, %v9165
    %v9293 = vadd.f32 %v9292, %v9166
    %v9294 = vadd.f32 %v9293, %v9167
    %v9295 = vadd.f32 %v9294, %v9168
    %v9296 = vadd.f32 %v9295, %v9169
    %v9297 = vadd.f32 %v9296, %v9170
    %v9298 = vadd.f32 %v9297, %v9171
    %v9299 = vadd.f32 %v9298, %v9172
    %v9300 = vadd.f32 %v9299, %v9173
    %v9301 = vadd.f32 %v9300, %v9174
    %v9302 = vadd.f32 %v9301, %v9175
    %v9303 = vadd.f32 %v9302, %v9176
    %v9304 = vadd.f32 %v9303, %v9177
    %v9305 = vrot.slane %v9304, 4
    %v9306 = vadd.f32 %v9304, %v9305
    %v9307 = vrot.slane %v9306, 2
    %v9308 = vadd.f32 %v9306, %v9307
    %v9309 = vrot.slane %v9308, 1
    %v9310 = vadd.f32 %v9308, %v9309
    %v9311 = vadd.f32 %v9178, %v9179
    %v9312 = vadd.f32 %v9311, %v9180
    %v9313 = vadd.f32 %v9312, %v9181
    %v9314 = vadd.f32 %v9313, %v9182
    %v9315 = vadd.f32 %v9314, %v9183
    %v9316 = vadd.f32 %v9315, %v9184
    %v9317 = vadd.f32 %v9316, %v9185
    %v9318 = vadd.f32 %v9317, %v9186
    %v9319 = vadd.f32 %v9318, %v9187
    %v9320 = vadd.f32 %v9319, %v9188
    %v9321 = vadd.f32 %v9320, %v9189
    %v9322 = vadd.f32 %v9321, %v9190
    %v9323 = vadd.f32 %v9322, %v9191
    %v9324 = vadd.f32 %v9323, %v9192
    %v9325 = vadd.f32 %v9324, %v9193
    %v9326 = vrot.slane %v9325, 4
    %v9327 = vadd.f32 %v9325, %v9326
    %v9328 = vrot.slane %v9327, 2
    %v9329 = vadd.f32 %v9327, %v9328
    %v9330 = vrot.slane %v9329, 1
    %v9331 = vadd.f32 %v9329, %v9330
    %v9332 = vadd.f32 %v9194, %v9195
    %v9333 = vadd.f32 %v9332, %v9196
    %v9334 = vadd.f32 %v9333, %v9197
    %v9335 = vadd.f32 %v9334, %v9198
    %v9336 = vadd.f32 %v9335, %v9199
    %v9337 = vadd.f32 %v9336, %v9200
    %v9338 = vadd.f32 %v9337, %v9201
    %v9339 = vadd.f32 %v9338, %v9202
    %v9340 = vadd.f32 %v9339, %v9203
    %v9341 = vadd.f32 %v9340, %v9204
    %v9342 = vadd.f32 %v9341, %v9205
    %v9343 = vadd.f32 %v9342, %v9206
    %v9344 = vadd.f32 %v9343, %v9207
    %v9345 = vadd.f32 %v9344, %v9208
    %v9346 = vadd.f32 %v9345, %v9209
    %v9347 = vrot.slane %v9346, 4
    %v9348 = vadd.f32 %v9346, %v9347
    %v9349 = vrot.slane %v9348, 2
    %v9350 = vadd.f32 %v9348, %v9349
    %v9351 = vrot.slane %v9350, 1
    %v9352 = vadd.f32 %v9350, %v9351
    %v9353 = vadd.f32 %v9210, %v9211
    %v9354 = vadd.f32 %v9353, %v9212
    %v9355 = vadd.f32 %v9354, %v9213
    %v9356 = vadd.f32 %v9355, %v9214
    %v9357 = vadd.f32 %v9356, %v9215
    %v9358 = vadd.f32 %v9357, %v9216
    %v9359 = vadd.f32 %v9358, %v9217
    %v9360 = vadd.f32 %v9359, %v9218
    %v9361 = vadd.f32 %v9360, %v9219
    %v9362 = vadd.f32 %v9361, %v9220
    %v9363 = vadd.f32 %v9362, %v9221
    %v9364 = vadd.f32 %v9363, %v9222
    %v9365 = vadd.f32 %v9364, %v9223
    %v9366 = vadd.f32 %v9365, %v9224
    %v9367 = vadd.f32 %v9366, %v9225
    %v9368 = vrot.slane %v9367, 4
    %v9369 = vadd.f32 %v9367, %v9368
    %v9370 = vrot.slane %v9369, 2
    %v9371 = vadd.f32 %v9369, %v9370
    %v9372 = vrot.slane %v9371, 1
    %v9373 = vadd.f32 %v9371, %v9372
    %v9374 = vadd.f32 %v9226, %v9227
    %v9375 = vadd.f32 %v9374, %v9228
    %v9376 = vadd.f32 %v9375, %v9229
    %v9377 = vadd.f32 %v9376, %v9230
    %v9378 = vadd.f32 %v9377, %v9231
    %v9379 = vadd.f32 %v9378, %v9232
    %v9380 = vadd.f32 %v9379, %v9233
    %v9381 = vadd.f32 %v9380, %v9234
    %v9382 = vadd.f32 %v9381, %v9235
    %v9383 = vadd.f32 %v9382, %v9236
    %v9384 = vadd.f32 %v9383, %v9237
    %v9385 = vadd.f32 %v9384, %v9238
    %v9386 = vadd.f32 %v9385, %v9239
    %v9387 = vadd.f32 %v9386, %v9240
    %v9388 = vadd.f32 %v9387, %v9241
    %v9389 = vrot.slane %v9388, 4
    %v9390 = vadd.f32 %v9388, %v9389
    %v9391 = vrot.slane %v9390, 2
    %v9392 = vadd.f32 %v9390, %v9391
    %v9393 = vrot.slane %v9392, 1
    %v9394 = vadd.f32 %v9392, %v9393
    %v9395 = vadd.f32 %v9242, %v9243
    %v9396 = vadd.f32 %v9395, %v9244
    %v9397 = vadd.f32 %v9396, %v9245
    %v9398 = vadd.f32 %v9397, %v9246
    %v9399 = vadd.f32 %v9398, %v9247
    %v9400 = vadd.f32 %v9399, %v9248
    %v9401 = vadd.f32 %v9400, %v9249
    %v9402 = vadd.f32 %v9401, %v9250
    %v9403 = vadd.f32 %v9402, %v9251
    %v9404 = vadd.f32 %v9403, %v9252
    %v9405 = vadd.f32 %v9404, %v9253
    %v9406 = vadd.f32 %v9405, %v9254
    %v9407 = vadd.f32 %v9406, %v9255
    %v9408 = vadd.f32 %v9407, %v9256
    %v9409 = vadd.f32 %v9408, %v9257
    %v9410 = vrot.slane %v9409, 4
    %v9411 = vadd.f32 %v9409, %v9410
    %v9412 = vrot.slane %v9411, 2
    %v9413 = vadd.f32 %v9411, %v9412
    %v9414 = vrot.slane %v9413, 1
    %v9415 = vadd.f32 %v9413, %v9414
    %v9416 = vadd.f32 %v9258, %v9259
    %v9417 = vadd.f32 %v9416, %v9260
    %v9418 = vadd.f32 %v9417, %v9261
    %v9419 = vadd.f32 %v9418, %v9262
    %v9420 = vadd.f32 %v9419, %v9263
    %v9421 = vadd.f32 %v9420, %v9264
    %v9422 = vadd.f32 %v9421, %v9265
    %v9423 = vadd.f32 %v9422, %v9266
    %v9424 = vadd.f32 %v9423, %v9267
    %v9425 = vadd.f32 %v9424, %v9268
    %v9426 = vadd.f32 %v9425, %v9269
    %v9427 = vadd.f32 %v9426, %v9270
    %v9428 = vadd.f32 %v9427, %v9271
    %v9429 = vadd.f32 %v9428, %v9272
    %v9430 = vadd.f32 %v9429, %v9273
    %v9431 = vrot.slane %v9430, 4
    %v9432 = vadd.f32 %v9430, %v9431
    %v9433 = vrot.slane %v9432, 2
    %v9434 = vadd.f32 %v9432, %v9433
    %v9435 = vrot.slane %v9434, 1
    %v9436 = vadd.f32 %v9434, %v9435
    %v9437 = vadd.f32 %v9274, %v9275
    %v9438 = vadd.f32 %v9437, %v9276
    %v9439 = vadd.f32 %v9438, %v9277
    %v9440 = vadd.f32 %v9439, %v9278
    %v9441 = vadd.f32 %v9440, %v9279
    %v9442 = vadd.f32 %v9441, %v9280
    %v9443 = vadd.f32 %v9442, %v9281
    %v9444 = vadd.f32 %v9443, %v9282
    %v9445 = vadd.f32 %v9444, %v9283
    %v9446 = vadd.f32 %v9445, %v9284
    %v9447 = vadd.f32 %v9446, %v9285
    %v9448 = vadd.f32 %v9447, %v9286
    %v9449 = vadd.f32 %v9448, %v9287
    %v9450 = vadd.f32 %v9449, %v9288
    %v9451 = vadd.f32 %v9450, %v9289
    %v9452 = vrot.slane %v9451, 4
    %v9453 = vadd.f32 %v9451, %v9452
    %v9454 = vrot.slane %v9453, 2
    %v9455 = vadd.f32 %v9453, %v9454
    %v9456 = vrot.slane %v9455, 1
    %v9457 = vadd.f32 %v9455, %v9456
    %v9466 = vsel %vm8601, %v9331, %v9310
    %v9467 = vsel %vm8603, %v9352, %v9466
    %v9468 = vsel %vm8605, %v9373, %v9467
    %v9469 = vsel %vm8607, %v9394, %v9468
    %v9470 = vsel %vm8609, %v9415, %v9469
    %v9471 = vsel %vm8611, %v9436, %v9470
    %v9472 = vsel %vm8613, %v9457, %v9471
    %9474 = vst [vmem:[#allocation5] sm:$0xff] %v9472
    %9475 = vst [vmem:[#allocation6] sm:$0xff] %v8614
    // Predicated region
    $region26: #{tpu_custom_call.1} parent=1 // pred_check
      _
    $region27: #{tpu_custom_call.1} parent=1 // pred_check_branch
      %9477 = sbr.rel (0) target = $region29
    $region28: #{tpu_custom_call.1} parent=1 // pred_region
      %s9479 = ssub.s32 128, 128
      %9480 = vsyncadd [#allocation4], %s9479
      %s9482 = sshll.u32 [#allocation5], 4
      %s9483 = int_to_ptr.vmem [resolvable:$true] %s9482
      %9485 = dma.vmem_to_hbm [thread:$0]  %s9483, 128, %s5, [#allocation4]
    $region29: #{tpu_custom_call.1} parent=1 // pred_fallthru
      _
    // Predicated region
    $region30: #{tpu_custom_call.1} parent=1 // pred_check
      _
    $region31: #{tpu_custom_call.1} parent=1 // pred_check_branch
      %9487 = sbr.rel (0) target = $region33
    $region32: #{tpu_custom_call.1} parent=1 // pred_region
      %s9489 = ssub.s32 128, 128
      %9490 = vsyncadd [#allocation7], %s9489
      %s9492 = sshll.u32 [#allocation6], 4
      %s9493 = int_to_ptr.vmem [resolvable:$true] %s9492
      %9495 = dma.vmem_to_hbm [thread:$0]  %s9493, 128, %s6, [#allocation7]
    $region33: #{tpu_custom_call.1} parent=1 // pred_fallthru
      _
    // Predicated region
    $region34: #{tpu_custom_call.1} parent=1 // pred_check
      _
    $region35: #{tpu_custom_call.1} parent=1 // pred_check_branch
      %9497 = sbr.rel (0) target = $region37
    $region36: #{tpu_custom_call.1} parent=1 // pred_region
      %9498 = dma.done [#allocation4], 128
    $region37: #{tpu_custom_call.1} parent=1 // pred_fallthru
      _
    // Predicated region
    $region38: #{tpu_custom_call.1} parent=1 // pred_check
      _
    $region39: #{tpu_custom_call.1} parent=1 // pred_check_branch
      %9500 = sbr.rel (0) target = $region41
    $region40: #{tpu_custom_call.1} parent=1 // pred_region
      %9501 = dma.done [#allocation7], 128
    $region41: #{tpu_custom_call.1} parent=1 // pred_fallthru
      _
    %9502 = vsyncpa [#allocation3], 1
    %9503 = vsyncpa [#allocation4], 1
    %9504 = vsyncpa [#allocation7], 1

</llo_original>
